<compile_context>
chip_gen: v6e
topology: v6e:2x2x1
jax: 0.10.0
libtpu: 0.0.40
codegen_flags: <defaults>
</compile_context>

<pallas_src>
import functools

import jax
import jax.numpy as jnp
from jax.experimental import pallas as pl
from jax.experimental.pallas import tpu as pltpu


# --------------------------- packed-parameter layout ---------------------------

def _vec_layout(C, Cm, F):
    """Row layout of the single packed (rows, 1) vector holding every bias/scale."""
    entries = (('n1_g', C), ('n1_b', C), ('sa_bqkv', 3 * C), ('sa_bo', C),
               ('n2_g', C), ('n2_b', C), ('nm_g', Cm), ('nm_b', Cm),
               ('ca_bq', C), ('ca_bkv', 2 * C), ('ca_bo', C),
               ('n3_g', C), ('n3_b', C), ('ffn_b1', F), ('ffn_b2', C))
    offs, o = {}, 0
    for name, rows in entries:
        offs[name] = (o, rows)
        o += rows
    return entries, offs, o


def prepare_params(params, nhead):
    """One-time weight transform: fold 1/sqrt(dh) into the Q projections and pack
    everything into 4 arrays (cuts 24 kernel inputs / warm-up DMAs down to 6)."""
    C = params['sa_wo'].shape[0]
    Cm = params['nm_g'].shape[0]
    F = params['ffn_w1'].shape[0]
    dh = C // nhead
    scale = 1.0 / float(dh) ** 0.5
    p = dict(params)
    p['sa_wqkv'] = jnp.concatenate([params['sa_wqkv'][:C] * scale, params['sa_wqkv'][C:]], 0)
    p['sa_bqkv'] = jnp.concatenate([params['sa_bqkv'][:C] * scale, params['sa_bqkv'][C:]], 0)
    p['ca_wq'] = params['ca_wq'] * scale
    p['ca_bq'] = params['ca_bq'] * scale
    # All weight matrices whose contraction dim is C, stacked on the row axis:
    # rows [0,3C) sa_wqkv | [3C,4C) sa_wo | [4C,5C) ca_wq | [5C,6C) ca_wo | [6C,6C+F) ffn_w1
    w_c = jnp.concatenate([p['sa_wqkv'], p['sa_wo'], p['ca_wq'], p['ca_wo'], p['ffn_w1']], 0)
    entries, _, _ = _vec_layout(C, Cm, F)
    vec = jnp.concatenate([p[name] for name, _ in entries], 0)          # (rows, 1)
    return dict(w_c=w_c, ca_wkv=p['ca_wkv'], ffn_w2=p['ffn_w2'], vec=vec)


# ----------------------------- in-kernel helpers ------------------------------

def _layernorm_cf(x, g, b, eps=1e-5):
    """LayerNorm over the channel axis of a channels-first (C, N) activation."""
    c = x.shape[0]
    mu = jnp.sum(x, axis=0, keepdims=True) * (1.0 / c)                 # (1, N)
    xc = x - mu
    var = jnp.sum(xc * xc, axis=0, keepdims=True) * (1.0 / c)          # (1, N)
    return xc * jax.lax.rsqrt(var + eps) * g + b                       # g, b: (rows, 1)


def _attention_cf(q, k, v, wo, bo, heads_ref, *, nhead, batch, approx_recip):
    """Multi-head attention on channels-first activations, batch fused on lanes.

    q: (C, B*L), k/v: (C, B*S) (q already carries the 1/sqrt(dh) scale), wo: (C, C),
    bo: (C, 1).  Per-batch score/AV matmuls; per-head AV outputs are written as
    8-lane strips into the (L, C) scratch so the output projection is ONE K=C MXU
    push per batch.  No transpose of the (L, S) probability matrix is ever taken.
    Returns (C, B*L) float32.
    """
    C = q.shape[0]
    L = q.shape[1] // batch
    S = k.shape[1] // batch
    dh = C // nhead
    outs = []
    # Static unroll over (batch, head); with B=2, nhead=4 live ranges stay small.
    # TODO(synk): switch to lax.fori_loop over heads if a bundle dump shows spills.
    for b in range(batch):
        qt = q[:, b * L:(b + 1) * L].T            # (L, C)  small XLU transpose
        kb = k[:, b * S:(b + 1) * S]              # (C, S)
        vt = v[:, b * S:(b + 1) * S].T            # (S, C)  small XLU transpose
        for h in range(nhead):
            lo, hi = h * dh, (h + 1) * dh
            s = jnp.dot(qt[:, lo:hi], kb[lo:hi, :],
                        preferred_element_type=jnp.float32)            # (L, S)
            s = s - jnp.max(s, axis=-1, keepdims=True)
            p = jnp.exp(s)
            den = jnp.sum(p, axis=-1, keepdims=True)
            if approx_recip:
                p = p * pl.reciprocal(den, approx=True)                # EUP slot
            else:
                p = p / den                                            # exact (default)
            heads_ref[:, lo:hi] = jnp.dot(p, vt[:, lo:hi],
                                          preferred_element_type=jnp.float32)  # (L, dh)
        heads_cf = heads_ref[...].T                                    # (C, L)
        outs.append(jnp.dot(wo, heads_cf, preferred_element_type=jnp.float32))
    return jnp.concatenate(outs, axis=-1) + bo                         # (C, B*L)


# --------------------------- fused decoder-layer kernel ------------------------

def decoder_layer_kernel(x_ref, mem_ref, wc_ref, wkv_ref, w2_ref, vec_ref,
                         out_ref, heads_ref, *, nhead, batch, voffs, approx_recip):
    C = x_ref.shape[0]
    F = w2_ref.shape[1]
    x = x_ref[...]                    # (C, B*L)  channels-first, batch fused on lanes
    mem = mem_ref[...]                # (Cm, B*S)
    wc = wc_ref[...]                  # (6C + F, C) packed inner-dim-C weights
    vec = vec_ref[...]                # (rows, 1)  packed biases / LN params

    def gv(name):
        o, r = voffs[name]
        return vec[o:o + r]           # (r, 1), static slice

    sa_wqkv = wc[0:3 * C]
    sa_wo = wc[3 * C:4 * C]
    ca_wq = wc[4 * C:5 * C]
    ca_wo = wc[5 * C:6 * C]
    ffn_w1 = wc[6 * C:6 * C + F]

    attn = functools.partial(_attention_cf, heads_ref=heads_ref, nhead=nhead,
                             batch=batch, approx_recip=approx_recip)

    # --- tgt = norm1(tgt); tgt = tgt + self_attn(tgt, tgt, tgt) ---
    x = _layernorm_cf(x, gv('n1_g'), gv('n1_b'))
    qkv = jnp.dot(sa_wqkv, x, preferred_element_type=jnp.float32) + gv('sa_bqkv')
    x = x + attn(qkv[0:C], qkv[C:2 * C], qkv[2 * C:3 * C], sa_wo, gv('sa_bo'))

    # --- tgt = norm2(tgt); memory = norm_mem(memory); cross-attention ---
    x = _layernorm_cf(x, gv('n2_g'), gv('n2_b'))
    m = _layernorm_cf(mem, gv('nm_g'), gv('nm_b'))
    qc = jnp.dot(ca_wq, x, preferred_element_type=jnp.float32) + gv('ca_bq')
    kv = jnp.dot(wkv_ref[...], m, preferred_element_type=jnp.float32) + gv('ca_bkv')
    x = x + attn(qc, kv[0:C], kv[C:2 * C], ca_wo, gv('ca_bo'))

    # --- tgt = norm3(tgt); tgt = tgt + linear2(relu(linear1(tgt))) ---
    x = _layernorm_cf(x, gv('n3_g'), gv('n3_b'))
    h = jnp.maximum(jnp.dot(ffn_w1, x, preferred_element_type=jnp.float32) + gv('ffn_b1'), 0.0)
    x = x + jnp.dot(w2_ref[...], h, preferred_element_type=jnp.float32) + gv('ffn_b2')

    out_ref[...] = x


# --------------------------------- glue / wrappers -----------------------------

def decoder_layer_forward_cf(x_cf, mem_cf, packed, *, nhead, batch, approx_recip=False):
    """Hot-path entry point: channels-first activations with the batch fused on lanes.
    x_cf: (C, B*L), mem_cf: (Cm, B*S).  Returns (C, B*L) float32."""
    C, NB = x_cf.shape
    Cm, _ = mem_cf.shape
    L = NB // batch
    F = packed['ffn_w2'].shape[1]
    _, voffs, _ = _vec_layout(C, Cm, F)
    kernel = functools.partial(decoder_layer_kernel, nhead=nhead, batch=batch,
                               voffs=voffs, approx_recip=approx_recip)
    # Single fused invocation: all operands (< 1 MiB total) sit in VMEM, no grid.
    return pl.pallas_call(
        kernel,
        out_shape=jax.ShapeDtypeStruct((C, NB), jnp.float32),
        scratch_shapes=[pltpu.VMEM((L, C), jnp.float32)],
    )(x_cf, mem_cf, packed['w_c'], packed['ca_wkv'], packed['ffn_w2'], packed['vec'])


def decoder_layer_forward(tgt, memory, packed, *, nhead, approx_recip=False):
    """Module-compatible wrapper: tgt (L, B, C), memory (S, B, Cm) -> (L, B, C).
    The permutes here are thin XLA glue; hot paths should call
    decoder_layer_forward_cf with channels-first activations directly."""
    L, B, C = tgt.shape
    S, _, Cm = memory.shape
    x_cf = jnp.transpose(tgt, (2, 1, 0)).reshape(C, B * L)
    mem_cf = jnp.transpose(memory, (2, 1, 0)).reshape(Cm, B * S)
    out_cf = decoder_layer_forward_cf(x_cf, mem_cf, packed, nhead=nhead, batch=B,
                                      approx_recip=approx_recip)
    return jnp.transpose(out_cf.reshape(C, B, L), (2, 1, 0))


# --------------------------- deterministic parameters --------------------------

def init_params(key, d_model, nc_mem, dim_feedforward):
    C, Cm, F = d_model, nc_mem, dim_feedforward
    ks = jax.random.split(key, 7)

    def xavier(k, shape):                          # shape = (out, in)
        lim = (6.0 / (shape[0] + shape[1])) ** 0.5
        return jax.random.uniform(k, shape, jnp.float32, -lim, lim)

    z = lambda s: jnp.zeros(s, jnp.float32)
    o = lambda s: jnp.ones(s, jnp.float32)

    return dict(
        n1_g=o((C, 1)), n1_b=z((C, 1)),
        sa_wqkv=xavier(ks[0], (3 * C, C)), sa_bqkv=z((3 * C, 1)),
        sa_wo=xavier(ks[1], (C, C)), sa_bo=z((C, 1)),
        n2_g=o((C, 1)), n2_b=z((C, 1)),
        nm_g=o((Cm, 1)), nm_b=z((Cm, 1)),
        ca_wq=xavier(ks[2], (C, C)), ca_bq=z((C, 1)),
        ca_wkv=xavier(ks[3], (2 * C, Cm)), ca_bkv=z((2 * C, 1)),
        ca_wo=xavier(ks[4], (C, C)), ca_bo=z((C, 1)),
        n3_g=o((C, 1)), n3_b=z((C, 1)),
        ffn_w1=xavier(ks[5], (F, C)), ffn_b1=z((F, 1)),
        ffn_w2=xavier(ks[6], (C, F)), ffn_b2=z((C, 1)),
    )


# -------------------- plain-JAX reference (for validation only) ----------------

def _reference_forward(tgt, memory, params, nhead):
    p = params

    def ln(x, g, b, eps=1e-5):
        mu = jnp.mean(x, axis=-1, keepdims=True)
        var = jnp.mean((x - mu) ** 2, axis=-1, keepdims=True)
        return (x - mu) * jax.lax.rsqrt(var + eps) * g[:, 0] + b[:, 0]

    def mha(q_in, kv_in, wq, bq, wk, bk, wv, bv, wo, bo):
        B, L, C = q_in.shape
        dh = C // nhead
        q = q_in @ wq.T + bq[:, 0]
        k = kv_in @ wk.T + bk[:, 0]
        v = kv_in @ wv.T + bv[:, 0]
        split = lambda t: t.reshape(B, t.shape[1], nhead, dh).transpose(0, 2, 1, 3)
        q, k, v = split(q), split(k), split(v)
        s = (q @ jnp.swapaxes(k, -1, -2)) / jnp.sqrt(jnp.float32(dh))
        out = jax.nn.softmax(s, axis=-1) @ v
        out = out.transpose(0, 2, 1, 3).reshape(B, L, C)
        return out @ wo.T + bo[:, 0]

    x = jnp.transpose(tgt, (1, 0, 2))       # (B, L, C)
    m = jnp.transpose(memory, (1, 0, 2))    # (B, S, Cm)

    x = ln(x, p['n1_g'], p['n1_b'])
    wq, wk, wv = jnp.split(p['sa_wqkv'], 3, axis=0)
    bq, bk, bv = jnp.split(p['sa_bqkv'], 3, axis=0)
    x = x + mha(x, x, wq, bq, wk, bk, wv, bv, p['sa_wo'], p['sa_bo'])
    x = ln(x, p['n2_g'], p['n2_b'])
    m = ln(m, p['nm_g'], p['nm_b'])
    wkc, wvc = jnp.split(p['ca_wkv'], 2, axis=0)
    bkc, bvc = jnp.split(p['ca_bkv'], 2, axis=0)
    x = x + mha(x, m, p['ca_wq'], p['ca_bq'], wkc, bkc, wvc, bvc, p['ca_wo'], p['ca_bo'])
    x = ln(x, p['n3_g'], p['n3_b'])
    h = jax.nn.relu(x @ p['ffn_w1'].T + p['ffn_b1'][:, 0])
    x = x + (h @ p['ffn_w2'].T + p['ffn_b2'][:, 0])
    return jnp.transpose(x, (1, 0, 2))      # (L, B, C)


# -------------------------------------- main ----------------------------------

if __name__ == "__main__":
    B, L, S = 2, 128, 256          # batch, tgt length, memory length
    D_MODEL, NC_MEM, NHEAD, DFF = 32, 32, 4, 64

    key = jax.random.PRNGKey(0)
    k_t, k_m, k_p = jax.random.split(key, 3)
    tgt = jax.random.normal(k_t, (L, B, D_MODEL), jnp.float32)
    memory = jax.random.normal(k_m, (S, B, NC_MEM), jnp.float32)
    params = init_params(k_p, D_MODEL, NC_MEM, DFF)
    packed = prepare_params(params, NHEAD)      # one-time scale fold + packing

    fwd = jax.jit(functools.partial(decoder_layer_forward, nhead=NHEAD))
    out = jax.block_until_ready(fwd(tgt, memory, packed))

    assert out.shape == (L, B, D_MODEL) and out.dtype == jnp.float32
    assert bool(jnp.all(jnp.isfinite(out)))

    # Tight check vs an f32 plain-JAX reference (exact softmax reciprocal, all-f32
    # MXU operands in the kernel, highest-precision matmuls in the reference).
    with jax.default_matmul_precision("float32"):
        ref = _reference_forward(tgt, memory, params, NHEAD)
    err = float(jnp.max(jnp.abs(out - ref)))
    assert err < 5e-3, f"max abs err {err}"

    print("KERNEL_OK")
</pallas_src>

<mosaic_0001>
module attributes {stable_mosaic.version = 11 : i64} {
  func.func @decoder_layer_kernel(%arg0: memref<32x256xf32, #tpu.memory_space<vmem>>, %arg1: memref<32x512xf32, #tpu.memory_space<vmem>>, %arg2: memref<256x32xf32, #tpu.memory_space<vmem>>, %arg3: memref<64x32xf32, #tpu.memory_space<vmem>>, %arg4: memref<32x64xf32, #tpu.memory_space<vmem>>, %arg5: memref<608x1xf32, #tpu.memory_space<vmem>>, %arg6: memref<32x256xf32, #tpu.memory_space<vmem>>, %arg7: memref<128x32xf32, #tpu.memory_space<vmem>>) attributes {dimension_semantics = [], scalar_prefetch = 0 : i64, scratch_operands = 1 : i64, tpu.core_type = #tpu.core_type<tc>} {
    %c0 = arith.constant 0 : index
    %c0_0 = arith.constant 0 : index
    %0 = vector.load %arg0[%c0, %c0_0] : memref<32x256xf32, #tpu.memory_space<vmem>>, vector<32x256xf32>
    %c0_1 = arith.constant 0 : index
    %c0_2 = arith.constant 0 : index
    %1 = vector.load %arg1[%c0_1, %c0_2] : memref<32x512xf32, #tpu.memory_space<vmem>>, vector<32x512xf32>
    %c0_3 = arith.constant 0 : index
    %c0_4 = arith.constant 0 : index
    %2 = vector.load %arg2[%c0_3, %c0_4] : memref<256x32xf32, #tpu.memory_space<vmem>>, vector<256x32xf32>
    %c0_5 = arith.constant 0 : index
    %c0_6 = arith.constant 0 : index
    %3 = vector.load %arg5[%c0_5, %c0_6] : memref<608x1xf32, #tpu.memory_space<vmem>>, vector<608x1xf32>
    %4 = vector.extract_strided_slice %2 {offsets = [0, 0], sizes = [96, 32], strides = [1, 1]} : vector<256x32xf32> to vector<96x32xf32>
    %5 = vector.extract_strided_slice %2 {offsets = [96, 0], sizes = [32, 32], strides = [1, 1]} : vector<256x32xf32> to vector<32x32xf32>
    %6 = vector.extract_strided_slice %2 {offsets = [128, 0], sizes = [32, 32], strides = [1, 1]} : vector<256x32xf32> to vector<32x32xf32>
    %7 = vector.extract_strided_slice %2 {offsets = [160, 0], sizes = [32, 32], strides = [1, 1]} : vector<256x32xf32> to vector<32x32xf32>
    %8 = vector.extract_strided_slice %2 {offsets = [192, 0], sizes = [64, 32], strides = [1, 1]} : vector<256x32xf32> to vector<64x32xf32>
    %9 = vector.extract_strided_slice %3 {offsets = [0, 0], sizes = [32, 1], strides = [1, 1]} : vector<608x1xf32> to vector<32x1xf32>
    %10 = vector.extract_strided_slice %3 {offsets = [32, 0], sizes = [32, 1], strides = [1, 1]} : vector<608x1xf32> to vector<32x1xf32>
    %cst = arith.constant dense<0.000000e+00> : vector<256xf32>
    %11 = vector.multi_reduction <add>, %0, %cst [0] : vector<32x256xf32> to vector<256xf32>
    %12 = vector.shape_cast %11 : vector<256xf32> to vector<1x256xf32>
    %cst_7 = arith.constant 3.125000e-02 : f32
    %13 = vector.broadcast %cst_7 : f32 to vector<1x256xf32>
    %14 = arith.mulf %12, %13 : vector<1x256xf32>
    %15 = vector.broadcast %14 : vector<1x256xf32> to vector<32x256xf32>
    %16 = arith.subf %0, %15 : vector<32x256xf32>
    %17 = arith.mulf %16, %16 : vector<32x256xf32>
    %cst_8 = arith.constant dense<0.000000e+00> : vector<256xf32>
    %18 = vector.multi_reduction <add>, %17, %cst_8 [0] : vector<32x256xf32> to vector<256xf32>
    %19 = vector.shape_cast %18 : vector<256xf32> to vector<1x256xf32>
    %cst_9 = arith.constant 3.125000e-02 : f32
    %20 = vector.broadcast %cst_9 : f32 to vector<1x256xf32>
    %21 = arith.mulf %19, %20 : vector<1x256xf32>
    %cst_10 = arith.constant 9.99999974E-6 : f32
    %22 = vector.broadcast %cst_10 : f32 to vector<1x256xf32>
    %23 = arith.addf %21, %22 : vector<1x256xf32>
    %24 = math.rsqrt %23 : vector<1x256xf32>
    %25 = vector.broadcast %24 : vector<1x256xf32> to vector<32x256xf32>
    %26 = arith.mulf %16, %25 : vector<32x256xf32>
    %27 = vector.broadcast %9 : vector<32x1xf32> to vector<32x256xf32>
    %28 = arith.mulf %26, %27 : vector<32x256xf32>
    %29 = vector.broadcast %10 : vector<32x1xf32> to vector<32x256xf32>
    %30 = arith.addf %28, %29 : vector<32x256xf32>
    %cst_11 = arith.constant dense<0.000000e+00> : vector<96x256xf32>
    %31 = tpu.matmul %4, %30, %cst_11 {dimension_numbers = #tpu.dot_dimension_numbers<[1], [0], [0], [1], [0, 0, 1, 1], [], []>} : vector<96x32xf32>, vector<32x256xf32>, vector<96x256xf32> -> vector<96x256xf32>
    %32 = vector.extract_strided_slice %3 {offsets = [64, 0], sizes = [96, 1], strides = [1, 1]} : vector<608x1xf32> to vector<96x1xf32>
    %33 = vector.broadcast %32 : vector<96x1xf32> to vector<96x256xf32>
    %34 = arith.addf %31, %33 : vector<96x256xf32>
    %35 = vector.extract_strided_slice %34 {offsets = [0, 0], sizes = [32, 256], strides = [1, 1]} : vector<96x256xf32> to vector<32x256xf32>
    %36 = vector.extract_strided_slice %34 {offsets = [32, 0], sizes = [32, 256], strides = [1, 1]} : vector<96x256xf32> to vector<32x256xf32>
    %37 = vector.extract_strided_slice %34 {offsets = [64, 0], sizes = [32, 256], strides = [1, 1]} : vector<96x256xf32> to vector<32x256xf32>
    %38 = vector.extract_strided_slice %3 {offsets = [160, 0], sizes = [32, 1], strides = [1, 1]} : vector<608x1xf32> to vector<32x1xf32>
    %39 = vector.extract_strided_slice %35 {offsets = [0, 0], sizes = [32, 128], strides = [1, 1]} : vector<32x256xf32> to vector<32x128xf32>
    %40 = tpu.transpose %39, [1, 0] : vector<32x128xf32> -> vector<128x32xf32>
    %41 = vector.extract_strided_slice %36 {offsets = [0, 0], sizes = [32, 128], strides = [1, 1]} : vector<32x256xf32> to vector<32x128xf32>
    %42 = vector.extract_strided_slice %37 {offsets = [0, 0], sizes = [32, 128], strides = [1, 1]} : vector<32x256xf32> to vector<32x128xf32>
    %43 = tpu.transpose %42, [1, 0] : vector<32x128xf32> -> vector<128x32xf32>
    %44 = vector.extract_strided_slice %40 {offsets = [0, 0], sizes = [128, 8], strides = [1, 1]} : vector<128x32xf32> to vector<128x8xf32>
    %45 = vector.extract_strided_slice %41 {offsets = [0, 0], sizes = [8, 128], strides = [1, 1]} : vector<32x128xf32> to vector<8x128xf32>
    %cst_12 = arith.constant dense<0.000000e+00> : vector<128x128xf32>
    %46 = tpu.matmul %44, %45, %cst_12 {dimension_numbers = #tpu.dot_dimension_numbers<[1], [0], [0], [1], [0, 0, 1, 1], [], []>} : vector<128x8xf32>, vector<8x128xf32>, vector<128x128xf32> -> vector<128x128xf32>
    %cst_13 = arith.constant dense<0xFF800000> : vector<128xf32>
    %47 = vector.multi_reduction <maximumf>, %46, %cst_13 [1] : vector<128x128xf32> to vector<128xf32>
    %48 = vector.shape_cast %47 : vector<128xf32> to vector<128x1xf32>
    %49 = vector.broadcast %48 : vector<128x1xf32> to vector<128x128xf32>
    %50 = arith.subf %46, %49 : vector<128x128xf32>
    %51 = math.exp %50 : vector<128x128xf32>
    %cst_14 = arith.constant dense<0.000000e+00> : vector<128xf32>
    %52 = vector.multi_reduction <add>, %51, %cst_14 [1] : vector<128x128xf32> to vector<128xf32>
    %53 = vector.shape_cast %52 : vector<128xf32> to vector<128x1xf32>
    %54 = vector.broadcast %53 : vector<128x1xf32> to vector<128x128xf32>
    %55 = arith.divf %51, %54 : vector<128x128xf32>
    %56 = vector.extract_strided_slice %43 {offsets = [0, 0], sizes = [128, 8], strides = [1, 1]} : vector<128x32xf32> to vector<128x8xf32>
    %cst_15 = arith.constant dense<0.000000e+00> : vector<128x8xf32>
    %57 = tpu.matmul %55, %56, %cst_15 {dimension_numbers = #tpu.dot_dimension_numbers<[1], [0], [0], [1], [0, 0, 1, 1], [], []>} : vector<128x128xf32>, vector<128x8xf32>, vector<128x8xf32> -> vector<128x8xf32>
    %c0_16 = arith.constant 0 : index
    %c0_17 = arith.constant 0 : index
    %58 = vector.load %arg7[%c0_16, %c0_17] : memref<128x32xf32, #tpu.memory_space<vmem>>, vector<128x8xf32>
    tpu.vector_store %arg7[%c0_16, %c0_17], %57 {strides = array<i32>} : memref<128x32xf32, #tpu.memory_space<vmem>>, vector<128x8xf32>,
    %59 = vector.extract_strided_slice %40 {offsets = [0, 8], sizes = [128, 8], strides = [1, 1]} : vector<128x32xf32> to vector<128x8xf32>
    %60 = vector.extract_strided_slice %41 {offsets = [8, 0], sizes = [8, 128], strides = [1, 1]} : vector<32x128xf32> to vector<8x128xf32>
    %cst_18 = arith.constant dense<0.000000e+00> : vector<128x128xf32>
    %61 = tpu.matmul %59, %60, %cst_18 {dimension_numbers = #tpu.dot_dimension_numbers<[1], [0], [0], [1], [0, 0, 1, 1], [], []>} : vector<128x8xf32>, vector<8x128xf32>, vector<128x128xf32> -> vector<128x128xf32>
    %cst_19 = arith.constant dense<0xFF800000> : vector<128xf32>
    %62 = vector.multi_reduction <maximumf>, %61, %cst_19 [1] : vector<128x128xf32> to vector<128xf32>
    %63 = vector.shape_cast %62 : vector<128xf32> to vector<128x1xf32>
    %64 = vector.broadcast %63 : vector<128x1xf32> to vector<128x128xf32>
    %65 = arith.subf %61, %64 : vector<128x128xf32>
    %66 = math.exp %65 : vector<128x128xf32>
    %cst_20 = arith.constant dense<0.000000e+00> : vector<128xf32>
    %67 = vector.multi_reduction <add>, %66, %cst_20 [1] : vector<128x128xf32> to vector<128xf32>
    %68 = vector.shape_cast %67 : vector<128xf32> to vector<128x1xf32>
    %69 = vector.broadcast %68 : vector<128x1xf32> to vector<128x128xf32>
    %70 = arith.divf %66, %69 : vector<128x128xf32>
    %71 = vector.extract_strided_slice %43 {offsets = [0, 8], sizes = [128, 8], strides = [1, 1]} : vector<128x32xf32> to vector<128x8xf32>
    %cst_21 = arith.constant dense<0.000000e+00> : vector<128x8xf32>
    %72 = tpu.matmul %70, %71, %cst_21 {dimension_numbers = #tpu.dot_dimension_numbers<[1], [0], [0], [1], [0, 0, 1, 1], [], []>} : vector<128x128xf32>, vector<128x8xf32>, vector<128x8xf32> -> vector<128x8xf32>
    %c0_22 = arith.constant 0 : index
    %c8 = arith.constant 8 : index
    %73 = vector.load %arg7[%c0_22, %c8] : memref<128x32xf32, #tpu.memory_space<vmem>>, vector<128x8xf32>
    tpu.vector_store %arg7[%c0_22, %c8], %72 {strides = array<i32>} : memref<128x32xf32, #tpu.memory_space<vmem>>, vector<128x8xf32>,
    %74 = vector.extract_strided_slice %40 {offsets = [0, 16], sizes = [128, 8], strides = [1, 1]} : vector<128x32xf32> to vector<128x8xf32>
    %75 = vector.extract_strided_slice %41 {offsets = [16, 0], sizes = [8, 128], strides = [1, 1]} : vector<32x128xf32> to vector<8x128xf32>
    %cst_23 = arith.constant dense<0.000000e+00> : vector<128x128xf32>
    %76 = tpu.matmul %74, %75, %cst_23 {dimension_numbers = #tpu.dot_dimension_numbers<[1], [0], [0], [1], [0, 0, 1, 1], [], []>} : vector<128x8xf32>, vector<8x128xf32>, vector<128x128xf32> -> vector<128x128xf32>
    %cst_24 = arith.constant dense<0xFF800000> : vector<128xf32>
    %77 = vector.multi_reduction <maximumf>, %76, %cst_24 [1] : vector<128x128xf32> to vector<128xf32>
    %78 = vector.shape_cast %77 : vector<128xf32> to vector<128x1xf32>
    %79 = vector.broadcast %78 : vector<128x1xf32> to vector<128x128xf32>
    %80 = arith.subf %76, %79 : vector<128x128xf32>
    %81 = math.exp %80 : vector<128x128xf32>
    %cst_25 = arith.constant dense<0.000000e+00> : vector<128xf32>
    %82 = vector.multi_reduction <add>, %81, %cst_25 [1] : vector<128x128xf32> to vector<128xf32>
    %83 = vector.shape_cast %82 : vector<128xf32> to vector<128x1xf32>
    %84 = vector.broadcast %83 : vector<128x1xf32> to vector<128x128xf32>
    %85 = arith.divf %81, %84 : vector<128x128xf32>
    %86 = vector.extract_strided_slice %43 {offsets = [0, 16], sizes = [128, 8], strides = [1, 1]} : vector<128x32xf32> to vector<128x8xf32>
    %cst_26 = arith.constant dense<0.000000e+00> : vector<128x8xf32>
    %87 = tpu.matmul %85, %86, %cst_26 {dimension_numbers = #tpu.dot_dimension_numbers<[1], [0], [0], [1], [0, 0, 1, 1], [], []>} : vector<128x128xf32>, vector<128x8xf32>, vector<128x8xf32> -> vector<128x8xf32>
    %c0_27 = arith.constant 0 : index
    %c16 = arith.constant 16 : index
    %88 = vector.load %arg7[%c0_27, %c16] : memref<128x32xf32, #tpu.memory_space<vmem>>, vector<128x8xf32>
    tpu.vector_store %arg7[%c0_27, %c16], %87 {strides = array<i32>} : memref<128x32xf32, #tpu.memory_space<vmem>>, vector<128x8xf32>,
    %89 = vector.extract_strided_slice %40 {offsets = [0, 24], sizes = [128, 8], strides = [1, 1]} : vector<128x32xf32> to vector<128x8xf32>
    %90 = vector.extract_strided_slice %41 {offsets = [24, 0], sizes = [8, 128], strides = [1, 1]} : vector<32x128xf32> to vector<8x128xf32>
    %cst_28 = arith.constant dense<0.000000e+00> : vector<128x128xf32>
    %91 = tpu.matmul %89, %90, %cst_28 {dimension_numbers = #tpu.dot_dimension_numbers<[1], [0], [0], [1], [0, 0, 1, 1], [], []>} : vector<128x8xf32>, vector<8x128xf32>, vector<128x128xf32> -> vector<128x128xf32>
    %cst_29 = arith.constant dense<0xFF800000> : vector<128xf32>
    %92 = vector.multi_reduction <maximumf>, %91, %cst_29 [1] : vector<128x128xf32> to vector<128xf32>
    %93 = vector.shape_cast %92 : vector<128xf32> to vector<128x1xf32>
    %94 = vector.broadcast %93 : vector<128x1xf32> to vector<128x128xf32>
    %95 = arith.subf %91, %94 : vector<128x128xf32>
    %96 = math.exp %95 : vector<128x128xf32>
    %cst_30 = arith.constant dense<0.000000e+00> : vector<128xf32>
    %97 = vector.multi_reduction <add>, %96, %cst_30 [1] : vector<128x128xf32> to vector<128xf32>
    %98 = vector.shape_cast %97 : vector<128xf32> to vector<128x1xf32>
    %99 = vector.broadcast %98 : vector<128x1xf32> to vector<128x128xf32>
    %100 = arith.divf %96, %99 : vector<128x128xf32>
    %101 = vector.extract_strided_slice %43 {offsets = [0, 24], sizes = [128, 8], strides = [1, 1]} : vector<128x32xf32> to vector<128x8xf32>
    %cst_31 = arith.constant dense<0.000000e+00> : vector<128x8xf32>
    %102 = tpu.matmul %100, %101, %cst_31 {dimension_numbers = #tpu.dot_dimension_numbers<[1], [0], [0], [1], [0, 0, 1, 1], [], []>} : vector<128x128xf32>, vector<128x8xf32>, vector<128x8xf32> -> vector<128x8xf32>
    %c0_32 = arith.constant 0 : index
    %c24 = arith.constant 24 : index
    %103 = vector.load %arg7[%c0_32, %c24] : memref<128x32xf32, #tpu.memory_space<vmem>>, vector<128x8xf32>
    tpu.vector_store %arg7[%c0_32, %c24], %102 {strides = array<i32>} : memref<128x32xf32, #tpu.memory_space<vmem>>, vector<128x8xf32>,
    %c0_33 = arith.constant 0 : index
    %c0_34 = arith.constant 0 : index
    %104 = vector.load %arg7[%c0_33, %c0_34] : memref<128x32xf32, #tpu.memory_space<vmem>>, vector<128x32xf32>
    %105 = tpu.transpose %104, [1, 0] : vector<128x32xf32> -> vector<32x128xf32>
    %cst_35 = arith.constant dense<0.000000e+00> : vector<32x128xf32>
    %106 = tpu.matmul %5, %105, %cst_35 {dimension_numbers = #tpu.dot_dimension_numbers<[1], [0], [0], [1], [0, 0, 1, 1], [], []>} : vector<32x32xf32>, vector<32x128xf32>, vector<32x128xf32> -> vector<32x128xf32>
    %107 = vector.extract_strided_slice %35 {offsets = [0, 128], sizes = [32, 128], strides = [1, 1]} : vector<32x256xf32> to vector<32x128xf32>
    %108 = tpu.transpose %107, [1, 0] : vector<32x128xf32> -> vector<128x32xf32>
    %109 = vector.extract_strided_slice %36 {offsets = [0, 128], sizes = [32, 128], strides = [1, 1]} : vector<32x256xf32> to vector<32x128xf32>
    %110 = vector.extract_strided_slice %37 {offsets = [0, 128], sizes = [32, 128], strides = [1, 1]} : vector<32x256xf32> to vector<32x128xf32>
    %111 = tpu.transpose %110, [1, 0] : vector<32x128xf32> -> vector<128x32xf32>
    %112 = vector.extract_strided_slice %108 {offsets = [0, 0], sizes = [128, 8], strides = [1, 1]} : vector<128x32xf32> to vector<128x8xf32>
    %113 = vector.extract_strided_slice %109 {offsets = [0, 0], sizes = [8, 128], strides = [1, 1]} : vector<32x128xf32> to vector<8x128xf32>
    %cst_36 = arith.constant dense<0.000000e+00> : vector<128x128xf32>
    %114 = tpu.matmul %112, %113, %cst_36 {dimension_numbers = #tpu.dot_dimension_numbers<[1], [0], [0], [1], [0, 0, 1, 1], [], []>} : vector<128x8xf32>, vector<8x128xf32>, vector<128x128xf32> -> vector<128x128xf32>
    %cst_37 = arith.constant dense<0xFF800000> : vector<128xf32>
    %115 = vector.multi_reduction <maximumf>, %114, %cst_37 [1] : vector<128x128xf32> to vector<128xf32>
    %116 = vector.shape_cast %115 : vector<128xf32> to vector<128x1xf32>
    %117 = vector.broadcast %116 : vector<128x1xf32> to vector<128x128xf32>
    %118 = arith.subf %114, %117 : vector<128x128xf32>
    %119 = math.exp %118 : vector<128x128xf32>
    %cst_38 = arith.constant dense<0.000000e+00> : vector<128xf32>
    %120 = vector.multi_reduction <add>, %119, %cst_38 [1] : vector<128x128xf32> to vector<128xf32>
    %121 = vector.shape_cast %120 : vector<128xf32> to vector<128x1xf32>
    %122 = vector.broadcast %121 : vector<128x1xf32> to vector<128x128xf32>
    %123 = arith.divf %119, %122 : vector<128x128xf32>
    %124 = vector.extract_strided_slice %111 {offsets = [0, 0], sizes = [128, 8], strides = [1, 1]} : vector<128x32xf32> to vector<128x8xf32>
    %cst_39 = arith.constant dense<0.000000e+00> : vector<128x8xf32>
    %125 = tpu.matmul %123, %124, %cst_39 {dimension_numbers = #tpu.dot_dimension_numbers<[1], [0], [0], [1], [0, 0, 1, 1], [], []>} : vector<128x128xf32>, vector<128x8xf32>, vector<128x8xf32> -> vector<128x8xf32>
    %c0_40 = arith.constant 0 : index
    %c0_41 = arith.constant 0 : index
    %126 = vector.load %arg7[%c0_40, %c0_41] : memref<128x32xf32, #tpu.memory_space<vmem>>, vector<128x8xf32>
    tpu.vector_store %arg7[%c0_40, %c0_41], %125 {strides = array<i32>} : memref<128x32xf32, #tpu.memory_space<vmem>>, vector<128x8xf32>,
    %127 = vector.extract_strided_slice %108 {offsets = [0, 8], sizes = [128, 8], strides = [1, 1]} : vector<128x32xf32> to vector<128x8xf32>
    %128 = vector.extract_strided_slice %109 {offsets = [8, 0], sizes = [8, 128], strides = [1, 1]} : vector<32x128xf32> to vector<8x128xf32>
    %cst_42 = arith.constant dense<0.000000e+00> : vector<128x128xf32>
    %129 = tpu.matmul %127, %128, %cst_42 {dimension_numbers = #tpu.dot_dimension_numbers<[1], [0], [0], [1], [0, 0, 1, 1], [], []>} : vector<128x8xf32>, vector<8x128xf32>, vector<128x128xf32> -> vector<128x128xf32>
    %cst_43 = arith.constant dense<0xFF800000> : vector<128xf32>
    %130 = vector.multi_reduction <maximumf>, %129, %cst_43 [1] : vector<128x128xf32> to vector<128xf32>
    %131 = vector.shape_cast %130 : vector<128xf32> to vector<128x1xf32>
    %132 = vector.broadcast %131 : vector<128x1xf32> to vector<128x128xf32>
    %133 = arith.subf %129, %132 : vector<128x128xf32>
    %134 = math.exp %133 : vector<128x128xf32>
    %cst_44 = arith.constant dense<0.000000e+00> : vector<128xf32>
    %135 = vector.multi_reduction <add>, %134, %cst_44 [1] : vector<128x128xf32> to vector<128xf32>
    %136 = vector.shape_cast %135 : vector<128xf32> to vector<128x1xf32>
    %137 = vector.broadcast %136 : vector<128x1xf32> to vector<128x128xf32>
    %138 = arith.divf %134, %137 : vector<128x128xf32>
    %139 = vector.extract_strided_slice %111 {offsets = [0, 8], sizes = [128, 8], strides = [1, 1]} : vector<128x32xf32> to vector<128x8xf32>
    %cst_45 = arith.constant dense<0.000000e+00> : vector<128x8xf32>
    %140 = tpu.matmul %138, %139, %cst_45 {dimension_numbers = #tpu.dot_dimension_numbers<[1], [0], [0], [1], [0, 0, 1, 1], [], []>} : vector<128x128xf32>, vector<128x8xf32>, vector<128x8xf32> -> vector<128x8xf32>
    %c0_46 = arith.constant 0 : index
    %c8_47 = arith.constant 8 : index
    %141 = vector.load %arg7[%c0_46, %c8_47] : memref<128x32xf32, #tpu.memory_space<vmem>>, vector<128x8xf32>
    tpu.vector_store %arg7[%c0_46, %c8_47], %140 {strides = array<i32>} : memref<128x32xf32, #tpu.memory_space<vmem>>, vector<128x8xf32>,
    %142 = vector.extract_strided_slice %108 {offsets = [0, 16], sizes = [128, 8], strides = [1, 1]} : vector<128x32xf32> to vector<128x8xf32>
    %143 = vector.extract_strided_slice %109 {offsets = [16, 0], sizes = [8, 128], strides = [1, 1]} : vector<32x128xf32> to vector<8x128xf32>
    %cst_48 = arith.constant dense<0.000000e+00> : vector<128x128xf32>
    %144 = tpu.matmul %142, %143, %cst_48 {dimension_numbers = #tpu.dot_dimension_numbers<[1], [0], [0], [1], [0, 0, 1, 1], [], []>} : vector<128x8xf32>, vector<8x128xf32>, vector<128x128xf32> -> vector<128x128xf32>
    %cst_49 = arith.constant dense<0xFF800000> : vector<128xf32>
    %145 = vector.multi_reduction <maximumf>, %144, %cst_49 [1] : vector<128x128xf32> to vector<128xf32>
    %146 = vector.shape_cast %145 : vector<128xf32> to vector<128x1xf32>
    %147 = vector.broadcast %146 : vector<128x1xf32> to vector<128x128xf32>
    %148 = arith.subf %144, %147 : vector<128x128xf32>
    %149 = math.exp %148 : vector<128x128xf32>
    %cst_50 = arith.constant dense<0.000000e+00> : vector<128xf32>
    %150 = vector.multi_reduction <add>, %149, %cst_50 [1] : vector<128x128xf32> to vector<128xf32>
    %151 = vector.shape_cast %150 : vector<128xf32> to vector<128x1xf32>
    %152 = vector.broadcast %151 : vector<128x1xf32> to vector<128x128xf32>
    %153 = arith.divf %149, %152 : vector<128x128xf32>
    %154 = vector.extract_strided_slice %111 {offsets = [0, 16], sizes = [128, 8], strides = [1, 1]} : vector<128x32xf32> to vector<128x8xf32>
    %cst_51 = arith.constant dense<0.000000e+00> : vector<128x8xf32>
    %155 = tpu.matmul %153, %154, %cst_51 {dimension_numbers = #tpu.dot_dimension_numbers<[1], [0], [0], [1], [0, 0, 1, 1], [], []>} : vector<128x128xf32>, vector<128x8xf32>, vector<128x8xf32> -> vector<128x8xf32>
    %c0_52 = arith.constant 0 : index
    %c16_53 = arith.constant 16 : index
    %156 = vector.load %arg7[%c0_52, %c16_53] : memref<128x32xf32, #tpu.memory_space<vmem>>, vector<128x8xf32>
    tpu.vector_store %arg7[%c0_52, %c16_53], %155 {strides = array<i32>} : memref<128x32xf32, #tpu.memory_space<vmem>>, vector<128x8xf32>,
    %157 = vector.extract_strided_slice %108 {offsets = [0, 24], sizes = [128, 8], strides = [1, 1]} : vector<128x32xf32> to vector<128x8xf32>
    %158 = vector.extract_strided_slice %109 {offsets = [24, 0], sizes = [8, 128], strides = [1, 1]} : vector<32x128xf32> to vector<8x128xf32>
    %cst_54 = arith.constant dense<0.000000e+00> : vector<128x128xf32>
    %159 = tpu.matmul %157, %158, %cst_54 {dimension_numbers = #tpu.dot_dimension_numbers<[1], [0], [0], [1], [0, 0, 1, 1], [], []>} : vector<128x8xf32>, vector<8x128xf32>, vector<128x128xf32> -> vector<128x128xf32>
    %cst_55 = arith.constant dense<0xFF800000> : vector<128xf32>
    %160 = vector.multi_reduction <maximumf>, %159, %cst_55 [1] : vector<128x128xf32> to vector<128xf32>
    %161 = vector.shape_cast %160 : vector<128xf32> to vector<128x1xf32>
    %162 = vector.broadcast %161 : vector<128x1xf32> to vector<128x128xf32>
    %163 = arith.subf %159, %162 : vector<128x128xf32>
    %164 = math.exp %163 : vector<128x128xf32>
    %cst_56 = arith.constant dense<0.000000e+00> : vector<128xf32>
    %165 = vector.multi_reduction <add>, %164, %cst_56 [1] : vector<128x128xf32> to vector<128xf32>
    %166 = vector.shape_cast %165 : vector<128xf32> to vector<128x1xf32>
    %167 = vector.broadcast %166 : vector<128x1xf32> to vector<128x128xf32>
    %168 = arith.divf %164, %167 : vector<128x128xf32>
    %169 = vector.extract_strided_slice %111 {offsets = [0, 24], sizes = [128, 8], strides = [1, 1]} : vector<128x32xf32> to vector<128x8xf32>
    %cst_57 = arith.constant dense<0.000000e+00> : vector<128x8xf32>
    %170 = tpu.matmul %168, %169, %cst_57 {dimension_numbers = #tpu.dot_dimension_numbers<[1], [0], [0], [1], [0, 0, 1, 1], [], []>} : vector<128x128xf32>, vector<128x8xf32>, vector<128x8xf32> -> vector<128x8xf32>
    %c0_58 = arith.constant 0 : index
    %c24_59 = arith.constant 24 : index
    %171 = vector.load %arg7[%c0_58, %c24_59] : memref<128x32xf32, #tpu.memory_space<vmem>>, vector<128x8xf32>
    tpu.vector_store %arg7[%c0_58, %c24_59], %170 {strides = array<i32>} : memref<128x32xf32, #tpu.memory_space<vmem>>, vector<128x8xf32>,
    %c0_60 = arith.constant 0 : index
    %c0_61 = arith.constant 0 : index
    %172 = vector.load %arg7[%c0_60, %c0_61] : memref<128x32xf32, #tpu.memory_space<vmem>>, vector<128x32xf32>
    %173 = tpu.transpose %172, [1, 0] : vector<128x32xf32> -> vector<32x128xf32>
    %cst_62 = arith.constant dense<0.000000e+00> : vector<32x128xf32>
    %174 = tpu.matmul %5, %173, %cst_62 {dimension_numbers = #tpu.dot_dimension_numbers<[1], [0], [0], [1], [0, 0, 1, 1], [], []>} : vector<32x32xf32>, vector<32x128xf32>, vector<32x128xf32> -> vector<32x128xf32>
    %175 = tpu.concatenate %106, %174 in 1 : vector<32x128xf32>, vector<32x128xf32> -> vector<32x256xf32>
    %176 = vector.broadcast %38 : vector<32x1xf32> to vector<32x256xf32>
    %177 = arith.addf %175, %176 : vector<32x256xf32>
    %178 = arith.addf %30, %177 : vector<32x256xf32>
    %179 = vector.extract_strided_slice %3 {offsets = [192, 0], sizes = [32, 1], strides = [1, 1]} : vector<608x1xf32> to vector<32x1xf32>
    %180 = vector.extract_strided_slice %3 {offsets = [224, 0], sizes = [32, 1], strides = [1, 1]} : vector<608x1xf32> to vector<32x1xf32>
    %cst_63 = arith.constant dense<0.000000e+00> : vector<256xf32>
    %181 = vector.multi_reduction <add>, %178, %cst_63 [0] : vector<32x256xf32> to vector<256xf32>
    %182 = vector.shape_cast %181 : vector<256xf32> to vector<1x256xf32>
    %cst_64 = arith.constant 3.125000e-02 : f32
    %183 = vector.broadcast %cst_64 : f32 to vector<1x256xf32>
    %184 = arith.mulf %182, %183 : vector<1x256xf32>
    %185 = vector.broadcast %184 : vector<1x256xf32> to vector<32x256xf32>
    %186 = arith.subf %178, %185 : vector<32x256xf32>
    %187 = arith.mulf %186, %186 : vector<32x256xf32>
    %cst_65 = arith.constant dense<0.000000e+00> : vector<256xf32>
    %188 = vector.multi_reduction <add>, %187, %cst_65 [0] : vector<32x256xf32> to vector<256xf32>
    %189 = vector.shape_cast %188 : vector<256xf32> to vector<1x256xf32>
    %cst_66 = arith.constant 3.125000e-02 : f32
    %190 = vector.broadcast %cst_66 : f32 to vector<1x256xf32>
    %191 = arith.mulf %189, %190 : vector<1x256xf32>
    %cst_67 = arith.constant 9.99999974E-6 : f32
    %192 = vector.broadcast %cst_67 : f32 to vector<1x256xf32>
    %193 = arith.addf %191, %192 : vector<1x256xf32>
    %194 = math.rsqrt %193 : vector<1x256xf32>
    %195 = vector.broadcast %194 : vector<1x256xf32> to vector<32x256xf32>
    %196 = arith.mulf %186, %195 : vector<32x256xf32>
    %197 = vector.broadcast %179 : vector<32x1xf32> to vector<32x256xf32>
    %198 = arith.mulf %196, %197 : vector<32x256xf32>
    %199 = vector.broadcast %180 : vector<32x1xf32> to vector<32x256xf32>
    %200 = arith.addf %198, %199 : vector<32x256xf32>
    %201 = vector.extract_strided_slice %3 {offsets = [256, 0], sizes = [32, 1], strides = [1, 1]} : vector<608x1xf32> to vector<32x1xf32>
    %202 = vector.extract_strided_slice %3 {offsets = [288, 0], sizes = [32, 1], strides = [1, 1]} : vector<608x1xf32> to vector<32x1xf32>
    %cst_68 = arith.constant dense<0.000000e+00> : vector<512xf32>
    %203 = vector.multi_reduction <add>, %1, %cst_68 [0] : vector<32x512xf32> to vector<512xf32>
    %204 = vector.shape_cast %203 : vector<512xf32> to vector<1x512xf32>
    %cst_69 = arith.constant 3.125000e-02 : f32
    %205 = vector.broadcast %cst_69 : f32 to vector<1x512xf32>
    %206 = arith.mulf %204, %205 : vector<1x512xf32>
    %207 = vector.broadcast %206 : vector<1x512xf32> to vector<32x512xf32>
    %208 = arith.subf %1, %207 : vector<32x512xf32>
    %209 = arith.mulf %208, %208 : vector<32x512xf32>
    %cst_70 = arith.constant dense<0.000000e+00> : vector<512xf32>
    %210 = vector.multi_reduction <add>, %209, %cst_70 [0] : vector<32x512xf32> to vector<512xf32>
    %211 = vector.shape_cast %210 : vector<512xf32> to vector<1x512xf32>
    %cst_71 = arith.constant 3.125000e-02 : f32
    %212 = vector.broadcast %cst_71 : f32 to vector<1x512xf32>
    %213 = arith.mulf %211, %212 : vector<1x512xf32>
    %cst_72 = arith.constant 9.99999974E-6 : f32
    %214 = vector.broadcast %cst_72 : f32 to vector<1x512xf32>
    %215 = arith.addf %213, %214 : vector<1x512xf32>
    %216 = math.rsqrt %215 : vector<1x512xf32>
    %217 = vector.broadcast %216 : vector<1x512xf32> to vector<32x512xf32>
    %218 = arith.mulf %208, %217 : vector<32x512xf32>
    %219 = vector.broadcast %201 : vector<32x1xf32> to vector<32x512xf32>
    %220 = arith.mulf %218, %219 : vector<32x512xf32>
    %221 = vector.broadcast %202 : vector<32x1xf32> to vector<32x512xf32>
    %222 = arith.addf %220, %221 : vector<32x512xf32>
    %cst_73 = arith.constant dense<0.000000e+00> : vector<32x256xf32>
    %223 = tpu.matmul %6, %200, %cst_73 {dimension_numbers = #tpu.dot_dimension_numbers<[1], [0], [0], [1], [0, 0, 1, 1], [], []>} : vector<32x32xf32>, vector<32x256xf32>, vector<32x256xf32> -> vector<32x256xf32>
    %224 = vector.extract_strided_slice %3 {offsets = [320, 0], sizes = [32, 1], strides = [1, 1]} : vector<608x1xf32> to vector<32x1xf32>
    %225 = vector.broadcast %224 : vector<32x1xf32> to vector<32x256xf32>
    %226 = arith.addf %223, %225 : vector<32x256xf32>
    %c0_74 = arith.constant 0 : index
    %c0_75 = arith.constant 0 : index
    %227 = vector.load %arg3[%c0_74, %c0_75] : memref<64x32xf32, #tpu.memory_space<vmem>>, vector<64x32xf32>
    %cst_76 = arith.constant dense<0.000000e+00> : vector<64x512xf32>
    %228 = tpu.matmul %227, %222, %cst_76 {dimension_numbers = #tpu.dot_dimension_numbers<[1], [0], [0], [1], [0, 0, 1, 1], [], []>} : vector<64x32xf32>, vector<32x512xf32>, vector<64x512xf32> -> vector<64x512xf32>
    %229 = vector.extract_strided_slice %3 {offsets = [352, 0], sizes = [64, 1], strides = [1, 1]} : vector<608x1xf32> to vector<64x1xf32>
    %230 = vector.broadcast %229 : vector<64x1xf32> to vector<64x512xf32>
    %231 = arith.addf %228, %230 : vector<64x512xf32>
    %232 = vector.extract_strided_slice %231 {offsets = [0, 0], sizes = [32, 512], strides = [1, 1]} : vector<64x512xf32> to vector<32x512xf32>
    %233 = vector.extract_strided_slice %231 {offsets = [32, 0], sizes = [32, 512], strides = [1, 1]} : vector<64x512xf32> to vector<32x512xf32>
    %234 = vector.extract_strided_slice %3 {offsets = [416, 0], sizes = [32, 1], strides = [1, 1]} : vector<608x1xf32> to vector<32x1xf32>
    %235 = vector.extract_strided_slice %226 {offsets = [0, 0], sizes = [32, 128], strides = [1, 1]} : vector<32x256xf32> to vector<32x128xf32>
    %236 = tpu.transpose %235, [1, 0] : vector<32x128xf32> -> vector<128x32xf32>
    %237 = vector.extract_strided_slice %232 {offsets = [0, 0], sizes = [32, 256], strides = [1, 1]} : vector<32x512xf32> to vector<32x256xf32>
    %238 = vector.extract_strided_slice %233 {offsets = [0, 0], sizes = [32, 256], strides = [1, 1]} : vector<32x512xf32> to vector<32x256xf32>
    %239 = tpu.transpose %238, [1, 0] : vector<32x256xf32> -> vector<256x32xf32>
    %240 = vector.extract_strided_slice %236 {offsets = [0, 0], sizes = [128, 8], strides = [1, 1]} : vector<128x32xf32> to vector<128x8xf32>
    %241 = vector.extract_strided_slice %237 {offsets = [0, 0], sizes = [8, 256], strides = [1, 1]} : vector<32x256xf32> to vector<8x256xf32>
    %cst_77 = arith.constant dense<0.000000e+00> : vector<128x256xf32>
    %242 = tpu.matmul %240, %241, %cst_77 {dimension_numbers = #tpu.dot_dimension_numbers<[1], [0], [0], [1], [0, 0, 1, 1], [], []>} : vector<128x8xf32>, vector<8x256xf32>, vector<128x256xf32> -> vector<128x256xf32>
    %cst_78 = arith.constant dense<0xFF800000> : vector<128xf32>
    %243 = vector.multi_reduction <maximumf>, %242, %cst_78 [1] : vector<128x256xf32> to vector<128xf32>
    %244 = vector.shape_cast %243 : vector<128xf32> to vector<128x1xf32>
    %245 = vector.broadcast %244 : vector<128x1xf32> to vector<128x256xf32>
    %246 = arith.subf %242, %245 : vector<128x256xf32>
    %247 = math.exp %246 : vector<128x256xf32>
    %cst_79 = arith.constant dense<0.000000e+00> : vector<128xf32>
    %248 = vector.multi_reduction <add>, %247, %cst_79 [1] : vector<128x256xf32> to vector<128xf32>
    %249 = vector.shape_cast %248 : vector<128xf32> to vector<128x1xf32>
    %250 = vector.broadcast %249 : vector<128x1xf32> to vector<128x256xf32>
    %251 = arith.divf %247, %250 : vector<128x256xf32>
    %252 = vector.extract_strided_slice %239 {offsets = [0, 0], sizes = [256, 8], strides = [1, 1]} : vector<256x32xf32> to vector<256x8xf32>
    %cst_80 = arith.constant dense<0.000000e+00> : vector<128x8xf32>
    %253 = tpu.matmul %251, %252, %cst_80 {dimension_numbers = #tpu.dot_dimension_numbers<[1], [0], [0], [1], [0, 0, 1, 1], [], []>} : vector<128x256xf32>, vector<256x8xf32>, vector<128x8xf32> -> vector<128x8xf32>
    %c0_81 = arith.constant 0 : index
    %c0_82 = arith.constant 0 : index
    %254 = vector.load %arg7[%c0_81, %c0_82] : memref<128x32xf32, #tpu.memory_space<vmem>>, vector<128x8xf32>
    tpu.vector_store %arg7[%c0_81, %c0_82], %253 {strides = array<i32>} : memref<128x32xf32, #tpu.memory_space<vmem>>, vector<128x8xf32>,
    %255 = vector.extract_strided_slice %236 {offsets = [0, 8], sizes = [128, 8], strides = [1, 1]} : vector<128x32xf32> to vector<128x8xf32>
    %256 = vector.extract_strided_slice %237 {offsets = [8, 0], sizes = [8, 256], strides = [1, 1]} : vector<32x256xf32> to vector<8x256xf32>
    %cst_83 = arith.constant dense<0.000000e+00> : vector<128x256xf32>
    %257 = tpu.matmul %255, %256, %cst_83 {dimension_numbers = #tpu.dot_dimension_numbers<[1], [0], [0], [1], [0, 0, 1, 1], [], []>} : vector<128x8xf32>, vector<8x256xf32>, vector<128x256xf32> -> vector<128x256xf32>
    %cst_84 = arith.constant dense<0xFF800000> : vector<128xf32>
    %258 = vector.multi_reduction <maximumf>, %257, %cst_84 [1] : vector<128x256xf32> to vector<128xf32>
    %259 = vector.shape_cast %258 : vector<128xf32> to vector<128x1xf32>
    %260 = vector.broadcast %259 : vector<128x1xf32> to vector<128x256xf32>
    %261 = arith.subf %257, %260 : vector<128x256xf32>
    %262 = math.exp %261 : vector<128x256xf32>
    %cst_85 = arith.constant dense<0.000000e+00> : vector<128xf32>
    %263 = vector.multi_reduction <add>, %262, %cst_85 [1] : vector<128x256xf32> to vector<128xf32>
    %264 = vector.shape_cast %263 : vector<128xf32> to vector<128x1xf32>
    %265 = vector.broadcast %264 : vector<128x1xf32> to vector<128x256xf32>
    %266 = arith.divf %262, %265 : vector<128x256xf32>
    %267 = vector.extract_strided_slice %239 {offsets = [0, 8], sizes = [256, 8], strides = [1, 1]} : vector<256x32xf32> to vector<256x8xf32>
    %cst_86 = arith.constant dense<0.000000e+00> : vector<128x8xf32>
    %268 = tpu.matmul %266, %267, %cst_86 {dimension_numbers = #tpu.dot_dimension_numbers<[1], [0], [0], [1], [0, 0, 1, 1], [], []>} : vector<128x256xf32>, vector<256x8xf32>, vector<128x8xf32> -> vector<128x8xf32>
    %c0_87 = arith.constant 0 : index
    %c8_88 = arith.constant 8 : index
    %269 = vector.load %arg7[%c0_87, %c8_88] : memref<128x32xf32, #tpu.memory_space<vmem>>, vector<128x8xf32>
    tpu.vector_store %arg7[%c0_87, %c8_88], %268 {strides = array<i32>} : memref<128x32xf32, #tpu.memory_space<vmem>>, vector<128x8xf32>,
    %270 = vector.extract_strided_slice %236 {offsets = [0, 16], sizes = [128, 8], strides = [1, 1]} : vector<128x32xf32> to vector<128x8xf32>
    %271 = vector.extract_strided_slice %237 {offsets = [16, 0], sizes = [8, 256], strides = [1, 1]} : vector<32x256xf32> to vector<8x256xf32>
    %cst_89 = arith.constant dense<0.000000e+00> : vector<128x256xf32>
    %272 = tpu.matmul %270, %271, %cst_89 {dimension_numbers = #tpu.dot_dimension_numbers<[1], [0], [0], [1], [0, 0, 1, 1], [], []>} : vector<128x8xf32>, vector<8x256xf32>, vector<128x256xf32> -> vector<128x256xf32>
    %cst_90 = arith.constant dense<0xFF800000> : vector<128xf32>
    %273 = vector.multi_reduction <maximumf>, %272, %cst_90 [1] : vector<128x256xf32> to vector<128xf32>
    %274 = vector.shape_cast %273 : vector<128xf32> to vector<128x1xf32>
    %275 = vector.broadcast %274 : vector<128x1xf32> to vector<128x256xf32>
    %276 = arith.subf %272, %275 : vector<128x256xf32>
    %277 = math.exp %276 : vector<128x256xf32>
    %cst_91 = arith.constant dense<0.000000e+00> : vector<128xf32>
    %278 = vector.multi_reduction <add>, %277, %cst_91 [1] : vector<128x256xf32> to vector<128xf32>
    %279 = vector.shape_cast %278 : vector<128xf32> to vector<128x1xf32>
    %280 = vector.broadcast %279 : vector<128x1xf32> to vector<128x256xf32>
    %281 = arith.divf %277, %280 : vector<128x256xf32>
    %282 = vector.extract_strided_slice %239 {offsets = [0, 16], sizes = [256, 8], strides = [1, 1]} : vector<256x32xf32> to vector<256x8xf32>
    %cst_92 = arith.constant dense<0.000000e+00> : vector<128x8xf32>
    %283 = tpu.matmul %281, %282, %cst_92 {dimension_numbers = #tpu.dot_dimension_numbers<[1], [0], [0], [1], [0, 0, 1, 1], [], []>} : vector<128x256xf32>, vector<256x8xf32>, vector<128x8xf32> -> vector<128x8xf32>
    %c0_93 = arith.constant 0 : index
    %c16_94 = arith.constant 16 : index
    %284 = vector.load %arg7[%c0_93, %c16_94] : memref<128x32xf32, #tpu.memory_space<vmem>>, vector<128x8xf32>
    tpu.vector_store %arg7[%c0_93, %c16_94], %283 {strides = array<i32>} : memref<128x32xf32, #tpu.memory_space<vmem>>, vector<128x8xf32>,
    %285 = vector.extract_strided_slice %236 {offsets = [0, 24], sizes = [128, 8], strides = [1, 1]} : vector<128x32xf32> to vector<128x8xf32>
    %286 = vector.extract_strided_slice %237 {offsets = [24, 0], sizes = [8, 256], strides = [1, 1]} : vector<32x256xf32> to vector<8x256xf32>
    %cst_95 = arith.constant dense<0.000000e+00> : vector<128x256xf32>
    %287 = tpu.matmul %285, %286, %cst_95 {dimension_numbers = #tpu.dot_dimension_numbers<[1], [0], [0], [1], [0, 0, 1, 1], [], []>} : vector<128x8xf32>, vector<8x256xf32>, vector<128x256xf32> -> vector<128x256xf32>
    %cst_96 = arith.constant dense<0xFF800000> : vector<128xf32>
    %288 = vector.multi_reduction <maximumf>, %287, %cst_96 [1] : vector<128x256xf32> to vector<128xf32>
    %289 = vector.shape_cast %288 : vector<128xf32> to vector<128x1xf32>
    %290 = vector.broadcast %289 : vector<128x1xf32> to vector<128x256xf32>
    %291 = arith.subf %287, %290 : vector<128x256xf32>
    %292 = math.exp %291 : vector<128x256xf32>
    %cst_97 = arith.constant dense<0.000000e+00> : vector<128xf32>
    %293 = vector.multi_reduction <add>, %292, %cst_97 [1] : vector<128x256xf32> to vector<128xf32>
    %294 = vector.shape_cast %293 : vector<128xf32> to vector<128x1xf32>
    %295 = vector.broadcast %294 : vector<128x1xf32> to vector<128x256xf32>
    %296 = arith.divf %292, %295 : vector<128x256xf32>
    %297 = vector.extract_strided_slice %239 {offsets = [0, 24], sizes = [256, 8], strides = [1, 1]} : vector<256x32xf32> to vector<256x8xf32>
    %cst_98 = arith.constant dense<0.000000e+00> : vector<128x8xf32>
    %298 = tpu.matmul %296, %297, %cst_98 {dimension_numbers = #tpu.dot_dimension_numbers<[1], [0], [0], [1], [0, 0, 1, 1], [], []>} : vector<128x256xf32>, vector<256x8xf32>, vector<128x8xf32> -> vector<128x8xf32>
    %c0_99 = arith.constant 0 : index
    %c24_100 = arith.constant 24 : index
    %299 = vector.load %arg7[%c0_99, %c24_100] : memref<128x32xf32, #tpu.memory_space<vmem>>, vector<128x8xf32>
    tpu.vector_store %arg7[%c0_99, %c24_100], %298 {strides = array<i32>} : memref<128x32xf32, #tpu.memory_space<vmem>>, vector<128x8xf32>,
    %c0_101 = arith.constant 0 : index
    %c0_102 = arith.constant 0 : index
    %300 = vector.load %arg7[%c0_101, %c0_102] : memref<128x32xf32, #tpu.memory_space<vmem>>, vector<128x32xf32>
    %301 = tpu.transpose %300, [1, 0] : vector<128x32xf32> -> vector<32x128xf32>
    %cst_103 = arith.constant dense<0.000000e+00> : vector<32x128xf32>
    %302 = tpu.matmul %7, %301, %cst_103 {dimension_numbers = #tpu.dot_dimension_numbers<[1], [0], [0], [1], [0, 0, 1, 1], [], []>} : vector<32x32xf32>, vector<32x128xf32>, vector<32x128xf32> -> vector<32x128xf32>
    %303 = vector.extract_strided_slice %226 {offsets = [0, 128], sizes = [32, 128], strides = [1, 1]} : vector<32x256xf32> to vector<32x128xf32>
    %304 = tpu.transpose %303, [1, 0] : vector<32x128xf32> -> vector<128x32xf32>
    %305 = vector.extract_strided_slice %232 {offsets = [0, 256], sizes = [32, 256], strides = [1, 1]} : vector<32x512xf32> to vector<32x256xf32>
    %306 = vector.extract_strided_slice %233 {offsets = [0, 256], sizes = [32, 256], strides = [1, 1]} : vector<32x512xf32> to vector<32x256xf32>
    %307 = tpu.transpose %306, [1, 0] : vector<32x256xf32> -> vector<256x32xf32>
    %308 = vector.extract_strided_slice %304 {offsets = [0, 0], sizes = [128, 8], strides = [1, 1]} : vector<128x32xf32> to vector<128x8xf32>
    %309 = vector.extract_strided_slice %305 {offsets = [0, 0], sizes = [8, 256], strides = [1, 1]} : vector<32x256xf32> to vector<8x256xf32>
    %cst_104 = arith.constant dense<0.000000e+00> : vector<128x256xf32>
    %310 = tpu.matmul %308, %309, %cst_104 {dimension_numbers = #tpu.dot_dimension_numbers<[1], [0], [0], [1], [0, 0, 1, 1], [], []>} : vector<128x8xf32>, vector<8x256xf32>, vector<128x256xf32> -> vector<128x256xf32>
    %cst_105 = arith.constant dense<0xFF800000> : vector<128xf32>
    %311 = vector.multi_reduction <maximumf>, %310, %cst_105 [1] : vector<128x256xf32> to vector<128xf32>
    %312 = vector.shape_cast %311 : vector<128xf32> to vector<128x1xf32>
    %313 = vector.broadcast %312 : vector<128x1xf32> to vector<128x256xf32>
    %314 = arith.subf %310, %313 : vector<128x256xf32>
    %315 = math.exp %314 : vector<128x256xf32>
    %cst_106 = arith.constant dense<0.000000e+00> : vector<128xf32>
    %316 = vector.multi_reduction <add>, %315, %cst_106 [1] : vector<128x256xf32> to vector<128xf32>
    %317 = vector.shape_cast %316 : vector<128xf32> to vector<128x1xf32>
    %318 = vector.broadcast %317 : vector<128x1xf32> to vector<128x256xf32>
    %319 = arith.divf %315, %318 : vector<128x256xf32>
    %320 = vector.extract_strided_slice %307 {offsets = [0, 0], sizes = [256, 8], strides = [1, 1]} : vector<256x32xf32> to vector<256x8xf32>
    %cst_107 = arith.constant dense<0.000000e+00> : vector<128x8xf32>
    %321 = tpu.matmul %319, %320, %cst_107 {dimension_numbers = #tpu.dot_dimension_numbers<[1], [0], [0], [1], [0, 0, 1, 1], [], []>} : vector<128x256xf32>, vector<256x8xf32>, vector<128x8xf32> -> vector<128x8xf32>
    %c0_108 = arith.constant 0 : index
    %c0_109 = arith.constant 0 : index
    %322 = vector.load %arg7[%c0_108, %c0_109] : memref<128x32xf32, #tpu.memory_space<vmem>>, vector<128x8xf32>
    tpu.vector_store %arg7[%c0_108, %c0_109], %321 {strides = array<i32>} : memref<128x32xf32, #tpu.memory_space<vmem>>, vector<128x8xf32>,
    %323 = vector.extract_strided_slice %304 {offsets = [0, 8], sizes = [128, 8], strides = [1, 1]} : vector<128x32xf32> to vector<128x8xf32>
    %324 = vector.extract_strided_slice %305 {offsets = [8, 0], sizes = [8, 256], strides = [1, 1]} : vector<32x256xf32> to vector<8x256xf32>
    %cst_110 = arith.constant dense<0.000000e+00> : vector<128x256xf32>
    %325 = tpu.matmul %323, %324, %cst_110 {dimension_numbers = #tpu.dot_dimension_numbers<[1], [0], [0], [1], [0, 0, 1, 1], [], []>} : vector<128x8xf32>, vector<8x256xf32>, vector<128x256xf32> -> vector<128x256xf32>
    %cst_111 = arith.constant dense<0xFF800000> : vector<128xf32>
    %326 = vector.multi_reduction <maximumf>, %325, %cst_111 [1] : vector<128x256xf32> to vector<128xf32>
    %327 = vector.shape_cast %326 : vector<128xf32> to vector<128x1xf32>
    %328 = vector.broadcast %327 : vector<128x1xf32> to vector<128x256xf32>
    %329 = arith.subf %325, %328 : vector<128x256xf32>
    %330 = math.exp %329 : vector<128x256xf32>
    %cst_112 = arith.constant dense<0.000000e+00> : vector<128xf32>
    %331 = vector.multi_reduction <add>, %330, %cst_112 [1] : vector<128x256xf32> to vector<128xf32>
    %332 = vector.shape_cast %331 : vector<128xf32> to vector<128x1xf32>
    %333 = vector.broadcast %332 : vector<128x1xf32> to vector<128x256xf32>
    %334 = arith.divf %330, %333 : vector<128x256xf32>
    %335 = vector.extract_strided_slice %307 {offsets = [0, 8], sizes = [256, 8], strides = [1, 1]} : vector<256x32xf32> to vector<256x8xf32>
    %cst_113 = arith.constant dense<0.000000e+00> : vector<128x8xf32>
    %336 = tpu.matmul %334, %335, %cst_113 {dimension_numbers = #tpu.dot_dimension_numbers<[1], [0], [0], [1], [0, 0, 1, 1], [], []>} : vector<128x256xf32>, vector<256x8xf32>, vector<128x8xf32> -> vector<128x8xf32>
    %c0_114 = arith.constant 0 : index
    %c8_115 = arith.constant 8 : index
    %337 = vector.load %arg7[%c0_114, %c8_115] : memref<128x32xf32, #tpu.memory_space<vmem>>, vector<128x8xf32>
    tpu.vector_store %arg7[%c0_114, %c8_115], %336 {strides = array<i32>} : memref<128x32xf32, #tpu.memory_space<vmem>>, vector<128x8xf32>,
    %338 = vector.extract_strided_slice %304 {offsets = [0, 16], sizes = [128, 8], strides = [1, 1]} : vector<128x32xf32> to vector<128x8xf32>
    %339 = vector.extract_strided_slice %305 {offsets = [16, 0], sizes = [8, 256], strides = [1, 1]} : vector<32x256xf32> to vector<8x256xf32>
    %cst_116 = arith.constant dense<0.000000e+00> : vector<128x256xf32>
    %340 = tpu.matmul %338, %339, %cst_116 {dimension_numbers = #tpu.dot_dimension_numbers<[1], [0], [0], [1], [0, 0, 1, 1], [], []>} : vector<128x8xf32>, vector<8x256xf32>, vector<128x256xf32> -> vector<128x256xf32>
    %cst_117 = arith.constant dense<0xFF800000> : vector<128xf32>
    %341 = vector.multi_reduction <maximumf>, %340, %cst_117 [1] : vector<128x256xf32> to vector<128xf32>
    %342 = vector.shape_cast %341 : vector<128xf32> to vector<128x1xf32>
    %343 = vector.broadcast %342 : vector<128x1xf32> to vector<128x256xf32>
    %344 = arith.subf %340, %343 : vector<128x256xf32>
    %345 = math.exp %344 : vector<128x256xf32>
    %cst_118 = arith.constant dense<0.000000e+00> : vector<128xf32>
    %346 = vector.multi_reduction <add>, %345, %cst_118 [1] : vector<128x256xf32> to vector<128xf32>
    %347 = vector.shape_cast %346 : vector<128xf32> to vector<128x1xf32>
    %348 = vector.broadcast %347 : vector<128x1xf32> to vector<128x256xf32>
    %349 = arith.divf %345, %348 : vector<128x256xf32>
    %350 = vector.extract_strided_slice %307 {offsets = [0, 16], sizes = [256, 8], strides = [1, 1]} : vector<256x32xf32> to vector<256x8xf32>
    %cst_119 = arith.constant dense<0.000000e+00> : vector<128x8xf32>
    %351 = tpu.matmul %349, %350, %cst_119 {dimension_numbers = #tpu.dot_dimension_numbers<[1], [0], [0], [1], [0, 0, 1, 1], [], []>} : vector<128x256xf32>, vector<256x8xf32>, vector<128x8xf32> -> vector<128x8xf32>
    %c0_120 = arith.constant 0 : index
    %c16_121 = arith.constant 16 : index
    %352 = vector.load %arg7[%c0_120, %c16_121] : memref<128x32xf32, #tpu.memory_space<vmem>>, vector<128x8xf32>
    tpu.vector_store %arg7[%c0_120, %c16_121], %351 {strides = array<i32>} : memref<128x32xf32, #tpu.memory_space<vmem>>, vector<128x8xf32>,
    %353 = vector.extract_strided_slice %304 {offsets = [0, 24], sizes = [128, 8], strides = [1, 1]} : vector<128x32xf32> to vector<128x8xf32>
    %354 = vector.extract_strided_slice %305 {offsets = [24, 0], sizes = [8, 256], strides = [1, 1]} : vector<32x256xf32> to vector<8x256xf32>
    %cst_122 = arith.constant dense<0.000000e+00> : vector<128x256xf32>
    %355 = tpu.matmul %353, %354, %cst_122 {dimension_numbers = #tpu.dot_dimension_numbers<[1], [0], [0], [1], [0, 0, 1, 1], [], []>} : vector<128x8xf32>, vector<8x256xf32>, vector<128x256xf32> -> vector<128x256xf32>
    %cst_123 = arith.constant dense<0xFF800000> : vector<128xf32>
    %356 = vector.multi_reduction <maximumf>, %355, %cst_123 [1] : vector<128x256xf32> to vector<128xf32>
    %357 = vector.shape_cast %356 : vector<128xf32> to vector<128x1xf32>
    %358 = vector.broadcast %357 : vector<128x1xf32> to vector<128x256xf32>
    %359 = arith.subf %355, %358 : vector<128x256xf32>
    %360 = math.exp %359 : vector<128x256xf32>
    %cst_124 = arith.constant dense<0.000000e+00> : vector<128xf32>
    %361 = vector.multi_reduction <add>, %360, %cst_124 [1] : vector<128x256xf32> to vector<128xf32>
    %362 = vector.shape_cast %361 : vector<128xf32> to vector<128x1xf32>
    %363 = vector.broadcast %362 : vector<128x1xf32> to vector<128x256xf32>
    %364 = arith.divf %360, %363 : vector<128x256xf32>
    %365 = vector.extract_strided_slice %307 {offsets = [0, 24], sizes = [256, 8], strides = [1, 1]} : vector<256x32xf32> to vector<256x8xf32>
    %cst_125 = arith.constant dense<0.000000e+00> : vector<128x8xf32>
    %366 = tpu.matmul %364, %365, %cst_125 {dimension_numbers = #tpu.dot_dimension_numbers<[1], [0], [0], [1], [0, 0, 1, 1], [], []>} : vector<128x256xf32>, vector<256x8xf32>, vector<128x8xf32> -> vector<128x8xf32>
    %c0_126 = arith.constant 0 : index
    %c24_127 = arith.constant 24 : index
    %367 = vector.load %arg7[%c0_126, %c24_127] : memref<128x32xf32, #tpu.memory_space<vmem>>, vector<128x8xf32>
    tpu.vector_store %arg7[%c0_126, %c24_127], %366 {strides = array<i32>} : memref<128x32xf32, #tpu.memory_space<vmem>>, vector<128x8xf32>,
    %c0_128 = arith.constant 0 : index
    %c0_129 = arith.constant 0 : index
    %368 = vector.load %arg7[%c0_128, %c0_129] : memref<128x32xf32, #tpu.memory_space<vmem>>, vector<128x32xf32>
    %369 = tpu.transpose %368, [1, 0] : vector<128x32xf32> -> vector<32x128xf32>
    %cst_130 = arith.constant dense<0.000000e+00> : vector<32x128xf32>
    %370 = tpu.matmul %7, %369, %cst_130 {dimension_numbers = #tpu.dot_dimension_numbers<[1], [0], [0], [1], [0, 0, 1, 1], [], []>} : vector<32x32xf32>, vector<32x128xf32>, vector<32x128xf32> -> vector<32x128xf32>
    %371 = tpu.concatenate %302, %370 in 1 : vector<32x128xf32>, vector<32x128xf32> -> vector<32x256xf32>
    %372 = vector.broadcast %234 : vector<32x1xf32> to vector<32x256xf32>
    %373 = arith.addf %371, %372 : vector<32x256xf32>
    %374 = arith.addf %200, %373 : vector<32x256xf32>
    %375 = vector.extract_strided_slice %3 {offsets = [448, 0], sizes = [32, 1], strides = [1, 1]} : vector<608x1xf32> to vector<32x1xf32>
    %376 = vector.extract_strided_slice %3 {offsets = [480, 0], sizes = [32, 1], strides = [1, 1]} : vector<608x1xf32> to vector<32x1xf32>
    %cst_131 = arith.constant dense<0.000000e+00> : vector<256xf32>
    %377 = vector.multi_reduction <add>, %374, %cst_131 [0] : vector<32x256xf32> to vector<256xf32>
    %378 = vector.shape_cast %377 : vector<256xf32> to vector<1x256xf32>
    %cst_132 = arith.constant 3.125000e-02 : f32
    %379 = vector.broadcast %cst_132 : f32 to vector<1x256xf32>
    %380 = arith.mulf %378, %379 : vector<1x256xf32>
    %381 = vector.broadcast %380 : vector<1x256xf32> to vector<32x256xf32>
    %382 = arith.subf %374, %381 : vector<32x256xf32>
    %383 = arith.mulf %382, %382 : vector<32x256xf32>
    %cst_133 = arith.constant dense<0.000000e+00> : vector<256xf32>
    %384 = vector.multi_reduction <add>, %383, %cst_133 [0] : vector<32x256xf32> to vector<256xf32>
    %385 = vector.shape_cast %384 : vector<256xf32> to vector<1x256xf32>
    %cst_134 = arith.constant 3.125000e-02 : f32
    %386 = vector.broadcast %cst_134 : f32 to vector<1x256xf32>
    %387 = arith.mulf %385, %386 : vector<1x256xf32>
    %cst_135 = arith.constant 9.99999974E-6 : f32
    %388 = vector.broadcast %cst_135 : f32 to vector<1x256xf32>
    %389 = arith.addf %387, %388 : vector<1x256xf32>
    %390 = math.rsqrt %389 : vector<1x256xf32>
    %391 = vector.broadcast %390 : vector<1x256xf32> to vector<32x256xf32>
    %392 = arith.mulf %382, %391 : vector<32x256xf32>
    %393 = vector.broadcast %375 : vector<32x1xf32> to vector<32x256xf32>
    %394 = arith.mulf %392, %393 : vector<32x256xf32>
    %395 = vector.broadcast %376 : vector<32x1xf32> to vector<32x256xf32>
    %396 = arith.addf %394, %395 : vector<32x256xf32>
    %cst_136 = arith.constant dense<0.000000e+00> : vector<64x256xf32>
    %397 = tpu.matmul %8, %396, %cst_136 {dimension_numbers = #tpu.dot_dimension_numbers<[1], [0], [0], [1], [0, 0, 1, 1], [], []>} : vector<64x32xf32>, vector<32x256xf32>, vector<64x256xf32> -> vector<64x256xf32>
    %398 = vector.extract_strided_slice %3 {offsets = [512, 0], sizes = [64, 1], strides = [1, 1]} : vector<608x1xf32> to vector<64x1xf32>
    %399 = vector.broadcast %398 : vector<64x1xf32> to vector<64x256xf32>
    %400 = arith.addf %397, %399 : vector<64x256xf32>
    %cst_137 = arith.constant 0.000000e+00 : f32
    %401 = vector.broadcast %cst_137 : f32 to vector<64x256xf32>
    %402 = arith.maximumf %400, %401 : vector<64x256xf32>
    %c0_138 = arith.constant 0 : index
    %c0_139 = arith.constant 0 : index
    %403 = vector.load %arg4[%c0_138, %c0_139] : memref<32x64xf32, #tpu.memory_space<vmem>>, vector<32x64xf32>
    %cst_140 = arith.constant dense<0.000000e+00> : vector<32x256xf32>
    %404 = tpu.matmul %403, %402, %cst_140 {dimension_numbers = #tpu.dot_dimension_numbers<[1], [0], [0], [1], [0, 0, 1, 1], [], []>} : vector<32x64xf32>, vector<64x256xf32>, vector<32x256xf32> -> vector<32x256xf32>
    %405 = arith.addf %396, %404 : vector<32x256xf32>
    %406 = vector.extract_strided_slice %3 {offsets = [576, 0], sizes = [32, 1], strides = [1, 1]} : vector<608x1xf32> to vector<32x1xf32>
    %407 = vector.broadcast %406 : vector<32x1xf32> to vector<32x256xf32>
    %408 = arith.addf %405, %407 : vector<32x256xf32>
    %c0_141 = arith.constant 0 : index
    %c0_142 = arith.constant 0 : index
    %409 = vector.load %arg6[%c0_141, %c0_142] : memref<32x256xf32, #tpu.memory_space<vmem>>, vector<32x256xf32>
    tpu.vector_store %arg6[%c0_141, %c0_142], %408 {strides = array<i32>} : memref<32x256xf32, #tpu.memory_space<vmem>>, vector<32x256xf32>,
    return
  }
}

</mosaic_0001>

<llo_original>
// kernel: decoder_layer_forward.1
$region0: #{decoder_layer_forward.1}
  #allocation0 [shape = 'u32[]', space=smem, size = 0x4, offset = 0x4, fixed_abs, tag = 'smem constant byte address 0x4 - core index']
  #allocation1 [shape = 'u32[144,128]{1,0:T(1,128)}', space=vmem, size = 0x12000, scoped, tag = 'internal scratch']
  #allocation2 [shape = 'f32[128,32]{1,0:T(8,128)}', space=vmem, size = 0x10000, scoped, tag = 'scratch operand']
  %s0 = inlined_call_operand.vmem [shape: f32[32,256], index: 0, kind: input, shape index: {}]
  %s1 = inlined_call_operand.vmem [shape: f32[32,512], index: 1, kind: input, shape index: {}]
  %s2 = inlined_call_operand.vmem [shape: f32[256,32], index: 2, kind: input, shape index: {}]
  %s3 = inlined_call_operand.vmem [shape: f32[64,32], index: 3, kind: input, shape index: {}]
  %s4 = inlined_call_operand.vmem [shape: f32[32,64], index: 4, kind: input, shape index: {}]
  %s5 = inlined_call_operand.vmem [shape: f32[608,1], index: 5, kind: input, shape index: {}]
  %s6 = inlined_call_operand.vmem [shape: f32[32,256], index: 6, kind: output, shape index: {}]
  %s7 = sld [smem:[#allocation0]]
  $region34: #{decoder_layer_forward.1} parent=0
    _
  %s9 = ssub.s32 1, %s7
  %s10 = scalar_select 0, %s9, %s7
  // Predicated region
  $region2: #{decoder_layer_forward.1} parent=0 // pred_check
    _
  $region3: #{decoder_layer_forward.1} parent=0 // pred_check_branch
    %12 = sbr.rel (0) target = $region5
  $region4: #{decoder_layer_forward.1} parent=0 // pred_region
    _
  $region5: #{decoder_layer_forward.1} parent=0 // pred_fallthru
    _
  // Predicated region
  $region6: #{decoder_layer_forward.1} parent=0 // pred_check
    _
  $region7: #{decoder_layer_forward.1} parent=0 // pred_check_branch
    %14 = sbr.rel (0) target = $region9
  $region8: #{decoder_layer_forward.1} parent=0 // pred_region
    _
  $region9: #{decoder_layer_forward.1} parent=0 // pred_fallthru
    _
  // Predicated region
  $region10: #{decoder_layer_forward.1} parent=0 // pred_check
    _
  $region11: #{decoder_layer_forward.1} parent=0 // pred_check_branch
    %16 = sbr.rel (0) target = $region13
  $region12: #{decoder_layer_forward.1} parent=0 // pred_region
    _
  $region13: #{decoder_layer_forward.1} parent=0 // pred_fallthru
    _
  // Predicated region
  $region14: #{decoder_layer_forward.1} parent=0 // pred_check
    _
  $region15: #{decoder_layer_forward.1} parent=0 // pred_check_branch
    %18 = sbr.rel (0) target = $region17
  $region16: #{decoder_layer_forward.1} parent=0 // pred_region
    _
  $region17: #{decoder_layer_forward.1} parent=0 // pred_fallthru
    _
  // Predicated region
  $region18: #{decoder_layer_forward.1} parent=0 // pred_check
    _
  $region19: #{decoder_layer_forward.1} parent=0 // pred_check_branch
    %20 = sbr.rel (0) target = $region21
  $region20: #{decoder_layer_forward.1} parent=0 // pred_region
    _
  $region21: #{decoder_layer_forward.1} parent=0 // pred_fallthru
    _
  // Predicated region
  $region22: #{decoder_layer_forward.1} parent=0 // pred_check
    _
  $region23: #{decoder_layer_forward.1} parent=0 // pred_check_branch
    %22 = sbr.rel (0) target = $region25
  $region24: #{decoder_layer_forward.1} parent=0 // pred_region
    _
  $region25: #{decoder_layer_forward.1} parent=0 // pred_fallthru
    _
  %v23 = vld [vmem:[%s0] sm:$0xff]
  %v24 = vld [vmem:[%s0 + $0x8] sm:$0xff]
  %v25 = vld [vmem:[%s0 + $0x10] sm:$0xff]
  %v26 = vld [vmem:[%s0 + $0x18] sm:$0xff]
  %v27 = vld [vmem:[%s0 + $0x20] sm:$0xff]
  %v28 = vld [vmem:[%s0 + $0x28] sm:$0xff]
  %v29 = vld [vmem:[%s0 + $0x30] sm:$0xff]
  %v30 = vld [vmem:[%s0 + $0x38] sm:$0xff]
  %v31 = vld [vmem:[%s1] sm:$0xff]
  %v32 = vld [vmem:[%s1 + $0x8] sm:$0xff]
  %v33 = vld [vmem:[%s1 + $0x10] sm:$0xff]
  %v34 = vld [vmem:[%s1 + $0x18] sm:$0xff]
  %v35 = vld [vmem:[%s1 + $0x20] sm:$0xff]
  %v36 = vld [vmem:[%s1 + $0x28] sm:$0xff]
  %v37 = vld [vmem:[%s1 + $0x30] sm:$0xff]
  %v38 = vld [vmem:[%s1 + $0x38] sm:$0xff]
  %v39 = vld [vmem:[%s1 + $0x40] sm:$0xff]
  %v40 = vld [vmem:[%s1 + $0x48] sm:$0xff]
  %v41 = vld [vmem:[%s1 + $0x50] sm:$0xff]
  %v42 = vld [vmem:[%s1 + $0x58] sm:$0xff]
  %v43 = vld [vmem:[%s1 + $0x60] sm:$0xff]
  %v44 = vld [vmem:[%s1 + $0x68] sm:$0xff]
  %v45 = vld [vmem:[%s1 + $0x70] sm:$0xff]
  %v46 = vld [vmem:[%s1 + $0x78] sm:$0xff]
  %v47 = vld [vmem:[%s2] sm:$0xff]
  %v48 = vld [vmem:[%s2 + $0x8] sm:$0xff]
  %v49 = vld [vmem:[%s2 + $0x10] sm:$0xff]
  %v50 = vld [vmem:[%s2 + $0x18] sm:$0xff]
  %v51 = vld [vmem:[%s2 + $0x20] sm:$0xff]
  %v52 = vld [vmem:[%s2 + $0x28] sm:$0xff]
  %v53 = vld [vmem:[%s2 + $0x30] sm:$0xff]
  %v54 = vld [vmem:[%s2 + $0x38] sm:$0xff]
  %v55 = vld [vmem:[%s2 + $0x40] sm:$0xff]
  %v56 = vld [vmem:[%s2 + $0x48] sm:$0xff]
  %v57 = vld [vmem:[%s2 + $0x50] sm:$0xff]
  %v58 = vld [vmem:[%s2 + $0x58] sm:$0xff]
  %v59 = vld [vmem:[%s2 + $0x60] sm:$0xff]
  %v60 = vld [vmem:[%s2 + $0x68] sm:$0xff]
  %v61 = vld [vmem:[%s2 + $0x70] sm:$0xff]
  %v62 = vld [vmem:[%s2 + $0x78] sm:$0xff]
  %v63 = vld [vmem:[%s2 + $0x80] sm:$0xff]
  %v64 = vld [vmem:[%s2 + $0x88] sm:$0xff]
  %v65 = vld [vmem:[%s2 + $0x90] sm:$0xff]
  %v66 = vld [vmem:[%s2 + $0x98] sm:$0xff]
  %v67 = vld [vmem:[%s2 + $0xa0] sm:$0xff]
  %v68 = vld [vmem:[%s2 + $0xa8] sm:$0xff]
  %v69 = vld [vmem:[%s2 + $0xb0] sm:$0xff]
  %v70 = vld [vmem:[%s2 + $0xb8] sm:$0xff]
  %v71 = vld [vmem:[%s2 + $0xc0] sm:$0xff]
  %v72 = vld [vmem:[%s2 + $0xc8] sm:$0xff]
  %v73 = vld [vmem:[%s2 + $0xd0] sm:$0xff]
  %v74 = vld [vmem:[%s2 + $0xd8] sm:$0xff]
  %v75 = vld [vmem:[%s2 + $0xe0] sm:$0xff]
  %v76 = vld [vmem:[%s2 + $0xe8] sm:$0xff]
  %v77 = vld [vmem:[%s2 + $0xf0] sm:$0xff]
  %v78 = vld [vmem:[%s2 + $0xf8] sm:$0xff]
  %v79 = vld [vmem:[%s5] sm:$0xff]
  %v80 = vld [vmem:[%s5 + $0x8] sm:$0xff]
  %v81 = vld [vmem:[%s5 + $0x10] sm:$0xff]
  %v82 = vld [vmem:[%s5 + $0x18] sm:$0xff]
  %v83 = vld [vmem:[%s5 + $0x20] sm:$0xff]
  %v84 = vld [vmem:[%s5 + $0x28] sm:$0xff]
  %v85 = vld [vmem:[%s5 + $0x30] sm:$0xff]
  %v86 = vld [vmem:[%s5 + $0x38] sm:$0xff]
  %v87 = vld [vmem:[%s5 + $0x40] sm:$0xff]
  %v88 = vld [vmem:[%s5 + $0x48] sm:$0xff]
  %v89 = vld [vmem:[%s5 + $0x50] sm:$0xff]
  %v90 = vld [vmem:[%s5 + $0x58] sm:$0xff]
  %v91 = vld [vmem:[%s5 + $0x60] sm:$0xff]
  %v92 = vld [vmem:[%s5 + $0x68] sm:$0xff]
  %v93 = vld [vmem:[%s5 + $0x70] sm:$0xff]
  %v94 = vld [vmem:[%s5 + $0x78] sm:$0xff]
  %v95 = vld [vmem:[%s5 + $0x80] sm:$0xff]
  %v96 = vld [vmem:[%s5 + $0x88] sm:$0xff]
  %v97 = vld [vmem:[%s5 + $0x90] sm:$0xff]
  %v98 = vld [vmem:[%s5 + $0x98] sm:$0xff]
  %v99 = vld [vmem:[%s5 + $0xa0] sm:$0xff]
  %v100 = vld [vmem:[%s5 + $0xa8] sm:$0xff]
  %v101 = vld [vmem:[%s5 + $0xb0] sm:$0xff]
  %v102 = vld [vmem:[%s5 + $0xb8] sm:$0xff]
  %v103 = vld [vmem:[%s5 + $0xc0] sm:$0xff]
  %v104 = vld [vmem:[%s5 + $0xc8] sm:$0xff]
  %v105 = vld [vmem:[%s5 + $0xd0] sm:$0xff]
  %v106 = vld [vmem:[%s5 + $0xd8] sm:$0xff]
  %v107 = vld [vmem:[%s5 + $0xe0] sm:$0xff]
  %v108 = vld [vmem:[%s5 + $0xe8] sm:$0xff]
  %v109 = vld [vmem:[%s5 + $0xf0] sm:$0xff]
  %v110 = vld [vmem:[%s5 + $0xf8] sm:$0xff]
  %v111 = vld [vmem:[%s5 + $0x100] sm:$0xff]
  %v112 = vld [vmem:[%s5 + $0x108] sm:$0xff]
  %v113 = vld [vmem:[%s5 + $0x110] sm:$0xff]
  %v114 = vld [vmem:[%s5 + $0x118] sm:$0xff]
  %v115 = vld [vmem:[%s5 + $0x120] sm:$0xff]
  %v116 = vld [vmem:[%s5 + $0x128] sm:$0xff]
  %v117 = vld [vmem:[%s5 + $0x130] sm:$0xff]
  %v118 = vld [vmem:[%s5 + $0x138] sm:$0xff]
  %v119 = vld [vmem:[%s5 + $0x140] sm:$0xff]
  %v120 = vld [vmem:[%s5 + $0x148] sm:$0xff]
  %v121 = vld [vmem:[%s5 + $0x150] sm:$0xff]
  %v122 = vld [vmem:[%s5 + $0x158] sm:$0xff]
  %v123 = vld [vmem:[%s5 + $0x160] sm:$0xff]
  %v124 = vld [vmem:[%s5 + $0x168] sm:$0xff]
  %v125 = vld [vmem:[%s5 + $0x170] sm:$0xff]
  %v126 = vld [vmem:[%s5 + $0x178] sm:$0xff]
  %v127 = vld [vmem:[%s5 + $0x180] sm:$0xff]
  %v128 = vld [vmem:[%s5 + $0x188] sm:$0xff]
  %v129 = vld [vmem:[%s5 + $0x190] sm:$0xff]
  %v130 = vld [vmem:[%s5 + $0x198] sm:$0xff]
  %v131 = vld [vmem:[%s5 + $0x1a0] sm:$0xff]
  %v132 = vld [vmem:[%s5 + $0x1a8] sm:$0xff]
  %v133 = vld [vmem:[%s5 + $0x1b0] sm:$0xff]
  %v134 = vld [vmem:[%s5 + $0x1b8] sm:$0xff]
  %v135 = vld [vmem:[%s5 + $0x1c0] sm:$0xff]
  %v136 = vld [vmem:[%s5 + $0x1c8] sm:$0xff]
  %v137 = vld [vmem:[%s5 + $0x1d0] sm:$0xff]
  %v138 = vld [vmem:[%s5 + $0x1d8] sm:$0xff]
  %v139 = vld [vmem:[%s5 + $0x1e0] sm:$0xff]
  %v140 = vld [vmem:[%s5 + $0x1e8] sm:$0xff]
  %v141 = vld [vmem:[%s5 + $0x1f0] sm:$0xff]
  %v142 = vld [vmem:[%s5 + $0x1f8] sm:$0xff]
  %v143 = vld [vmem:[%s5 + $0x200] sm:$0xff]
  %v144 = vld [vmem:[%s5 + $0x208] sm:$0xff]
  %v145 = vld [vmem:[%s5 + $0x210] sm:$0xff]
  %v146 = vld [vmem:[%s5 + $0x218] sm:$0xff]
  %v147 = vld [vmem:[%s5 + $0x220] sm:$0xff]
  %v148 = vld [vmem:[%s5 + $0x228] sm:$0xff]
  %v149 = vld [vmem:[%s5 + $0x230] sm:$0xff]
  %v150 = vld [vmem:[%s5 + $0x238] sm:$0xff]
  %v151 = vld [vmem:[%s5 + $0x240] sm:$0xff]
  %v152 = vld [vmem:[%s5 + $0x248] sm:$0xff]
  %v153 = vld [vmem:[%s5 + $0x250] sm:$0xff]
  %v154 = vld [vmem:[%s5 + $0x258] sm:$0xff]
  %v155 = vadd.f32 %v23, %v25
  %v156 = vadd.f32 %v155, %v27
  %v157 = vadd.f32 %v156, %v29
  %v158 = vrot.slane %v157, 4
  %v159 = vadd.f32 %v157, %v158
  %v160 = vrot.slane %v159, 2
  %v161 = vadd.f32 %v159, %v160
  %v162 = vrot.slane %v161, 1
  %v163 = vadd.f32 %v161, %v162
  %v164 = vadd.f32 %v24, %v26
  %v165 = vadd.f32 %v164, %v28
  %v166 = vadd.f32 %v165, %v30
  %v167 = vrot.slane %v166, 4
  %v168 = vadd.f32 %v166, %v167
  %v169 = vrot.slane %v168, 2
  %v170 = vadd.f32 %v168, %v169
  %v171 = vrot.slane %v170, 1
  %v172 = vadd.f32 %v170, %v171
  %v173 = vmul.f32 %v163, 0.03125
  %v174 = vmul.f32 %v172, 0.03125
  %v175 = vsub.f32 %v23, %v173
  %v176 = vsub.f32 %v24, %v174
  %v177 = vsub.f32 %v25, %v173
  %v178 = vsub.f32 %v26, %v174
  %v179 = vsub.f32 %v27, %v173
  %v180 = vsub.f32 %v28, %v174
  %v181 = vsub.f32 %v29, %v173
  %v182 = vsub.f32 %v30, %v174
  %v183 = vmul.f32 %v175, %v175
  %v184 = vmul.f32 %v176, %v176
  %v185 = vmul.f32 %v177, %v177
  %v186 = vmul.f32 %v178, %v178
  %v187 = vmul.f32 %v179, %v179
  %v188 = vmul.f32 %v180, %v180
  %v189 = vmul.f32 %v181, %v181
  %v190 = vmul.f32 %v182, %v182
  %v191 = vadd.f32 %v183, %v185
  %v192 = vadd.f32 %v191, %v187
  %v193 = vadd.f32 %v192, %v189
  %v194 = vrot.slane %v193, 4
  %v195 = vadd.f32 %v193, %v194
  %v196 = vrot.slane %v195, 2
  %v197 = vadd.f32 %v195, %v196
  %v198 = vrot.slane %v197, 1
  %v199 = vadd.f32 %v197, %v198
  %v200 = vadd.f32 %v184, %v186
  %v201 = vadd.f32 %v200, %v188
  %v202 = vadd.f32 %v201, %v190
  %v203 = vrot.slane %v202, 4
  %v204 = vadd.f32 %v202, %v203
  %v205 = vrot.slane %v204, 2
  %v206 = vadd.f32 %v204, %v205
  %v207 = vrot.slane %v206, 1
  %v208 = vadd.f32 %v206, %v207
  %v209 = vmul.f32 %v199, 0.03125
  %v210 = vmul.f32 %v208, 0.03125
  %v211 = vadd.f32 %v209, 1e-05
  %v212 = vadd.f32 %v210, 1e-05
  %v213 = vrsqrt.pop %v211
  %v214 = vrsqrt.pop %v212
  %v215 = vmul.f32 %v175, %v213
  %v216 = vmul.f32 %v176, %v214
  %v217 = vmul.f32 %v177, %v213
  %v218 = vmul.f32 %v178, %v214
  %v219 = vmul.f32 %v179, %v213
  %v220 = vmul.f32 %v180, %v214
  %v221 = vmul.f32 %v181, %v213
  %v222 = vmul.f32 %v182, %v214
  %224 = vset.pattern.permute.xlu0 0
  %225 = vperm.xlu0 %224, %v79
  %v226 = vpop.permute.xlu0 %225
  %229 = vset.pattern.permute.xlu0 0
  %230 = vperm.xlu0 %229, %v80
  %v231 = vpop.permute.xlu0 %230
  %234 = vset.pattern.permute.xlu0 0
  %235 = vperm.xlu0 %234, %v81
  %v236 = vpop.permute.xlu0 %235
  %239 = vset.pattern.permute.xlu0 0
  %240 = vperm.xlu0 %239, %v82
  %v241 = vpop.permute.xlu0 %240
  %v243 = vmul.f32 %v215, %v226
  %v244 = vmul.f32 %v216, %v226
  %v245 = vmul.f32 %v217, %v231
  %v246 = vmul.f32 %v218, %v231
  %v247 = vmul.f32 %v219, %v236
  %v248 = vmul.f32 %v220, %v236
  %v249 = vmul.f32 %v221, %v241
  %v250 = vmul.f32 %v222, %v241
  %252 = vset.pattern.permute.xlu0 0
  %253 = vperm.xlu0 %252, %v83
  %v254 = vpop.permute.xlu0 %253
  %257 = vset.pattern.permute.xlu0 0
  %258 = vperm.xlu0 %257, %v84
  %v259 = vpop.permute.xlu0 %258
  %262 = vset.pattern.permute.xlu0 0
  %263 = vperm.xlu0 %262, %v85
  %v264 = vpop.permute.xlu0 %263
  %267 = vset.pattern.permute.xlu0 0
  %268 = vperm.xlu0 %267, %v86
  %v269 = vpop.permute.xlu0 %268
  %v271 = vadd.f32 %v243, %v254
  %v272 = vadd.f32 %v244, %v254
  %v273 = vadd.f32 %v245, %v259
  %v274 = vadd.f32 %v246, %v259
  %v275 = vadd.f32 %v247, %v264
  %v276 = vadd.f32 %v248, %v264
  %v277 = vadd.f32 %v249, %v269
  %v278 = vadd.f32 %v250, %v269
  %280 = vset.pattern.permute.xlu0 0
  %281 = vperm.xlu0 %280, %v87
  %v282 = vpop.permute.xlu0 %281
  %285 = vset.pattern.permute.xlu0 0
  %286 = vperm.xlu0 %285, %v88
  %v287 = vpop.permute.xlu0 %286
  %290 = vset.pattern.permute.xlu0 0
  %291 = vperm.xlu0 %290, %v89
  %v292 = vpop.permute.xlu0 %291
  %295 = vset.pattern.permute.xlu0 0
  %296 = vperm.xlu0 %295, %v90
  %v297 = vpop.permute.xlu0 %296
  %300 = vset.pattern.permute.xlu0 0
  %301 = vperm.xlu0 %300, %v91
  %v302 = vpop.permute.xlu0 %301
  %305 = vset.pattern.permute.xlu0 0
  %306 = vperm.xlu0 %305, %v92
  %v307 = vpop.permute.xlu0 %306
  %310 = vset.pattern.permute.xlu0 0
  %311 = vperm.xlu0 %310, %v93
  %v312 = vpop.permute.xlu0 %311
  %315 = vset.pattern.permute.xlu0 0
  %316 = vperm.xlu0 %315, %v94
  %v317 = vpop.permute.xlu0 %316
  %320 = vset.pattern.permute.xlu0 0
  %321 = vperm.xlu0 %320, %v95
  %v322 = vpop.permute.xlu0 %321
  %325 = vset.pattern.permute.xlu0 0
  %326 = vperm.xlu0 %325, %v96
  %v327 = vpop.permute.xlu0 %326
  %330 = vset.pattern.permute.xlu0 0
  %331 = vperm.xlu0 %330, %v97
  %v332 = vpop.permute.xlu0 %331
  %335 = vset.pattern.permute.xlu0 0
  %336 = vperm.xlu0 %335, %v98
  %v337 = vpop.permute.xlu0 %336
  %vm339 = vcmask 261120
  %v341 = vsel %vm339, %v47, 0
  %v344 = vsel %vm339, %v48, 0
  %v347 = vsel %vm339, %v49, 0
  %v350 = vsel %vm339, %v50, 0
  %v353 = vsel %vm339, %v51, 0
  %v356 = vsel %vm339, %v52, 0
  %v359 = vsel %vm339, %v53, 0
  %v362 = vsel %vm339, %v54, 0
  %v365 = vsel %vm339, %v55, 0
  %v368 = vsel %vm339, %v56, 0
  %v371 = vsel %vm339, %v57, 0
  %v374 = vsel %vm339, %v58, 0
  %376 = vmatprep.subr.mxu0 0.0
  %377 = vmatpush1.msra.mxu0 0.0
  %378 = vmatprep.subr.mxu0 0.0
  %379 = vmatpush1.msra.mxu0 0.0
  %380 = vmatprep.subr.mxu0 0.0
  %381 = vmatpush1.msra.mxu0 0.0
  %382 = vmatprep.subr.mxu0 0.0
  %383 = vmatpush1.msra.mxu0 0.0
  %384 = vmatprep.subr.mxu0 0.0
  %385 = vmatpush1.msra.mxu0 0.0
  %386 = vmatprep.subr.mxu0 0.0
  %387 = vmatpush1.msra.mxu0 0.0
  %388 = vmatprep.subr.mxu0 0.0
  %389 = vmatpush1.msra.mxu0 0.0
  %390 = vmatprep.subr.mxu0 0.0
  %391 = vmatpush1.msra.mxu0 0.0
  %392 = vmatprep.subr.mxu0 0.0
  %393 = vmatpush1.msra.mxu0 0.0
  %394 = vmatprep.subr.mxu0 0.0
  %395 = vmatpush1.msra.mxu0 0.0
  %396 = vmatprep.subr.mxu0 0.0
  %397 = vmatpush1.msra.mxu0 0.0
  %398 = vmatprep.subr.mxu0 0.0
  %399 = vmatpush1.msra.mxu0 0.0
  %400 = vmatprep.subr.mxu0 %v278
  %401 = vmatpush1.msra.mxu0 %v277
  %402 = vmatprep.subr.mxu0 %v276
  %403 = vmatpush1.msra.mxu0 %v275
  %404 = vmatprep.subr.mxu0 %v274
  %405 = vmatpush1.msra.mxu0 %v273
  %406 = vmatprep.subr.mxu0 %v272
  %407 = vmatpush1.msra.mxu0 %v271
  %408 = vmatprep.subr.mxu0 0.0
  %409 = vmatpush2.msra.mxu0 0.0
  %410 = vmatprep.subr.mxu0 0.0
  %411 = vmatpush2.msra.mxu0 0.0
  %412 = vmatprep.subr.mxu0 0.0
  %413 = vmatpush2.msra.mxu0 0.0
  %414 = vmatprep.subr.mxu0 0.0
  %415 = vmatpush2.msra.mxu0 0.0
  %416 = vmatprep.subr.mxu0 0.0
  %417 = vmatpush2.msra.mxu0 0.0
  %418 = vmatprep.subr.mxu0 0.0
  %419 = vmatpush2.msra.mxu0 0.0
  %420 = vmatprep.subr.mxu0 0.0
  %421 = vmatpush2.msra.mxu0 0.0
  %422 = vmatprep.subr.mxu0 0.0
  %423 = vmatpush2.msra.mxu0 0.0
  %424 = vmatprep.subr.mxu0 0.0
  %425 = vmatpush2.msra.mxu0 0.0
  %426 = vmatprep.subr.mxu0 0.0
  %427 = vmatpush2.msra.mxu0 0.0
  %428 = vmatprep.subr.mxu0 0.0
  %429 = vmatpush2.msra.mxu0 0.0
  %430 = vmatprep.subr.mxu0 0.0
  %431 = vmatpush2.msra.mxu0 0.0
  %432 = vmatprep.subr.mxu0 0.0
  %433 = vmatpush2.msra.mxu0 0.0
  %434 = vmatprep.subr.mxu0 0.0
  %435 = vmatpush2.msra.mxu0 0.0
  %436 = vmatprep.subr.mxu0 0.0
  %437 = vmatpush2.msra.mxu0 0.0
  %438 = vmatprep.subr.mxu0 0.0
  %439 = vmatpush2.msra.mxu0 0.0
  %440 = vmatprep.mubr.f32.mxu0 0.0
  %441 = vmatmul.mubr.f32.gmra.mxu0 %v341
  %v442 = vpop.f32.mrf.mxu0
  %v443 = vadd.f32 %v282, %v442
  %v444 = vpop.f32.mrf.mxu0
  %v445 = vadd.f32 %v282, %v444
  %446 = vmatprep.mubr.f32.mxu0 0.0
  %447 = vmatmul.mubr.f32.gmra.mxu0 %v344
  %v448 = vpop.f32.mrf.mxu0
  %v449 = vadd.f32 %v287, %v448
  %v450 = vpop.f32.mrf.mxu0
  %v451 = vadd.f32 %v287, %v450
  %452 = vmatprep.mubr.f32.mxu0 0.0
  %453 = vmatmul.mubr.f32.gmra.mxu0 %v347
  %v454 = vpop.f32.mrf.mxu0
  %v455 = vadd.f32 %v292, %v454
  %v456 = vpop.f32.mrf.mxu0
  %v457 = vadd.f32 %v292, %v456
  %458 = vmatprep.mubr.f32.mxu0 0.0
  %459 = vmatmul.mubr.f32.gmra.mxu0 %v350
  %v460 = vpop.f32.mrf.mxu0
  %v461 = vadd.f32 %v297, %v460
  %v462 = vpop.f32.mrf.mxu0
  %v463 = vadd.f32 %v297, %v462
  %464 = vmatprep.mubr.f32.mxu0 0.0
  %465 = vmatmul.mubr.f32.gmra.mxu0 %v353
  %v466 = vpop.f32.mrf.mxu0
  %v467 = vadd.f32 %v302, %v466
  %v468 = vpop.f32.mrf.mxu0
  %v469 = vadd.f32 %v302, %v468
  %470 = vmatprep.mubr.f32.mxu0 0.0
  %471 = vmatmul.mubr.f32.gmra.mxu0 %v356
  %v472 = vpop.f32.mrf.mxu0
  %v473 = vadd.f32 %v307, %v472
  %v474 = vpop.f32.mrf.mxu0
  %v475 = vadd.f32 %v307, %v474
  %476 = vmatprep.mubr.f32.mxu0 0.0
  %477 = vmatmul.mubr.f32.gmra.mxu0 %v359
  %v478 = vpop.f32.mrf.mxu0
  %v479 = vadd.f32 %v312, %v478
  %v480 = vpop.f32.mrf.mxu0
  %v481 = vadd.f32 %v312, %v480
  %482 = vmatprep.mubr.f32.mxu0 0.0
  %483 = vmatmul.mubr.f32.gmra.mxu0 %v362
  %v484 = vpop.f32.mrf.mxu0
  %v485 = vadd.f32 %v317, %v484
  %v486 = vpop.f32.mrf.mxu0
  %v487 = vadd.f32 %v317, %v486
  %488 = vmatprep.mubr.f32.mxu0 0.0
  %489 = vmatmul.mubr.f32.gmra.mxu0 %v365
  %v490 = vpop.f32.mrf.mxu0
  %v491 = vadd.f32 %v322, %v490
  %v492 = vpop.f32.mrf.mxu0
  %v493 = vadd.f32 %v322, %v492
  %494 = vmatprep.mubr.f32.mxu0 0.0
  %495 = vmatmul.mubr.f32.gmra.mxu0 %v368
  %v496 = vpop.f32.mrf.mxu0
  %v497 = vadd.f32 %v327, %v496
  %v498 = vpop.f32.mrf.mxu0
  %v499 = vadd.f32 %v327, %v498
  %500 = vmatprep.mubr.f32.mxu0 0.0
  %501 = vmatmul.mubr.f32.gmra.mxu0 %v371
  %v502 = vpop.f32.mrf.mxu0
  %v503 = vadd.f32 %v332, %v502
  %v504 = vpop.f32.mrf.mxu0
  %v505 = vadd.f32 %v332, %v504
  %506 = vmatprep.mubr.f32.mxu0 0.0
  %507 = vmatmul.mubr.f32.gmra.mxu0 %v374
  %v508 = vpop.f32.mrf.mxu0
  %v509 = vadd.f32 %v337, %v508
  %v510 = vpop.f32.mrf.mxu0
  %v511 = vadd.f32 %v337, %v510
  %512 = vdwg.mxu0
  %513 = vxpose.xlu0.b32.start [1/16] %v443, 128
  %514 = vxpose.xlu0.b32.cont [2/16] %v449, 128
  %515 = vxpose.xlu0.b32.cont [3/16] %v455, 128
  %516 = vxpose.xlu0.b32.cont [4/16] %v461, 128
  %517 = vxpose.xlu0.b32.cont [5/16] 0.0, 128
  %518 = vxpose.xlu0.b32.cont [6/16] 0.0, 128
  %519 = vxpose.xlu0.b32.cont [7/16] 0.0, 128
  %520 = vxpose.xlu0.b32.cont [8/16] 0.0, 128
  %521 = vxpose.xlu0.b32.cont [9/16] 0.0, 128
  %522 = vxpose.xlu0.b32.cont [10/16] 0.0, 128
  %523 = vxpose.xlu0.b32.cont [11/16] 0.0, 128
  %524 = vxpose.xlu0.b32.cont [12/16] 0.0, 128
  %525 = vxpose.xlu0.b32.cont [13/16] 0.0, 128
  %526 = vxpose.xlu0.b32.cont [14/16] 0.0, 128
  %527 = vxpose.xlu0.b32.cont [15/16] 0.0, 128
  %528 = vxpose.xlu0.b32.end [16/16] 0.0, 128
  %v529 = vpop.trf.xlu0
  %v530 = vpop.trf.xlu0
  %v531 = vpop.trf.xlu0
  %v532 = vpop.trf.xlu0
  %v533 = vpop.trf.xlu0
  %v534 = vpop.trf.xlu0
  %v535 = vpop.trf.xlu0
  %v536 = vpop.trf.xlu0
  %v537 = vpop.trf.xlu0
  %v538 = vpop.trf.xlu0
  %v539 = vpop.trf.xlu0
  %v540 = vpop.trf.xlu0
  %v541 = vpop.trf.xlu0
  %v542 = vpop.trf.xlu0
  %v543 = vpop.trf.xlu0
  %v544 = vpop.trf.xlu0
  %vm545 = vcmask 64512
  %v547 = vsel %vm545, %v529, 0
  %v550 = vsel %vm545, %v530, 0
  %v553 = vsel %vm545, %v531, 0
  %v556 = vsel %vm545, %v532, 0
  %v559 = vsel %vm545, %v533, 0
  %v562 = vsel %vm545, %v534, 0
  %v565 = vsel %vm545, %v535, 0
  %v568 = vsel %vm545, %v536, 0
  %v571 = vsel %vm545, %v537, 0
  %v574 = vsel %vm545, %v538, 0
  %v577 = vsel %vm545, %v539, 0
  %v580 = vsel %vm545, %v540, 0
  %v583 = vsel %vm545, %v541, 0
  %v586 = vsel %vm545, %v542, 0
  %v589 = vsel %vm545, %v543, 0
  %v592 = vsel %vm545, %v544, 0
  %594 = vmatprep.subr.mxu0 0.0
  %595 = vmatpush1.msra.mxu0 0.0
  %596 = vmatprep.subr.mxu0 0.0
  %597 = vmatpush1.msra.mxu0 0.0
  %598 = vmatprep.subr.mxu0 0.0
  %599 = vmatpush1.msra.mxu0 0.0
  %600 = vmatprep.subr.mxu0 0.0
  %601 = vmatpush1.msra.mxu0 0.0
  %602 = vmatprep.subr.mxu0 0.0
  %603 = vmatpush1.msra.mxu0 0.0
  %604 = vmatprep.subr.mxu0 0.0
  %605 = vmatpush1.msra.mxu0 0.0
  %606 = vmatprep.subr.mxu0 0.0
  %607 = vmatpush1.msra.mxu0 0.0
  %608 = vmatprep.subr.mxu0 0.0
  %609 = vmatpush1.msra.mxu0 0.0
  %610 = vmatprep.subr.mxu0 0.0
  %611 = vmatpush1.msra.mxu0 0.0
  %612 = vmatprep.subr.mxu0 0.0
  %613 = vmatpush1.msra.mxu0 0.0
  %614 = vmatprep.subr.mxu0 0.0
  %615 = vmatpush1.msra.mxu0 0.0
  %616 = vmatprep.subr.mxu0 0.0
  %617 = vmatpush1.msra.mxu0 0.0
  %618 = vmatprep.subr.mxu0 0.0
  %619 = vmatpush1.msra.mxu0 0.0
  %620 = vmatprep.subr.mxu0 0.0
  %621 = vmatpush1.msra.mxu0 0.0
  %622 = vmatprep.subr.mxu0 0.0
  %623 = vmatpush1.msra.mxu0 0.0
  %624 = vmatprep.subr.mxu0 0.0
  %625 = vmatpush1.msra.mxu0 %v467
  %626 = vmatprep.subr.mxu0 0.0
  %627 = vmatpush2.msra.mxu0 0.0
  %628 = vmatprep.subr.mxu0 0.0
  %629 = vmatpush2.msra.mxu0 0.0
  %630 = vmatprep.subr.mxu0 0.0
  %631 = vmatpush2.msra.mxu0 0.0
  %632 = vmatprep.subr.mxu0 0.0
  %633 = vmatpush2.msra.mxu0 0.0
  %634 = vmatprep.subr.mxu0 0.0
  %635 = vmatpush2.msra.mxu0 0.0
  %636 = vmatprep.subr.mxu0 0.0
  %637 = vmatpush2.msra.mxu0 0.0
  %638 = vmatprep.subr.mxu0 0.0
  %639 = vmatpush2.msra.mxu0 0.0
  %640 = vmatprep.subr.mxu0 0.0
  %641 = vmatpush2.msra.mxu0 0.0
  %642 = vmatprep.subr.mxu0 0.0
  %643 = vmatpush2.msra.mxu0 0.0
  %644 = vmatprep.subr.mxu0 0.0
  %645 = vmatpush2.msra.mxu0 0.0
  %646 = vmatprep.subr.mxu0 0.0
  %647 = vmatpush2.msra.mxu0 0.0
  %648 = vmatprep.subr.mxu0 0.0
  %649 = vmatpush2.msra.mxu0 0.0
  %650 = vmatprep.subr.mxu0 0.0
  %651 = vmatpush2.msra.mxu0 0.0
  %652 = vmatprep.subr.mxu0 0.0
  %653 = vmatpush2.msra.mxu0 0.0
  %654 = vmatprep.subr.mxu0 0.0
  %655 = vmatpush2.msra.mxu0 0.0
  %656 = vmatprep.subr.mxu0 0.0
  %657 = vmatpush2.msra.mxu0 0.0
  %658 = vmatprep.mubr.f32.mxu0 0.0
  %659 = vmatmul.mubr.f32.gmra.mxu0 %v547
  %v660 = vpop.f32.mrf.mxu0
  %v661 = vadd.f32 0.0, %v660
  %v662 = vpop.f32.mrf.mxu0
  %663 = vmatprep.mubr.f32.mxu0 0.0
  %664 = vmatmul.mubr.f32.gmra.mxu0 %v550
  %v665 = vpop.f32.mrf.mxu0
  %v666 = vadd.f32 0.0, %v665
  %v667 = vpop.f32.mrf.mxu0
  %668 = vmatprep.mubr.f32.mxu0 0.0
  %669 = vmatmul.mubr.f32.gmra.mxu0 %v553
  %v670 = vpop.f32.mrf.mxu0
  %v671 = vadd.f32 0.0, %v670
  %v672 = vpop.f32.mrf.mxu0
  %673 = vmatprep.mubr.f32.mxu0 0.0
  %674 = vmatmul.mubr.f32.gmra.mxu0 %v556
  %v675 = vpop.f32.mrf.mxu0
  %v676 = vadd.f32 0.0, %v675
  %v677 = vpop.f32.mrf.mxu0
  %678 = vmatprep.mubr.f32.mxu0 0.0
  %679 = vmatmul.mubr.f32.gmra.mxu0 %v559
  %v680 = vpop.f32.mrf.mxu0
  %v681 = vadd.f32 0.0, %v680
  %v682 = vpop.f32.mrf.mxu0
  %683 = vmatprep.mubr.f32.mxu0 0.0
  %684 = vmatmul.mubr.f32.gmra.mxu0 %v562
  %v685 = vpop.f32.mrf.mxu0
  %v686 = vadd.f32 0.0, %v685
  %v687 = vpop.f32.mrf.mxu0
  %688 = vmatprep.mubr.f32.mxu0 0.0
  %689 = vmatmul.mubr.f32.gmra.mxu0 %v565
  %v690 = vpop.f32.mrf.mxu0
  %v691 = vadd.f32 0.0, %v690
  %v692 = vpop.f32.mrf.mxu0
  %693 = vmatprep.mubr.f32.mxu0 0.0
  %694 = vmatmul.mubr.f32.gmra.mxu0 %v568
  %v695 = vpop.f32.mrf.mxu0
  %v696 = vadd.f32 0.0, %v695
  %v697 = vpop.f32.mrf.mxu0
  %698 = vmatprep.mubr.f32.mxu0 0.0
  %699 = vmatmul.mubr.f32.gmra.mxu0 %v571
  %v700 = vpop.f32.mrf.mxu0
  %v701 = vadd.f32 0.0, %v700
  %v702 = vpop.f32.mrf.mxu0
  %703 = vmatprep.mubr.f32.mxu0 0.0
  %704 = vmatmul.mubr.f32.gmra.mxu0 %v574
  %v705 = vpop.f32.mrf.mxu0
  %v706 = vadd.f32 0.0, %v705
  %v707 = vpop.f32.mrf.mxu0
  %708 = vmatprep.mubr.f32.mxu0 0.0
  %709 = vmatmul.mubr.f32.gmra.mxu0 %v577
  %v710 = vpop.f32.mrf.mxu0
  %v711 = vadd.f32 0.0, %v710
  %v712 = vpop.f32.mrf.mxu0
  %713 = vmatprep.mubr.f32.mxu0 0.0
  %714 = vmatmul.mubr.f32.gmra.mxu0 %v580
  %v715 = vpop.f32.mrf.mxu0
  %v716 = vadd.f32 0.0, %v715
  %v717 = vpop.f32.mrf.mxu0
  %718 = vmatprep.mubr.f32.mxu0 0.0
  %719 = vmatmul.mubr.f32.gmra.mxu0 %v583
  %v720 = vpop.f32.mrf.mxu0
  %v721 = vadd.f32 0.0, %v720
  %v722 = vpop.f32.mrf.mxu0
  %723 = vmatprep.mubr.f32.mxu0 0.0
  %724 = vmatmul.mubr.f32.gmra.mxu0 %v586
  %v725 = vpop.f32.mrf.mxu0
  %v726 = vadd.f32 0.0, %v725
  %v727 = vpop.f32.mrf.mxu0
  %728 = vmatprep.mubr.f32.mxu0 0.0
  %729 = vmatmul.mubr.f32.gmra.mxu0 %v589
  %v730 = vpop.f32.mrf.mxu0
  %v731 = vadd.f32 0.0, %v730
  %v732 = vpop.f32.mrf.mxu0
  %733 = vmatprep.mubr.f32.mxu0 0.0
  %734 = vmatmul.mubr.f32.gmra.mxu0 %v592
  %v735 = vpop.f32.mrf.mxu0
  %v736 = vadd.f32 0.0, %v735
  %v737 = vpop.f32.mrf.mxu0
  %738 = vdwg.mxu0
  %739 = vmax.xlane.f32.xlu0 %v661
  %v740 = vpop.xlane.xlu0 %739
  %741 = vmax.xlane.f32.xlu0 %v666
  %v742 = vpop.xlane.xlu0 %741
  %743 = vmax.xlane.f32.xlu0 %v671
  %v744 = vpop.xlane.xlu0 %743
  %745 = vmax.xlane.f32.xlu0 %v676
  %v746 = vpop.xlane.xlu0 %745
  %747 = vmax.xlane.f32.xlu0 %v681
  %v748 = vpop.xlane.xlu0 %747
  %749 = vmax.xlane.f32.xlu0 %v686
  %v750 = vpop.xlane.xlu0 %749
  %751 = vmax.xlane.f32.xlu0 %v691
  %v752 = vpop.xlane.xlu0 %751
  %753 = vmax.xlane.f32.xlu0 %v696
  %v754 = vpop.xlane.xlu0 %753
  %755 = vmax.xlane.f32.xlu0 %v701
  %v756 = vpop.xlane.xlu0 %755
  %757 = vmax.xlane.f32.xlu0 %v706
  %v758 = vpop.xlane.xlu0 %757
  %759 = vmax.xlane.f32.xlu0 %v711
  %v760 = vpop.xlane.xlu0 %759
  %761 = vmax.xlane.f32.xlu0 %v716
  %v762 = vpop.xlane.xlu0 %761
  %763 = vmax.xlane.f32.xlu0 %v721
  %v764 = vpop.xlane.xlu0 %763
  %765 = vmax.xlane.f32.xlu0 %v726
  %v766 = vpop.xlane.xlu0 %765
  %767 = vmax.xlane.f32.xlu0 %v731
  %v768 = vpop.xlane.xlu0 %767
  %769 = vmax.xlane.f32.xlu0 %v736
  %v770 = vpop.xlane.xlu0 %769
  %v771 = vsub.f32 %v661, %v740
  %v772 = vsub.f32 %v666, %v742
  %v773 = vsub.f32 %v671, %v744
  %v774 = vsub.f32 %v676, %v746
  %v775 = vsub.f32 %v681, %v748
  %v776 = vsub.f32 %v686, %v750
  %v777 = vsub.f32 %v691, %v752
  %v778 = vsub.f32 %v696, %v754
  %v779 = vsub.f32 %v701, %v756
  %v780 = vsub.f32 %v706, %v758
  %v781 = vsub.f32 %v711, %v760
  %v782 = vsub.f32 %v716, %v762
  %v783 = vsub.f32 %v721, %v764
  %v784 = vsub.f32 %v726, %v766
  %v785 = vsub.f32 %v731, %v768
  %v786 = vsub.f32 %v736, %v770
  %v787 = vmul.f32 %v771, 1.442695
  %v788 = vpow.pop %v787
  %v789 = vmul.f32 %v772, 1.442695
  %v790 = vpow.pop %v789
  %v791 = vmul.f32 %v773, 1.442695
  %v792 = vpow.pop %v791
  %v793 = vmul.f32 %v774, 1.442695
  %v794 = vpow.pop %v793
  %v795 = vmul.f32 %v775, 1.442695
  %v796 = vpow.pop %v795
  %v797 = vmul.f32 %v776, 1.442695
  %v798 = vpow.pop %v797
  %v799 = vmul.f32 %v777, 1.442695
  %v800 = vpow.pop %v799
  %v801 = vmul.f32 %v778, 1.442695
  %v802 = vpow.pop %v801
  %v803 = vmul.f32 %v779, 1.442695
  %v804 = vpow.pop %v803
  %v805 = vmul.f32 %v780, 1.442695
  %v806 = vpow.pop %v805
  %v807 = vmul.f32 %v781, 1.442695
  %v808 = vpow.pop %v807
  %v809 = vmul.f32 %v782, 1.442695
  %v810 = vpow.pop %v809
  %v811 = vmul.f32 %v783, 1.442695
  %v812 = vpow.pop %v811
  %v813 = vmul.f32 %v784, 1.442695
  %v814 = vpow.pop %v813
  %v815 = vmul.f32 %v785, 1.442695
  %v816 = vpow.pop %v815
  %v817 = vmul.f32 %v786, 1.442695
  %v818 = vpow.pop %v817
  %819 = vadd.xlane.f32.xlu0 %v788
  %v820 = vpop.xlane.xlu0 %819
  %821 = vadd.xlane.f32.xlu0 %v790
  %v822 = vpop.xlane.xlu0 %821
  %823 = vadd.xlane.f32.xlu0 %v792
  %v824 = vpop.xlane.xlu0 %823
  %825 = vadd.xlane.f32.xlu0 %v794
  %v826 = vpop.xlane.xlu0 %825
  %827 = vadd.xlane.f32.xlu0 %v796
  %v828 = vpop.xlane.xlu0 %827
  %829 = vadd.xlane.f32.xlu0 %v798
  %v830 = vpop.xlane.xlu0 %829
  %831 = vadd.xlane.f32.xlu0 %v800
  %v832 = vpop.xlane.xlu0 %831
  %833 = vadd.xlane.f32.xlu0 %v802
  %v834 = vpop.xlane.xlu0 %833
  %835 = vadd.xlane.f32.xlu0 %v804
  %v836 = vpop.xlane.xlu0 %835
  %837 = vadd.xlane.f32.xlu0 %v806
  %v838 = vpop.xlane.xlu0 %837
  %839 = vadd.xlane.f32.xlu0 %v808
  %v840 = vpop.xlane.xlu0 %839
  %841 = vadd.xlane.f32.xlu0 %v810
  %v842 = vpop.xlane.xlu0 %841
  %843 = vadd.xlane.f32.xlu0 %v812
  %v844 = vpop.xlane.xlu0 %843
  %845 = vadd.xlane.f32.xlu0 %v814
  %v846 = vpop.xlane.xlu0 %845
  %847 = vadd.xlane.f32.xlu0 %v816
  %v848 = vpop.xlane.xlu0 %847
  %849 = vadd.xlane.f32.xlu0 %v818
  %v850 = vpop.xlane.xlu0 %849
  %v851 = vrcp.pop %v820
  %v852 = vmul.f32 %v788, %v851
  %v853 = vrcp.pop %v822
  %v854 = vmul.f32 %v790, %v853
  %v855 = vrcp.pop %v824
  %v856 = vmul.f32 %v792, %v855
  %v857 = vrcp.pop %v826
  %v858 = vmul.f32 %v794, %v857
  %v859 = vrcp.pop %v828
  %v860 = vmul.f32 %v796, %v859
  %v861 = vrcp.pop %v830
  %v862 = vmul.f32 %v798, %v861
  %v863 = vrcp.pop %v832
  %v864 = vmul.f32 %v800, %v863
  %v865 = vrcp.pop %v834
  %v866 = vmul.f32 %v802, %v865
  %v867 = vrcp.pop %v836
  %v868 = vmul.f32 %v804, %v867
  %v869 = vrcp.pop %v838
  %v870 = vmul.f32 %v806, %v869
  %v871 = vrcp.pop %v840
  %v872 = vmul.f32 %v808, %v871
  %v873 = vrcp.pop %v842
  %v874 = vmul.f32 %v810, %v873
  %v875 = vrcp.pop %v844
  %v876 = vmul.f32 %v812, %v875
  %v877 = vrcp.pop %v846
  %v878 = vmul.f32 %v814, %v877
  %v879 = vrcp.pop %v848
  %v880 = vmul.f32 %v816, %v879
  %v881 = vrcp.pop %v850
  %v882 = vmul.f32 %v818, %v881
  %883 = vmatprep.subr.mxu0 0.0
  %884 = vmatpush1.xpose.msra.mxu0 0.0
  %885 = vmatprep.subr.mxu0 0.0
  %886 = vmatpush1.xpose.msra.mxu0 0.0
  %887 = vmatprep.subr.mxu0 0.0
  %888 = vmatpush1.xpose.msra.mxu0 0.0
  %889 = vmatprep.subr.mxu0 0.0
  %890 = vmatpush1.xpose.msra.mxu0 0.0
  %891 = vmatprep.subr.mxu0 0.0
  %892 = vmatpush1.xpose.msra.mxu0 0.0
  %893 = vmatprep.subr.mxu0 0.0
  %894 = vmatpush1.xpose.msra.mxu0 0.0
  %895 = vmatprep.subr.mxu0 0.0
  %896 = vmatpush1.xpose.msra.mxu0 0.0
  %897 = vmatprep.subr.mxu0 0.0
  %898 = vmatpush1.xpose.msra.mxu0 0.0
  %899 = vmatprep.subr.mxu0 0.0
  %900 = vmatpush1.xpose.msra.mxu0 0.0
  %901 = vmatprep.subr.mxu0 0.0
  %902 = vmatpush1.xpose.msra.mxu0 0.0
  %903 = vmatprep.subr.mxu0 0.0
  %904 = vmatpush1.xpose.msra.mxu0 0.0
  %905 = vmatprep.subr.mxu0 0.0
  %906 = vmatpush1.xpose.msra.mxu0 0.0
  %907 = vmatprep.subr.mxu0 0.0
  %908 = vmatpush1.xpose.msra.mxu0 0.0
  %909 = vmatprep.subr.mxu0 0.0
  %910 = vmatpush1.xpose.msra.mxu0 0.0
  %911 = vmatprep.subr.mxu0 0.0
  %912 = vmatpush1.xpose.msra.mxu0 0.0
  %913 = vmatprep.subr.mxu0 0.0
  %914 = vmatpush1.xpose.msra.mxu0 %v491
  %915 = vmatprep.subr.mxu0 0.0
  %916 = vmatpush2.xpose.msra.mxu0 0.0
  %917 = vmatprep.subr.mxu0 0.0
  %918 = vmatpush2.xpose.msra.mxu0 0.0
  %919 = vmatprep.subr.mxu0 0.0
  %920 = vmatpush2.xpose.msra.mxu0 0.0
  %921 = vmatprep.subr.mxu0 0.0
  %922 = vmatpush2.xpose.msra.mxu0 0.0
  %923 = vmatprep.subr.mxu0 0.0
  %924 = vmatpush2.xpose.msra.mxu0 0.0
  %925 = vmatprep.subr.mxu0 0.0
  %926 = vmatpush2.xpose.msra.mxu0 0.0
  %927 = vmatprep.subr.mxu0 0.0
  %928 = vmatpush2.xpose.msra.mxu0 0.0
  %929 = vmatprep.subr.mxu0 0.0
  %930 = vmatpush2.xpose.msra.mxu0 0.0
  %931 = vmatprep.subr.mxu0 0.0
  %932 = vmatpush2.xpose.msra.mxu0 0.0
  %933 = vmatprep.subr.mxu0 0.0
  %934 = vmatpush2.xpose.msra.mxu0 0.0
  %935 = vmatprep.subr.mxu0 0.0
  %936 = vmatpush2.xpose.msra.mxu0 0.0
  %937 = vmatprep.subr.mxu0 0.0
  %938 = vmatpush2.xpose.msra.mxu0 0.0
  %939 = vmatprep.subr.mxu0 0.0
  %940 = vmatpush2.xpose.msra.mxu0 0.0
  %941 = vmatprep.subr.mxu0 0.0
  %942 = vmatpush2.xpose.msra.mxu0 0.0
  %943 = vmatprep.subr.mxu0 0.0
  %944 = vmatpush2.xpose.msra.mxu0 0.0
  %945 = vmatprep.subr.mxu0 0.0
  %946 = vmatpush2.xpose.msra.mxu0 0.0
  %947 = vmatprep.mubr.f32.mxu0 0.0
  %948 = vmatmul.mubr.f32.gmra.mxu0 %v852
  %v949 = vpop.f32.mrf.mxu0
  %v950 = vadd.f32 0.0, %v949
  %v951 = vpop.f32.mrf.mxu0
  %952 = vmatprep.mubr.f32.mxu0 0.0
  %953 = vmatmul.mubr.f32.gmra.mxu0 %v854
  %v954 = vpop.f32.mrf.mxu0
  %v955 = vadd.f32 0.0, %v954
  %v956 = vpop.f32.mrf.mxu0
  %957 = vmatprep.mubr.f32.mxu0 0.0
  %958 = vmatmul.mubr.f32.gmra.mxu0 %v856
  %v959 = vpop.f32.mrf.mxu0
  %v960 = vadd.f32 0.0, %v959
  %v961 = vpop.f32.mrf.mxu0
  %962 = vmatprep.mubr.f32.mxu0 0.0
  %963 = vmatmul.mubr.f32.gmra.mxu0 %v858
  %v964 = vpop.f32.mrf.mxu0
  %v965 = vadd.f32 0.0, %v964
  %v966 = vpop.f32.mrf.mxu0
  %967 = vmatprep.mubr.f32.mxu0 0.0
  %968 = vmatmul.mubr.f32.gmra.mxu0 %v860
  %v969 = vpop.f32.mrf.mxu0
  %v970 = vadd.f32 0.0, %v969
  %v971 = vpop.f32.mrf.mxu0
  %972 = vmatprep.mubr.f32.mxu0 0.0
  %973 = vmatmul.mubr.f32.gmra.mxu0 %v862
  %v974 = vpop.f32.mrf.mxu0
  %v975 = vadd.f32 0.0, %v974
  %v976 = vpop.f32.mrf.mxu0
  %977 = vmatprep.mubr.f32.mxu0 0.0
  %978 = vmatmul.mubr.f32.gmra.mxu0 %v864
  %v979 = vpop.f32.mrf.mxu0
  %v980 = vadd.f32 0.0, %v979
  %v981 = vpop.f32.mrf.mxu0
  %982 = vmatprep.mubr.f32.mxu0 0.0
  %983 = vmatmul.mubr.f32.gmra.mxu0 %v866
  %v984 = vpop.f32.mrf.mxu0
  %v985 = vadd.f32 0.0, %v984
  %v986 = vpop.f32.mrf.mxu0
  %987 = vmatprep.mubr.f32.mxu0 0.0
  %988 = vmatmul.mubr.f32.gmra.mxu0 %v868
  %v989 = vpop.f32.mrf.mxu0
  %v990 = vadd.f32 0.0, %v989
  %v991 = vpop.f32.mrf.mxu0
  %992 = vmatprep.mubr.f32.mxu0 0.0
  %993 = vmatmul.mubr.f32.gmra.mxu0 %v870
  %v994 = vpop.f32.mrf.mxu0
  %v995 = vadd.f32 0.0, %v994
  %v996 = vpop.f32.mrf.mxu0
  %997 = vmatprep.mubr.f32.mxu0 0.0
  %998 = vmatmul.mubr.f32.gmra.mxu0 %v872
  %v999 = vpop.f32.mrf.mxu0
  %v1000 = vadd.f32 0.0, %v999
  %v1001 = vpop.f32.mrf.mxu0
  %1002 = vmatprep.mubr.f32.mxu0 0.0
  %1003 = vmatmul.mubr.f32.gmra.mxu0 %v874
  %v1004 = vpop.f32.mrf.mxu0
  %v1005 = vadd.f32 0.0, %v1004
  %v1006 = vpop.f32.mrf.mxu0
  %1007 = vmatprep.mubr.f32.mxu0 0.0
  %1008 = vmatmul.mubr.f32.gmra.mxu0 %v876
  %v1009 = vpop.f32.mrf.mxu0
  %v1010 = vadd.f32 0.0, %v1009
  %v1011 = vpop.f32.mrf.mxu0
  %1012 = vmatprep.mubr.f32.mxu0 0.0
  %1013 = vmatmul.mubr.f32.gmra.mxu0 %v878
  %v1014 = vpop.f32.mrf.mxu0
  %v1015 = vadd.f32 0.0, %v1014
  %v1016 = vpop.f32.mrf.mxu0
  %1017 = vmatprep.mubr.f32.mxu0 0.0
  %1018 = vmatmul.mubr.f32.gmra.mxu0 %v880
  %v1019 = vpop.f32.mrf.mxu0
  %v1020 = vadd.f32 0.0, %v1019
  %v1021 = vpop.f32.mrf.mxu0
  %1022 = vmatprep.mubr.f32.mxu0 0.0
  %1023 = vmatmul.mubr.f32.gmra.mxu0 %v882
  %v1024 = vpop.f32.mrf.mxu0
  %v1025 = vadd.f32 0.0, %v1024
  %v1026 = vpop.f32.mrf.mxu0
  %1027 = vdwg.mxu0
  %1028 = vst.msk [vmem:[#allocation2] sm:$0xff] %vm545, %v950
  %1029 = vst.msk [vmem:[#allocation2 + $0x8] sm:$0xff] %vm545, %v955
  %1030 = vst.msk [vmem:[#allocation2 + $0x10] sm:$0xff] %vm545, %v960
  %1031 = vst.msk [vmem:[#allocation2 + $0x18] sm:$0xff] %vm545, %v965
  %1032 = vst.msk [vmem:[#allocation2 + $0x20] sm:$0xff] %vm545, %v970
  %1033 = vst.msk [vmem:[#allocation2 + $0x28] sm:$0xff] %vm545, %v975
  %1034 = vst.msk [vmem:[#allocation2 + $0x30] sm:$0xff] %vm545, %v980
  %1035 = vst.msk [vmem:[#allocation2 + $0x38] sm:$0xff] %vm545, %v985
  %1036 = vst.msk [vmem:[#allocation2 + $0x40] sm:$0xff] %vm545, %v990
  %1037 = vst.msk [vmem:[#allocation2 + $0x48] sm:$0xff] %vm545, %v995
  %1038 = vst.msk [vmem:[#allocation2 + $0x50] sm:$0xff] %vm545, %v1000
  %1039 = vst.msk [vmem:[#allocation2 + $0x58] sm:$0xff] %vm545, %v1005
  %1040 = vst.msk [vmem:[#allocation2 + $0x60] sm:$0xff] %vm545, %v1010
  %1041 = vst.msk [vmem:[#allocation2 + $0x68] sm:$0xff] %vm545, %v1015
  %1042 = vst.msk [vmem:[#allocation2 + $0x70] sm:$0xff] %vm545, %v1020
  %1043 = vst.msk [vmem:[#allocation2 + $0x78] sm:$0xff] %vm545, %v1025
  %1044 = vrot.lane.b32.xlu0 %v529, 120
  %v1045 = vpop.permute.xlu0 %1044
  %1046 = vrot.lane.b32.xlu0 %v530, 120
  %v1047 = vpop.permute.xlu0 %1046
  %1048 = vrot.lane.b32.xlu0 %v531, 120
  %v1049 = vpop.permute.xlu0 %1048
  %1050 = vrot.lane.b32.xlu0 %v532, 120
  %v1051 = vpop.permute.xlu0 %1050
  %1052 = vrot.lane.b32.xlu0 %v533, 120
  %v1053 = vpop.permute.xlu0 %1052
  %1054 = vrot.lane.b32.xlu0 %v534, 120
  %v1055 = vpop.permute.xlu0 %1054
  %1056 = vrot.lane.b32.xlu0 %v535, 120
  %v1057 = vpop.permute.xlu0 %1056
  %1058 = vrot.lane.b32.xlu0 %v536, 120
  %v1059 = vpop.permute.xlu0 %1058
  %1060 = vrot.lane.b32.xlu0 %v537, 120
  %v1061 = vpop.permute.xlu0 %1060
  %1062 = vrot.lane.b32.xlu0 %v538, 120
  %v1063 = vpop.permute.xlu0 %1062
  %1064 = vrot.lane.b32.xlu0 %v539, 120
  %v1065 = vpop.permute.xlu0 %1064
  %1066 = vrot.lane.b32.xlu0 %v540, 120
  %v1067 = vpop.permute.xlu0 %1066
  %1068 = vrot.lane.b32.xlu0 %v541, 120
  %v1069 = vpop.permute.xlu0 %1068
  %1070 = vrot.lane.b32.xlu0 %v542, 120
  %v1071 = vpop.permute.xlu0 %1070
  %1072 = vrot.lane.b32.xlu0 %v543, 120
  %v1073 = vpop.permute.xlu0 %1072
  %1074 = vrot.lane.b32.xlu0 %v544, 120
  %v1075 = vpop.permute.xlu0 %1074
  %v1076 = vsel %vm545, %v1045, 0
  %v1078 = vsel %vm545, %v1047, 0
  %v1080 = vsel %vm545, %v1049, 0
  %v1082 = vsel %vm545, %v1051, 0
  %v1084 = vsel %vm545, %v1053, 0
  %v1086 = vsel %vm545, %v1055, 0
  %v1088 = vsel %vm545, %v1057, 0
  %v1090 = vsel %vm545, %v1059, 0
  %v1092 = vsel %vm545, %v1061, 0
  %v1094 = vsel %vm545, %v1063, 0
  %v1096 = vsel %vm545, %v1065, 0
  %v1098 = vsel %vm545, %v1067, 0
  %v1100 = vsel %vm545, %v1069, 0
  %v1102 = vsel %vm545, %v1071, 0
  %v1104 = vsel %vm545, %v1073, 0
  %v1106 = vsel %vm545, %v1075, 0
  %1108 = vmatprep.subr.mxu0 0.0
  %1109 = vmatpush1.msra.mxu0 0.0
  %1110 = vmatprep.subr.mxu0 0.0
  %1111 = vmatpush1.msra.mxu0 0.0
  %1112 = vmatprep.subr.mxu0 0.0
  %1113 = vmatpush1.msra.mxu0 0.0
  %1114 = vmatprep.subr.mxu0 0.0
  %1115 = vmatpush1.msra.mxu0 0.0
  %1116 = vmatprep.subr.mxu0 0.0
  %1117 = vmatpush1.msra.mxu0 0.0
  %1118 = vmatprep.subr.mxu0 0.0
  %1119 = vmatpush1.msra.mxu0 0.0
  %1120 = vmatprep.subr.mxu0 0.0
  %1121 = vmatpush1.msra.mxu0 0.0
  %1122 = vmatprep.subr.mxu0 0.0
  %1123 = vmatpush1.msra.mxu0 0.0
  %1124 = vmatprep.subr.mxu0 0.0
  %1125 = vmatpush1.msra.mxu0 0.0
  %1126 = vmatprep.subr.mxu0 0.0
  %1127 = vmatpush1.msra.mxu0 0.0
  %1128 = vmatprep.subr.mxu0 0.0
  %1129 = vmatpush1.msra.mxu0 0.0
  %1130 = vmatprep.subr.mxu0 0.0
  %1131 = vmatpush1.msra.mxu0 0.0
  %1132 = vmatprep.subr.mxu0 0.0
  %1133 = vmatpush1.msra.mxu0 0.0
  %1134 = vmatprep.subr.mxu0 0.0
  %1135 = vmatpush1.msra.mxu0 0.0
  %1136 = vmatprep.subr.mxu0 0.0
  %1137 = vmatpush1.msra.mxu0 0.0
  %1138 = vmatprep.subr.mxu0 0.0
  %1139 = vmatpush1.msra.mxu0 %v473
  %1140 = vmatprep.subr.mxu0 0.0
  %1141 = vmatpush2.msra.mxu0 0.0
  %1142 = vmatprep.subr.mxu0 0.0
  %1143 = vmatpush2.msra.mxu0 0.0
  %1144 = vmatprep.subr.mxu0 0.0
  %1145 = vmatpush2.msra.mxu0 0.0
  %1146 = vmatprep.subr.mxu0 0.0
  %1147 = vmatpush2.msra.mxu0 0.0
  %1148 = vmatprep.subr.mxu0 0.0
  %1149 = vmatpush2.msra.mxu0 0.0
  %1150 = vmatprep.subr.mxu0 0.0
  %1151 = vmatpush2.msra.mxu0 0.0
  %1152 = vmatprep.subr.mxu0 0.0
  %1153 = vmatpush2.msra.mxu0 0.0
  %1154 = vmatprep.subr.mxu0 0.0
  %1155 = vmatpush2.msra.mxu0 0.0
  %1156 = vmatprep.subr.mxu0 0.0
  %1157 = vmatpush2.msra.mxu0 0.0
  %1158 = vmatprep.subr.mxu0 0.0
  %1159 = vmatpush2.msra.mxu0 0.0
  %1160 = vmatprep.subr.mxu0 0.0
  %1161 = vmatpush2.msra.mxu0 0.0
  %1162 = vmatprep.subr.mxu0 0.0
  %1163 = vmatpush2.msra.mxu0 0.0
  %1164 = vmatprep.subr.mxu0 0.0
  %1165 = vmatpush2.msra.mxu0 0.0
  %1166 = vmatprep.subr.mxu0 0.0
  %1167 = vmatpush2.msra.mxu0 0.0
  %1168 = vmatprep.subr.mxu0 0.0
  %1169 = vmatpush2.msra.mxu0 0.0
  %1170 = vmatprep.subr.mxu0 0.0
  %1171 = vmatpush2.msra.mxu0 0.0
  %1172 = vmatprep.mubr.f32.mxu0 0.0
  %1173 = vmatmul.mubr.f32.gmra.mxu0 %v1076
  %v1174 = vpop.f32.mrf.mxu0
  %v1175 = vadd.f32 0.0, %v1174
  %v1176 = vpop.f32.mrf.mxu0
  %1177 = vmatprep.mubr.f32.mxu0 0.0
  %1178 = vmatmul.mubr.f32.gmra.mxu0 %v1078
  %v1179 = vpop.f32.mrf.mxu0
  %v1180 = vadd.f32 0.0, %v1179
  %v1181 = vpop.f32.mrf.mxu0
  %1182 = vmatprep.mubr.f32.mxu0 0.0
  %1183 = vmatmul.mubr.f32.gmra.mxu0 %v1080
  %v1184 = vpop.f32.mrf.mxu0
  %v1185 = vadd.f32 0.0, %v1184
  %v1186 = vpop.f32.mrf.mxu0
  %1187 = vmatprep.mubr.f32.mxu0 0.0
  %1188 = vmatmul.mubr.f32.gmra.mxu0 %v1082
  %v1189 = vpop.f32.mrf.mxu0
  %v1190 = vadd.f32 0.0, %v1189
  %v1191 = vpop.f32.mrf.mxu0
  %1192 = vmatprep.mubr.f32.mxu0 0.0
  %1193 = vmatmul.mubr.f32.gmra.mxu0 %v1084
  %v1194 = vpop.f32.mrf.mxu0
  %v1195 = vadd.f32 0.0, %v1194
  %v1196 = vpop.f32.mrf.mxu0
  %1197 = vmatprep.mubr.f32.mxu0 0.0
  %1198 = vmatmul.mubr.f32.gmra.mxu0 %v1086
  %v1199 = vpop.f32.mrf.mxu0
  %v1200 = vadd.f32 0.0, %v1199
  %v1201 = vpop.f32.mrf.mxu0
  %1202 = vmatprep.mubr.f32.mxu0 0.0
  %1203 = vmatmul.mubr.f32.gmra.mxu0 %v1088
  %v1204 = vpop.f32.mrf.mxu0
  %v1205 = vadd.f32 0.0, %v1204
  %v1206 = vpop.f32.mrf.mxu0
  %1207 = vmatprep.mubr.f32.mxu0 0.0
  %1208 = vmatmul.mubr.f32.gmra.mxu0 %v1090
  %v1209 = vpop.f32.mrf.mxu0
  %v1210 = vadd.f32 0.0, %v1209
  %v1211 = vpop.f32.mrf.mxu0
  %1212 = vmatprep.mubr.f32.mxu0 0.0
  %1213 = vmatmul.mubr.f32.gmra.mxu0 %v1092
  %v1214 = vpop.f32.mrf.mxu0
  %v1215 = vadd.f32 0.0, %v1214
  %v1216 = vpop.f32.mrf.mxu0
  %1217 = vmatprep.mubr.f32.mxu0 0.0
  %1218 = vmatmul.mubr.f32.gmra.mxu0 %v1094
  %v1219 = vpop.f32.mrf.mxu0
  %v1220 = vadd.f32 0.0, %v1219
  %v1221 = vpop.f32.mrf.mxu0
  %1222 = vmatprep.mubr.f32.mxu0 0.0
  %1223 = vmatmul.mubr.f32.gmra.mxu0 %v1096
  %v1224 = vpop.f32.mrf.mxu0
  %v1225 = vadd.f32 0.0, %v1224
  %v1226 = vpop.f32.mrf.mxu0
  %1227 = vmatprep.mubr.f32.mxu0 0.0
  %1228 = vmatmul.mubr.f32.gmra.mxu0 %v1098
  %v1229 = vpop.f32.mrf.mxu0
  %v1230 = vadd.f32 0.0, %v1229
  %v1231 = vpop.f32.mrf.mxu0
  %1232 = vmatprep.mubr.f32.mxu0 0.0
  %1233 = vmatmul.mubr.f32.gmra.mxu0 %v1100
  %v1234 = vpop.f32.mrf.mxu0
  %v1235 = vadd.f32 0.0, %v1234
  %v1236 = vpop.f32.mrf.mxu0
  %1237 = vmatprep.mubr.f32.mxu0 0.0
  %1238 = vmatmul.mubr.f32.gmra.mxu0 %v1102
  %v1239 = vpop.f32.mrf.mxu0
  %v1240 = vadd.f32 0.0, %v1239
  %v1241 = vpop.f32.mrf.mxu0
  %1242 = vmatprep.mubr.f32.mxu0 0.0
  %1243 = vmatmul.mubr.f32.gmra.mxu0 %v1104
  %v1244 = vpop.f32.mrf.mxu0
  %v1245 = vadd.f32 0.0, %v1244
  %v1246 = vpop.f32.mrf.mxu0
  %1247 = vmatprep.mubr.f32.mxu0 0.0
  %1248 = vmatmul.mubr.f32.gmra.mxu0 %v1106
  %v1249 = vpop.f32.mrf.mxu0
  %v1250 = vadd.f32 0.0, %v1249
  %v1251 = vpop.f32.mrf.mxu0
  %1252 = vdwg.mxu0
  %1253 = vmax.xlane.f32.xlu0 %v1175
  %v1254 = vpop.xlane.xlu0 %1253
  %1255 = vmax.xlane.f32.xlu0 %v1180
  %v1256 = vpop.xlane.xlu0 %1255
  %1257 = vmax.xlane.f32.xlu0 %v1185
  %v1258 = vpop.xlane.xlu0 %1257
  %1259 = vmax.xlane.f32.xlu0 %v1190
  %v1260 = vpop.xlane.xlu0 %1259
  %1261 = vmax.xlane.f32.xlu0 %v1195
  %v1262 = vpop.xlane.xlu0 %1261
  %1263 = vmax.xlane.f32.xlu0 %v1200
  %v1264 = vpop.xlane.xlu0 %1263
  %1265 = vmax.xlane.f32.xlu0 %v1205
  %v1266 = vpop.xlane.xlu0 %1265
  %1267 = vmax.xlane.f32.xlu0 %v1210
  %v1268 = vpop.xlane.xlu0 %1267
  %1269 = vmax.xlane.f32.xlu0 %v1215
  %v1270 = vpop.xlane.xlu0 %1269
  %1271 = vmax.xlane.f32.xlu0 %v1220
  %v1272 = vpop.xlane.xlu0 %1271
  %1273 = vmax.xlane.f32.xlu0 %v1225
  %v1274 = vpop.xlane.xlu0 %1273
  %1275 = vmax.xlane.f32.xlu0 %v1230
  %v1276 = vpop.xlane.xlu0 %1275
  %1277 = vmax.xlane.f32.xlu0 %v1235
  %v1278 = vpop.xlane.xlu0 %1277
  %1279 = vmax.xlane.f32.xlu0 %v1240
  %v1280 = vpop.xlane.xlu0 %1279
  %1281 = vmax.xlane.f32.xlu0 %v1245
  %v1282 = vpop.xlane.xlu0 %1281
  %1283 = vmax.xlane.f32.xlu0 %v1250
  %v1284 = vpop.xlane.xlu0 %1283
  %v1285 = vsub.f32 %v1175, %v1254
  %v1286 = vsub.f32 %v1180, %v1256
  %v1287 = vsub.f32 %v1185, %v1258
  %v1288 = vsub.f32 %v1190, %v1260
  %v1289 = vsub.f32 %v1195, %v1262
  %v1290 = vsub.f32 %v1200, %v1264
  %v1291 = vsub.f32 %v1205, %v1266
  %v1292 = vsub.f32 %v1210, %v1268
  %v1293 = vsub.f32 %v1215, %v1270
  %v1294 = vsub.f32 %v1220, %v1272
  %v1295 = vsub.f32 %v1225, %v1274
  %v1296 = vsub.f32 %v1230, %v1276
  %v1297 = vsub.f32 %v1235, %v1278
  %v1298 = vsub.f32 %v1240, %v1280
  %v1299 = vsub.f32 %v1245, %v1282
  %v1300 = vsub.f32 %v1250, %v1284
  %v1301 = vmul.f32 %v1285, 1.442695
  %v1302 = vpow.pop %v1301
  %v1303 = vmul.f32 %v1286, 1.442695
  %v1304 = vpow.pop %v1303
  %v1305 = vmul.f32 %v1287, 1.442695
  %v1306 = vpow.pop %v1305
  %v1307 = vmul.f32 %v1288, 1.442695
  %v1308 = vpow.pop %v1307
  %v1309 = vmul.f32 %v1289, 1.442695
  %v1310 = vpow.pop %v1309
  %v1311 = vmul.f32 %v1290, 1.442695
  %v1312 = vpow.pop %v1311
  %v1313 = vmul.f32 %v1291, 1.442695
  %v1314 = vpow.pop %v1313
  %v1315 = vmul.f32 %v1292, 1.442695
  %v1316 = vpow.pop %v1315
  %v1317 = vmul.f32 %v1293, 1.442695
  %v1318 = vpow.pop %v1317
  %v1319 = vmul.f32 %v1294, 1.442695
  %v1320 = vpow.pop %v1319
  %v1321 = vmul.f32 %v1295, 1.442695
  %v1322 = vpow.pop %v1321
  %v1323 = vmul.f32 %v1296, 1.442695
  %v1324 = vpow.pop %v1323
  %v1325 = vmul.f32 %v1297, 1.442695
  %v1326 = vpow.pop %v1325
  %v1327 = vmul.f32 %v1298, 1.442695
  %v1328 = vpow.pop %v1327
  %v1329 = vmul.f32 %v1299, 1.442695
  %v1330 = vpow.pop %v1329
  %v1331 = vmul.f32 %v1300, 1.442695
  %v1332 = vpow.pop %v1331
  %1333 = vadd.xlane.f32.xlu0 %v1302
  %v1334 = vpop.xlane.xlu0 %1333
  %1335 = vadd.xlane.f32.xlu0 %v1304
  %v1336 = vpop.xlane.xlu0 %1335
  %1337 = vadd.xlane.f32.xlu0 %v1306
  %v1338 = vpop.xlane.xlu0 %1337
  %1339 = vadd.xlane.f32.xlu0 %v1308
  %v1340 = vpop.xlane.xlu0 %1339
  %1341 = vadd.xlane.f32.xlu0 %v1310
  %v1342 = vpop.xlane.xlu0 %1341
  %1343 = vadd.xlane.f32.xlu0 %v1312
  %v1344 = vpop.xlane.xlu0 %1343
  %1345 = vadd.xlane.f32.xlu0 %v1314
  %v1346 = vpop.xlane.xlu0 %1345
  %1347 = vadd.xlane.f32.xlu0 %v1316
  %v1348 = vpop.xlane.xlu0 %1347
  %1349 = vadd.xlane.f32.xlu0 %v1318
  %v1350 = vpop.xlane.xlu0 %1349
  %1351 = vadd.xlane.f32.xlu0 %v1320
  %v1352 = vpop.xlane.xlu0 %1351
  %1353 = vadd.xlane.f32.xlu0 %v1322
  %v1354 = vpop.xlane.xlu0 %1353
  %1355 = vadd.xlane.f32.xlu0 %v1324
  %v1356 = vpop.xlane.xlu0 %1355
  %1357 = vadd.xlane.f32.xlu0 %v1326
  %v1358 = vpop.xlane.xlu0 %1357
  %1359 = vadd.xlane.f32.xlu0 %v1328
  %v1360 = vpop.xlane.xlu0 %1359
  %1361 = vadd.xlane.f32.xlu0 %v1330
  %v1362 = vpop.xlane.xlu0 %1361
  %1363 = vadd.xlane.f32.xlu0 %v1332
  %v1364 = vpop.xlane.xlu0 %1363
  %v1365 = vrcp.pop %v1334
  %v1366 = vmul.f32 %v1302, %v1365
  %v1367 = vrcp.pop %v1336
  %v1368 = vmul.f32 %v1304, %v1367
  %v1369 = vrcp.pop %v1338
  %v1370 = vmul.f32 %v1306, %v1369
  %v1371 = vrcp.pop %v1340
  %v1372 = vmul.f32 %v1308, %v1371
  %v1373 = vrcp.pop %v1342
  %v1374 = vmul.f32 %v1310, %v1373
  %v1375 = vrcp.pop %v1344
  %v1376 = vmul.f32 %v1312, %v1375
  %v1377 = vrcp.pop %v1346
  %v1378 = vmul.f32 %v1314, %v1377
  %v1379 = vrcp.pop %v1348
  %v1380 = vmul.f32 %v1316, %v1379
  %v1381 = vrcp.pop %v1350
  %v1382 = vmul.f32 %v1318, %v1381
  %v1383 = vrcp.pop %v1352
  %v1384 = vmul.f32 %v1320, %v1383
  %v1385 = vrcp.pop %v1354
  %v1386 = vmul.f32 %v1322, %v1385
  %v1387 = vrcp.pop %v1356
  %v1388 = vmul.f32 %v1324, %v1387
  %v1389 = vrcp.pop %v1358
  %v1390 = vmul.f32 %v1326, %v1389
  %v1391 = vrcp.pop %v1360
  %v1392 = vmul.f32 %v1328, %v1391
  %v1393 = vrcp.pop %v1362
  %v1394 = vmul.f32 %v1330, %v1393
  %v1395 = vrcp.pop %v1364
  %v1396 = vmul.f32 %v1332, %v1395
  %1397 = vmatprep.subr.mxu0 0.0
  %1398 = vmatpush1.xpose.msra.mxu0 0.0
  %1399 = vmatprep.subr.mxu0 0.0
  %1400 = vmatpush1.xpose.msra.mxu0 0.0
  %1401 = vmatprep.subr.mxu0 0.0
  %1402 = vmatpush1.xpose.msra.mxu0 0.0
  %1403 = vmatprep.subr.mxu0 0.0
  %1404 = vmatpush1.xpose.msra.mxu0 0.0
  %1405 = vmatprep.subr.mxu0 0.0
  %1406 = vmatpush1.xpose.msra.mxu0 0.0
  %1407 = vmatprep.subr.mxu0 0.0
  %1408 = vmatpush1.xpose.msra.mxu0 0.0
  %1409 = vmatprep.subr.mxu0 0.0
  %1410 = vmatpush1.xpose.msra.mxu0 0.0
  %1411 = vmatprep.subr.mxu0 0.0
  %1412 = vmatpush1.xpose.msra.mxu0 0.0
  %1413 = vmatprep.subr.mxu0 0.0
  %1414 = vmatpush1.xpose.msra.mxu0 0.0
  %1415 = vmatprep.subr.mxu0 0.0
  %1416 = vmatpush1.xpose.msra.mxu0 0.0
  %1417 = vmatprep.subr.mxu0 0.0
  %1418 = vmatpush1.xpose.msra.mxu0 0.0
  %1419 = vmatprep.subr.mxu0 0.0
  %1420 = vmatpush1.xpose.msra.mxu0 0.0
  %1421 = vmatprep.subr.mxu0 0.0
  %1422 = vmatpush1.xpose.msra.mxu0 0.0
  %1423 = vmatprep.subr.mxu0 0.0
  %1424 = vmatpush1.xpose.msra.mxu0 0.0
  %1425 = vmatprep.subr.mxu0 0.0
  %1426 = vmatpush1.xpose.msra.mxu0 0.0
  %1427 = vmatprep.subr.mxu0 0.0
  %1428 = vmatpush1.xpose.msra.mxu0 %v497
  %1429 = vmatprep.subr.mxu0 0.0
  %1430 = vmatpush2.xpose.msra.mxu0 0.0
  %1431 = vmatprep.subr.mxu0 0.0
  %1432 = vmatpush2.xpose.msra.mxu0 0.0
  %1433 = vmatprep.subr.mxu0 0.0
  %1434 = vmatpush2.xpose.msra.mxu0 0.0
  %1435 = vmatprep.subr.mxu0 0.0
  %1436 = vmatpush2.xpose.msra.mxu0 0.0
  %1437 = vmatprep.subr.mxu0 0.0
  %1438 = vmatpush2.xpose.msra.mxu0 0.0
  %1439 = vmatprep.subr.mxu0 0.0
  %1440 = vmatpush2.xpose.msra.mxu0 0.0
  %1441 = vmatprep.subr.mxu0 0.0
  %1442 = vmatpush2.xpose.msra.mxu0 0.0
  %1443 = vmatprep.subr.mxu0 0.0
  %1444 = vmatpush2.xpose.msra.mxu0 0.0
  %1445 = vmatprep.subr.mxu0 0.0
  %1446 = vmatpush2.xpose.msra.mxu0 0.0
  %1447 = vmatprep.subr.mxu0 0.0
  %1448 = vmatpush2.xpose.msra.mxu0 0.0
  %1449 = vmatprep.subr.mxu0 0.0
  %1450 = vmatpush2.xpose.msra.mxu0 0.0
  %1451 = vmatprep.subr.mxu0 0.0
  %1452 = vmatpush2.xpose.msra.mxu0 0.0
  %1453 = vmatprep.subr.mxu0 0.0
  %1454 = vmatpush2.xpose.msra.mxu0 0.0
  %1455 = vmatprep.subr.mxu0 0.0
  %1456 = vmatpush2.xpose.msra.mxu0 0.0
  %1457 = vmatprep.subr.mxu0 0.0
  %1458 = vmatpush2.xpose.msra.mxu0 0.0
  %1459 = vmatprep.subr.mxu0 0.0
  %1460 = vmatpush2.xpose.msra.mxu0 0.0
  %1461 = vmatprep.mubr.f32.mxu0 0.0
  %1462 = vmatmul.mubr.f32.gmra.mxu0 %v1366
  %v1463 = vpop.f32.mrf.mxu0
  %v1464 = vadd.f32 0.0, %v1463
  %v1465 = vpop.f32.mrf.mxu0
  %1466 = vmatprep.mubr.f32.mxu0 0.0
  %1467 = vmatmul.mubr.f32.gmra.mxu0 %v1368
  %v1468 = vpop.f32.mrf.mxu0
  %v1469 = vadd.f32 0.0, %v1468
  %v1470 = vpop.f32.mrf.mxu0
  %1471 = vmatprep.mubr.f32.mxu0 0.0
  %1472 = vmatmul.mubr.f32.gmra.mxu0 %v1370
  %v1473 = vpop.f32.mrf.mxu0
  %v1474 = vadd.f32 0.0, %v1473
  %v1475 = vpop.f32.mrf.mxu0
  %1476 = vmatprep.mubr.f32.mxu0 0.0
  %1477 = vmatmul.mubr.f32.gmra.mxu0 %v1372
  %v1478 = vpop.f32.mrf.mxu0
  %v1479 = vadd.f32 0.0, %v1478
  %v1480 = vpop.f32.mrf.mxu0
  %1481 = vmatprep.mubr.f32.mxu0 0.0
  %1482 = vmatmul.mubr.f32.gmra.mxu0 %v1374
  %v1483 = vpop.f32.mrf.mxu0
  %v1484 = vadd.f32 0.0, %v1483
  %v1485 = vpop.f32.mrf.mxu0
  %1486 = vmatprep.mubr.f32.mxu0 0.0
  %1487 = vmatmul.mubr.f32.gmra.mxu0 %v1376
  %v1488 = vpop.f32.mrf.mxu0
  %v1489 = vadd.f32 0.0, %v1488
  %v1490 = vpop.f32.mrf.mxu0
  %1491 = vmatprep.mubr.f32.mxu0 0.0
  %1492 = vmatmul.mubr.f32.gmra.mxu0 %v1378
  %v1493 = vpop.f32.mrf.mxu0
  %v1494 = vadd.f32 0.0, %v1493
  %v1495 = vpop.f32.mrf.mxu0
  %1496 = vmatprep.mubr.f32.mxu0 0.0
  %1497 = vmatmul.mubr.f32.gmra.mxu0 %v1380
  %v1498 = vpop.f32.mrf.mxu0
  %v1499 = vadd.f32 0.0, %v1498
  %v1500 = vpop.f32.mrf.mxu0
  %1501 = vmatprep.mubr.f32.mxu0 0.0
  %1502 = vmatmul.mubr.f32.gmra.mxu0 %v1382
  %v1503 = vpop.f32.mrf.mxu0
  %v1504 = vadd.f32 0.0, %v1503
  %v1505 = vpop.f32.mrf.mxu0
  %1506 = vmatprep.mubr.f32.mxu0 0.0
  %1507 = vmatmul.mubr.f32.gmra.mxu0 %v1384
  %v1508 = vpop.f32.mrf.mxu0
  %v1509 = vadd.f32 0.0, %v1508
  %v1510 = vpop.f32.mrf.mxu0
  %1511 = vmatprep.mubr.f32.mxu0 0.0
  %1512 = vmatmul.mubr.f32.gmra.mxu0 %v1386
  %v1513 = vpop.f32.mrf.mxu0
  %v1514 = vadd.f32 0.0, %v1513
  %v1515 = vpop.f32.mrf.mxu0
  %1516 = vmatprep.mubr.f32.mxu0 0.0
  %1517 = vmatmul.mubr.f32.gmra.mxu0 %v1388
  %v1518 = vpop.f32.mrf.mxu0
  %v1519 = vadd.f32 0.0, %v1518
  %v1520 = vpop.f32.mrf.mxu0
  %1521 = vmatprep.mubr.f32.mxu0 0.0
  %1522 = vmatmul.mubr.f32.gmra.mxu0 %v1390
  %v1523 = vpop.f32.mrf.mxu0
  %v1524 = vadd.f32 0.0, %v1523
  %v1525 = vpop.f32.mrf.mxu0
  %1526 = vmatprep.mubr.f32.mxu0 0.0
  %1527 = vmatmul.mubr.f32.gmra.mxu0 %v1392
  %v1528 = vpop.f32.mrf.mxu0
  %v1529 = vadd.f32 0.0, %v1528
  %v1530 = vpop.f32.mrf.mxu0
  %1531 = vmatprep.mubr.f32.mxu0 0.0
  %1532 = vmatmul.mubr.f32.gmra.mxu0 %v1394
  %v1533 = vpop.f32.mrf.mxu0
  %v1534 = vadd.f32 0.0, %v1533
  %v1535 = vpop.f32.mrf.mxu0
  %1536 = vmatprep.mubr.f32.mxu0 0.0
  %1537 = vmatmul.mubr.f32.gmra.mxu0 %v1396
  %v1538 = vpop.f32.mrf.mxu0
  %v1539 = vadd.f32 0.0, %v1538
  %v1540 = vpop.f32.mrf.mxu0
  %1541 = vdwg.mxu0
  %1558 = vrot.lane.b32.xlu0 %v1464, 8
  %v1559 = vpop.permute.xlu0 %1558
  %1560 = vrot.lane.b32.xlu0 %v1469, 8
  %v1561 = vpop.permute.xlu0 %1560
  %1562 = vrot.lane.b32.xlu0 %v1474, 8
  %v1563 = vpop.permute.xlu0 %1562
  %1564 = vrot.lane.b32.xlu0 %v1479, 8
  %v1565 = vpop.permute.xlu0 %1564
  %1566 = vrot.lane.b32.xlu0 %v1484, 8
  %v1567 = vpop.permute.xlu0 %1566
  %1568 = vrot.lane.b32.xlu0 %v1489, 8
  %v1569 = vpop.permute.xlu0 %1568
  %1570 = vrot.lane.b32.xlu0 %v1494, 8
  %v1571 = vpop.permute.xlu0 %1570
  %1572 = vrot.lane.b32.xlu0 %v1499, 8
  %v1573 = vpop.permute.xlu0 %1572
  %1574 = vrot.lane.b32.xlu0 %v1504, 8
  %v1575 = vpop.permute.xlu0 %1574
  %1576 = vrot.lane.b32.xlu0 %v1509, 8
  %v1577 = vpop.permute.xlu0 %1576
  %1578 = vrot.lane.b32.xlu0 %v1514, 8
  %v1579 = vpop.permute.xlu0 %1578
  %1580 = vrot.lane.b32.xlu0 %v1519, 8
  %v1581 = vpop.permute.xlu0 %1580
  %1582 = vrot.lane.b32.xlu0 %v1524, 8
  %v1583 = vpop.permute.xlu0 %1582
  %1584 = vrot.lane.b32.xlu0 %v1529, 8
  %v1585 = vpop.permute.xlu0 %1584
  %1586 = vrot.lane.b32.xlu0 %v1534, 8
  %v1587 = vpop.permute.xlu0 %1586
  %1588 = vrot.lane.b32.xlu0 %v1539, 8
  %v1589 = vpop.permute.xlu0 %1588
  %vm1606 = vcmask 130112
  %1607 = vst.msk [vmem:[#allocation2] sm:$0xff] %vm1606, %v1559
  %1608 = vst.msk [vmem:[#allocation2 + $0x8] sm:$0xff] %vm1606, %v1561
  %1609 = vst.msk [vmem:[#allocation2 + $0x10] sm:$0xff] %vm1606, %v1563
  %1610 = vst.msk [vmem:[#allocation2 + $0x18] sm:$0xff] %vm1606, %v1565
  %1611 = vst.msk [vmem:[#allocation2 + $0x20] sm:$0xff] %vm1606, %v1567
  %1612 = vst.msk [vmem:[#allocation2 + $0x28] sm:$0xff] %vm1606, %v1569
  %1613 = vst.msk [vmem:[#allocation2 + $0x30] sm:$0xff] %vm1606, %v1571
  %1614 = vst.msk [vmem:[#allocation2 + $0x38] sm:$0xff] %vm1606, %v1573
  %1615 = vst.msk [vmem:[#allocation2 + $0x40] sm:$0xff] %vm1606, %v1575
  %1616 = vst.msk [vmem:[#allocation2 + $0x48] sm:$0xff] %vm1606, %v1577
  %1617 = vst.msk [vmem:[#allocation2 + $0x50] sm:$0xff] %vm1606, %v1579
  %1618 = vst.msk [vmem:[#allocation2 + $0x58] sm:$0xff] %vm1606, %v1581
  %1619 = vst.msk [vmem:[#allocation2 + $0x60] sm:$0xff] %vm1606, %v1583
  %1620 = vst.msk [vmem:[#allocation2 + $0x68] sm:$0xff] %vm1606, %v1585
  %1621 = vst.msk [vmem:[#allocation2 + $0x70] sm:$0xff] %vm1606, %v1587
  %1622 = vst.msk [vmem:[#allocation2 + $0x78] sm:$0xff] %vm1606, %v1589
  %1623 = vrot.lane.b32.xlu0 %v529, 112
  %v1624 = vpop.permute.xlu0 %1623
  %1625 = vrot.lane.b32.xlu0 %v530, 112
  %v1626 = vpop.permute.xlu0 %1625
  %1627 = vrot.lane.b32.xlu0 %v531, 112
  %v1628 = vpop.permute.xlu0 %1627
  %1629 = vrot.lane.b32.xlu0 %v532, 112
  %v1630 = vpop.permute.xlu0 %1629
  %1631 = vrot.lane.b32.xlu0 %v533, 112
  %v1632 = vpop.permute.xlu0 %1631
  %1633 = vrot.lane.b32.xlu0 %v534, 112
  %v1634 = vpop.permute.xlu0 %1633
  %1635 = vrot.lane.b32.xlu0 %v535, 112
  %v1636 = vpop.permute.xlu0 %1635
  %1637 = vrot.lane.b32.xlu0 %v536, 112
  %v1638 = vpop.permute.xlu0 %1637
  %1639 = vrot.lane.b32.xlu0 %v537, 112
  %v1640 = vpop.permute.xlu0 %1639
  %1641 = vrot.lane.b32.xlu0 %v538, 112
  %v1642 = vpop.permute.xlu0 %1641
  %1643 = vrot.lane.b32.xlu0 %v539, 112
  %v1644 = vpop.permute.xlu0 %1643
  %1645 = vrot.lane.b32.xlu0 %v540, 112
  %v1646 = vpop.permute.xlu0 %1645
  %1647 = vrot.lane.b32.xlu0 %v541, 112
  %v1648 = vpop.permute.xlu0 %1647
  %1649 = vrot.lane.b32.xlu0 %v542, 112
  %v1650 = vpop.permute.xlu0 %1649
  %1651 = vrot.lane.b32.xlu0 %v543, 112
  %v1652 = vpop.permute.xlu0 %1651
  %1653 = vrot.lane.b32.xlu0 %v544, 112
  %v1654 = vpop.permute.xlu0 %1653
  %v1655 = vsel %vm545, %v1624, 0
  %v1657 = vsel %vm545, %v1626, 0
  %v1659 = vsel %vm545, %v1628, 0
  %v1661 = vsel %vm545, %v1630, 0
  %v1663 = vsel %vm545, %v1632, 0
  %v1665 = vsel %vm545, %v1634, 0
  %v1667 = vsel %vm545, %v1636, 0
  %v1669 = vsel %vm545, %v1638, 0
  %v1671 = vsel %vm545, %v1640, 0
  %v1673 = vsel %vm545, %v1642, 0
  %v1675 = vsel %vm545, %v1644, 0
  %v1677 = vsel %vm545, %v1646, 0
  %v1679 = vsel %vm545, %v1648, 0
  %v1681 = vsel %vm545, %v1650, 0
  %v1683 = vsel %vm545, %v1652, 0
  %v1685 = vsel %vm545, %v1654, 0
  %1687 = vmatprep.subr.mxu0 0.0
  %1688 = vmatpush1.msra.mxu0 0.0
  %1689 = vmatprep.subr.mxu0 0.0
  %1690 = vmatpush1.msra.mxu0 0.0
  %1691 = vmatprep.subr.mxu0 0.0
  %1692 = vmatpush1.msra.mxu0 0.0
  %1693 = vmatprep.subr.mxu0 0.0
  %1694 = vmatpush1.msra.mxu0 0.0
  %1695 = vmatprep.subr.mxu0 0.0
  %1696 = vmatpush1.msra.mxu0 0.0
  %1697 = vmatprep.subr.mxu0 0.0
  %1698 = vmatpush1.msra.mxu0 0.0
  %1699 = vmatprep.subr.mxu0 0.0
  %1700 = vmatpush1.msra.mxu0 0.0
  %1701 = vmatprep.subr.mxu0 0.0
  %1702 = vmatpush1.msra.mxu0 0.0
  %1703 = vmatprep.subr.mxu0 0.0
  %1704 = vmatpush1.msra.mxu0 0.0
  %1705 = vmatprep.subr.mxu0 0.0
  %1706 = vmatpush1.msra.mxu0 0.0
  %1707 = vmatprep.subr.mxu0 0.0
  %1708 = vmatpush1.msra.mxu0 0.0
  %1709 = vmatprep.subr.mxu0 0.0
  %1710 = vmatpush1.msra.mxu0 0.0
  %1711 = vmatprep.subr.mxu0 0.0
  %1712 = vmatpush1.msra.mxu0 0.0
  %1713 = vmatprep.subr.mxu0 0.0
  %1714 = vmatpush1.msra.mxu0 0.0
  %1715 = vmatprep.subr.mxu0 0.0
  %1716 = vmatpush1.msra.mxu0 0.0
  %1717 = vmatprep.subr.mxu0 0.0
  %1718 = vmatpush1.msra.mxu0 %v479
  %1719 = vmatprep.subr.mxu0 0.0
  %1720 = vmatpush2.msra.mxu0 0.0
  %1721 = vmatprep.subr.mxu0 0.0
  %1722 = vmatpush2.msra.mxu0 0.0
  %1723 = vmatprep.subr.mxu0 0.0
  %1724 = vmatpush2.msra.mxu0 0.0
  %1725 = vmatprep.subr.mxu0 0.0
  %1726 = vmatpush2.msra.mxu0 0.0
  %1727 = vmatprep.subr.mxu0 0.0
  %1728 = vmatpush2.msra.mxu0 0.0
  %1729 = vmatprep.subr.mxu0 0.0
  %1730 = vmatpush2.msra.mxu0 0.0
  %1731 = vmatprep.subr.mxu0 0.0
  %1732 = vmatpush2.msra.mxu0 0.0
  %1733 = vmatprep.subr.mxu0 0.0
  %1734 = vmatpush2.msra.mxu0 0.0
  %1735 = vmatprep.subr.mxu0 0.0
  %1736 = vmatpush2.msra.mxu0 0.0
  %1737 = vmatprep.subr.mxu0 0.0
  %1738 = vmatpush2.msra.mxu0 0.0
  %1739 = vmatprep.subr.mxu0 0.0
  %1740 = vmatpush2.msra.mxu0 0.0
  %1741 = vmatprep.subr.mxu0 0.0
  %1742 = vmatpush2.msra.mxu0 0.0
  %1743 = vmatprep.subr.mxu0 0.0
  %1744 = vmatpush2.msra.mxu0 0.0
  %1745 = vmatprep.subr.mxu0 0.0
  %1746 = vmatpush2.msra.mxu0 0.0
  %1747 = vmatprep.subr.mxu0 0.0
  %1748 = vmatpush2.msra.mxu0 0.0
  %1749 = vmatprep.subr.mxu0 0.0
  %1750 = vmatpush2.msra.mxu0 0.0
  %1751 = vmatprep.mubr.f32.mxu0 0.0
  %1752 = vmatmul.mubr.f32.gmra.mxu0 %v1655
  %v1753 = vpop.f32.mrf.mxu0
  %v1754 = vadd.f32 0.0, %v1753
  %v1755 = vpop.f32.mrf.mxu0
  %1756 = vmatprep.mubr.f32.mxu0 0.0
  %1757 = vmatmul.mubr.f32.gmra.mxu0 %v1657
  %v1758 = vpop.f32.mrf.mxu0
  %v1759 = vadd.f32 0.0, %v1758
  %v1760 = vpop.f32.mrf.mxu0
  %1761 = vmatprep.mubr.f32.mxu0 0.0
  %1762 = vmatmul.mubr.f32.gmra.mxu0 %v1659
  %v1763 = vpop.f32.mrf.mxu0
  %v1764 = vadd.f32 0.0, %v1763
  %v1765 = vpop.f32.mrf.mxu0
  %1766 = vmatprep.mubr.f32.mxu0 0.0
  %1767 = vmatmul.mubr.f32.gmra.mxu0 %v1661
  %v1768 = vpop.f32.mrf.mxu0
  %v1769 = vadd.f32 0.0, %v1768
  %v1770 = vpop.f32.mrf.mxu0
  %1771 = vmatprep.mubr.f32.mxu0 0.0
  %1772 = vmatmul.mubr.f32.gmra.mxu0 %v1663
  %v1773 = vpop.f32.mrf.mxu0
  %v1774 = vadd.f32 0.0, %v1773
  %v1775 = vpop.f32.mrf.mxu0
  %1776 = vmatprep.mubr.f32.mxu0 0.0
  %1777 = vmatmul.mubr.f32.gmra.mxu0 %v1665
  %v1778 = vpop.f32.mrf.mxu0
  %v1779 = vadd.f32 0.0, %v1778
  %v1780 = vpop.f32.mrf.mxu0
  %1781 = vmatprep.mubr.f32.mxu0 0.0
  %1782 = vmatmul.mubr.f32.gmra.mxu0 %v1667
  %v1783 = vpop.f32.mrf.mxu0
  %v1784 = vadd.f32 0.0, %v1783
  %v1785 = vpop.f32.mrf.mxu0
  %1786 = vmatprep.mubr.f32.mxu0 0.0
  %1787 = vmatmul.mubr.f32.gmra.mxu0 %v1669
  %v1788 = vpop.f32.mrf.mxu0
  %v1789 = vadd.f32 0.0, %v1788
  %v1790 = vpop.f32.mrf.mxu0
  %1791 = vmatprep.mubr.f32.mxu0 0.0
  %1792 = vmatmul.mubr.f32.gmra.mxu0 %v1671
  %v1793 = vpop.f32.mrf.mxu0
  %v1794 = vadd.f32 0.0, %v1793
  %v1795 = vpop.f32.mrf.mxu0
  %1796 = vmatprep.mubr.f32.mxu0 0.0
  %1797 = vmatmul.mubr.f32.gmra.mxu0 %v1673
  %v1798 = vpop.f32.mrf.mxu0
  %v1799 = vadd.f32 0.0, %v1798
  %v1800 = vpop.f32.mrf.mxu0
  %1801 = vmatprep.mubr.f32.mxu0 0.0
  %1802 = vmatmul.mubr.f32.gmra.mxu0 %v1675
  %v1803 = vpop.f32.mrf.mxu0
  %v1804 = vadd.f32 0.0, %v1803
  %v1805 = vpop.f32.mrf.mxu0
  %1806 = vmatprep.mubr.f32.mxu0 0.0
  %1807 = vmatmul.mubr.f32.gmra.mxu0 %v1677
  %v1808 = vpop.f32.mrf.mxu0
  %v1809 = vadd.f32 0.0, %v1808
  %v1810 = vpop.f32.mrf.mxu0
  %1811 = vmatprep.mubr.f32.mxu0 0.0
  %1812 = vmatmul.mubr.f32.gmra.mxu0 %v1679
  %v1813 = vpop.f32.mrf.mxu0
  %v1814 = vadd.f32 0.0, %v1813
  %v1815 = vpop.f32.mrf.mxu0
  %1816 = vmatprep.mubr.f32.mxu0 0.0
  %1817 = vmatmul.mubr.f32.gmra.mxu0 %v1681
  %v1818 = vpop.f32.mrf.mxu0
  %v1819 = vadd.f32 0.0, %v1818
  %v1820 = vpop.f32.mrf.mxu0
  %1821 = vmatprep.mubr.f32.mxu0 0.0
  %1822 = vmatmul.mubr.f32.gmra.mxu0 %v1683
  %v1823 = vpop.f32.mrf.mxu0
  %v1824 = vadd.f32 0.0, %v1823
  %v1825 = vpop.f32.mrf.mxu0
  %1826 = vmatprep.mubr.f32.mxu0 0.0
  %1827 = vmatmul.mubr.f32.gmra.mxu0 %v1685
  %v1828 = vpop.f32.mrf.mxu0
  %v1829 = vadd.f32 0.0, %v1828
  %v1830 = vpop.f32.mrf.mxu0
  %1831 = vdwg.mxu0
  %1832 = vmax.xlane.f32.xlu0 %v1754
  %v1833 = vpop.xlane.xlu0 %1832
  %1834 = vmax.xlane.f32.xlu0 %v1759
  %v1835 = vpop.xlane.xlu0 %1834
  %1836 = vmax.xlane.f32.xlu0 %v1764
  %v1837 = vpop.xlane.xlu0 %1836
  %1838 = vmax.xlane.f32.xlu0 %v1769
  %v1839 = vpop.xlane.xlu0 %1838
  %1840 = vmax.xlane.f32.xlu0 %v1774
  %v1841 = vpop.xlane.xlu0 %1840
  %1842 = vmax.xlane.f32.xlu0 %v1779
  %v1843 = vpop.xlane.xlu0 %1842
  %1844 = vmax.xlane.f32.xlu0 %v1784
  %v1845 = vpop.xlane.xlu0 %1844
  %1846 = vmax.xlane.f32.xlu0 %v1789
  %v1847 = vpop.xlane.xlu0 %1846
  %1848 = vmax.xlane.f32.xlu0 %v1794
  %v1849 = vpop.xlane.xlu0 %1848
  %1850 = vmax.xlane.f32.xlu0 %v1799
  %v1851 = vpop.xlane.xlu0 %1850
  %1852 = vmax.xlane.f32.xlu0 %v1804
  %v1853 = vpop.xlane.xlu0 %1852
  %1854 = vmax.xlane.f32.xlu0 %v1809
  %v1855 = vpop.xlane.xlu0 %1854
  %1856 = vmax.xlane.f32.xlu0 %v1814
  %v1857 = vpop.xlane.xlu0 %1856
  %1858 = vmax.xlane.f32.xlu0 %v1819
  %v1859 = vpop.xlane.xlu0 %1858
  %1860 = vmax.xlane.f32.xlu0 %v1824
  %v1861 = vpop.xlane.xlu0 %1860
  %1862 = vmax.xlane.f32.xlu0 %v1829
  %v1863 = vpop.xlane.xlu0 %1862
  %v1864 = vsub.f32 %v1754, %v1833
  %v1865 = vsub.f32 %v1759, %v1835
  %v1866 = vsub.f32 %v1764, %v1837
  %v1867 = vsub.f32 %v1769, %v1839
  %v1868 = vsub.f32 %v1774, %v1841
  %v1869 = vsub.f32 %v1779, %v1843
  %v1870 = vsub.f32 %v1784, %v1845
  %v1871 = vsub.f32 %v1789, %v1847
  %v1872 = vsub.f32 %v1794, %v1849
  %v1873 = vsub.f32 %v1799, %v1851
  %v1874 = vsub.f32 %v1804, %v1853
  %v1875 = vsub.f32 %v1809, %v1855
  %v1876 = vsub.f32 %v1814, %v1857
  %v1877 = vsub.f32 %v1819, %v1859
  %v1878 = vsub.f32 %v1824, %v1861
  %v1879 = vsub.f32 %v1829, %v1863
  %v1880 = vmul.f32 %v1864, 1.442695
  %v1881 = vpow.pop %v1880
  %v1882 = vmul.f32 %v1865, 1.442695
  %v1883 = vpow.pop %v1882
  %v1884 = vmul.f32 %v1866, 1.442695
  %v1885 = vpow.pop %v1884
  %v1886 = vmul.f32 %v1867, 1.442695
  %v1887 = vpow.pop %v1886
  %v1888 = vmul.f32 %v1868, 1.442695
  %v1889 = vpow.pop %v1888
  %v1890 = vmul.f32 %v1869, 1.442695
  %v1891 = vpow.pop %v1890
  %v1892 = vmul.f32 %v1870, 1.442695
  %v1893 = vpow.pop %v1892
  %v1894 = vmul.f32 %v1871, 1.442695
  %v1895 = vpow.pop %v1894
  %v1896 = vmul.f32 %v1872, 1.442695
  %v1897 = vpow.pop %v1896
  %v1898 = vmul.f32 %v1873, 1.442695
  %v1899 = vpow.pop %v1898
  %v1900 = vmul.f32 %v1874, 1.442695
  %v1901 = vpow.pop %v1900
  %v1902 = vmul.f32 %v1875, 1.442695
  %v1903 = vpow.pop %v1902
  %v1904 = vmul.f32 %v1876, 1.442695
  %v1905 = vpow.pop %v1904
  %v1906 = vmul.f32 %v1877, 1.442695
  %v1907 = vpow.pop %v1906
  %v1908 = vmul.f32 %v1878, 1.442695
  %v1909 = vpow.pop %v1908
  %v1910 = vmul.f32 %v1879, 1.442695
  %v1911 = vpow.pop %v1910
  %1912 = vadd.xlane.f32.xlu0 %v1881
  %v1913 = vpop.xlane.xlu0 %1912
  %1914 = vadd.xlane.f32.xlu0 %v1883
  %v1915 = vpop.xlane.xlu0 %1914
  %1916 = vadd.xlane.f32.xlu0 %v1885
  %v1917 = vpop.xlane.xlu0 %1916
  %1918 = vadd.xlane.f32.xlu0 %v1887
  %v1919 = vpop.xlane.xlu0 %1918
  %1920 = vadd.xlane.f32.xlu0 %v1889
  %v1921 = vpop.xlane.xlu0 %1920
  %1922 = vadd.xlane.f32.xlu0 %v1891
  %v1923 = vpop.xlane.xlu0 %1922
  %1924 = vadd.xlane.f32.xlu0 %v1893
  %v1925 = vpop.xlane.xlu0 %1924
  %1926 = vadd.xlane.f32.xlu0 %v1895
  %v1927 = vpop.xlane.xlu0 %1926
  %1928 = vadd.xlane.f32.xlu0 %v1897
  %v1929 = vpop.xlane.xlu0 %1928
  %1930 = vadd.xlane.f32.xlu0 %v1899
  %v1931 = vpop.xlane.xlu0 %1930
  %1932 = vadd.xlane.f32.xlu0 %v1901
  %v1933 = vpop.xlane.xlu0 %1932
  %1934 = vadd.xlane.f32.xlu0 %v1903
  %v1935 = vpop.xlane.xlu0 %1934
  %1936 = vadd.xlane.f32.xlu0 %v1905
  %v1937 = vpop.xlane.xlu0 %1936
  %1938 = vadd.xlane.f32.xlu0 %v1907
  %v1939 = vpop.xlane.xlu0 %1938
  %1940 = vadd.xlane.f32.xlu0 %v1909
  %v1941 = vpop.xlane.xlu0 %1940
  %1942 = vadd.xlane.f32.xlu0 %v1911
  %v1943 = vpop.xlane.xlu0 %1942
  %v1944 = vrcp.pop %v1913
  %v1945 = vmul.f32 %v1881, %v1944
  %v1946 = vrcp.pop %v1915
  %v1947 = vmul.f32 %v1883, %v1946
  %v1948 = vrcp.pop %v1917
  %v1949 = vmul.f32 %v1885, %v1948
  %v1950 = vrcp.pop %v1919
  %v1951 = vmul.f32 %v1887, %v1950
  %v1952 = vrcp.pop %v1921
  %v1953 = vmul.f32 %v1889, %v1952
  %v1954 = vrcp.pop %v1923
  %v1955 = vmul.f32 %v1891, %v1954
  %v1956 = vrcp.pop %v1925
  %v1957 = vmul.f32 %v1893, %v1956
  %v1958 = vrcp.pop %v1927
  %v1959 = vmul.f32 %v1895, %v1958
  %v1960 = vrcp.pop %v1929
  %v1961 = vmul.f32 %v1897, %v1960
  %v1962 = vrcp.pop %v1931
  %v1963 = vmul.f32 %v1899, %v1962
  %v1964 = vrcp.pop %v1933
  %v1965 = vmul.f32 %v1901, %v1964
  %v1966 = vrcp.pop %v1935
  %v1967 = vmul.f32 %v1903, %v1966
  %v1968 = vrcp.pop %v1937
  %v1969 = vmul.f32 %v1905, %v1968
  %v1970 = vrcp.pop %v1939
  %v1971 = vmul.f32 %v1907, %v1970
  %v1972 = vrcp.pop %v1941
  %v1973 = vmul.f32 %v1909, %v1972
  %v1974 = vrcp.pop %v1943
  %v1975 = vmul.f32 %v1911, %v1974
  %1976 = vmatprep.subr.mxu0 0.0
  %1977 = vmatpush1.xpose.msra.mxu0 0.0
  %1978 = vmatprep.subr.mxu0 0.0
  %1979 = vmatpush1.xpose.msra.mxu0 0.0
  %1980 = vmatprep.subr.mxu0 0.0
  %1981 = vmatpush1.xpose.msra.mxu0 0.0
  %1982 = vmatprep.subr.mxu0 0.0
  %1983 = vmatpush1.xpose.msra.mxu0 0.0
  %1984 = vmatprep.subr.mxu0 0.0
  %1985 = vmatpush1.xpose.msra.mxu0 0.0
  %1986 = vmatprep.subr.mxu0 0.0
  %1987 = vmatpush1.xpose.msra.mxu0 0.0
  %1988 = vmatprep.subr.mxu0 0.0
  %1989 = vmatpush1.xpose.msra.mxu0 0.0
  %1990 = vmatprep.subr.mxu0 0.0
  %1991 = vmatpush1.xpose.msra.mxu0 0.0
  %1992 = vmatprep.subr.mxu0 0.0
  %1993 = vmatpush1.xpose.msra.mxu0 0.0
  %1994 = vmatprep.subr.mxu0 0.0
  %1995 = vmatpush1.xpose.msra.mxu0 0.0
  %1996 = vmatprep.subr.mxu0 0.0
  %1997 = vmatpush1.xpose.msra.mxu0 0.0
  %1998 = vmatprep.subr.mxu0 0.0
  %1999 = vmatpush1.xpose.msra.mxu0 0.0
  %2000 = vmatprep.subr.mxu0 0.0
  %2001 = vmatpush1.xpose.msra.mxu0 0.0
  %2002 = vmatprep.subr.mxu0 0.0
  %2003 = vmatpush1.xpose.msra.mxu0 0.0
  %2004 = vmatprep.subr.mxu0 0.0
  %2005 = vmatpush1.xpose.msra.mxu0 0.0
  %2006 = vmatprep.subr.mxu0 0.0
  %2007 = vmatpush1.xpose.msra.mxu0 %v503
  %2008 = vmatprep.subr.mxu0 0.0
  %2009 = vmatpush2.xpose.msra.mxu0 0.0
  %2010 = vmatprep.subr.mxu0 0.0
  %2011 = vmatpush2.xpose.msra.mxu0 0.0
  %2012 = vmatprep.subr.mxu0 0.0
  %2013 = vmatpush2.xpose.msra.mxu0 0.0
  %2014 = vmatprep.subr.mxu0 0.0
  %2015 = vmatpush2.xpose.msra.mxu0 0.0
  %2016 = vmatprep.subr.mxu0 0.0
  %2017 = vmatpush2.xpose.msra.mxu0 0.0
  %2018 = vmatprep.subr.mxu0 0.0
  %2019 = vmatpush2.xpose.msra.mxu0 0.0
  %2020 = vmatprep.subr.mxu0 0.0
  %2021 = vmatpush2.xpose.msra.mxu0 0.0
  %2022 = vmatprep.subr.mxu0 0.0
  %2023 = vmatpush2.xpose.msra.mxu0 0.0
  %2024 = vmatprep.subr.mxu0 0.0
  %2025 = vmatpush2.xpose.msra.mxu0 0.0
  %2026 = vmatprep.subr.mxu0 0.0
  %2027 = vmatpush2.xpose.msra.mxu0 0.0
  %2028 = vmatprep.subr.mxu0 0.0
  %2029 = vmatpush2.xpose.msra.mxu0 0.0
  %2030 = vmatprep.subr.mxu0 0.0
  %2031 = vmatpush2.xpose.msra.mxu0 0.0
  %2032 = vmatprep.subr.mxu0 0.0
  %2033 = vmatpush2.xpose.msra.mxu0 0.0
  %2034 = vmatprep.subr.mxu0 0.0
  %2035 = vmatpush2.xpose.msra.mxu0 0.0
  %2036 = vmatprep.subr.mxu0 0.0
  %2037 = vmatpush2.xpose.msra.mxu0 0.0
  %2038 = vmatprep.subr.mxu0 0.0
  %2039 = vmatpush2.xpose.msra.mxu0 0.0
  %2040 = vmatprep.mubr.f32.mxu0 0.0
  %2041 = vmatmul.mubr.f32.gmra.mxu0 %v1945
  %v2042 = vpop.f32.mrf.mxu0
  %v2043 = vadd.f32 0.0, %v2042
  %v2044 = vpop.f32.mrf.mxu0
  %2045 = vmatprep.mubr.f32.mxu0 0.0
  %2046 = vmatmul.mubr.f32.gmra.mxu0 %v1947
  %v2047 = vpop.f32.mrf.mxu0
  %v2048 = vadd.f32 0.0, %v2047
  %v2049 = vpop.f32.mrf.mxu0
  %2050 = vmatprep.mubr.f32.mxu0 0.0
  %2051 = vmatmul.mubr.f32.gmra.mxu0 %v1949
  %v2052 = vpop.f32.mrf.mxu0
  %v2053 = vadd.f32 0.0, %v2052
  %v2054 = vpop.f32.mrf.mxu0
  %2055 = vmatprep.mubr.f32.mxu0 0.0
  %2056 = vmatmul.mubr.f32.gmra.mxu0 %v1951
  %v2057 = vpop.f32.mrf.mxu0
  %v2058 = vadd.f32 0.0, %v2057
  %v2059 = vpop.f32.mrf.mxu0
  %2060 = vmatprep.mubr.f32.mxu0 0.0
  %2061 = vmatmul.mubr.f32.gmra.mxu0 %v1953
  %v2062 = vpop.f32.mrf.mxu0
  %v2063 = vadd.f32 0.0, %v2062
  %v2064 = vpop.f32.mrf.mxu0
  %2065 = vmatprep.mubr.f32.mxu0 0.0
  %2066 = vmatmul.mubr.f32.gmra.mxu0 %v1955
  %v2067 = vpop.f32.mrf.mxu0
  %v2068 = vadd.f32 0.0, %v2067
  %v2069 = vpop.f32.mrf.mxu0
  %2070 = vmatprep.mubr.f32.mxu0 0.0
  %2071 = vmatmul.mubr.f32.gmra.mxu0 %v1957
  %v2072 = vpop.f32.mrf.mxu0
  %v2073 = vadd.f32 0.0, %v2072
  %v2074 = vpop.f32.mrf.mxu0
  %2075 = vmatprep.mubr.f32.mxu0 0.0
  %2076 = vmatmul.mubr.f32.gmra.mxu0 %v1959
  %v2077 = vpop.f32.mrf.mxu0
  %v2078 = vadd.f32 0.0, %v2077
  %v2079 = vpop.f32.mrf.mxu0
  %2080 = vmatprep.mubr.f32.mxu0 0.0
  %2081 = vmatmul.mubr.f32.gmra.mxu0 %v1961
  %v2082 = vpop.f32.mrf.mxu0
  %v2083 = vadd.f32 0.0, %v2082
  %v2084 = vpop.f32.mrf.mxu0
  %2085 = vmatprep.mubr.f32.mxu0 0.0
  %2086 = vmatmul.mubr.f32.gmra.mxu0 %v1963
  %v2087 = vpop.f32.mrf.mxu0
  %v2088 = vadd.f32 0.0, %v2087
  %v2089 = vpop.f32.mrf.mxu0
  %2090 = vmatprep.mubr.f32.mxu0 0.0
  %2091 = vmatmul.mubr.f32.gmra.mxu0 %v1965
  %v2092 = vpop.f32.mrf.mxu0
  %v2093 = vadd.f32 0.0, %v2092
  %v2094 = vpop.f32.mrf.mxu0
  %2095 = vmatprep.mubr.f32.mxu0 0.0
  %2096 = vmatmul.mubr.f32.gmra.mxu0 %v1967
  %v2097 = vpop.f32.mrf.mxu0
  %v2098 = vadd.f32 0.0, %v2097
  %v2099 = vpop.f32.mrf.mxu0
  %2100 = vmatprep.mubr.f32.mxu0 0.0
  %2101 = vmatmul.mubr.f32.gmra.mxu0 %v1969
  %v2102 = vpop.f32.mrf.mxu0
  %v2103 = vadd.f32 0.0, %v2102
  %v2104 = vpop.f32.mrf.mxu0
  %2105 = vmatprep.mubr.f32.mxu0 0.0
  %2106 = vmatmul.mubr.f32.gmra.mxu0 %v1971
  %v2107 = vpop.f32.mrf.mxu0
  %v2108 = vadd.f32 0.0, %v2107
  %v2109 = vpop.f32.mrf.mxu0
  %2110 = vmatprep.mubr.f32.mxu0 0.0
  %2111 = vmatmul.mubr.f32.gmra.mxu0 %v1973
  %v2112 = vpop.f32.mrf.mxu0
  %v2113 = vadd.f32 0.0, %v2112
  %v2114 = vpop.f32.mrf.mxu0
  %2115 = vmatprep.mubr.f32.mxu0 0.0
  %2116 = vmatmul.mubr.f32.gmra.mxu0 %v1975
  %v2117 = vpop.f32.mrf.mxu0
  %v2118 = vadd.f32 0.0, %v2117
  %v2119 = vpop.f32.mrf.mxu0
  %2120 = vdwg.mxu0
  %2137 = vrot.lane.b32.xlu0 %v2043, 16
  %v2138 = vpop.permute.xlu0 %2137
  %2139 = vrot.lane.b32.xlu0 %v2048, 16
  %v2140 = vpop.permute.xlu0 %2139
  %2141 = vrot.lane.b32.xlu0 %v2053, 16
  %v2142 = vpop.permute.xlu0 %2141
  %2143 = vrot.lane.b32.xlu0 %v2058, 16
  %v2144 = vpop.permute.xlu0 %2143
  %2145 = vrot.lane.b32.xlu0 %v2063, 16
  %v2146 = vpop.permute.xlu0 %2145
  %2147 = vrot.lane.b32.xlu0 %v2068, 16
  %v2148 = vpop.permute.xlu0 %2147
  %2149 = vrot.lane.b32.xlu0 %v2073, 16
  %v2150 = vpop.permute.xlu0 %2149
  %2151 = vrot.lane.b32.xlu0 %v2078, 16
  %v2152 = vpop.permute.xlu0 %2151
  %2153 = vrot.lane.b32.xlu0 %v2083, 16
  %v2154 = vpop.permute.xlu0 %2153
  %2155 = vrot.lane.b32.xlu0 %v2088, 16
  %v2156 = vpop.permute.xlu0 %2155
  %2157 = vrot.lane.b32.xlu0 %v2093, 16
  %v2158 = vpop.permute.xlu0 %2157
  %2159 = vrot.lane.b32.xlu0 %v2098, 16
  %v2160 = vpop.permute.xlu0 %2159
  %2161 = vrot.lane.b32.xlu0 %v2103, 16
  %v2162 = vpop.permute.xlu0 %2161
  %2163 = vrot.lane.b32.xlu0 %v2108, 16
  %v2164 = vpop.permute.xlu0 %2163
  %2165 = vrot.lane.b32.xlu0 %v2113, 16
  %v2166 = vpop.permute.xlu0 %2165
  %2167 = vrot.lane.b32.xlu0 %v2118, 16
  %v2168 = vpop.permute.xlu0 %2167
  %vm2185 = vcmask 195712
  %2186 = vst.msk [vmem:[#allocation2] sm:$0xff] %vm2185, %v2138
  %2187 = vst.msk [vmem:[#allocation2 + $0x8] sm:$0xff] %vm2185, %v2140
  %2188 = vst.msk [vmem:[#allocation2 + $0x10] sm:$0xff] %vm2185, %v2142
  %2189 = vst.msk [vmem:[#allocation2 + $0x18] sm:$0xff] %vm2185, %v2144
  %2190 = vst.msk [vmem:[#allocation2 + $0x20] sm:$0xff] %vm2185, %v2146
  %2191 = vst.msk [vmem:[#allocation2 + $0x28] sm:$0xff] %vm2185, %v2148
  %2192 = vst.msk [vmem:[#allocation2 + $0x30] sm:$0xff] %vm2185, %v2150
  %2193 = vst.msk [vmem:[#allocation2 + $0x38] sm:$0xff] %vm2185, %v2152
  %2194 = vst.msk [vmem:[#allocation2 + $0x40] sm:$0xff] %vm2185, %v2154
  %2195 = vst.msk [vmem:[#allocation2 + $0x48] sm:$0xff] %vm2185, %v2156
  %2196 = vst.msk [vmem:[#allocation2 + $0x50] sm:$0xff] %vm2185, %v2158
  %2197 = vst.msk [vmem:[#allocation2 + $0x58] sm:$0xff] %vm2185, %v2160
  %2198 = vst.msk [vmem:[#allocation2 + $0x60] sm:$0xff] %vm2185, %v2162
  %2199 = vst.msk [vmem:[#allocation2 + $0x68] sm:$0xff] %vm2185, %v2164
  %2200 = vst.msk [vmem:[#allocation2 + $0x70] sm:$0xff] %vm2185, %v2166
  %2201 = vst.msk [vmem:[#allocation2 + $0x78] sm:$0xff] %vm2185, %v2168
  %2202 = vrot.lane.b32.xlu0 %v529, 104
  %v2203 = vpop.permute.xlu0 %2202
  %2204 = vrot.lane.b32.xlu0 %v530, 104
  %v2205 = vpop.permute.xlu0 %2204
  %2206 = vrot.lane.b32.xlu0 %v531, 104
  %v2207 = vpop.permute.xlu0 %2206
  %2208 = vrot.lane.b32.xlu0 %v532, 104
  %v2209 = vpop.permute.xlu0 %2208
  %2210 = vrot.lane.b32.xlu0 %v533, 104
  %v2211 = vpop.permute.xlu0 %2210
  %2212 = vrot.lane.b32.xlu0 %v534, 104
  %v2213 = vpop.permute.xlu0 %2212
  %2214 = vrot.lane.b32.xlu0 %v535, 104
  %v2215 = vpop.permute.xlu0 %2214
  %2216 = vrot.lane.b32.xlu0 %v536, 104
  %v2217 = vpop.permute.xlu0 %2216
  %2218 = vrot.lane.b32.xlu0 %v537, 104
  %v2219 = vpop.permute.xlu0 %2218
  %2220 = vrot.lane.b32.xlu0 %v538, 104
  %v2221 = vpop.permute.xlu0 %2220
  %2222 = vrot.lane.b32.xlu0 %v539, 104
  %v2223 = vpop.permute.xlu0 %2222
  %2224 = vrot.lane.b32.xlu0 %v540, 104
  %v2225 = vpop.permute.xlu0 %2224
  %2226 = vrot.lane.b32.xlu0 %v541, 104
  %v2227 = vpop.permute.xlu0 %2226
  %2228 = vrot.lane.b32.xlu0 %v542, 104
  %v2229 = vpop.permute.xlu0 %2228
  %2230 = vrot.lane.b32.xlu0 %v543, 104
  %v2231 = vpop.permute.xlu0 %2230
  %2232 = vrot.lane.b32.xlu0 %v544, 104
  %v2233 = vpop.permute.xlu0 %2232
  %v2234 = vsel %vm545, %v2203, 0
  %v2236 = vsel %vm545, %v2205, 0
  %v2238 = vsel %vm545, %v2207, 0
  %v2240 = vsel %vm545, %v2209, 0
  %v2242 = vsel %vm545, %v2211, 0
  %v2244 = vsel %vm545, %v2213, 0
  %v2246 = vsel %vm545, %v2215, 0
  %v2248 = vsel %vm545, %v2217, 0
  %v2250 = vsel %vm545, %v2219, 0
  %v2252 = vsel %vm545, %v2221, 0
  %v2254 = vsel %vm545, %v2223, 0
  %v2256 = vsel %vm545, %v2225, 0
  %v2258 = vsel %vm545, %v2227, 0
  %v2260 = vsel %vm545, %v2229, 0
  %v2262 = vsel %vm545, %v2231, 0
  %v2264 = vsel %vm545, %v2233, 0
  %2266 = vmatprep.subr.mxu0 0.0
  %2267 = vmatpush1.msra.mxu0 0.0
  %2268 = vmatprep.subr.mxu0 0.0
  %2269 = vmatpush1.msra.mxu0 0.0
  %2270 = vmatprep.subr.mxu0 0.0
  %2271 = vmatpush1.msra.mxu0 0.0
  %2272 = vmatprep.subr.mxu0 0.0
  %2273 = vmatpush1.msra.mxu0 0.0
  %2274 = vmatprep.subr.mxu0 0.0
  %2275 = vmatpush1.msra.mxu0 0.0
  %2276 = vmatprep.subr.mxu0 0.0
  %2277 = vmatpush1.msra.mxu0 0.0
  %2278 = vmatprep.subr.mxu0 0.0
  %2279 = vmatpush1.msra.mxu0 0.0
  %2280 = vmatprep.subr.mxu0 0.0
  %2281 = vmatpush1.msra.mxu0 0.0
  %2282 = vmatprep.subr.mxu0 0.0
  %2283 = vmatpush1.msra.mxu0 0.0
  %2284 = vmatprep.subr.mxu0 0.0
  %2285 = vmatpush1.msra.mxu0 0.0
  %2286 = vmatprep.subr.mxu0 0.0
  %2287 = vmatpush1.msra.mxu0 0.0
  %2288 = vmatprep.subr.mxu0 0.0
  %2289 = vmatpush1.msra.mxu0 0.0
  %2290 = vmatprep.subr.mxu0 0.0
  %2291 = vmatpush1.msra.mxu0 0.0
  %2292 = vmatprep.subr.mxu0 0.0
  %2293 = vmatpush1.msra.mxu0 0.0
  %2294 = vmatprep.subr.mxu0 0.0
  %2295 = vmatpush1.msra.mxu0 0.0
  %2296 = vmatprep.subr.mxu0 0.0
  %2297 = vmatpush1.msra.mxu0 %v485
  %2298 = vmatprep.subr.mxu0 0.0
  %2299 = vmatpush2.msra.mxu0 0.0
  %2300 = vmatprep.subr.mxu0 0.0
  %2301 = vmatpush2.msra.mxu0 0.0
  %2302 = vmatprep.subr.mxu0 0.0
  %2303 = vmatpush2.msra.mxu0 0.0
  %2304 = vmatprep.subr.mxu0 0.0
  %2305 = vmatpush2.msra.mxu0 0.0
  %2306 = vmatprep.subr.mxu0 0.0
  %2307 = vmatpush2.msra.mxu0 0.0
  %2308 = vmatprep.subr.mxu0 0.0
  %2309 = vmatpush2.msra.mxu0 0.0
  %2310 = vmatprep.subr.mxu0 0.0
  %2311 = vmatpush2.msra.mxu0 0.0
  %2312 = vmatprep.subr.mxu0 0.0
  %2313 = vmatpush2.msra.mxu0 0.0
  %2314 = vmatprep.subr.mxu0 0.0
  %2315 = vmatpush2.msra.mxu0 0.0
  %2316 = vmatprep.subr.mxu0 0.0
  %2317 = vmatpush2.msra.mxu0 0.0
  %2318 = vmatprep.subr.mxu0 0.0
  %2319 = vmatpush2.msra.mxu0 0.0
  %2320 = vmatprep.subr.mxu0 0.0
  %2321 = vmatpush2.msra.mxu0 0.0
  %2322 = vmatprep.subr.mxu0 0.0
  %2323 = vmatpush2.msra.mxu0 0.0
  %2324 = vmatprep.subr.mxu0 0.0
  %2325 = vmatpush2.msra.mxu0 0.0
  %2326 = vmatprep.subr.mxu0 0.0
  %2327 = vmatpush2.msra.mxu0 0.0
  %2328 = vmatprep.subr.mxu0 0.0
  %2329 = vmatpush2.msra.mxu0 0.0
  %2330 = vmatprep.mubr.f32.mxu0 0.0
  %2331 = vmatmul.mubr.f32.gmra.mxu0 %v2234
  %v2332 = vpop.f32.mrf.mxu0
  %v2333 = vadd.f32 0.0, %v2332
  %v2334 = vpop.f32.mrf.mxu0
  %2335 = vmatprep.mubr.f32.mxu0 0.0
  %2336 = vmatmul.mubr.f32.gmra.mxu0 %v2236
  %v2337 = vpop.f32.mrf.mxu0
  %v2338 = vadd.f32 0.0, %v2337
  %v2339 = vpop.f32.mrf.mxu0
  %2340 = vmatprep.mubr.f32.mxu0 0.0
  %2341 = vmatmul.mubr.f32.gmra.mxu0 %v2238
  %v2342 = vpop.f32.mrf.mxu0
  %v2343 = vadd.f32 0.0, %v2342
  %v2344 = vpop.f32.mrf.mxu0
  %2345 = vmatprep.mubr.f32.mxu0 0.0
  %2346 = vmatmul.mubr.f32.gmra.mxu0 %v2240
  %v2347 = vpop.f32.mrf.mxu0
  %v2348 = vadd.f32 0.0, %v2347
  %v2349 = vpop.f32.mrf.mxu0
  %2350 = vmatprep.mubr.f32.mxu0 0.0
  %2351 = vmatmul.mubr.f32.gmra.mxu0 %v2242
  %v2352 = vpop.f32.mrf.mxu0
  %v2353 = vadd.f32 0.0, %v2352
  %v2354 = vpop.f32.mrf.mxu0
  %2355 = vmatprep.mubr.f32.mxu0 0.0
  %2356 = vmatmul.mubr.f32.gmra.mxu0 %v2244
  %v2357 = vpop.f32.mrf.mxu0
  %v2358 = vadd.f32 0.0, %v2357
  %v2359 = vpop.f32.mrf.mxu0
  %2360 = vmatprep.mubr.f32.mxu0 0.0
  %2361 = vmatmul.mubr.f32.gmra.mxu0 %v2246
  %v2362 = vpop.f32.mrf.mxu0
  %v2363 = vadd.f32 0.0, %v2362
  %v2364 = vpop.f32.mrf.mxu0
  %2365 = vmatprep.mubr.f32.mxu0 0.0
  %2366 = vmatmul.mubr.f32.gmra.mxu0 %v2248
  %v2367 = vpop.f32.mrf.mxu0
  %v2368 = vadd.f32 0.0, %v2367
  %v2369 = vpop.f32.mrf.mxu0
  %2370 = vmatprep.mubr.f32.mxu0 0.0
  %2371 = vmatmul.mubr.f32.gmra.mxu0 %v2250
  %v2372 = vpop.f32.mrf.mxu0
  %v2373 = vadd.f32 0.0, %v2372
  %v2374 = vpop.f32.mrf.mxu0
  %2375 = vmatprep.mubr.f32.mxu0 0.0
  %2376 = vmatmul.mubr.f32.gmra.mxu0 %v2252
  %v2377 = vpop.f32.mrf.mxu0
  %v2378 = vadd.f32 0.0, %v2377
  %v2379 = vpop.f32.mrf.mxu0
  %2380 = vmatprep.mubr.f32.mxu0 0.0
  %2381 = vmatmul.mubr.f32.gmra.mxu0 %v2254
  %v2382 = vpop.f32.mrf.mxu0
  %v2383 = vadd.f32 0.0, %v2382
  %v2384 = vpop.f32.mrf.mxu0
  %2385 = vmatprep.mubr.f32.mxu0 0.0
  %2386 = vmatmul.mubr.f32.gmra.mxu0 %v2256
  %v2387 = vpop.f32.mrf.mxu0
  %v2388 = vadd.f32 0.0, %v2387
  %v2389 = vpop.f32.mrf.mxu0
  %2390 = vmatprep.mubr.f32.mxu0 0.0
  %2391 = vmatmul.mubr.f32.gmra.mxu0 %v2258
  %v2392 = vpop.f32.mrf.mxu0
  %v2393 = vadd.f32 0.0, %v2392
  %v2394 = vpop.f32.mrf.mxu0
  %2395 = vmatprep.mubr.f32.mxu0 0.0
  %2396 = vmatmul.mubr.f32.gmra.mxu0 %v2260
  %v2397 = vpop.f32.mrf.mxu0
  %v2398 = vadd.f32 0.0, %v2397
  %v2399 = vpop.f32.mrf.mxu0
  %2400 = vmatprep.mubr.f32.mxu0 0.0
  %2401 = vmatmul.mubr.f32.gmra.mxu0 %v2262
  %v2402 = vpop.f32.mrf.mxu0
  %v2403 = vadd.f32 0.0, %v2402
  %v2404 = vpop.f32.mrf.mxu0
  %2405 = vmatprep.mubr.f32.mxu0 0.0
  %2406 = vmatmul.mubr.f32.gmra.mxu0 %v2264
  %v2407 = vpop.f32.mrf.mxu0
  %v2408 = vadd.f32 0.0, %v2407
  %v2409 = vpop.f32.mrf.mxu0
  %2410 = vdwg.mxu0
  %2411 = vmax.xlane.f32.xlu0 %v2333
  %v2412 = vpop.xlane.xlu0 %2411
  %2413 = vmax.xlane.f32.xlu0 %v2338
  %v2414 = vpop.xlane.xlu0 %2413
  %2415 = vmax.xlane.f32.xlu0 %v2343
  %v2416 = vpop.xlane.xlu0 %2415
  %2417 = vmax.xlane.f32.xlu0 %v2348
  %v2418 = vpop.xlane.xlu0 %2417
  %2419 = vmax.xlane.f32.xlu0 %v2353
  %v2420 = vpop.xlane.xlu0 %2419
  %2421 = vmax.xlane.f32.xlu0 %v2358
  %v2422 = vpop.xlane.xlu0 %2421
  %2423 = vmax.xlane.f32.xlu0 %v2363
  %v2424 = vpop.xlane.xlu0 %2423
  %2425 = vmax.xlane.f32.xlu0 %v2368
  %v2426 = vpop.xlane.xlu0 %2425
  %2427 = vmax.xlane.f32.xlu0 %v2373
  %v2428 = vpop.xlane.xlu0 %2427
  %2429 = vmax.xlane.f32.xlu0 %v2378
  %v2430 = vpop.xlane.xlu0 %2429
  %2431 = vmax.xlane.f32.xlu0 %v2383
  %v2432 = vpop.xlane.xlu0 %2431
  %2433 = vmax.xlane.f32.xlu0 %v2388
  %v2434 = vpop.xlane.xlu0 %2433
  %2435 = vmax.xlane.f32.xlu0 %v2393
  %v2436 = vpop.xlane.xlu0 %2435
  %2437 = vmax.xlane.f32.xlu0 %v2398
  %v2438 = vpop.xlane.xlu0 %2437
  %2439 = vmax.xlane.f32.xlu0 %v2403
  %v2440 = vpop.xlane.xlu0 %2439
  %2441 = vmax.xlane.f32.xlu0 %v2408
  %v2442 = vpop.xlane.xlu0 %2441
  %v2443 = vsub.f32 %v2333, %v2412
  %v2444 = vsub.f32 %v2338, %v2414
  %v2445 = vsub.f32 %v2343, %v2416
  %v2446 = vsub.f32 %v2348, %v2418
  %v2447 = vsub.f32 %v2353, %v2420
  %v2448 = vsub.f32 %v2358, %v2422
  %v2449 = vsub.f32 %v2363, %v2424
  %v2450 = vsub.f32 %v2368, %v2426
  %v2451 = vsub.f32 %v2373, %v2428
  %v2452 = vsub.f32 %v2378, %v2430
  %v2453 = vsub.f32 %v2383, %v2432
  %v2454 = vsub.f32 %v2388, %v2434
  %v2455 = vsub.f32 %v2393, %v2436
  %v2456 = vsub.f32 %v2398, %v2438
  %v2457 = vsub.f32 %v2403, %v2440
  %v2458 = vsub.f32 %v2408, %v2442
  %v2459 = vmul.f32 %v2443, 1.442695
  %v2460 = vpow.pop %v2459
  %v2461 = vmul.f32 %v2444, 1.442695
  %v2462 = vpow.pop %v2461
  %v2463 = vmul.f32 %v2445, 1.442695
  %v2464 = vpow.pop %v2463
  %v2465 = vmul.f32 %v2446, 1.442695
  %v2466 = vpow.pop %v2465
  %v2467 = vmul.f32 %v2447, 1.442695
  %v2468 = vpow.pop %v2467
  %v2469 = vmul.f32 %v2448, 1.442695
  %v2470 = vpow.pop %v2469
  %v2471 = vmul.f32 %v2449, 1.442695
  %v2472 = vpow.pop %v2471
  %v2473 = vmul.f32 %v2450, 1.442695
  %v2474 = vpow.pop %v2473
  %v2475 = vmul.f32 %v2451, 1.442695
  %v2476 = vpow.pop %v2475
  %v2477 = vmul.f32 %v2452, 1.442695
  %v2478 = vpow.pop %v2477
  %v2479 = vmul.f32 %v2453, 1.442695
  %v2480 = vpow.pop %v2479
  %v2481 = vmul.f32 %v2454, 1.442695
  %v2482 = vpow.pop %v2481
  %v2483 = vmul.f32 %v2455, 1.442695
  %v2484 = vpow.pop %v2483
  %v2485 = vmul.f32 %v2456, 1.442695
  %v2486 = vpow.pop %v2485
  %v2487 = vmul.f32 %v2457, 1.442695
  %v2488 = vpow.pop %v2487
  %v2489 = vmul.f32 %v2458, 1.442695
  %v2490 = vpow.pop %v2489
  %2491 = vadd.xlane.f32.xlu0 %v2460
  %v2492 = vpop.xlane.xlu0 %2491
  %2493 = vadd.xlane.f32.xlu0 %v2462
  %v2494 = vpop.xlane.xlu0 %2493
  %2495 = vadd.xlane.f32.xlu0 %v2464
  %v2496 = vpop.xlane.xlu0 %2495
  %2497 = vadd.xlane.f32.xlu0 %v2466
  %v2498 = vpop.xlane.xlu0 %2497
  %2499 = vadd.xlane.f32.xlu0 %v2468
  %v2500 = vpop.xlane.xlu0 %2499
  %2501 = vadd.xlane.f32.xlu0 %v2470
  %v2502 = vpop.xlane.xlu0 %2501
  %2503 = vadd.xlane.f32.xlu0 %v2472
  %v2504 = vpop.xlane.xlu0 %2503
  %2505 = vadd.xlane.f32.xlu0 %v2474
  %v2506 = vpop.xlane.xlu0 %2505
  %2507 = vadd.xlane.f32.xlu0 %v2476
  %v2508 = vpop.xlane.xlu0 %2507
  %2509 = vadd.xlane.f32.xlu0 %v2478
  %v2510 = vpop.xlane.xlu0 %2509
  %2511 = vadd.xlane.f32.xlu0 %v2480
  %v2512 = vpop.xlane.xlu0 %2511
  %2513 = vadd.xlane.f32.xlu0 %v2482
  %v2514 = vpop.xlane.xlu0 %2513
  %2515 = vadd.xlane.f32.xlu0 %v2484
  %v2516 = vpop.xlane.xlu0 %2515
  %2517 = vadd.xlane.f32.xlu0 %v2486
  %v2518 = vpop.xlane.xlu0 %2517
  %2519 = vadd.xlane.f32.xlu0 %v2488
  %v2520 = vpop.xlane.xlu0 %2519
  %2521 = vadd.xlane.f32.xlu0 %v2490
  %v2522 = vpop.xlane.xlu0 %2521
  %v2523 = vrcp.pop %v2492
  %v2524 = vmul.f32 %v2460, %v2523
  %v2525 = vrcp.pop %v2494
  %v2526 = vmul.f32 %v2462, %v2525
  %v2527 = vrcp.pop %v2496
  %v2528 = vmul.f32 %v2464, %v2527
  %v2529 = vrcp.pop %v2498
  %v2530 = vmul.f32 %v2466, %v2529
  %v2531 = vrcp.pop %v2500
  %v2532 = vmul.f32 %v2468, %v2531
  %v2533 = vrcp.pop %v2502
  %v2534 = vmul.f32 %v2470, %v2533
  %v2535 = vrcp.pop %v2504
  %v2536 = vmul.f32 %v2472, %v2535
  %v2537 = vrcp.pop %v2506
  %v2538 = vmul.f32 %v2474, %v2537
  %v2539 = vrcp.pop %v2508
  %v2540 = vmul.f32 %v2476, %v2539
  %v2541 = vrcp.pop %v2510
  %v2542 = vmul.f32 %v2478, %v2541
  %v2543 = vrcp.pop %v2512
  %v2544 = vmul.f32 %v2480, %v2543
  %v2545 = vrcp.pop %v2514
  %v2546 = vmul.f32 %v2482, %v2545
  %v2547 = vrcp.pop %v2516
  %v2548 = vmul.f32 %v2484, %v2547
  %v2549 = vrcp.pop %v2518
  %v2550 = vmul.f32 %v2486, %v2549
  %v2551 = vrcp.pop %v2520
  %v2552 = vmul.f32 %v2488, %v2551
  %v2553 = vrcp.pop %v2522
  %v2554 = vmul.f32 %v2490, %v2553
  %2555 = vmatprep.subr.mxu0 0.0
  %2556 = vmatpush1.xpose.msra.mxu0 0.0
  %2557 = vmatprep.subr.mxu0 0.0
  %2558 = vmatpush1.xpose.msra.mxu0 0.0
  %2559 = vmatprep.subr.mxu0 0.0
  %2560 = vmatpush1.xpose.msra.mxu0 0.0
  %2561 = vmatprep.subr.mxu0 0.0
  %2562 = vmatpush1.xpose.msra.mxu0 0.0
  %2563 = vmatprep.subr.mxu0 0.0
  %2564 = vmatpush1.xpose.msra.mxu0 0.0
  %2565 = vmatprep.subr.mxu0 0.0
  %2566 = vmatpush1.xpose.msra.mxu0 0.0
  %2567 = vmatprep.subr.mxu0 0.0
  %2568 = vmatpush1.xpose.msra.mxu0 0.0
  %2569 = vmatprep.subr.mxu0 0.0
  %2570 = vmatpush1.xpose.msra.mxu0 0.0
  %2571 = vmatprep.subr.mxu0 0.0
  %2572 = vmatpush1.xpose.msra.mxu0 0.0
  %2573 = vmatprep.subr.mxu0 0.0
  %2574 = vmatpush1.xpose.msra.mxu0 0.0
  %2575 = vmatprep.subr.mxu0 0.0
  %2576 = vmatpush1.xpose.msra.mxu0 0.0
  %2577 = vmatprep.subr.mxu0 0.0
  %2578 = vmatpush1.xpose.msra.mxu0 0.0
  %2579 = vmatprep.subr.mxu0 0.0
  %2580 = vmatpush1.xpose.msra.mxu0 0.0
  %2581 = vmatprep.subr.mxu0 0.0
  %2582 = vmatpush1.xpose.msra.mxu0 0.0
  %2583 = vmatprep.subr.mxu0 0.0
  %2584 = vmatpush1.xpose.msra.mxu0 0.0
  %2585 = vmatprep.subr.mxu0 0.0
  %2586 = vmatpush1.xpose.msra.mxu0 %v509
  %2587 = vmatprep.subr.mxu0 0.0
  %2588 = vmatpush2.xpose.msra.mxu0 0.0
  %2589 = vmatprep.subr.mxu0 0.0
  %2590 = vmatpush2.xpose.msra.mxu0 0.0
  %2591 = vmatprep.subr.mxu0 0.0
  %2592 = vmatpush2.xpose.msra.mxu0 0.0
  %2593 = vmatprep.subr.mxu0 0.0
  %2594 = vmatpush2.xpose.msra.mxu0 0.0
  %2595 = vmatprep.subr.mxu0 0.0
  %2596 = vmatpush2.xpose.msra.mxu0 0.0
  %2597 = vmatprep.subr.mxu0 0.0
  %2598 = vmatpush2.xpose.msra.mxu0 0.0
  %2599 = vmatprep.subr.mxu0 0.0
  %2600 = vmatpush2.xpose.msra.mxu0 0.0
  %2601 = vmatprep.subr.mxu0 0.0
  %2602 = vmatpush2.xpose.msra.mxu0 0.0
  %2603 = vmatprep.subr.mxu0 0.0
  %2604 = vmatpush2.xpose.msra.mxu0 0.0
  %2605 = vmatprep.subr.mxu0 0.0
  %2606 = vmatpush2.xpose.msra.mxu0 0.0
  %2607 = vmatprep.subr.mxu0 0.0
  %2608 = vmatpush2.xpose.msra.mxu0 0.0
  %2609 = vmatprep.subr.mxu0 0.0
  %2610 = vmatpush2.xpose.msra.mxu0 0.0
  %2611 = vmatprep.subr.mxu0 0.0
  %2612 = vmatpush2.xpose.msra.mxu0 0.0
  %2613 = vmatprep.subr.mxu0 0.0
  %2614 = vmatpush2.xpose.msra.mxu0 0.0
  %2615 = vmatprep.subr.mxu0 0.0
  %2616 = vmatpush2.xpose.msra.mxu0 0.0
  %2617 = vmatprep.subr.mxu0 0.0
  %2618 = vmatpush2.xpose.msra.mxu0 0.0
  %2619 = vmatprep.mubr.f32.mxu0 0.0
  %2620 = vmatmul.mubr.f32.gmra.mxu0 %v2524
  %v2621 = vpop.f32.mrf.mxu0
  %v2622 = vadd.f32 0.0, %v2621
  %v2623 = vpop.f32.mrf.mxu0
  %2624 = vmatprep.mubr.f32.mxu0 0.0
  %2625 = vmatmul.mubr.f32.gmra.mxu0 %v2526
  %v2626 = vpop.f32.mrf.mxu0
  %v2627 = vadd.f32 0.0, %v2626
  %v2628 = vpop.f32.mrf.mxu0
  %2629 = vmatprep.mubr.f32.mxu0 0.0
  %2630 = vmatmul.mubr.f32.gmra.mxu0 %v2528
  %v2631 = vpop.f32.mrf.mxu0
  %v2632 = vadd.f32 0.0, %v2631
  %v2633 = vpop.f32.mrf.mxu0
  %2634 = vmatprep.mubr.f32.mxu0 0.0
  %2635 = vmatmul.mubr.f32.gmra.mxu0 %v2530
  %v2636 = vpop.f32.mrf.mxu0
  %v2637 = vadd.f32 0.0, %v2636
  %v2638 = vpop.f32.mrf.mxu0
  %2639 = vmatprep.mubr.f32.mxu0 0.0
  %2640 = vmatmul.mubr.f32.gmra.mxu0 %v2532
  %v2641 = vpop.f32.mrf.mxu0
  %v2642 = vadd.f32 0.0, %v2641
  %v2643 = vpop.f32.mrf.mxu0
  %2644 = vmatprep.mubr.f32.mxu0 0.0
  %2645 = vmatmul.mubr.f32.gmra.mxu0 %v2534
  %v2646 = vpop.f32.mrf.mxu0
  %v2647 = vadd.f32 0.0, %v2646
  %v2648 = vpop.f32.mrf.mxu0
  %2649 = vmatprep.mubr.f32.mxu0 0.0
  %2650 = vmatmul.mubr.f32.gmra.mxu0 %v2536
  %v2651 = vpop.f32.mrf.mxu0
  %v2652 = vadd.f32 0.0, %v2651
  %v2653 = vpop.f32.mrf.mxu0
  %2654 = vmatprep.mubr.f32.mxu0 0.0
  %2655 = vmatmul.mubr.f32.gmra.mxu0 %v2538
  %v2656 = vpop.f32.mrf.mxu0
  %v2657 = vadd.f32 0.0, %v2656
  %v2658 = vpop.f32.mrf.mxu0
  %2659 = vmatprep.mubr.f32.mxu0 0.0
  %2660 = vmatmul.mubr.f32.gmra.mxu0 %v2540
  %v2661 = vpop.f32.mrf.mxu0
  %v2662 = vadd.f32 0.0, %v2661
  %v2663 = vpop.f32.mrf.mxu0
  %2664 = vmatprep.mubr.f32.mxu0 0.0
  %2665 = vmatmul.mubr.f32.gmra.mxu0 %v2542
  %v2666 = vpop.f32.mrf.mxu0
  %v2667 = vadd.f32 0.0, %v2666
  %v2668 = vpop.f32.mrf.mxu0
  %2669 = vmatprep.mubr.f32.mxu0 0.0
  %2670 = vmatmul.mubr.f32.gmra.mxu0 %v2544
  %v2671 = vpop.f32.mrf.mxu0
  %v2672 = vadd.f32 0.0, %v2671
  %v2673 = vpop.f32.mrf.mxu0
  %2674 = vmatprep.mubr.f32.mxu0 0.0
  %2675 = vmatmul.mubr.f32.gmra.mxu0 %v2546
  %v2676 = vpop.f32.mrf.mxu0
  %v2677 = vadd.f32 0.0, %v2676
  %v2678 = vpop.f32.mrf.mxu0
  %2679 = vmatprep.mubr.f32.mxu0 0.0
  %2680 = vmatmul.mubr.f32.gmra.mxu0 %v2548
  %v2681 = vpop.f32.mrf.mxu0
  %v2682 = vadd.f32 0.0, %v2681
  %v2683 = vpop.f32.mrf.mxu0
  %2684 = vmatprep.mubr.f32.mxu0 0.0
  %2685 = vmatmul.mubr.f32.gmra.mxu0 %v2550
  %v2686 = vpop.f32.mrf.mxu0
  %v2687 = vadd.f32 0.0, %v2686
  %v2688 = vpop.f32.mrf.mxu0
  %2689 = vmatprep.mubr.f32.mxu0 0.0
  %2690 = vmatmul.mubr.f32.gmra.mxu0 %v2552
  %v2691 = vpop.f32.mrf.mxu0
  %v2692 = vadd.f32 0.0, %v2691
  %v2693 = vpop.f32.mrf.mxu0
  %2694 = vmatprep.mubr.f32.mxu0 0.0
  %2695 = vmatmul.mubr.f32.gmra.mxu0 %v2554
  %v2696 = vpop.f32.mrf.mxu0
  %v2697 = vadd.f32 0.0, %v2696
  %v2698 = vpop.f32.mrf.mxu0
  %2699 = vdwg.mxu0
  %2716 = vrot.lane.b32.xlu0 %v2622, 24
  %v2717 = vpop.permute.xlu0 %2716
  %2718 = vrot.lane.b32.xlu0 %v2627, 24
  %v2719 = vpop.permute.xlu0 %2718
  %2720 = vrot.lane.b32.xlu0 %v2632, 24
  %v2721 = vpop.permute.xlu0 %2720
  %2722 = vrot.lane.b32.xlu0 %v2637, 24
  %v2723 = vpop.permute.xlu0 %2722
  %2724 = vrot.lane.b32.xlu0 %v2642, 24
  %v2725 = vpop.permute.xlu0 %2724
  %2726 = vrot.lane.b32.xlu0 %v2647, 24
  %v2727 = vpop.permute.xlu0 %2726
  %2728 = vrot.lane.b32.xlu0 %v2652, 24
  %v2729 = vpop.permute.xlu0 %2728
  %2730 = vrot.lane.b32.xlu0 %v2657, 24
  %v2731 = vpop.permute.xlu0 %2730
  %2732 = vrot.lane.b32.xlu0 %v2662, 24
  %v2733 = vpop.permute.xlu0 %2732
  %2734 = vrot.lane.b32.xlu0 %v2667, 24
  %v2735 = vpop.permute.xlu0 %2734
  %2736 = vrot.lane.b32.xlu0 %v2672, 24
  %v2737 = vpop.permute.xlu0 %2736
  %2738 = vrot.lane.b32.xlu0 %v2677, 24
  %v2739 = vpop.permute.xlu0 %2738
  %2740 = vrot.lane.b32.xlu0 %v2682, 24
  %v2741 = vpop.permute.xlu0 %2740
  %2742 = vrot.lane.b32.xlu0 %v2687, 24
  %v2743 = vpop.permute.xlu0 %2742
  %2744 = vrot.lane.b32.xlu0 %v2692, 24
  %v2745 = vpop.permute.xlu0 %2744
  %2746 = vrot.lane.b32.xlu0 %v2697, 24
  %v2747 = vpop.permute.xlu0 %2746
  %vm2764 = vcmask 261312
  %2765 = vst.msk [vmem:[#allocation2] sm:$0xff] %vm2764, %v2717
  %2766 = vst.msk [vmem:[#allocation2 + $0x8] sm:$0xff] %vm2764, %v2719
  %2767 = vst.msk [vmem:[#allocation2 + $0x10] sm:$0xff] %vm2764, %v2721
  %2768 = vst.msk [vmem:[#allocation2 + $0x18] sm:$0xff] %vm2764, %v2723
  %2769 = vst.msk [vmem:[#allocation2 + $0x20] sm:$0xff] %vm2764, %v2725
  %2770 = vst.msk [vmem:[#allocation2 + $0x28] sm:$0xff] %vm2764, %v2727
  %2771 = vst.msk [vmem:[#allocation2 + $0x30] sm:$0xff] %vm2764, %v2729
  %2772 = vst.msk [vmem:[#allocation2 + $0x38] sm:$0xff] %vm2764, %v2731
  %2773 = vst.msk [vmem:[#allocation2 + $0x40] sm:$0xff] %vm2764, %v2733
  %2774 = vst.msk [vmem:[#allocation2 + $0x48] sm:$0xff] %vm2764, %v2735
  %2775 = vst.msk [vmem:[#allocation2 + $0x50] sm:$0xff] %vm2764, %v2737
  %2776 = vst.msk [vmem:[#allocation2 + $0x58] sm:$0xff] %vm2764, %v2739
  %2777 = vst.msk [vmem:[#allocation2 + $0x60] sm:$0xff] %vm2764, %v2741
  %2778 = vst.msk [vmem:[#allocation2 + $0x68] sm:$0xff] %vm2764, %v2743
  %2779 = vst.msk [vmem:[#allocation2 + $0x70] sm:$0xff] %vm2764, %v2745
  %2780 = vst.msk [vmem:[#allocation2 + $0x78] sm:$0xff] %vm2764, %v2747
  %v2781 = vld [vmem:[#allocation2] sm:$0xff]
  %v2782 = vld [vmem:[#allocation2 + $0x8] sm:$0xff]
  %v2783 = vld [vmem:[#allocation2 + $0x10] sm:$0xff]
  %v2784 = vld [vmem:[#allocation2 + $0x18] sm:$0xff]
  %v2785 = vld [vmem:[#allocation2 + $0x20] sm:$0xff]
  %v2786 = vld [vmem:[#allocation2 + $0x28] sm:$0xff]
  %v2787 = vld [vmem:[#allocation2 + $0x30] sm:$0xff]
  %v2788 = vld [vmem:[#allocation2 + $0x38] sm:$0xff]
  %v2789 = vld [vmem:[#allocation2 + $0x40] sm:$0xff]
  %v2790 = vld [vmem:[#allocation2 + $0x48] sm:$0xff]
  %v2791 = vld [vmem:[#allocation2 + $0x50] sm:$0xff]
  %v2792 = vld [vmem:[#allocation2 + $0x58] sm:$0xff]
  %v2793 = vld [vmem:[#allocation2 + $0x60] sm:$0xff]
  %v2794 = vld [vmem:[#allocation2 + $0x68] sm:$0xff]
  %v2795 = vld [vmem:[#allocation2 + $0x70] sm:$0xff]
  %v2796 = vld [vmem:[#allocation2 + $0x78] sm:$0xff]
  %v2798 = vsel %vm339, %v59, 0
  %v2801 = vsel %vm339, %v60, 0
  %v2804 = vsel %vm339, %v61, 0
  %v2807 = vsel %vm339, %v62, 0
  %v2810 = vsel %vm339, %v2781, 0
  %v2813 = vsel %vm339, %v2782, 0
  %v2816 = vsel %vm339, %v2783, 0
  %v2819 = vsel %vm339, %v2784, 0
  %v2822 = vsel %vm339, %v2785, 0
  %v2825 = vsel %vm339, %v2786, 0
  %v2828 = vsel %vm339, %v2787, 0
  %v2831 = vsel %vm339, %v2788, 0
  %v2834 = vsel %vm339, %v2789, 0
  %v2837 = vsel %vm339, %v2790, 0
  %v2840 = vsel %vm339, %v2791, 0
  %v2843 = vsel %vm339, %v2792, 0
  %v2846 = vsel %vm339, %v2793, 0
  %v2849 = vsel %vm339, %v2794, 0
  %v2852 = vsel %vm339, %v2795, 0
  %v2855 = vsel %vm339, %v2796, 0
  %2857 = vmatprep.subr.mxu0 0.0
  %2858 = vmatpush1.xpose.msra.mxu0 %v2855
  %2859 = vmatprep.subr.mxu0 0.0
  %2860 = vmatpush1.xpose.msra.mxu0 %v2852
  %2861 = vmatprep.subr.mxu0 0.0
  %2862 = vmatpush1.xpose.msra.mxu0 %v2849
  %2863 = vmatprep.subr.mxu0 0.0
  %2864 = vmatpush1.xpose.msra.mxu0 %v2846
  %2865 = vmatprep.subr.mxu0 0.0
  %2866 = vmatpush1.xpose.msra.mxu0 %v2843
  %2867 = vmatprep.subr.mxu0 0.0
  %2868 = vmatpush1.xpose.msra.mxu0 %v2840
  %2869 = vmatprep.subr.mxu0 0.0
  %2870 = vmatpush1.xpose.msra.mxu0 %v2837
  %2871 = vmatprep.subr.mxu0 0.0
  %2872 = vmatpush1.xpose.msra.mxu0 %v2834
  %2873 = vmatprep.subr.mxu0 0.0
  %2874 = vmatpush1.xpose.msra.mxu0 %v2831
  %2875 = vmatprep.subr.mxu0 0.0
  %2876 = vmatpush1.xpose.msra.mxu0 %v2828
  %2877 = vmatprep.subr.mxu0 0.0
  %2878 = vmatpush1.xpose.msra.mxu0 %v2825
  %2879 = vmatprep.subr.mxu0 0.0
  %2880 = vmatpush1.xpose.msra.mxu0 %v2822
  %2881 = vmatprep.subr.mxu0 0.0
  %2882 = vmatpush1.xpose.msra.mxu0 %v2819
  %2883 = vmatprep.subr.mxu0 0.0
  %2884 = vmatpush1.xpose.msra.mxu0 %v2816
  %2885 = vmatprep.subr.mxu0 0.0
  %2886 = vmatpush1.xpose.msra.mxu0 %v2813
  %2887 = vmatprep.subr.mxu0 0.0
  %2888 = vmatpush1.xpose.msra.mxu0 %v2810
  %2889 = vmatprep.subr.mxu0 0.0
  %2890 = vmatpush2.xpose.msra.mxu0 0.0
  %2891 = vmatprep.subr.mxu0 0.0
  %2892 = vmatpush2.xpose.msra.mxu0 0.0
  %2893 = vmatprep.subr.mxu0 0.0
  %2894 = vmatpush2.xpose.msra.mxu0 0.0
  %2895 = vmatprep.subr.mxu0 0.0
  %2896 = vmatpush2.xpose.msra.mxu0 0.0
  %2897 = vmatprep.subr.mxu0 0.0
  %2898 = vmatpush2.xpose.msra.mxu0 0.0
  %2899 = vmatprep.subr.mxu0 0.0
  %2900 = vmatpush2.xpose.msra.mxu0 0.0
  %2901 = vmatprep.subr.mxu0 0.0
  %2902 = vmatpush2.xpose.msra.mxu0 0.0
  %2903 = vmatprep.subr.mxu0 0.0
  %2904 = vmatpush2.xpose.msra.mxu0 0.0
  %2905 = vmatprep.subr.mxu0 0.0
  %2906 = vmatpush2.xpose.msra.mxu0 0.0
  %2907 = vmatprep.subr.mxu0 0.0
  %2908 = vmatpush2.xpose.msra.mxu0 0.0
  %2909 = vmatprep.subr.mxu0 0.0
  %2910 = vmatpush2.xpose.msra.mxu0 0.0
  %2911 = vmatprep.subr.mxu0 0.0
  %2912 = vmatpush2.xpose.msra.mxu0 0.0
  %2913 = vmatprep.subr.mxu0 0.0
  %2914 = vmatpush2.xpose.msra.mxu0 0.0
  %2915 = vmatprep.subr.mxu0 0.0
  %2916 = vmatpush2.xpose.msra.mxu0 0.0
  %2917 = vmatprep.subr.mxu0 0.0
  %2918 = vmatpush2.xpose.msra.mxu0 0.0
  %2919 = vmatprep.subr.mxu0 0.0
  %2920 = vmatpush2.xpose.msra.mxu0 0.0
  %2921 = vmatprep.mubr.f32.mxu0 0.0
  %2922 = vmatmul.mubr.f32.gmra.mxu0 %v2798
  %v2923 = vpop.f32.mrf.mxu0
  %v2924 = vadd.f32 0.0, %v2923
  %v2925 = vpop.f32.mrf.mxu0
  %2926 = vmatprep.mubr.f32.mxu0 0.0
  %2927 = vmatmul.mubr.f32.gmra.mxu0 %v2801
  %v2928 = vpop.f32.mrf.mxu0
  %v2929 = vadd.f32 0.0, %v2928
  %v2930 = vpop.f32.mrf.mxu0
  %2931 = vmatprep.mubr.f32.mxu0 0.0
  %2932 = vmatmul.mubr.f32.gmra.mxu0 %v2804
  %v2933 = vpop.f32.mrf.mxu0
  %v2934 = vadd.f32 0.0, %v2933
  %v2935 = vpop.f32.mrf.mxu0
  %2936 = vmatprep.mubr.f32.mxu0 0.0
  %2937 = vmatmul.mubr.f32.gmra.mxu0 %v2807
  %v2938 = vpop.f32.mrf.mxu0
  %v2939 = vadd.f32 0.0, %v2938
  %v2940 = vpop.f32.mrf.mxu0
  %2941 = vdwg.mxu0
  %2942 = vxpose.xlu0.b32.start [1/16] %v445, 128
  %2943 = vxpose.xlu0.b32.cont [2/16] %v451, 128
  %2944 = vxpose.xlu0.b32.cont [3/16] %v457, 128
  %2945 = vxpose.xlu0.b32.cont [4/16] %v463, 128
  %2946 = vxpose.xlu0.b32.cont [5/16] 0.0, 128
  %2947 = vxpose.xlu0.b32.cont [6/16] 0.0, 128
  %2948 = vxpose.xlu0.b32.cont [7/16] 0.0, 128
  %2949 = vxpose.xlu0.b32.cont [8/16] 0.0, 128
  %2950 = vxpose.xlu0.b32.cont [9/16] 0.0, 128
  %2951 = vxpose.xlu0.b32.cont [10/16] 0.0, 128
  %2952 = vxpose.xlu0.b32.cont [11/16] 0.0, 128
  %2953 = vxpose.xlu0.b32.cont [12/16] 0.0, 128
  %2954 = vxpose.xlu0.b32.cont [13/16] 0.0, 128
  %2955 = vxpose.xlu0.b32.cont [14/16] 0.0, 128
  %2956 = vxpose.xlu0.b32.cont [15/16] 0.0, 128
  %2957 = vxpose.xlu0.b32.end [16/16] 0.0, 128
  %v2958 = vpop.trf.xlu0
  %v2959 = vpop.trf.xlu0
  %v2960 = vpop.trf.xlu0
  %v2961 = vpop.trf.xlu0
  %v2962 = vpop.trf.xlu0
  %v2963 = vpop.trf.xlu0
  %v2964 = vpop.trf.xlu0
  %v2965 = vpop.trf.xlu0
  %v2966 = vpop.trf.xlu0
  %v2967 = vpop.trf.xlu0
  %v2968 = vpop.trf.xlu0
  %v2969 = vpop.trf.xlu0
  %v2970 = vpop.trf.xlu0
  %v2971 = vpop.trf.xlu0
  %v2972 = vpop.trf.xlu0
  %v2973 = vpop.trf.xlu0
  %v2975 = vsel %vm545, %v2958, 0
  %v2978 = vsel %vm545, %v2959, 0
  %v2981 = vsel %vm545, %v2960, 0
  %v2984 = vsel %vm545, %v2961, 0
  %v2987 = vsel %vm545, %v2962, 0
  %v2990 = vsel %vm545, %v2963, 0
  %v2993 = vsel %vm545, %v2964, 0
  %v2996 = vsel %vm545, %v2965, 0
  %v2999 = vsel %vm545, %v2966, 0
  %v3002 = vsel %vm545, %v2967, 0
  %v3005 = vsel %vm545, %v2968, 0
  %v3008 = vsel %vm545, %v2969, 0
  %v3011 = vsel %vm545, %v2970, 0
  %v3014 = vsel %vm545, %v2971, 0
  %v3017 = vsel %vm545, %v2972, 0
  %v3020 = vsel %vm545, %v2973, 0
  %3022 = vmatprep.subr.mxu0 0.0
  %3023 = vmatpush1.msra.mxu0 0.0
  %3024 = vmatprep.subr.mxu0 0.0
  %3025 = vmatpush1.msra.mxu0 0.0
  %3026 = vmatprep.subr.mxu0 0.0
  %3027 = vmatpush1.msra.mxu0 0.0
  %3028 = vmatprep.subr.mxu0 0.0
  %3029 = vmatpush1.msra.mxu0 0.0
  %3030 = vmatprep.subr.mxu0 0.0
  %3031 = vmatpush1.msra.mxu0 0.0
  %3032 = vmatprep.subr.mxu0 0.0
  %3033 = vmatpush1.msra.mxu0 0.0
  %3034 = vmatprep.subr.mxu0 0.0
  %3035 = vmatpush1.msra.mxu0 0.0
  %3036 = vmatprep.subr.mxu0 0.0
  %3037 = vmatpush1.msra.mxu0 0.0
  %3038 = vmatprep.subr.mxu0 0.0
  %3039 = vmatpush1.msra.mxu0 0.0
  %3040 = vmatprep.subr.mxu0 0.0
  %3041 = vmatpush1.msra.mxu0 0.0
  %3042 = vmatprep.subr.mxu0 0.0
  %3043 = vmatpush1.msra.mxu0 0.0
  %3044 = vmatprep.subr.mxu0 0.0
  %3045 = vmatpush1.msra.mxu0 0.0
  %3046 = vmatprep.subr.mxu0 0.0
  %3047 = vmatpush1.msra.mxu0 0.0
  %3048 = vmatprep.subr.mxu0 0.0
  %3049 = vmatpush1.msra.mxu0 0.0
  %3050 = vmatprep.subr.mxu0 0.0
  %3051 = vmatpush1.msra.mxu0 0.0
  %3052 = vmatprep.subr.mxu0 0.0
  %3053 = vmatpush1.msra.mxu0 %v469
  %3054 = vmatprep.subr.mxu0 0.0
  %3055 = vmatpush2.msra.mxu0 0.0
  %3056 = vmatprep.subr.mxu0 0.0
  %3057 = vmatpush2.msra.mxu0 0.0
  %3058 = vmatprep.subr.mxu0 0.0
  %3059 = vmatpush2.msra.mxu0 0.0
  %3060 = vmatprep.subr.mxu0 0.0
  %3061 = vmatpush2.msra.mxu0 0.0
  %3062 = vmatprep.subr.mxu0 0.0
  %3063 = vmatpush2.msra.mxu0 0.0
  %3064 = vmatprep.subr.mxu0 0.0
  %3065 = vmatpush2.msra.mxu0 0.0
  %3066 = vmatprep.subr.mxu0 0.0
  %3067 = vmatpush2.msra.mxu0 0.0
  %3068 = vmatprep.subr.mxu0 0.0
  %3069 = vmatpush2.msra.mxu0 0.0
  %3070 = vmatprep.subr.mxu0 0.0
  %3071 = vmatpush2.msra.mxu0 0.0
  %3072 = vmatprep.subr.mxu0 0.0
  %3073 = vmatpush2.msra.mxu0 0.0
  %3074 = vmatprep.subr.mxu0 0.0
  %3075 = vmatpush2.msra.mxu0 0.0
  %3076 = vmatprep.subr.mxu0 0.0
  %3077 = vmatpush2.msra.mxu0 0.0
  %3078 = vmatprep.subr.mxu0 0.0
  %3079 = vmatpush2.msra.mxu0 0.0
  %3080 = vmatprep.subr.mxu0 0.0
  %3081 = vmatpush2.msra.mxu0 0.0
  %3082 = vmatprep.subr.mxu0 0.0
  %3083 = vmatpush2.msra.mxu0 0.0
  %3084 = vmatprep.subr.mxu0 0.0
  %3085 = vmatpush2.msra.mxu0 0.0
  %3086 = vmatprep.mubr.f32.mxu0 0.0
  %3087 = vmatmul.mubr.f32.gmra.mxu0 %v2975
  %v3088 = vpop.f32.mrf.mxu0
  %v3089 = vadd.f32 0.0, %v3088
  %v3090 = vpop.f32.mrf.mxu0
  %3091 = vmatprep.mubr.f32.mxu0 0.0
  %3092 = vmatmul.mubr.f32.gmra.mxu0 %v2978
  %v3093 = vpop.f32.mrf.mxu0
  %v3094 = vadd.f32 0.0, %v3093
  %v3095 = vpop.f32.mrf.mxu0
  %3096 = vmatprep.mubr.f32.mxu0 0.0
  %3097 = vmatmul.mubr.f32.gmra.mxu0 %v2981
  %v3098 = vpop.f32.mrf.mxu0
  %v3099 = vadd.f32 0.0, %v3098
  %v3100 = vpop.f32.mrf.mxu0
  %3101 = vmatprep.mubr.f32.mxu0 0.0
  %3102 = vmatmul.mubr.f32.gmra.mxu0 %v2984
  %v3103 = vpop.f32.mrf.mxu0
  %v3104 = vadd.f32 0.0, %v3103
  %v3105 = vpop.f32.mrf.mxu0
  %3106 = vmatprep.mubr.f32.mxu0 0.0
  %3107 = vmatmul.mubr.f32.gmra.mxu0 %v2987
  %v3108 = vpop.f32.mrf.mxu0
  %v3109 = vadd.f32 0.0, %v3108
  %v3110 = vpop.f32.mrf.mxu0
  %3111 = vmatprep.mubr.f32.mxu0 0.0
  %3112 = vmatmul.mubr.f32.gmra.mxu0 %v2990
  %v3113 = vpop.f32.mrf.mxu0
  %v3114 = vadd.f32 0.0, %v3113
  %v3115 = vpop.f32.mrf.mxu0
  %3116 = vmatprep.mubr.f32.mxu0 0.0
  %3117 = vmatmul.mubr.f32.gmra.mxu0 %v2993
  %v3118 = vpop.f32.mrf.mxu0
  %v3119 = vadd.f32 0.0, %v3118
  %v3120 = vpop.f32.mrf.mxu0
  %3121 = vmatprep.mubr.f32.mxu0 0.0
  %3122 = vmatmul.mubr.f32.gmra.mxu0 %v2996
  %v3123 = vpop.f32.mrf.mxu0
  %v3124 = vadd.f32 0.0, %v3123
  %v3125 = vpop.f32.mrf.mxu0
  %3126 = vmatprep.mubr.f32.mxu0 0.0
  %3127 = vmatmul.mubr.f32.gmra.mxu0 %v2999
  %v3128 = vpop.f32.mrf.mxu0
  %v3129 = vadd.f32 0.0, %v3128
  %v3130 = vpop.f32.mrf.mxu0
  %3131 = vmatprep.mubr.f32.mxu0 0.0
  %3132 = vmatmul.mubr.f32.gmra.mxu0 %v3002
  %v3133 = vpop.f32.mrf.mxu0
  %v3134 = vadd.f32 0.0, %v3133
  %v3135 = vpop.f32.mrf.mxu0
  %3136 = vmatprep.mubr.f32.mxu0 0.0
  %3137 = vmatmul.mubr.f32.gmra.mxu0 %v3005
  %v3138 = vpop.f32.mrf.mxu0
  %v3139 = vadd.f32 0.0, %v3138
  %v3140 = vpop.f32.mrf.mxu0
  %3141 = vmatprep.mubr.f32.mxu0 0.0
  %3142 = vmatmul.mubr.f32.gmra.mxu0 %v3008
  %v3143 = vpop.f32.mrf.mxu0
  %v3144 = vadd.f32 0.0, %v3143
  %v3145 = vpop.f32.mrf.mxu0
  %3146 = vmatprep.mubr.f32.mxu0 0.0
  %3147 = vmatmul.mubr.f32.gmra.mxu0 %v3011
  %v3148 = vpop.f32.mrf.mxu0
  %v3149 = vadd.f32 0.0, %v3148
  %v3150 = vpop.f32.mrf.mxu0
  %3151 = vmatprep.mubr.f32.mxu0 0.0
  %3152 = vmatmul.mubr.f32.gmra.mxu0 %v3014
  %v3153 = vpop.f32.mrf.mxu0
  %v3154 = vadd.f32 0.0, %v3153
  %v3155 = vpop.f32.mrf.mxu0
  %3156 = vmatprep.mubr.f32.mxu0 0.0
  %3157 = vmatmul.mubr.f32.gmra.mxu0 %v3017
  %v3158 = vpop.f32.mrf.mxu0
  %v3159 = vadd.f32 0.0, %v3158
  %v3160 = vpop.f32.mrf.mxu0
  %3161 = vmatprep.mubr.f32.mxu0 0.0
  %3162 = vmatmul.mubr.f32.gmra.mxu0 %v3020
  %v3163 = vpop.f32.mrf.mxu0
  %v3164 = vadd.f32 0.0, %v3163
  %v3165 = vpop.f32.mrf.mxu0
  %3166 = vdwg.mxu0
  %3167 = vmax.xlane.f32.xlu0 %v3089
  %v3168 = vpop.xlane.xlu0 %3167
  %3169 = vmax.xlane.f32.xlu0 %v3094
  %v3170 = vpop.xlane.xlu0 %3169
  %3171 = vmax.xlane.f32.xlu0 %v3099
  %v3172 = vpop.xlane.xlu0 %3171
  %3173 = vmax.xlane.f32.xlu0 %v3104
  %v3174 = vpop.xlane.xlu0 %3173
  %3175 = vmax.xlane.f32.xlu0 %v3109
  %v3176 = vpop.xlane.xlu0 %3175
  %3177 = vmax.xlane.f32.xlu0 %v3114
  %v3178 = vpop.xlane.xlu0 %3177
  %3179 = vmax.xlane.f32.xlu0 %v3119
  %v3180 = vpop.xlane.xlu0 %3179
  %3181 = vmax.xlane.f32.xlu0 %v3124
  %v3182 = vpop.xlane.xlu0 %3181
  %3183 = vmax.xlane.f32.xlu0 %v3129
  %v3184 = vpop.xlane.xlu0 %3183
  %3185 = vmax.xlane.f32.xlu0 %v3134
  %v3186 = vpop.xlane.xlu0 %3185
  %3187 = vmax.xlane.f32.xlu0 %v3139
  %v3188 = vpop.xlane.xlu0 %3187
  %3189 = vmax.xlane.f32.xlu0 %v3144
  %v3190 = vpop.xlane.xlu0 %3189
  %3191 = vmax.xlane.f32.xlu0 %v3149
  %v3192 = vpop.xlane.xlu0 %3191
  %3193 = vmax.xlane.f32.xlu0 %v3154
  %v3194 = vpop.xlane.xlu0 %3193
  %3195 = vmax.xlane.f32.xlu0 %v3159
  %v3196 = vpop.xlane.xlu0 %3195
  %3197 = vmax.xlane.f32.xlu0 %v3164
  %v3198 = vpop.xlane.xlu0 %3197
  %v3199 = vsub.f32 %v3089, %v3168
  %v3200 = vsub.f32 %v3094, %v3170
  %v3201 = vsub.f32 %v3099, %v3172
  %v3202 = vsub.f32 %v3104, %v3174
  %v3203 = vsub.f32 %v3109, %v3176
  %v3204 = vsub.f32 %v3114, %v3178
  %v3205 = vsub.f32 %v3119, %v3180
  %v3206 = vsub.f32 %v3124, %v3182
  %v3207 = vsub.f32 %v3129, %v3184
  %v3208 = vsub.f32 %v3134, %v3186
  %v3209 = vsub.f32 %v3139, %v3188
  %v3210 = vsub.f32 %v3144, %v3190
  %v3211 = vsub.f32 %v3149, %v3192
  %v3212 = vsub.f32 %v3154, %v3194
  %v3213 = vsub.f32 %v3159, %v3196
  %v3214 = vsub.f32 %v3164, %v3198
  %v3215 = vmul.f32 %v3199, 1.442695
  %v3216 = vpow.pop %v3215
  %v3217 = vmul.f32 %v3200, 1.442695
  %v3218 = vpow.pop %v3217
  %v3219 = vmul.f32 %v3201, 1.442695
  %v3220 = vpow.pop %v3219
  %v3221 = vmul.f32 %v3202, 1.442695
  %v3222 = vpow.pop %v3221
  %v3223 = vmul.f32 %v3203, 1.442695
  %v3224 = vpow.pop %v3223
  %v3225 = vmul.f32 %v3204, 1.442695
  %v3226 = vpow.pop %v3225
  %v3227 = vmul.f32 %v3205, 1.442695
  %v3228 = vpow.pop %v3227
  %v3229 = vmul.f32 %v3206, 1.442695
  %v3230 = vpow.pop %v3229
  %v3231 = vmul.f32 %v3207, 1.442695
  %v3232 = vpow.pop %v3231
  %v3233 = vmul.f32 %v3208, 1.442695
  %v3234 = vpow.pop %v3233
  %v3235 = vmul.f32 %v3209, 1.442695
  %v3236 = vpow.pop %v3235
  %v3237 = vmul.f32 %v3210, 1.442695
  %v3238 = vpow.pop %v3237
  %v3239 = vmul.f32 %v3211, 1.442695
  %v3240 = vpow.pop %v3239
  %v3241 = vmul.f32 %v3212, 1.442695
  %v3242 = vpow.pop %v3241
  %v3243 = vmul.f32 %v3213, 1.442695
  %v3244 = vpow.pop %v3243
  %v3245 = vmul.f32 %v3214, 1.442695
  %v3246 = vpow.pop %v3245
  %3247 = vadd.xlane.f32.xlu0 %v3216
  %v3248 = vpop.xlane.xlu0 %3247
  %3249 = vadd.xlane.f32.xlu0 %v3218
  %v3250 = vpop.xlane.xlu0 %3249
  %3251 = vadd.xlane.f32.xlu0 %v3220
  %v3252 = vpop.xlane.xlu0 %3251
  %3253 = vadd.xlane.f32.xlu0 %v3222
  %v3254 = vpop.xlane.xlu0 %3253
  %3255 = vadd.xlane.f32.xlu0 %v3224
  %v3256 = vpop.xlane.xlu0 %3255
  %3257 = vadd.xlane.f32.xlu0 %v3226
  %v3258 = vpop.xlane.xlu0 %3257
  %3259 = vadd.xlane.f32.xlu0 %v3228
  %v3260 = vpop.xlane.xlu0 %3259
  %3261 = vadd.xlane.f32.xlu0 %v3230
  %v3262 = vpop.xlane.xlu0 %3261
  %3263 = vadd.xlane.f32.xlu0 %v3232
  %v3264 = vpop.xlane.xlu0 %3263
  %3265 = vadd.xlane.f32.xlu0 %v3234
  %v3266 = vpop.xlane.xlu0 %3265
  %3267 = vadd.xlane.f32.xlu0 %v3236
  %v3268 = vpop.xlane.xlu0 %3267
  %3269 = vadd.xlane.f32.xlu0 %v3238
  %v3270 = vpop.xlane.xlu0 %3269
  %3271 = vadd.xlane.f32.xlu0 %v3240
  %v3272 = vpop.xlane.xlu0 %3271
  %3273 = vadd.xlane.f32.xlu0 %v3242
  %v3274 = vpop.xlane.xlu0 %3273
  %3275 = vadd.xlane.f32.xlu0 %v3244
  %v3276 = vpop.xlane.xlu0 %3275
  %3277 = vadd.xlane.f32.xlu0 %v3246
  %v3278 = vpop.xlane.xlu0 %3277
  %v3279 = vrcp.pop %v3248
  %v3280 = vmul.f32 %v3216, %v3279
  %v3281 = vrcp.pop %v3250
  %v3282 = vmul.f32 %v3218, %v3281
  %v3283 = vrcp.pop %v3252
  %v3284 = vmul.f32 %v3220, %v3283
  %v3285 = vrcp.pop %v3254
  %v3286 = vmul.f32 %v3222, %v3285
  %v3287 = vrcp.pop %v3256
  %v3288 = vmul.f32 %v3224, %v3287
  %v3289 = vrcp.pop %v3258
  %v3290 = vmul.f32 %v3226, %v3289
  %v3291 = vrcp.pop %v3260
  %v3292 = vmul.f32 %v3228, %v3291
  %v3293 = vrcp.pop %v3262
  %v3294 = vmul.f32 %v3230, %v3293
  %v3295 = vrcp.pop %v3264
  %v3296 = vmul.f32 %v3232, %v3295
  %v3297 = vrcp.pop %v3266
  %v3298 = vmul.f32 %v3234, %v3297
  %v3299 = vrcp.pop %v3268
  %v3300 = vmul.f32 %v3236, %v3299
  %v3301 = vrcp.pop %v3270
  %v3302 = vmul.f32 %v3238, %v3301
  %v3303 = vrcp.pop %v3272
  %v3304 = vmul.f32 %v3240, %v3303
  %v3305 = vrcp.pop %v3274
  %v3306 = vmul.f32 %v3242, %v3305
  %v3307 = vrcp.pop %v3276
  %v3308 = vmul.f32 %v3244, %v3307
  %v3309 = vrcp.pop %v3278
  %v3310 = vmul.f32 %v3246, %v3309
  %3311 = vmatprep.subr.mxu0 0.0
  %3312 = vmatpush1.xpose.msra.mxu0 0.0
  %3313 = vmatprep.subr.mxu0 0.0
  %3314 = vmatpush1.xpose.msra.mxu0 0.0
  %3315 = vmatprep.subr.mxu0 0.0
  %3316 = vmatpush1.xpose.msra.mxu0 0.0
  %3317 = vmatprep.subr.mxu0 0.0
  %3318 = vmatpush1.xpose.msra.mxu0 0.0
  %3319 = vmatprep.subr.mxu0 0.0
  %3320 = vmatpush1.xpose.msra.mxu0 0.0
  %3321 = vmatprep.subr.mxu0 0.0
  %3322 = vmatpush1.xpose.msra.mxu0 0.0
  %3323 = vmatprep.subr.mxu0 0.0
  %3324 = vmatpush1.xpose.msra.mxu0 0.0
  %3325 = vmatprep.subr.mxu0 0.0
  %3326 = vmatpush1.xpose.msra.mxu0 0.0
  %3327 = vmatprep.subr.mxu0 0.0
  %3328 = vmatpush1.xpose.msra.mxu0 0.0
  %3329 = vmatprep.subr.mxu0 0.0
  %3330 = vmatpush1.xpose.msra.mxu0 0.0
  %3331 = vmatprep.subr.mxu0 0.0
  %3332 = vmatpush1.xpose.msra.mxu0 0.0
  %3333 = vmatprep.subr.mxu0 0.0
  %3334 = vmatpush1.xpose.msra.mxu0 0.0
  %3335 = vmatprep.subr.mxu0 0.0
  %3336 = vmatpush1.xpose.msra.mxu0 0.0
  %3337 = vmatprep.subr.mxu0 0.0
  %3338 = vmatpush1.xpose.msra.mxu0 0.0
  %3339 = vmatprep.subr.mxu0 0.0
  %3340 = vmatpush1.xpose.msra.mxu0 0.0
  %3341 = vmatprep.subr.mxu0 0.0
  %3342 = vmatpush1.xpose.msra.mxu0 %v493
  %3343 = vmatprep.subr.mxu0 0.0
  %3344 = vmatpush2.xpose.msra.mxu0 0.0
  %3345 = vmatprep.subr.mxu0 0.0
  %3346 = vmatpush2.xpose.msra.mxu0 0.0
  %3347 = vmatprep.subr.mxu0 0.0
  %3348 = vmatpush2.xpose.msra.mxu0 0.0
  %3349 = vmatprep.subr.mxu0 0.0
  %3350 = vmatpush2.xpose.msra.mxu0 0.0
  %3351 = vmatprep.subr.mxu0 0.0
  %3352 = vmatpush2.xpose.msra.mxu0 0.0
  %3353 = vmatprep.subr.mxu0 0.0
  %3354 = vmatpush2.xpose.msra.mxu0 0.0
  %3355 = vmatprep.subr.mxu0 0.0
  %3356 = vmatpush2.xpose.msra.mxu0 0.0
  %3357 = vmatprep.subr.mxu0 0.0
  %3358 = vmatpush2.xpose.msra.mxu0 0.0
  %3359 = vmatprep.subr.mxu0 0.0
  %3360 = vmatpush2.xpose.msra.mxu0 0.0
  %3361 = vmatprep.subr.mxu0 0.0
  %3362 = vmatpush2.xpose.msra.mxu0 0.0
  %3363 = vmatprep.subr.mxu0 0.0
  %3364 = vmatpush2.xpose.msra.mxu0 0.0
  %3365 = vmatprep.subr.mxu0 0.0
  %3366 = vmatpush2.xpose.msra.mxu0 0.0
  %3367 = vmatprep.subr.mxu0 0.0
  %3368 = vmatpush2.xpose.msra.mxu0 0.0
  %3369 = vmatprep.subr.mxu0 0.0
  %3370 = vmatpush2.xpose.msra.mxu0 0.0
  %3371 = vmatprep.subr.mxu0 0.0
  %3372 = vmatpush2.xpose.msra.mxu0 0.0
  %3373 = vmatprep.subr.mxu0 0.0
  %3374 = vmatpush2.xpose.msra.mxu0 0.0
  %3375 = vmatprep.mubr.f32.mxu0 0.0
  %3376 = vmatmul.mubr.f32.gmra.mxu0 %v3280
  %v3377 = vpop.f32.mrf.mxu0
  %v3378 = vadd.f32 0.0, %v3377
  %v3379 = vpop.f32.mrf.mxu0
  %3380 = vmatprep.mubr.f32.mxu0 0.0
  %3381 = vmatmul.mubr.f32.gmra.mxu0 %v3282
  %v3382 = vpop.f32.mrf.mxu0
  %v3383 = vadd.f32 0.0, %v3382
  %v3384 = vpop.f32.mrf.mxu0
  %3385 = vmatprep.mubr.f32.mxu0 0.0
  %3386 = vmatmul.mubr.f32.gmra.mxu0 %v3284
  %v3387 = vpop.f32.mrf.mxu0
  %v3388 = vadd.f32 0.0, %v3387
  %v3389 = vpop.f32.mrf.mxu0
  %3390 = vmatprep.mubr.f32.mxu0 0.0
  %3391 = vmatmul.mubr.f32.gmra.mxu0 %v3286
  %v3392 = vpop.f32.mrf.mxu0
  %v3393 = vadd.f32 0.0, %v3392
  %v3394 = vpop.f32.mrf.mxu0
  %3395 = vmatprep.mubr.f32.mxu0 0.0
  %3396 = vmatmul.mubr.f32.gmra.mxu0 %v3288
  %v3397 = vpop.f32.mrf.mxu0
  %v3398 = vadd.f32 0.0, %v3397
  %v3399 = vpop.f32.mrf.mxu0
  %3400 = vmatprep.mubr.f32.mxu0 0.0
  %3401 = vmatmul.mubr.f32.gmra.mxu0 %v3290
  %v3402 = vpop.f32.mrf.mxu0
  %v3403 = vadd.f32 0.0, %v3402
  %v3404 = vpop.f32.mrf.mxu0
  %3405 = vmatprep.mubr.f32.mxu0 0.0
  %3406 = vmatmul.mubr.f32.gmra.mxu0 %v3292
  %v3407 = vpop.f32.mrf.mxu0
  %v3408 = vadd.f32 0.0, %v3407
  %v3409 = vpop.f32.mrf.mxu0
  %3410 = vmatprep.mubr.f32.mxu0 0.0
  %3411 = vmatmul.mubr.f32.gmra.mxu0 %v3294
  %v3412 = vpop.f32.mrf.mxu0
  %v3413 = vadd.f32 0.0, %v3412
  %v3414 = vpop.f32.mrf.mxu0
  %3415 = vmatprep.mubr.f32.mxu0 0.0
  %3416 = vmatmul.mubr.f32.gmra.mxu0 %v3296
  %v3417 = vpop.f32.mrf.mxu0
  %v3418 = vadd.f32 0.0, %v3417
  %v3419 = vpop.f32.mrf.mxu0
  %3420 = vmatprep.mubr.f32.mxu0 0.0
  %3421 = vmatmul.mubr.f32.gmra.mxu0 %v3298
  %v3422 = vpop.f32.mrf.mxu0
  %v3423 = vadd.f32 0.0, %v3422
  %v3424 = vpop.f32.mrf.mxu0
  %3425 = vmatprep.mubr.f32.mxu0 0.0
  %3426 = vmatmul.mubr.f32.gmra.mxu0 %v3300
  %v3427 = vpop.f32.mrf.mxu0
  %v3428 = vadd.f32 0.0, %v3427
  %v3429 = vpop.f32.mrf.mxu0
  %3430 = vmatprep.mubr.f32.mxu0 0.0
  %3431 = vmatmul.mubr.f32.gmra.mxu0 %v3302
  %v3432 = vpop.f32.mrf.mxu0
  %v3433 = vadd.f32 0.0, %v3432
  %v3434 = vpop.f32.mrf.mxu0
  %3435 = vmatprep.mubr.f32.mxu0 0.0
  %3436 = vmatmul.mubr.f32.gmra.mxu0 %v3304
  %v3437 = vpop.f32.mrf.mxu0
  %v3438 = vadd.f32 0.0, %v3437
  %v3439 = vpop.f32.mrf.mxu0
  %3440 = vmatprep.mubr.f32.mxu0 0.0
  %3441 = vmatmul.mubr.f32.gmra.mxu0 %v3306
  %v3442 = vpop.f32.mrf.mxu0
  %v3443 = vadd.f32 0.0, %v3442
  %v3444 = vpop.f32.mrf.mxu0
  %3445 = vmatprep.mubr.f32.mxu0 0.0
  %3446 = vmatmul.mubr.f32.gmra.mxu0 %v3308
  %v3447 = vpop.f32.mrf.mxu0
  %v3448 = vadd.f32 0.0, %v3447
  %v3449 = vpop.f32.mrf.mxu0
  %3450 = vmatprep.mubr.f32.mxu0 0.0
  %3451 = vmatmul.mubr.f32.gmra.mxu0 %v3310
  %v3452 = vpop.f32.mrf.mxu0
  %v3453 = vadd.f32 0.0, %v3452
  %v3454 = vpop.f32.mrf.mxu0
  %3455 = vdwg.mxu0
  %3456 = vst.msk [vmem:[#allocation2] sm:$0xff] %vm545, %v3378
  %3457 = vst.msk [vmem:[#allocation2 + $0x8] sm:$0xff] %vm545, %v3383
  %3458 = vst.msk [vmem:[#allocation2 + $0x10] sm:$0xff] %vm545, %v3388
  %3459 = vst.msk [vmem:[#allocation2 + $0x18] sm:$0xff] %vm545, %v3393
  %3460 = vst.msk [vmem:[#allocation2 + $0x20] sm:$0xff] %vm545, %v3398
  %3461 = vst.msk [vmem:[#allocation2 + $0x28] sm:$0xff] %vm545, %v3403
  %3462 = vst.msk [vmem:[#allocation2 + $0x30] sm:$0xff] %vm545, %v3408
  %3463 = vst.msk [vmem:[#allocation2 + $0x38] sm:$0xff] %vm545, %v3413
  %3464 = vst.msk [vmem:[#allocation2 + $0x40] sm:$0xff] %vm545, %v3418
  %3465 = vst.msk [vmem:[#allocation2 + $0x48] sm:$0xff] %vm545, %v3423
  %3466 = vst.msk [vmem:[#allocation2 + $0x50] sm:$0xff] %vm545, %v3428
  %3467 = vst.msk [vmem:[#allocation2 + $0x58] sm:$0xff] %vm545, %v3433
  %3468 = vst.msk [vmem:[#allocation2 + $0x60] sm:$0xff] %vm545, %v3438
  %3469 = vst.msk [vmem:[#allocation2 + $0x68] sm:$0xff] %vm545, %v3443
  %3470 = vst.msk [vmem:[#allocation2 + $0x70] sm:$0xff] %vm545, %v3448
  %3471 = vst.msk [vmem:[#allocation2 + $0x78] sm:$0xff] %vm545, %v3453
  %3472 = vrot.lane.b32.xlu0 %v2958, 120
  %v3473 = vpop.permute.xlu0 %3472
  %3474 = vrot.lane.b32.xlu0 %v2959, 120
  %v3475 = vpop.permute.xlu0 %3474
  %3476 = vrot.lane.b32.xlu0 %v2960, 120
  %v3477 = vpop.permute.xlu0 %3476
  %3478 = vrot.lane.b32.xlu0 %v2961, 120
  %v3479 = vpop.permute.xlu0 %3478
  %3480 = vrot.lane.b32.xlu0 %v2962, 120
  %v3481 = vpop.permute.xlu0 %3480
  %3482 = vrot.lane.b32.xlu0 %v2963, 120
  %v3483 = vpop.permute.xlu0 %3482
  %3484 = vrot.lane.b32.xlu0 %v2964, 120
  %v3485 = vpop.permute.xlu0 %3484
  %3486 = vrot.lane.b32.xlu0 %v2965, 120
  %v3487 = vpop.permute.xlu0 %3486
  %3488 = vrot.lane.b32.xlu0 %v2966, 120
  %v3489 = vpop.permute.xlu0 %3488
  %3490 = vrot.lane.b32.xlu0 %v2967, 120
  %v3491 = vpop.permute.xlu0 %3490
  %3492 = vrot.lane.b32.xlu0 %v2968, 120
  %v3493 = vpop.permute.xlu0 %3492
  %3494 = vrot.lane.b32.xlu0 %v2969, 120
  %v3495 = vpop.permute.xlu0 %3494
  %3496 = vrot.lane.b32.xlu0 %v2970, 120
  %v3497 = vpop.permute.xlu0 %3496
  %3498 = vrot.lane.b32.xlu0 %v2971, 120
  %v3499 = vpop.permute.xlu0 %3498
  %3500 = vrot.lane.b32.xlu0 %v2972, 120
  %v3501 = vpop.permute.xlu0 %3500
  %3502 = vrot.lane.b32.xlu0 %v2973, 120
  %v3503 = vpop.permute.xlu0 %3502
  %v3504 = vsel %vm545, %v3473, 0
  %v3506 = vsel %vm545, %v3475, 0
  %v3508 = vsel %vm545, %v3477, 0
  %v3510 = vsel %vm545, %v3479, 0
  %v3512 = vsel %vm545, %v3481, 0
  %v3514 = vsel %vm545, %v3483, 0
  %v3516 = vsel %vm545, %v3485, 0
  %v3518 = vsel %vm545, %v3487, 0
  %v3520 = vsel %vm545, %v3489, 0
  %v3522 = vsel %vm545, %v3491, 0
  %v3524 = vsel %vm545, %v3493, 0
  %v3526 = vsel %vm545, %v3495, 0
  %v3528 = vsel %vm545, %v3497, 0
  %v3530 = vsel %vm545, %v3499, 0
  %v3532 = vsel %vm545, %v3501, 0
  %v3534 = vsel %vm545, %v3503, 0
  %3536 = vmatprep.subr.mxu0 0.0
  %3537 = vmatpush1.msra.mxu0 0.0
  %3538 = vmatprep.subr.mxu0 0.0
  %3539 = vmatpush1.msra.mxu0 0.0
  %3540 = vmatprep.subr.mxu0 0.0
  %3541 = vmatpush1.msra.mxu0 0.0
  %3542 = vmatprep.subr.mxu0 0.0
  %3543 = vmatpush1.msra.mxu0 0.0
  %3544 = vmatprep.subr.mxu0 0.0
  %3545 = vmatpush1.msra.mxu0 0.0
  %3546 = vmatprep.subr.mxu0 0.0
  %3547 = vmatpush1.msra.mxu0 0.0
  %3548 = vmatprep.subr.mxu0 0.0
  %3549 = vmatpush1.msra.mxu0 0.0
  %3550 = vmatprep.subr.mxu0 0.0
  %3551 = vmatpush1.msra.mxu0 0.0
  %3552 = vmatprep.subr.mxu0 0.0
  %3553 = vmatpush1.msra.mxu0 0.0
  %3554 = vmatprep.subr.mxu0 0.0
  %3555 = vmatpush1.msra.mxu0 0.0
  %3556 = vmatprep.subr.mxu0 0.0
  %3557 = vmatpush1.msra.mxu0 0.0
  %3558 = vmatprep.subr.mxu0 0.0
  %3559 = vmatpush1.msra.mxu0 0.0
  %3560 = vmatprep.subr.mxu0 0.0
  %3561 = vmatpush1.msra.mxu0 0.0
  %3562 = vmatprep.subr.mxu0 0.0
  %3563 = vmatpush1.msra.mxu0 0.0
  %3564 = vmatprep.subr.mxu0 0.0
  %3565 = vmatpush1.msra.mxu0 0.0
  %3566 = vmatprep.subr.mxu0 0.0
  %3567 = vmatpush1.msra.mxu0 %v475
  %3568 = vmatprep.subr.mxu0 0.0
  %3569 = vmatpush2.msra.mxu0 0.0
  %3570 = vmatprep.subr.mxu0 0.0
  %3571 = vmatpush2.msra.mxu0 0.0
  %3572 = vmatprep.subr.mxu0 0.0
  %3573 = vmatpush2.msra.mxu0 0.0
  %3574 = vmatprep.subr.mxu0 0.0
  %3575 = vmatpush2.msra.mxu0 0.0
  %3576 = vmatprep.subr.mxu0 0.0
  %3577 = vmatpush2.msra.mxu0 0.0
  %3578 = vmatprep.subr.mxu0 0.0
  %3579 = vmatpush2.msra.mxu0 0.0
  %3580 = vmatprep.subr.mxu0 0.0
  %3581 = vmatpush2.msra.mxu0 0.0
  %3582 = vmatprep.subr.mxu0 0.0
  %3583 = vmatpush2.msra.mxu0 0.0
  %3584 = vmatprep.subr.mxu0 0.0
  %3585 = vmatpush2.msra.mxu0 0.0
  %3586 = vmatprep.subr.mxu0 0.0
  %3587 = vmatpush2.msra.mxu0 0.0
  %3588 = vmatprep.subr.mxu0 0.0
  %3589 = vmatpush2.msra.mxu0 0.0
  %3590 = vmatprep.subr.mxu0 0.0
  %3591 = vmatpush2.msra.mxu0 0.0
  %3592 = vmatprep.subr.mxu0 0.0
  %3593 = vmatpush2.msra.mxu0 0.0
  %3594 = vmatprep.subr.mxu0 0.0
  %3595 = vmatpush2.msra.mxu0 0.0
  %3596 = vmatprep.subr.mxu0 0.0
  %3597 = vmatpush2.msra.mxu0 0.0
  %3598 = vmatprep.subr.mxu0 0.0
  %3599 = vmatpush2.msra.mxu0 0.0
  %3600 = vmatprep.mubr.f32.mxu0 0.0
  %3601 = vmatmul.mubr.f32.gmra.mxu0 %v3504
  %v3602 = vpop.f32.mrf.mxu0
  %v3603 = vadd.f32 0.0, %v3602
  %v3604 = vpop.f32.mrf.mxu0
  %3605 = vmatprep.mubr.f32.mxu0 0.0
  %3606 = vmatmul.mubr.f32.gmra.mxu0 %v3506
  %v3607 = vpop.f32.mrf.mxu0
  %v3608 = vadd.f32 0.0, %v3607
  %v3609 = vpop.f32.mrf.mxu0
  %3610 = vmatprep.mubr.f32.mxu0 0.0
  %3611 = vmatmul.mubr.f32.gmra.mxu0 %v3508
  %v3612 = vpop.f32.mrf.mxu0
  %v3613 = vadd.f32 0.0, %v3612
  %v3614 = vpop.f32.mrf.mxu0
  %3615 = vmatprep.mubr.f32.mxu0 0.0
  %3616 = vmatmul.mubr.f32.gmra.mxu0 %v3510
  %v3617 = vpop.f32.mrf.mxu0
  %v3618 = vadd.f32 0.0, %v3617
  %v3619 = vpop.f32.mrf.mxu0
  %3620 = vmatprep.mubr.f32.mxu0 0.0
  %3621 = vmatmul.mubr.f32.gmra.mxu0 %v3512
  %v3622 = vpop.f32.mrf.mxu0
  %v3623 = vadd.f32 0.0, %v3622
  %v3624 = vpop.f32.mrf.mxu0
  %3625 = vmatprep.mubr.f32.mxu0 0.0
  %3626 = vmatmul.mubr.f32.gmra.mxu0 %v3514
  %v3627 = vpop.f32.mrf.mxu0
  %v3628 = vadd.f32 0.0, %v3627
  %v3629 = vpop.f32.mrf.mxu0
  %3630 = vmatprep.mubr.f32.mxu0 0.0
  %3631 = vmatmul.mubr.f32.gmra.mxu0 %v3516
  %v3632 = vpop.f32.mrf.mxu0
  %v3633 = vadd.f32 0.0, %v3632
  %v3634 = vpop.f32.mrf.mxu0
  %3635 = vmatprep.mubr.f32.mxu0 0.0
  %3636 = vmatmul.mubr.f32.gmra.mxu0 %v3518
  %v3637 = vpop.f32.mrf.mxu0
  %v3638 = vadd.f32 0.0, %v3637
  %v3639 = vpop.f32.mrf.mxu0
  %3640 = vmatprep.mubr.f32.mxu0 0.0
  %3641 = vmatmul.mubr.f32.gmra.mxu0 %v3520
  %v3642 = vpop.f32.mrf.mxu0
  %v3643 = vadd.f32 0.0, %v3642
  %v3644 = vpop.f32.mrf.mxu0
  %3645 = vmatprep.mubr.f32.mxu0 0.0
  %3646 = vmatmul.mubr.f32.gmra.mxu0 %v3522
  %v3647 = vpop.f32.mrf.mxu0
  %v3648 = vadd.f32 0.0, %v3647
  %v3649 = vpop.f32.mrf.mxu0
  %3650 = vmatprep.mubr.f32.mxu0 0.0
  %3651 = vmatmul.mubr.f32.gmra.mxu0 %v3524
  %v3652 = vpop.f32.mrf.mxu0
  %v3653 = vadd.f32 0.0, %v3652
  %v3654 = vpop.f32.mrf.mxu0
  %3655 = vmatprep.mubr.f32.mxu0 0.0
  %3656 = vmatmul.mubr.f32.gmra.mxu0 %v3526
  %v3657 = vpop.f32.mrf.mxu0
  %v3658 = vadd.f32 0.0, %v3657
  %v3659 = vpop.f32.mrf.mxu0
  %3660 = vmatprep.mubr.f32.mxu0 0.0
  %3661 = vmatmul.mubr.f32.gmra.mxu0 %v3528
  %v3662 = vpop.f32.mrf.mxu0
  %v3663 = vadd.f32 0.0, %v3662
  %v3664 = vpop.f32.mrf.mxu0
  %3665 = vmatprep.mubr.f32.mxu0 0.0
  %3666 = vmatmul.mubr.f32.gmra.mxu0 %v3530
  %v3667 = vpop.f32.mrf.mxu0
  %v3668 = vadd.f32 0.0, %v3667
  %v3669 = vpop.f32.mrf.mxu0
  %3670 = vmatprep.mubr.f32.mxu0 0.0
  %3671 = vmatmul.mubr.f32.gmra.mxu0 %v3532
  %v3672 = vpop.f32.mrf.mxu0
  %v3673 = vadd.f32 0.0, %v3672
  %v3674 = vpop.f32.mrf.mxu0
  %3675 = vmatprep.mubr.f32.mxu0 0.0
  %3676 = vmatmul.mubr.f32.gmra.mxu0 %v3534
  %v3677 = vpop.f32.mrf.mxu0
  %v3678 = vadd.f32 0.0, %v3677
  %v3679 = vpop.f32.mrf.mxu0
  %3680 = vdwg.mxu0
  %3681 = vmax.xlane.f32.xlu0 %v3603
  %v3682 = vpop.xlane.xlu0 %3681
  %3683 = vmax.xlane.f32.xlu0 %v3608
  %v3684 = vpop.xlane.xlu0 %3683
  %3685 = vmax.xlane.f32.xlu0 %v3613
  %v3686 = vpop.xlane.xlu0 %3685
  %3687 = vmax.xlane.f32.xlu0 %v3618
  %v3688 = vpop.xlane.xlu0 %3687
  %3689 = vmax.xlane.f32.xlu0 %v3623
  %v3690 = vpop.xlane.xlu0 %3689
  %3691 = vmax.xlane.f32.xlu0 %v3628
  %v3692 = vpop.xlane.xlu0 %3691
  %3693 = vmax.xlane.f32.xlu0 %v3633
  %v3694 = vpop.xlane.xlu0 %3693
  %3695 = vmax.xlane.f32.xlu0 %v3638
  %v3696 = vpop.xlane.xlu0 %3695
  %3697 = vmax.xlane.f32.xlu0 %v3643
  %v3698 = vpop.xlane.xlu0 %3697
  %3699 = vmax.xlane.f32.xlu0 %v3648
  %v3700 = vpop.xlane.xlu0 %3699
  %3701 = vmax.xlane.f32.xlu0 %v3653
  %v3702 = vpop.xlane.xlu0 %3701
  %3703 = vmax.xlane.f32.xlu0 %v3658
  %v3704 = vpop.xlane.xlu0 %3703
  %3705 = vmax.xlane.f32.xlu0 %v3663
  %v3706 = vpop.xlane.xlu0 %3705
  %3707 = vmax.xlane.f32.xlu0 %v3668
  %v3708 = vpop.xlane.xlu0 %3707
  %3709 = vmax.xlane.f32.xlu0 %v3673
  %v3710 = vpop.xlane.xlu0 %3709
  %3711 = vmax.xlane.f32.xlu0 %v3678
  %v3712 = vpop.xlane.xlu0 %3711
  %v3713 = vsub.f32 %v3603, %v3682
  %v3714 = vsub.f32 %v3608, %v3684
  %v3715 = vsub.f32 %v3613, %v3686
  %v3716 = vsub.f32 %v3618, %v3688
  %v3717 = vsub.f32 %v3623, %v3690
  %v3718 = vsub.f32 %v3628, %v3692
  %v3719 = vsub.f32 %v3633, %v3694
  %v3720 = vsub.f32 %v3638, %v3696
  %v3721 = vsub.f32 %v3643, %v3698
  %v3722 = vsub.f32 %v3648, %v3700
  %v3723 = vsub.f32 %v3653, %v3702
  %v3724 = vsub.f32 %v3658, %v3704
  %v3725 = vsub.f32 %v3663, %v3706
  %v3726 = vsub.f32 %v3668, %v3708
  %v3727 = vsub.f32 %v3673, %v3710
  %v3728 = vsub.f32 %v3678, %v3712
  %v3729 = vmul.f32 %v3713, 1.442695
  %v3730 = vpow.pop %v3729
  %v3731 = vmul.f32 %v3714, 1.442695
  %v3732 = vpow.pop %v3731
  %v3733 = vmul.f32 %v3715, 1.442695
  %v3734 = vpow.pop %v3733
  %v3735 = vmul.f32 %v3716, 1.442695
  %v3736 = vpow.pop %v3735
  %v3737 = vmul.f32 %v3717, 1.442695
  %v3738 = vpow.pop %v3737
  %v3739 = vmul.f32 %v3718, 1.442695
  %v3740 = vpow.pop %v3739
  %v3741 = vmul.f32 %v3719, 1.442695
  %v3742 = vpow.pop %v3741
  %v3743 = vmul.f32 %v3720, 1.442695
  %v3744 = vpow.pop %v3743
  %v3745 = vmul.f32 %v3721, 1.442695
  %v3746 = vpow.pop %v3745
  %v3747 = vmul.f32 %v3722, 1.442695
  %v3748 = vpow.pop %v3747
  %v3749 = vmul.f32 %v3723, 1.442695
  %v3750 = vpow.pop %v3749
  %v3751 = vmul.f32 %v3724, 1.442695
  %v3752 = vpow.pop %v3751
  %v3753 = vmul.f32 %v3725, 1.442695
  %v3754 = vpow.pop %v3753
  %v3755 = vmul.f32 %v3726, 1.442695
  %v3756 = vpow.pop %v3755
  %v3757 = vmul.f32 %v3727, 1.442695
  %v3758 = vpow.pop %v3757
  %v3759 = vmul.f32 %v3728, 1.442695
  %v3760 = vpow.pop %v3759
  %3761 = vadd.xlane.f32.xlu0 %v3730
  %v3762 = vpop.xlane.xlu0 %3761
  %3763 = vadd.xlane.f32.xlu0 %v3732
  %v3764 = vpop.xlane.xlu0 %3763
  %3765 = vadd.xlane.f32.xlu0 %v3734
  %v3766 = vpop.xlane.xlu0 %3765
  %3767 = vadd.xlane.f32.xlu0 %v3736
  %v3768 = vpop.xlane.xlu0 %3767
  %3769 = vadd.xlane.f32.xlu0 %v3738
  %v3770 = vpop.xlane.xlu0 %3769
  %3771 = vadd.xlane.f32.xlu0 %v3740
  %v3772 = vpop.xlane.xlu0 %3771
  %3773 = vadd.xlane.f32.xlu0 %v3742
  %v3774 = vpop.xlane.xlu0 %3773
  %3775 = vadd.xlane.f32.xlu0 %v3744
  %v3776 = vpop.xlane.xlu0 %3775
  %3777 = vadd.xlane.f32.xlu0 %v3746
  %v3778 = vpop.xlane.xlu0 %3777
  %3779 = vadd.xlane.f32.xlu0 %v3748
  %v3780 = vpop.xlane.xlu0 %3779
  %3781 = vadd.xlane.f32.xlu0 %v3750
  %v3782 = vpop.xlane.xlu0 %3781
  %3783 = vadd.xlane.f32.xlu0 %v3752
  %v3784 = vpop.xlane.xlu0 %3783
  %3785 = vadd.xlane.f32.xlu0 %v3754
  %v3786 = vpop.xlane.xlu0 %3785
  %3787 = vadd.xlane.f32.xlu0 %v3756
  %v3788 = vpop.xlane.xlu0 %3787
  %3789 = vadd.xlane.f32.xlu0 %v3758
  %v3790 = vpop.xlane.xlu0 %3789
  %3791 = vadd.xlane.f32.xlu0 %v3760
  %v3792 = vpop.xlane.xlu0 %3791
  %v3793 = vrcp.pop %v3762
  %v3794 = vmul.f32 %v3730, %v3793
  %v3795 = vrcp.pop %v3764
  %v3796 = vmul.f32 %v3732, %v3795
  %v3797 = vrcp.pop %v3766
  %v3798 = vmul.f32 %v3734, %v3797
  %v3799 = vrcp.pop %v3768
  %v3800 = vmul.f32 %v3736, %v3799
  %v3801 = vrcp.pop %v3770
  %v3802 = vmul.f32 %v3738, %v3801
  %v3803 = vrcp.pop %v3772
  %v3804 = vmul.f32 %v3740, %v3803
  %v3805 = vrcp.pop %v3774
  %v3806 = vmul.f32 %v3742, %v3805
  %v3807 = vrcp.pop %v3776
  %v3808 = vmul.f32 %v3744, %v3807
  %v3809 = vrcp.pop %v3778
  %v3810 = vmul.f32 %v3746, %v3809
  %v3811 = vrcp.pop %v3780
  %v3812 = vmul.f32 %v3748, %v3811
  %v3813 = vrcp.pop %v3782
  %v3814 = vmul.f32 %v3750, %v3813
  %v3815 = vrcp.pop %v3784
  %v3816 = vmul.f32 %v3752, %v3815
  %v3817 = vrcp.pop %v3786
  %v3818 = vmul.f32 %v3754, %v3817
  %v3819 = vrcp.pop %v3788
  %v3820 = vmul.f32 %v3756, %v3819
  %v3821 = vrcp.pop %v3790
  %v3822 = vmul.f32 %v3758, %v3821
  %v3823 = vrcp.pop %v3792
  %v3824 = vmul.f32 %v3760, %v3823
  %3825 = vmatprep.subr.mxu0 0.0
  %3826 = vmatpush1.xpose.msra.mxu0 0.0
  %3827 = vmatprep.subr.mxu0 0.0
  %3828 = vmatpush1.xpose.msra.mxu0 0.0
  %3829 = vmatprep.subr.mxu0 0.0
  %3830 = vmatpush1.xpose.msra.mxu0 0.0
  %3831 = vmatprep.subr.mxu0 0.0
  %3832 = vmatpush1.xpose.msra.mxu0 0.0
  %3833 = vmatprep.subr.mxu0 0.0
  %3834 = vmatpush1.xpose.msra.mxu0 0.0
  %3835 = vmatprep.subr.mxu0 0.0
  %3836 = vmatpush1.xpose.msra.mxu0 0.0
  %3837 = vmatprep.subr.mxu0 0.0
  %3838 = vmatpush1.xpose.msra.mxu0 0.0
  %3839 = vmatprep.subr.mxu0 0.0
  %3840 = vmatpush1.xpose.msra.mxu0 0.0
  %3841 = vmatprep.subr.mxu0 0.0
  %3842 = vmatpush1.xpose.msra.mxu0 0.0
  %3843 = vmatprep.subr.mxu0 0.0
  %3844 = vmatpush1.xpose.msra.mxu0 0.0
  %3845 = vmatprep.subr.mxu0 0.0
  %3846 = vmatpush1.xpose.msra.mxu0 0.0
  %3847 = vmatprep.subr.mxu0 0.0
  %3848 = vmatpush1.xpose.msra.mxu0 0.0
  %3849 = vmatprep.subr.mxu0 0.0
  %3850 = vmatpush1.xpose.msra.mxu0 0.0
  %3851 = vmatprep.subr.mxu0 0.0
  %3852 = vmatpush1.xpose.msra.mxu0 0.0
  %3853 = vmatprep.subr.mxu0 0.0
  %3854 = vmatpush1.xpose.msra.mxu0 0.0
  %3855 = vmatprep.subr.mxu0 0.0
  %3856 = vmatpush1.xpose.msra.mxu0 %v499
  %3857 = vmatprep.subr.mxu0 0.0
  %3858 = vmatpush2.xpose.msra.mxu0 0.0
  %3859 = vmatprep.subr.mxu0 0.0
  %3860 = vmatpush2.xpose.msra.mxu0 0.0
  %3861 = vmatprep.subr.mxu0 0.0
  %3862 = vmatpush2.xpose.msra.mxu0 0.0
  %3863 = vmatprep.subr.mxu0 0.0
  %3864 = vmatpush2.xpose.msra.mxu0 0.0
  %3865 = vmatprep.subr.mxu0 0.0
  %3866 = vmatpush2.xpose.msra.mxu0 0.0
  %3867 = vmatprep.subr.mxu0 0.0
  %3868 = vmatpush2.xpose.msra.mxu0 0.0
  %3869 = vmatprep.subr.mxu0 0.0
  %3870 = vmatpush2.xpose.msra.mxu0 0.0
  %3871 = vmatprep.subr.mxu0 0.0
  %3872 = vmatpush2.xpose.msra.mxu0 0.0
  %3873 = vmatprep.subr.mxu0 0.0
  %3874 = vmatpush2.xpose.msra.mxu0 0.0
  %3875 = vmatprep.subr.mxu0 0.0
  %3876 = vmatpush2.xpose.msra.mxu0 0.0
  %3877 = vmatprep.subr.mxu0 0.0
  %3878 = vmatpush2.xpose.msra.mxu0 0.0
  %3879 = vmatprep.subr.mxu0 0.0
  %3880 = vmatpush2.xpose.msra.mxu0 0.0
  %3881 = vmatprep.subr.mxu0 0.0
  %3882 = vmatpush2.xpose.msra.mxu0 0.0
  %3883 = vmatprep.subr.mxu0 0.0
  %3884 = vmatpush2.xpose.msra.mxu0 0.0
  %3885 = vmatprep.subr.mxu0 0.0
  %3886 = vmatpush2.xpose.msra.mxu0 0.0
  %3887 = vmatprep.subr.mxu0 0.0
  %3888 = vmatpush2.xpose.msra.mxu0 0.0
  %3889 = vmatprep.mubr.f32.mxu0 0.0
  %3890 = vmatmul.mubr.f32.gmra.mxu0 %v3794
  %v3891 = vpop.f32.mrf.mxu0
  %v3892 = vadd.f32 0.0, %v3891
  %v3893 = vpop.f32.mrf.mxu0
  %3894 = vmatprep.mubr.f32.mxu0 0.0
  %3895 = vmatmul.mubr.f32.gmra.mxu0 %v3796
  %v3896 = vpop.f32.mrf.mxu0
  %v3897 = vadd.f32 0.0, %v3896
  %v3898 = vpop.f32.mrf.mxu0
  %3899 = vmatprep.mubr.f32.mxu0 0.0
  %3900 = vmatmul.mubr.f32.gmra.mxu0 %v3798
  %v3901 = vpop.f32.mrf.mxu0
  %v3902 = vadd.f32 0.0, %v3901
  %v3903 = vpop.f32.mrf.mxu0
  %3904 = vmatprep.mubr.f32.mxu0 0.0
  %3905 = vmatmul.mubr.f32.gmra.mxu0 %v3800
  %v3906 = vpop.f32.mrf.mxu0
  %v3907 = vadd.f32 0.0, %v3906
  %v3908 = vpop.f32.mrf.mxu0
  %3909 = vmatprep.mubr.f32.mxu0 0.0
  %3910 = vmatmul.mubr.f32.gmra.mxu0 %v3802
  %v3911 = vpop.f32.mrf.mxu0
  %v3912 = vadd.f32 0.0, %v3911
  %v3913 = vpop.f32.mrf.mxu0
  %3914 = vmatprep.mubr.f32.mxu0 0.0
  %3915 = vmatmul.mubr.f32.gmra.mxu0 %v3804
  %v3916 = vpop.f32.mrf.mxu0
  %v3917 = vadd.f32 0.0, %v3916
  %v3918 = vpop.f32.mrf.mxu0
  %3919 = vmatprep.mubr.f32.mxu0 0.0
  %3920 = vmatmul.mubr.f32.gmra.mxu0 %v3806
  %v3921 = vpop.f32.mrf.mxu0
  %v3922 = vadd.f32 0.0, %v3921
  %v3923 = vpop.f32.mrf.mxu0
  %3924 = vmatprep.mubr.f32.mxu0 0.0
  %3925 = vmatmul.mubr.f32.gmra.mxu0 %v3808
  %v3926 = vpop.f32.mrf.mxu0
  %v3927 = vadd.f32 0.0, %v3926
  %v3928 = vpop.f32.mrf.mxu0
  %3929 = vmatprep.mubr.f32.mxu0 0.0
  %3930 = vmatmul.mubr.f32.gmra.mxu0 %v3810
  %v3931 = vpop.f32.mrf.mxu0
  %v3932 = vadd.f32 0.0, %v3931
  %v3933 = vpop.f32.mrf.mxu0
  %3934 = vmatprep.mubr.f32.mxu0 0.0
  %3935 = vmatmul.mubr.f32.gmra.mxu0 %v3812
  %v3936 = vpop.f32.mrf.mxu0
  %v3937 = vadd.f32 0.0, %v3936
  %v3938 = vpop.f32.mrf.mxu0
  %3939 = vmatprep.mubr.f32.mxu0 0.0
  %3940 = vmatmul.mubr.f32.gmra.mxu0 %v3814
  %v3941 = vpop.f32.mrf.mxu0
  %v3942 = vadd.f32 0.0, %v3941
  %v3943 = vpop.f32.mrf.mxu0
  %3944 = vmatprep.mubr.f32.mxu0 0.0
  %3945 = vmatmul.mubr.f32.gmra.mxu0 %v3816
  %v3946 = vpop.f32.mrf.mxu0
  %v3947 = vadd.f32 0.0, %v3946
  %v3948 = vpop.f32.mrf.mxu0
  %3949 = vmatprep.mubr.f32.mxu0 0.0
  %3950 = vmatmul.mubr.f32.gmra.mxu0 %v3818
  %v3951 = vpop.f32.mrf.mxu0
  %v3952 = vadd.f32 0.0, %v3951
  %v3953 = vpop.f32.mrf.mxu0
  %3954 = vmatprep.mubr.f32.mxu0 0.0
  %3955 = vmatmul.mubr.f32.gmra.mxu0 %v3820
  %v3956 = vpop.f32.mrf.mxu0
  %v3957 = vadd.f32 0.0, %v3956
  %v3958 = vpop.f32.mrf.mxu0
  %3959 = vmatprep.mubr.f32.mxu0 0.0
  %3960 = vmatmul.mubr.f32.gmra.mxu0 %v3822
  %v3961 = vpop.f32.mrf.mxu0
  %v3962 = vadd.f32 0.0, %v3961
  %v3963 = vpop.f32.mrf.mxu0
  %3964 = vmatprep.mubr.f32.mxu0 0.0
  %3965 = vmatmul.mubr.f32.gmra.mxu0 %v3824
  %v3966 = vpop.f32.mrf.mxu0
  %v3967 = vadd.f32 0.0, %v3966
  %v3968 = vpop.f32.mrf.mxu0
  %3969 = vdwg.mxu0
  %3986 = vrot.lane.b32.xlu0 %v3892, 8
  %v3987 = vpop.permute.xlu0 %3986
  %3988 = vrot.lane.b32.xlu0 %v3897, 8
  %v3989 = vpop.permute.xlu0 %3988
  %3990 = vrot.lane.b32.xlu0 %v3902, 8
  %v3991 = vpop.permute.xlu0 %3990
  %3992 = vrot.lane.b32.xlu0 %v3907, 8
  %v3993 = vpop.permute.xlu0 %3992
  %3994 = vrot.lane.b32.xlu0 %v3912, 8
  %v3995 = vpop.permute.xlu0 %3994
  %3996 = vrot.lane.b32.xlu0 %v3917, 8
  %v3997 = vpop.permute.xlu0 %3996
  %3998 = vrot.lane.b32.xlu0 %v3922, 8
  %v3999 = vpop.permute.xlu0 %3998
  %4000 = vrot.lane.b32.xlu0 %v3927, 8
  %v4001 = vpop.permute.xlu0 %4000
  %4002 = vrot.lane.b32.xlu0 %v3932, 8
  %v4003 = vpop.permute.xlu0 %4002
  %4004 = vrot.lane.b32.xlu0 %v3937, 8
  %v4005 = vpop.permute.xlu0 %4004
  %4006 = vrot.lane.b32.xlu0 %v3942, 8
  %v4007 = vpop.permute.xlu0 %4006
  %4008 = vrot.lane.b32.xlu0 %v3947, 8
  %v4009 = vpop.permute.xlu0 %4008
  %4010 = vrot.lane.b32.xlu0 %v3952, 8
  %v4011 = vpop.permute.xlu0 %4010
  %4012 = vrot.lane.b32.xlu0 %v3957, 8
  %v4013 = vpop.permute.xlu0 %4012
  %4014 = vrot.lane.b32.xlu0 %v3962, 8
  %v4015 = vpop.permute.xlu0 %4014
  %4016 = vrot.lane.b32.xlu0 %v3967, 8
  %v4017 = vpop.permute.xlu0 %4016
  %4034 = vst.msk [vmem:[#allocation2] sm:$0xff] %vm1606, %v3987
  %4035 = vst.msk [vmem:[#allocation2 + $0x8] sm:$0xff] %vm1606, %v3989
  %4036 = vst.msk [vmem:[#allocation2 + $0x10] sm:$0xff] %vm1606, %v3991
  %4037 = vst.msk [vmem:[#allocation2 + $0x18] sm:$0xff] %vm1606, %v3993
  %4038 = vst.msk [vmem:[#allocation2 + $0x20] sm:$0xff] %vm1606, %v3995
  %4039 = vst.msk [vmem:[#allocation2 + $0x28] sm:$0xff] %vm1606, %v3997
  %4040 = vst.msk [vmem:[#allocation2 + $0x30] sm:$0xff] %vm1606, %v3999
  %4041 = vst.msk [vmem:[#allocation2 + $0x38] sm:$0xff] %vm1606, %v4001
  %4042 = vst.msk [vmem:[#allocation2 + $0x40] sm:$0xff] %vm1606, %v4003
  %4043 = vst.msk [vmem:[#allocation2 + $0x48] sm:$0xff] %vm1606, %v4005
  %4044 = vst.msk [vmem:[#allocation2 + $0x50] sm:$0xff] %vm1606, %v4007
  %4045 = vst.msk [vmem:[#allocation2 + $0x58] sm:$0xff] %vm1606, %v4009
  %4046 = vst.msk [vmem:[#allocation2 + $0x60] sm:$0xff] %vm1606, %v4011
  %4047 = vst.msk [vmem:[#allocation2 + $0x68] sm:$0xff] %vm1606, %v4013
  %4048 = vst.msk [vmem:[#allocation2 + $0x70] sm:$0xff] %vm1606, %v4015
  %4049 = vst.msk [vmem:[#allocation2 + $0x78] sm:$0xff] %vm1606, %v4017
  %4050 = vrot.lane.b32.xlu0 %v2958, 112
  %v4051 = vpop.permute.xlu0 %4050
  %4052 = vrot.lane.b32.xlu0 %v2959, 112
  %v4053 = vpop.permute.xlu0 %4052
  %4054 = vrot.lane.b32.xlu0 %v2960, 112
  %v4055 = vpop.permute.xlu0 %4054
  %4056 = vrot.lane.b32.xlu0 %v2961, 112
  %v4057 = vpop.permute.xlu0 %4056
  %4058 = vrot.lane.b32.xlu0 %v2962, 112
  %v4059 = vpop.permute.xlu0 %4058
  %4060 = vrot.lane.b32.xlu0 %v2963, 112
  %v4061 = vpop.permute.xlu0 %4060
  %4062 = vrot.lane.b32.xlu0 %v2964, 112
  %v4063 = vpop.permute.xlu0 %4062
  %4064 = vrot.lane.b32.xlu0 %v2965, 112
  %v4065 = vpop.permute.xlu0 %4064
  %4066 = vrot.lane.b32.xlu0 %v2966, 112
  %v4067 = vpop.permute.xlu0 %4066
  %4068 = vrot.lane.b32.xlu0 %v2967, 112
  %v4069 = vpop.permute.xlu0 %4068
  %4070 = vrot.lane.b32.xlu0 %v2968, 112
  %v4071 = vpop.permute.xlu0 %4070
  %4072 = vrot.lane.b32.xlu0 %v2969, 112
  %v4073 = vpop.permute.xlu0 %4072
  %4074 = vrot.lane.b32.xlu0 %v2970, 112
  %v4075 = vpop.permute.xlu0 %4074
  %4076 = vrot.lane.b32.xlu0 %v2971, 112
  %v4077 = vpop.permute.xlu0 %4076
  %4078 = vrot.lane.b32.xlu0 %v2972, 112
  %v4079 = vpop.permute.xlu0 %4078
  %4080 = vrot.lane.b32.xlu0 %v2973, 112
  %v4081 = vpop.permute.xlu0 %4080
  %v4082 = vsel %vm545, %v4051, 0
  %v4084 = vsel %vm545, %v4053, 0
  %v4086 = vsel %vm545, %v4055, 0
  %v4088 = vsel %vm545, %v4057, 0
  %v4090 = vsel %vm545, %v4059, 0
  %v4092 = vsel %vm545, %v4061, 0
  %v4094 = vsel %vm545, %v4063, 0
  %v4096 = vsel %vm545, %v4065, 0
  %v4098 = vsel %vm545, %v4067, 0
  %v4100 = vsel %vm545, %v4069, 0
  %v4102 = vsel %vm545, %v4071, 0
  %v4104 = vsel %vm545, %v4073, 0
  %v4106 = vsel %vm545, %v4075, 0
  %v4108 = vsel %vm545, %v4077, 0
  %v4110 = vsel %vm545, %v4079, 0
  %v4112 = vsel %vm545, %v4081, 0
  %4114 = vmatprep.subr.mxu0 0.0
  %4115 = vmatpush1.msra.mxu0 0.0
  %4116 = vmatprep.subr.mxu0 0.0
  %4117 = vmatpush1.msra.mxu0 0.0
  %4118 = vmatprep.subr.mxu0 0.0
  %4119 = vmatpush1.msra.mxu0 0.0
  %4120 = vmatprep.subr.mxu0 0.0
  %4121 = vmatpush1.msra.mxu0 0.0
  %4122 = vmatprep.subr.mxu0 0.0
  %4123 = vmatpush1.msra.mxu0 0.0
  %4124 = vmatprep.subr.mxu0 0.0
  %4125 = vmatpush1.msra.mxu0 0.0
  %4126 = vmatprep.subr.mxu0 0.0
  %4127 = vmatpush1.msra.mxu0 0.0
  %4128 = vmatprep.subr.mxu0 0.0
  %4129 = vmatpush1.msra.mxu0 0.0
  %4130 = vmatprep.subr.mxu0 0.0
  %4131 = vmatpush1.msra.mxu0 0.0
  %4132 = vmatprep.subr.mxu0 0.0
  %4133 = vmatpush1.msra.mxu0 0.0
  %4134 = vmatprep.subr.mxu0 0.0
  %4135 = vmatpush1.msra.mxu0 0.0
  %4136 = vmatprep.subr.mxu0 0.0
  %4137 = vmatpush1.msra.mxu0 0.0
  %4138 = vmatprep.subr.mxu0 0.0
  %4139 = vmatpush1.msra.mxu0 0.0
  %4140 = vmatprep.subr.mxu0 0.0
  %4141 = vmatpush1.msra.mxu0 0.0
  %4142 = vmatprep.subr.mxu0 0.0
  %4143 = vmatpush1.msra.mxu0 0.0
  %4144 = vmatprep.subr.mxu0 0.0
  %4145 = vmatpush1.msra.mxu0 %v481
  %4146 = vmatprep.subr.mxu0 0.0
  %4147 = vmatpush2.msra.mxu0 0.0
  %4148 = vmatprep.subr.mxu0 0.0
  %4149 = vmatpush2.msra.mxu0 0.0
  %4150 = vmatprep.subr.mxu0 0.0
  %4151 = vmatpush2.msra.mxu0 0.0
  %4152 = vmatprep.subr.mxu0 0.0
  %4153 = vmatpush2.msra.mxu0 0.0
  %4154 = vmatprep.subr.mxu0 0.0
  %4155 = vmatpush2.msra.mxu0 0.0
  %4156 = vmatprep.subr.mxu0 0.0
  %4157 = vmatpush2.msra.mxu0 0.0
  %4158 = vmatprep.subr.mxu0 0.0
  %4159 = vmatpush2.msra.mxu0 0.0
  %4160 = vmatprep.subr.mxu0 0.0
  %4161 = vmatpush2.msra.mxu0 0.0
  %4162 = vmatprep.subr.mxu0 0.0
  %4163 = vmatpush2.msra.mxu0 0.0
  %4164 = vmatprep.subr.mxu0 0.0
  %4165 = vmatpush2.msra.mxu0 0.0
  %4166 = vmatprep.subr.mxu0 0.0
  %4167 = vmatpush2.msra.mxu0 0.0
  %4168 = vmatprep.subr.mxu0 0.0
  %4169 = vmatpush2.msra.mxu0 0.0
  %4170 = vmatprep.subr.mxu0 0.0
  %4171 = vmatpush2.msra.mxu0 0.0
  %4172 = vmatprep.subr.mxu0 0.0
  %4173 = vmatpush2.msra.mxu0 0.0
  %4174 = vmatprep.subr.mxu0 0.0
  %4175 = vmatpush2.msra.mxu0 0.0
  %4176 = vmatprep.subr.mxu0 0.0
  %4177 = vmatpush2.msra.mxu0 0.0
  %4178 = vmatprep.mubr.f32.mxu0 0.0
  %4179 = vmatmul.mubr.f32.gmra.mxu0 %v4082
  %v4180 = vpop.f32.mrf.mxu0
  %v4181 = vadd.f32 0.0, %v4180
  %v4182 = vpop.f32.mrf.mxu0
  %4183 = vmatprep.mubr.f32.mxu0 0.0
  %4184 = vmatmul.mubr.f32.gmra.mxu0 %v4084
  %v4185 = vpop.f32.mrf.mxu0
  %v4186 = vadd.f32 0.0, %v4185
  %v4187 = vpop.f32.mrf.mxu0
  %4188 = vmatprep.mubr.f32.mxu0 0.0
  %4189 = vmatmul.mubr.f32.gmra.mxu0 %v4086
  %v4190 = vpop.f32.mrf.mxu0
  %v4191 = vadd.f32 0.0, %v4190
  %v4192 = vpop.f32.mrf.mxu0
  %4193 = vmatprep.mubr.f32.mxu0 0.0
  %4194 = vmatmul.mubr.f32.gmra.mxu0 %v4088
  %v4195 = vpop.f32.mrf.mxu0
  %v4196 = vadd.f32 0.0, %v4195
  %v4197 = vpop.f32.mrf.mxu0
  %4198 = vmatprep.mubr.f32.mxu0 0.0
  %4199 = vmatmul.mubr.f32.gmra.mxu0 %v4090
  %v4200 = vpop.f32.mrf.mxu0
  %v4201 = vadd.f32 0.0, %v4200
  %v4202 = vpop.f32.mrf.mxu0
  %4203 = vmatprep.mubr.f32.mxu0 0.0
  %4204 = vmatmul.mubr.f32.gmra.mxu0 %v4092
  %v4205 = vpop.f32.mrf.mxu0
  %v4206 = vadd.f32 0.0, %v4205
  %v4207 = vpop.f32.mrf.mxu0
  %4208 = vmatprep.mubr.f32.mxu0 0.0
  %4209 = vmatmul.mubr.f32.gmra.mxu0 %v4094
  %v4210 = vpop.f32.mrf.mxu0
  %v4211 = vadd.f32 0.0, %v4210
  %v4212 = vpop.f32.mrf.mxu0
  %4213 = vmatprep.mubr.f32.mxu0 0.0
  %4214 = vmatmul.mubr.f32.gmra.mxu0 %v4096
  %v4215 = vpop.f32.mrf.mxu0
  %v4216 = vadd.f32 0.0, %v4215
  %v4217 = vpop.f32.mrf.mxu0
  %4218 = vmatprep.mubr.f32.mxu0 0.0
  %4219 = vmatmul.mubr.f32.gmra.mxu0 %v4098
  %v4220 = vpop.f32.mrf.mxu0
  %v4221 = vadd.f32 0.0, %v4220
  %v4222 = vpop.f32.mrf.mxu0
  %4223 = vmatprep.mubr.f32.mxu0 0.0
  %4224 = vmatmul.mubr.f32.gmra.mxu0 %v4100
  %v4225 = vpop.f32.mrf.mxu0
  %v4226 = vadd.f32 0.0, %v4225
  %v4227 = vpop.f32.mrf.mxu0
  %4228 = vmatprep.mubr.f32.mxu0 0.0
  %4229 = vmatmul.mubr.f32.gmra.mxu0 %v4102
  %v4230 = vpop.f32.mrf.mxu0
  %v4231 = vadd.f32 0.0, %v4230
  %v4232 = vpop.f32.mrf.mxu0
  %4233 = vmatprep.mubr.f32.mxu0 0.0
  %4234 = vmatmul.mubr.f32.gmra.mxu0 %v4104
  %v4235 = vpop.f32.mrf.mxu0
  %v4236 = vadd.f32 0.0, %v4235
  %v4237 = vpop.f32.mrf.mxu0
  %4238 = vmatprep.mubr.f32.mxu0 0.0
  %4239 = vmatmul.mubr.f32.gmra.mxu0 %v4106
  %v4240 = vpop.f32.mrf.mxu0
  %v4241 = vadd.f32 0.0, %v4240
  %v4242 = vpop.f32.mrf.mxu0
  %4243 = vmatprep.mubr.f32.mxu0 0.0
  %4244 = vmatmul.mubr.f32.gmra.mxu0 %v4108
  %v4245 = vpop.f32.mrf.mxu0
  %v4246 = vadd.f32 0.0, %v4245
  %v4247 = vpop.f32.mrf.mxu0
  %4248 = vmatprep.mubr.f32.mxu0 0.0
  %4249 = vmatmul.mubr.f32.gmra.mxu0 %v4110
  %v4250 = vpop.f32.mrf.mxu0
  %v4251 = vadd.f32 0.0, %v4250
  %v4252 = vpop.f32.mrf.mxu0
  %4253 = vmatprep.mubr.f32.mxu0 0.0
  %4254 = vmatmul.mubr.f32.gmra.mxu0 %v4112
  %v4255 = vpop.f32.mrf.mxu0
  %v4256 = vadd.f32 0.0, %v4255
  %v4257 = vpop.f32.mrf.mxu0
  %4258 = vdwg.mxu0
  %4259 = vmax.xlane.f32.xlu0 %v4181
  %v4260 = vpop.xlane.xlu0 %4259
  %4261 = vmax.xlane.f32.xlu0 %v4186
  %v4262 = vpop.xlane.xlu0 %4261
  %4263 = vmax.xlane.f32.xlu0 %v4191
  %v4264 = vpop.xlane.xlu0 %4263
  %4265 = vmax.xlane.f32.xlu0 %v4196
  %v4266 = vpop.xlane.xlu0 %4265
  %4267 = vmax.xlane.f32.xlu0 %v4201
  %v4268 = vpop.xlane.xlu0 %4267
  %4269 = vmax.xlane.f32.xlu0 %v4206
  %v4270 = vpop.xlane.xlu0 %4269
  %4271 = vmax.xlane.f32.xlu0 %v4211
  %v4272 = vpop.xlane.xlu0 %4271
  %4273 = vmax.xlane.f32.xlu0 %v4216
  %v4274 = vpop.xlane.xlu0 %4273
  %4275 = vmax.xlane.f32.xlu0 %v4221
  %v4276 = vpop.xlane.xlu0 %4275
  %4277 = vmax.xlane.f32.xlu0 %v4226
  %v4278 = vpop.xlane.xlu0 %4277
  %4279 = vmax.xlane.f32.xlu0 %v4231
  %v4280 = vpop.xlane.xlu0 %4279
  %4281 = vmax.xlane.f32.xlu0 %v4236
  %v4282 = vpop.xlane.xlu0 %4281
  %4283 = vmax.xlane.f32.xlu0 %v4241
  %v4284 = vpop.xlane.xlu0 %4283
  %4285 = vmax.xlane.f32.xlu0 %v4246
  %v4286 = vpop.xlane.xlu0 %4285
  %4287 = vmax.xlane.f32.xlu0 %v4251
  %v4288 = vpop.xlane.xlu0 %4287
  %4289 = vmax.xlane.f32.xlu0 %v4256
  %v4290 = vpop.xlane.xlu0 %4289
  %v4291 = vsub.f32 %v4181, %v4260
  %v4292 = vsub.f32 %v4186, %v4262
  %v4293 = vsub.f32 %v4191, %v4264
  %v4294 = vsub.f32 %v4196, %v4266
  %v4295 = vsub.f32 %v4201, %v4268
  %v4296 = vsub.f32 %v4206, %v4270
  %v4297 = vsub.f32 %v4211, %v4272
  %v4298 = vsub.f32 %v4216, %v4274
  %v4299 = vsub.f32 %v4221, %v4276
  %v4300 = vsub.f32 %v4226, %v4278
  %v4301 = vsub.f32 %v4231, %v4280
  %v4302 = vsub.f32 %v4236, %v4282
  %v4303 = vsub.f32 %v4241, %v4284
  %v4304 = vsub.f32 %v4246, %v4286
  %v4305 = vsub.f32 %v4251, %v4288
  %v4306 = vsub.f32 %v4256, %v4290
  %v4307 = vmul.f32 %v4291, 1.442695
  %v4308 = vpow.pop %v4307
  %v4309 = vmul.f32 %v4292, 1.442695
  %v4310 = vpow.pop %v4309
  %v4311 = vmul.f32 %v4293, 1.442695
  %v4312 = vpow.pop %v4311
  %v4313 = vmul.f32 %v4294, 1.442695
  %v4314 = vpow.pop %v4313
  %v4315 = vmul.f32 %v4295, 1.442695
  %v4316 = vpow.pop %v4315
  %v4317 = vmul.f32 %v4296, 1.442695
  %v4318 = vpow.pop %v4317
  %v4319 = vmul.f32 %v4297, 1.442695
  %v4320 = vpow.pop %v4319
  %v4321 = vmul.f32 %v4298, 1.442695
  %v4322 = vpow.pop %v4321
  %v4323 = vmul.f32 %v4299, 1.442695
  %v4324 = vpow.pop %v4323
  %v4325 = vmul.f32 %v4300, 1.442695
  %v4326 = vpow.pop %v4325
  %v4327 = vmul.f32 %v4301, 1.442695
  %v4328 = vpow.pop %v4327
  %v4329 = vmul.f32 %v4302, 1.442695
  %v4330 = vpow.pop %v4329
  %v4331 = vmul.f32 %v4303, 1.442695
  %v4332 = vpow.pop %v4331
  %v4333 = vmul.f32 %v4304, 1.442695
  %v4334 = vpow.pop %v4333
  %v4335 = vmul.f32 %v4305, 1.442695
  %v4336 = vpow.pop %v4335
  %v4337 = vmul.f32 %v4306, 1.442695
  %v4338 = vpow.pop %v4337
  %4339 = vadd.xlane.f32.xlu0 %v4308
  %v4340 = vpop.xlane.xlu0 %4339
  %4341 = vadd.xlane.f32.xlu0 %v4310
  %v4342 = vpop.xlane.xlu0 %4341
  %4343 = vadd.xlane.f32.xlu0 %v4312
  %v4344 = vpop.xlane.xlu0 %4343
  %4345 = vadd.xlane.f32.xlu0 %v4314
  %v4346 = vpop.xlane.xlu0 %4345
  %4347 = vadd.xlane.f32.xlu0 %v4316
  %v4348 = vpop.xlane.xlu0 %4347
  %4349 = vadd.xlane.f32.xlu0 %v4318
  %v4350 = vpop.xlane.xlu0 %4349
  %4351 = vadd.xlane.f32.xlu0 %v4320
  %v4352 = vpop.xlane.xlu0 %4351
  %4353 = vadd.xlane.f32.xlu0 %v4322
  %v4354 = vpop.xlane.xlu0 %4353
  %4355 = vadd.xlane.f32.xlu0 %v4324
  %v4356 = vpop.xlane.xlu0 %4355
  %4357 = vadd.xlane.f32.xlu0 %v4326
  %v4358 = vpop.xlane.xlu0 %4357
  %4359 = vadd.xlane.f32.xlu0 %v4328
  %v4360 = vpop.xlane.xlu0 %4359
  %4361 = vadd.xlane.f32.xlu0 %v4330
  %v4362 = vpop.xlane.xlu0 %4361
  %4363 = vadd.xlane.f32.xlu0 %v4332
  %v4364 = vpop.xlane.xlu0 %4363
  %4365 = vadd.xlane.f32.xlu0 %v4334
  %v4366 = vpop.xlane.xlu0 %4365
  %4367 = vadd.xlane.f32.xlu0 %v4336
  %v4368 = vpop.xlane.xlu0 %4367
  %4369 = vadd.xlane.f32.xlu0 %v4338
  %v4370 = vpop.xlane.xlu0 %4369
  %v4371 = vrcp.pop %v4340
  %v4372 = vmul.f32 %v4308, %v4371
  %v4373 = vrcp.pop %v4342
  %v4374 = vmul.f32 %v4310, %v4373
  %v4375 = vrcp.pop %v4344
  %v4376 = vmul.f32 %v4312, %v4375
  %v4377 = vrcp.pop %v4346
  %v4378 = vmul.f32 %v4314, %v4377
  %v4379 = vrcp.pop %v4348
  %v4380 = vmul.f32 %v4316, %v4379
  %v4381 = vrcp.pop %v4350
  %v4382 = vmul.f32 %v4318, %v4381
  %v4383 = vrcp.pop %v4352
  %v4384 = vmul.f32 %v4320, %v4383
  %v4385 = vrcp.pop %v4354
  %v4386 = vmul.f32 %v4322, %v4385
  %v4387 = vrcp.pop %v4356
  %v4388 = vmul.f32 %v4324, %v4387
  %v4389 = vrcp.pop %v4358
  %v4390 = vmul.f32 %v4326, %v4389
  %v4391 = vrcp.pop %v4360
  %v4392 = vmul.f32 %v4328, %v4391
  %v4393 = vrcp.pop %v4362
  %v4394 = vmul.f32 %v4330, %v4393
  %v4395 = vrcp.pop %v4364
  %v4396 = vmul.f32 %v4332, %v4395
  %v4397 = vrcp.pop %v4366
  %v4398 = vmul.f32 %v4334, %v4397
  %v4399 = vrcp.pop %v4368
  %v4400 = vmul.f32 %v4336, %v4399
  %v4401 = vrcp.pop %v4370
  %v4402 = vmul.f32 %v4338, %v4401
  %4403 = vmatprep.subr.mxu0 0.0
  %4404 = vmatpush1.xpose.msra.mxu0 0.0
  %4405 = vmatprep.subr.mxu0 0.0
  %4406 = vmatpush1.xpose.msra.mxu0 0.0
  %4407 = vmatprep.subr.mxu0 0.0
  %4408 = vmatpush1.xpose.msra.mxu0 0.0
  %4409 = vmatprep.subr.mxu0 0.0
  %4410 = vmatpush1.xpose.msra.mxu0 0.0
  %4411 = vmatprep.subr.mxu0 0.0
  %4412 = vmatpush1.xpose.msra.mxu0 0.0
  %4413 = vmatprep.subr.mxu0 0.0
  %4414 = vmatpush1.xpose.msra.mxu0 0.0
  %4415 = vmatprep.subr.mxu0 0.0
  %4416 = vmatpush1.xpose.msra.mxu0 0.0
  %4417 = vmatprep.subr.mxu0 0.0
  %4418 = vmatpush1.xpose.msra.mxu0 0.0
  %4419 = vmatprep.subr.mxu0 0.0
  %4420 = vmatpush1.xpose.msra.mxu0 0.0
  %4421 = vmatprep.subr.mxu0 0.0
  %4422 = vmatpush1.xpose.msra.mxu0 0.0
  %4423 = vmatprep.subr.mxu0 0.0
  %4424 = vmatpush1.xpose.msra.mxu0 0.0
  %4425 = vmatprep.subr.mxu0 0.0
  %4426 = vmatpush1.xpose.msra.mxu0 0.0
  %4427 = vmatprep.subr.mxu0 0.0
  %4428 = vmatpush1.xpose.msra.mxu0 0.0
  %4429 = vmatprep.subr.mxu0 0.0
  %4430 = vmatpush1.xpose.msra.mxu0 0.0
  %4431 = vmatprep.subr.mxu0 0.0
  %4432 = vmatpush1.xpose.msra.mxu0 0.0
  %4433 = vmatprep.subr.mxu0 0.0
  %4434 = vmatpush1.xpose.msra.mxu0 %v505
  %4435 = vmatprep.subr.mxu0 0.0
  %4436 = vmatpush2.xpose.msra.mxu0 0.0
  %4437 = vmatprep.subr.mxu0 0.0
  %4438 = vmatpush2.xpose.msra.mxu0 0.0
  %4439 = vmatprep.subr.mxu0 0.0
  %4440 = vmatpush2.xpose.msra.mxu0 0.0
  %4441 = vmatprep.subr.mxu0 0.0
  %4442 = vmatpush2.xpose.msra.mxu0 0.0
  %4443 = vmatprep.subr.mxu0 0.0
  %4444 = vmatpush2.xpose.msra.mxu0 0.0
  %4445 = vmatprep.subr.mxu0 0.0
  %4446 = vmatpush2.xpose.msra.mxu0 0.0
  %4447 = vmatprep.subr.mxu0 0.0
  %4448 = vmatpush2.xpose.msra.mxu0 0.0
  %4449 = vmatprep.subr.mxu0 0.0
  %4450 = vmatpush2.xpose.msra.mxu0 0.0
  %4451 = vmatprep.subr.mxu0 0.0
  %4452 = vmatpush2.xpose.msra.mxu0 0.0
  %4453 = vmatprep.subr.mxu0 0.0
  %4454 = vmatpush2.xpose.msra.mxu0 0.0
  %4455 = vmatprep.subr.mxu0 0.0
  %4456 = vmatpush2.xpose.msra.mxu0 0.0
  %4457 = vmatprep.subr.mxu0 0.0
  %4458 = vmatpush2.xpose.msra.mxu0 0.0
  %4459 = vmatprep.subr.mxu0 0.0
  %4460 = vmatpush2.xpose.msra.mxu0 0.0
  %4461 = vmatprep.subr.mxu0 0.0
  %4462 = vmatpush2.xpose.msra.mxu0 0.0
  %4463 = vmatprep.subr.mxu0 0.0
  %4464 = vmatpush2.xpose.msra.mxu0 0.0
  %4465 = vmatprep.subr.mxu0 0.0
  %4466 = vmatpush2.xpose.msra.mxu0 0.0
  %4467 = vmatprep.mubr.f32.mxu0 0.0
  %4468 = vmatmul.mubr.f32.gmra.mxu0 %v4372
  %v4469 = vpop.f32.mrf.mxu0
  %v4470 = vadd.f32 0.0, %v4469
  %v4471 = vpop.f32.mrf.mxu0
  %4472 = vmatprep.mubr.f32.mxu0 0.0
  %4473 = vmatmul.mubr.f32.gmra.mxu0 %v4374
  %v4474 = vpop.f32.mrf.mxu0
  %v4475 = vadd.f32 0.0, %v4474
  %v4476 = vpop.f32.mrf.mxu0
  %4477 = vmatprep.mubr.f32.mxu0 0.0
  %4478 = vmatmul.mubr.f32.gmra.mxu0 %v4376
  %v4479 = vpop.f32.mrf.mxu0
  %v4480 = vadd.f32 0.0, %v4479
  %v4481 = vpop.f32.mrf.mxu0
  %4482 = vmatprep.mubr.f32.mxu0 0.0
  %4483 = vmatmul.mubr.f32.gmra.mxu0 %v4378
  %v4484 = vpop.f32.mrf.mxu0
  %v4485 = vadd.f32 0.0, %v4484
  %v4486 = vpop.f32.mrf.mxu0
  %4487 = vmatprep.mubr.f32.mxu0 0.0
  %4488 = vmatmul.mubr.f32.gmra.mxu0 %v4380
  %v4489 = vpop.f32.mrf.mxu0
  %v4490 = vadd.f32 0.0, %v4489
  %v4491 = vpop.f32.mrf.mxu0
  %4492 = vmatprep.mubr.f32.mxu0 0.0
  %4493 = vmatmul.mubr.f32.gmra.mxu0 %v4382
  %v4494 = vpop.f32.mrf.mxu0
  %v4495 = vadd.f32 0.0, %v4494
  %v4496 = vpop.f32.mrf.mxu0
  %4497 = vmatprep.mubr.f32.mxu0 0.0
  %4498 = vmatmul.mubr.f32.gmra.mxu0 %v4384
  %v4499 = vpop.f32.mrf.mxu0
  %v4500 = vadd.f32 0.0, %v4499
  %v4501 = vpop.f32.mrf.mxu0
  %4502 = vmatprep.mubr.f32.mxu0 0.0
  %4503 = vmatmul.mubr.f32.gmra.mxu0 %v4386
  %v4504 = vpop.f32.mrf.mxu0
  %v4505 = vadd.f32 0.0, %v4504
  %v4506 = vpop.f32.mrf.mxu0
  %4507 = vmatprep.mubr.f32.mxu0 0.0
  %4508 = vmatmul.mubr.f32.gmra.mxu0 %v4388
  %v4509 = vpop.f32.mrf.mxu0
  %v4510 = vadd.f32 0.0, %v4509
  %v4511 = vpop.f32.mrf.mxu0
  %4512 = vmatprep.mubr.f32.mxu0 0.0
  %4513 = vmatmul.mubr.f32.gmra.mxu0 %v4390
  %v4514 = vpop.f32.mrf.mxu0
  %v4515 = vadd.f32 0.0, %v4514
  %v4516 = vpop.f32.mrf.mxu0
  %4517 = vmatprep.mubr.f32.mxu0 0.0
  %4518 = vmatmul.mubr.f32.gmra.mxu0 %v4392
  %v4519 = vpop.f32.mrf.mxu0
  %v4520 = vadd.f32 0.0, %v4519
  %v4521 = vpop.f32.mrf.mxu0
  %4522 = vmatprep.mubr.f32.mxu0 0.0
  %4523 = vmatmul.mubr.f32.gmra.mxu0 %v4394
  %v4524 = vpop.f32.mrf.mxu0
  %v4525 = vadd.f32 0.0, %v4524
  %v4526 = vpop.f32.mrf.mxu0
  %4527 = vmatprep.mubr.f32.mxu0 0.0
  %4528 = vmatmul.mubr.f32.gmra.mxu0 %v4396
  %v4529 = vpop.f32.mrf.mxu0
  %v4530 = vadd.f32 0.0, %v4529
  %v4531 = vpop.f32.mrf.mxu0
  %4532 = vmatprep.mubr.f32.mxu0 0.0
  %4533 = vmatmul.mubr.f32.gmra.mxu0 %v4398
  %v4534 = vpop.f32.mrf.mxu0
  %v4535 = vadd.f32 0.0, %v4534
  %v4536 = vpop.f32.mrf.mxu0
  %4537 = vmatprep.mubr.f32.mxu0 0.0
  %4538 = vmatmul.mubr.f32.gmra.mxu0 %v4400
  %v4539 = vpop.f32.mrf.mxu0
  %v4540 = vadd.f32 0.0, %v4539
  %v4541 = vpop.f32.mrf.mxu0
  %4542 = vmatprep.mubr.f32.mxu0 0.0
  %4543 = vmatmul.mubr.f32.gmra.mxu0 %v4402
  %v4544 = vpop.f32.mrf.mxu0
  %v4545 = vadd.f32 0.0, %v4544
  %v4546 = vpop.f32.mrf.mxu0
  %4547 = vdwg.mxu0
  %4564 = vrot.lane.b32.xlu0 %v4470, 16
  %v4565 = vpop.permute.xlu0 %4564
  %4566 = vrot.lane.b32.xlu0 %v4475, 16
  %v4567 = vpop.permute.xlu0 %4566
  %4568 = vrot.lane.b32.xlu0 %v4480, 16
  %v4569 = vpop.permute.xlu0 %4568
  %4570 = vrot.lane.b32.xlu0 %v4485, 16
  %v4571 = vpop.permute.xlu0 %4570
  %4572 = vrot.lane.b32.xlu0 %v4490, 16
  %v4573 = vpop.permute.xlu0 %4572
  %4574 = vrot.lane.b32.xlu0 %v4495, 16
  %v4575 = vpop.permute.xlu0 %4574
  %4576 = vrot.lane.b32.xlu0 %v4500, 16
  %v4577 = vpop.permute.xlu0 %4576
  %4578 = vrot.lane.b32.xlu0 %v4505, 16
  %v4579 = vpop.permute.xlu0 %4578
  %4580 = vrot.lane.b32.xlu0 %v4510, 16
  %v4581 = vpop.permute.xlu0 %4580
  %4582 = vrot.lane.b32.xlu0 %v4515, 16
  %v4583 = vpop.permute.xlu0 %4582
  %4584 = vrot.lane.b32.xlu0 %v4520, 16
  %v4585 = vpop.permute.xlu0 %4584
  %4586 = vrot.lane.b32.xlu0 %v4525, 16
  %v4587 = vpop.permute.xlu0 %4586
  %4588 = vrot.lane.b32.xlu0 %v4530, 16
  %v4589 = vpop.permute.xlu0 %4588
  %4590 = vrot.lane.b32.xlu0 %v4535, 16
  %v4591 = vpop.permute.xlu0 %4590
  %4592 = vrot.lane.b32.xlu0 %v4540, 16
  %v4593 = vpop.permute.xlu0 %4592
  %4594 = vrot.lane.b32.xlu0 %v4545, 16
  %v4595 = vpop.permute.xlu0 %4594
  %4612 = vst.msk [vmem:[#allocation2] sm:$0xff] %vm2185, %v4565
  %4613 = vst.msk [vmem:[#allocation2 + $0x8] sm:$0xff] %vm2185, %v4567
  %4614 = vst.msk [vmem:[#allocation2 + $0x10] sm:$0xff] %vm2185, %v4569
  %4615 = vst.msk [vmem:[#allocation2 + $0x18] sm:$0xff] %vm2185, %v4571
  %4616 = vst.msk [vmem:[#allocation2 + $0x20] sm:$0xff] %vm2185, %v4573
  %4617 = vst.msk [vmem:[#allocation2 + $0x28] sm:$0xff] %vm2185, %v4575
  %4618 = vst.msk [vmem:[#allocation2 + $0x30] sm:$0xff] %vm2185, %v4577
  %4619 = vst.msk [vmem:[#allocation2 + $0x38] sm:$0xff] %vm2185, %v4579
  %4620 = vst.msk [vmem:[#allocation2 + $0x40] sm:$0xff] %vm2185, %v4581
  %4621 = vst.msk [vmem:[#allocation2 + $0x48] sm:$0xff] %vm2185, %v4583
  %4622 = vst.msk [vmem:[#allocation2 + $0x50] sm:$0xff] %vm2185, %v4585
  %4623 = vst.msk [vmem:[#allocation2 + $0x58] sm:$0xff] %vm2185, %v4587
  %4624 = vst.msk [vmem:[#allocation2 + $0x60] sm:$0xff] %vm2185, %v4589
  %4625 = vst.msk [vmem:[#allocation2 + $0x68] sm:$0xff] %vm2185, %v4591
  %4626 = vst.msk [vmem:[#allocation2 + $0x70] sm:$0xff] %vm2185, %v4593
  %4627 = vst.msk [vmem:[#allocation2 + $0x78] sm:$0xff] %vm2185, %v4595
  %4628 = vrot.lane.b32.xlu0 %v2958, 104
  %v4629 = vpop.permute.xlu0 %4628
  %4630 = vrot.lane.b32.xlu0 %v2959, 104
  %v4631 = vpop.permute.xlu0 %4630
  %4632 = vrot.lane.b32.xlu0 %v2960, 104
  %v4633 = vpop.permute.xlu0 %4632
  %4634 = vrot.lane.b32.xlu0 %v2961, 104
  %v4635 = vpop.permute.xlu0 %4634
  %4636 = vrot.lane.b32.xlu0 %v2962, 104
  %v4637 = vpop.permute.xlu0 %4636
  %4638 = vrot.lane.b32.xlu0 %v2963, 104
  %v4639 = vpop.permute.xlu0 %4638
  %4640 = vrot.lane.b32.xlu0 %v2964, 104
  %v4641 = vpop.permute.xlu0 %4640
  %4642 = vrot.lane.b32.xlu0 %v2965, 104
  %v4643 = vpop.permute.xlu0 %4642
  %4644 = vrot.lane.b32.xlu0 %v2966, 104
  %v4645 = vpop.permute.xlu0 %4644
  %4646 = vrot.lane.b32.xlu0 %v2967, 104
  %v4647 = vpop.permute.xlu0 %4646
  %4648 = vrot.lane.b32.xlu0 %v2968, 104
  %v4649 = vpop.permute.xlu0 %4648
  %4650 = vrot.lane.b32.xlu0 %v2969, 104
  %v4651 = vpop.permute.xlu0 %4650
  %4652 = vrot.lane.b32.xlu0 %v2970, 104
  %v4653 = vpop.permute.xlu0 %4652
  %4654 = vrot.lane.b32.xlu0 %v2971, 104
  %v4655 = vpop.permute.xlu0 %4654
  %4656 = vrot.lane.b32.xlu0 %v2972, 104
  %v4657 = vpop.permute.xlu0 %4656
  %4658 = vrot.lane.b32.xlu0 %v2973, 104
  %v4659 = vpop.permute.xlu0 %4658
  %v4660 = vsel %vm545, %v4629, 0
  %v4662 = vsel %vm545, %v4631, 0
  %v4664 = vsel %vm545, %v4633, 0
  %v4666 = vsel %vm545, %v4635, 0
  %v4668 = vsel %vm545, %v4637, 0
  %v4670 = vsel %vm545, %v4639, 0
  %v4672 = vsel %vm545, %v4641, 0
  %v4674 = vsel %vm545, %v4643, 0
  %v4676 = vsel %vm545, %v4645, 0
  %v4678 = vsel %vm545, %v4647, 0
  %v4680 = vsel %vm545, %v4649, 0
  %v4682 = vsel %vm545, %v4651, 0
  %v4684 = vsel %vm545, %v4653, 0
  %v4686 = vsel %vm545, %v4655, 0
  %v4688 = vsel %vm545, %v4657, 0
  %v4690 = vsel %vm545, %v4659, 0
  %4692 = vmatprep.subr.mxu0 0.0
  %4693 = vmatpush1.msra.mxu0 0.0
  %4694 = vmatprep.subr.mxu0 0.0
  %4695 = vmatpush1.msra.mxu0 0.0
  %4696 = vmatprep.subr.mxu0 0.0
  %4697 = vmatpush1.msra.mxu0 0.0
  %4698 = vmatprep.subr.mxu0 0.0
  %4699 = vmatpush1.msra.mxu0 0.0
  %4700 = vmatprep.subr.mxu0 0.0
  %4701 = vmatpush1.msra.mxu0 0.0
  %4702 = vmatprep.subr.mxu0 0.0
  %4703 = vmatpush1.msra.mxu0 0.0
  %4704 = vmatprep.subr.mxu0 0.0
  %4705 = vmatpush1.msra.mxu0 0.0
  %4706 = vmatprep.subr.mxu0 0.0
  %4707 = vmatpush1.msra.mxu0 0.0
  %4708 = vmatprep.subr.mxu0 0.0
  %4709 = vmatpush1.msra.mxu0 0.0
  %4710 = vmatprep.subr.mxu0 0.0
  %4711 = vmatpush1.msra.mxu0 0.0
  %4712 = vmatprep.subr.mxu0 0.0
  %4713 = vmatpush1.msra.mxu0 0.0
  %4714 = vmatprep.subr.mxu0 0.0
  %4715 = vmatpush1.msra.mxu0 0.0
  %4716 = vmatprep.subr.mxu0 0.0
  %4717 = vmatpush1.msra.mxu0 0.0
  %4718 = vmatprep.subr.mxu0 0.0
  %4719 = vmatpush1.msra.mxu0 0.0
  %4720 = vmatprep.subr.mxu0 0.0
  %4721 = vmatpush1.msra.mxu0 0.0
  %4722 = vmatprep.subr.mxu0 0.0
  %4723 = vmatpush1.msra.mxu0 %v487
  %4724 = vmatprep.subr.mxu0 0.0
  %4725 = vmatpush2.msra.mxu0 0.0
  %4726 = vmatprep.subr.mxu0 0.0
  %4727 = vmatpush2.msra.mxu0 0.0
  %4728 = vmatprep.subr.mxu0 0.0
  %4729 = vmatpush2.msra.mxu0 0.0
  %4730 = vmatprep.subr.mxu0 0.0
  %4731 = vmatpush2.msra.mxu0 0.0
  %4732 = vmatprep.subr.mxu0 0.0
  %4733 = vmatpush2.msra.mxu0 0.0
  %4734 = vmatprep.subr.mxu0 0.0
  %4735 = vmatpush2.msra.mxu0 0.0
  %4736 = vmatprep.subr.mxu0 0.0
  %4737 = vmatpush2.msra.mxu0 0.0
  %4738 = vmatprep.subr.mxu0 0.0
  %4739 = vmatpush2.msra.mxu0 0.0
  %4740 = vmatprep.subr.mxu0 0.0
  %4741 = vmatpush2.msra.mxu0 0.0
  %4742 = vmatprep.subr.mxu0 0.0
  %4743 = vmatpush2.msra.mxu0 0.0
  %4744 = vmatprep.subr.mxu0 0.0
  %4745 = vmatpush2.msra.mxu0 0.0
  %4746 = vmatprep.subr.mxu0 0.0
  %4747 = vmatpush2.msra.mxu0 0.0
  %4748 = vmatprep.subr.mxu0 0.0
  %4749 = vmatpush2.msra.mxu0 0.0
  %4750 = vmatprep.subr.mxu0 0.0
  %4751 = vmatpush2.msra.mxu0 0.0
  %4752 = vmatprep.subr.mxu0 0.0
  %4753 = vmatpush2.msra.mxu0 0.0
  %4754 = vmatprep.subr.mxu0 0.0
  %4755 = vmatpush2.msra.mxu0 0.0
  %4756 = vmatprep.mubr.f32.mxu0 0.0
  %4757 = vmatmul.mubr.f32.gmra.mxu0 %v4660
  %v4758 = vpop.f32.mrf.mxu0
  %v4759 = vadd.f32 0.0, %v4758
  %v4760 = vpop.f32.mrf.mxu0
  %4761 = vmatprep.mubr.f32.mxu0 0.0
  %4762 = vmatmul.mubr.f32.gmra.mxu0 %v4662
  %v4763 = vpop.f32.mrf.mxu0
  %v4764 = vadd.f32 0.0, %v4763
  %v4765 = vpop.f32.mrf.mxu0
  %4766 = vmatprep.mubr.f32.mxu0 0.0
  %4767 = vmatmul.mubr.f32.gmra.mxu0 %v4664
  %v4768 = vpop.f32.mrf.mxu0
  %v4769 = vadd.f32 0.0, %v4768
  %v4770 = vpop.f32.mrf.mxu0
  %4771 = vmatprep.mubr.f32.mxu0 0.0
  %4772 = vmatmul.mubr.f32.gmra.mxu0 %v4666
  %v4773 = vpop.f32.mrf.mxu0
  %v4774 = vadd.f32 0.0, %v4773
  %v4775 = vpop.f32.mrf.mxu0
  %4776 = vmatprep.mubr.f32.mxu0 0.0
  %4777 = vmatmul.mubr.f32.gmra.mxu0 %v4668
  %v4778 = vpop.f32.mrf.mxu0
  %v4779 = vadd.f32 0.0, %v4778
  %v4780 = vpop.f32.mrf.mxu0
  %4781 = vmatprep.mubr.f32.mxu0 0.0
  %4782 = vmatmul.mubr.f32.gmra.mxu0 %v4670
  %v4783 = vpop.f32.mrf.mxu0
  %v4784 = vadd.f32 0.0, %v4783
  %v4785 = vpop.f32.mrf.mxu0
  %4786 = vmatprep.mubr.f32.mxu0 0.0
  %4787 = vmatmul.mubr.f32.gmra.mxu0 %v4672
  %v4788 = vpop.f32.mrf.mxu0
  %v4789 = vadd.f32 0.0, %v4788
  %v4790 = vpop.f32.mrf.mxu0
  %4791 = vmatprep.mubr.f32.mxu0 0.0
  %4792 = vmatmul.mubr.f32.gmra.mxu0 %v4674
  %v4793 = vpop.f32.mrf.mxu0
  %v4794 = vadd.f32 0.0, %v4793
  %v4795 = vpop.f32.mrf.mxu0
  %4796 = vmatprep.mubr.f32.mxu0 0.0
  %4797 = vmatmul.mubr.f32.gmra.mxu0 %v4676
  %v4798 = vpop.f32.mrf.mxu0
  %v4799 = vadd.f32 0.0, %v4798
  %v4800 = vpop.f32.mrf.mxu0
  %4801 = vmatprep.mubr.f32.mxu0 0.0
  %4802 = vmatmul.mubr.f32.gmra.mxu0 %v4678
  %v4803 = vpop.f32.mrf.mxu0
  %v4804 = vadd.f32 0.0, %v4803
  %v4805 = vpop.f32.mrf.mxu0
  %4806 = vmatprep.mubr.f32.mxu0 0.0
  %4807 = vmatmul.mubr.f32.gmra.mxu0 %v4680
  %v4808 = vpop.f32.mrf.mxu0
  %v4809 = vadd.f32 0.0, %v4808
  %v4810 = vpop.f32.mrf.mxu0
  %4811 = vmatprep.mubr.f32.mxu0 0.0
  %4812 = vmatmul.mubr.f32.gmra.mxu0 %v4682
  %v4813 = vpop.f32.mrf.mxu0
  %v4814 = vadd.f32 0.0, %v4813
  %v4815 = vpop.f32.mrf.mxu0
  %4816 = vmatprep.mubr.f32.mxu0 0.0
  %4817 = vmatmul.mubr.f32.gmra.mxu0 %v4684
  %v4818 = vpop.f32.mrf.mxu0
  %v4819 = vadd.f32 0.0, %v4818
  %v4820 = vpop.f32.mrf.mxu0
  %4821 = vmatprep.mubr.f32.mxu0 0.0
  %4822 = vmatmul.mubr.f32.gmra.mxu0 %v4686
  %v4823 = vpop.f32.mrf.mxu0
  %v4824 = vadd.f32 0.0, %v4823
  %v4825 = vpop.f32.mrf.mxu0
  %4826 = vmatprep.mubr.f32.mxu0 0.0
  %4827 = vmatmul.mubr.f32.gmra.mxu0 %v4688
  %v4828 = vpop.f32.mrf.mxu0
  %v4829 = vadd.f32 0.0, %v4828
  %v4830 = vpop.f32.mrf.mxu0
  %4831 = vmatprep.mubr.f32.mxu0 0.0
  %4832 = vmatmul.mubr.f32.gmra.mxu0 %v4690
  %v4833 = vpop.f32.mrf.mxu0
  %v4834 = vadd.f32 0.0, %v4833
  %v4835 = vpop.f32.mrf.mxu0
  %4836 = vdwg.mxu0
  %4837 = vmax.xlane.f32.xlu0 %v4759
  %v4838 = vpop.xlane.xlu0 %4837
  %4839 = vmax.xlane.f32.xlu0 %v4764
  %v4840 = vpop.xlane.xlu0 %4839
  %4841 = vmax.xlane.f32.xlu0 %v4769
  %v4842 = vpop.xlane.xlu0 %4841
  %4843 = vmax.xlane.f32.xlu0 %v4774
  %v4844 = vpop.xlane.xlu0 %4843
  %4845 = vmax.xlane.f32.xlu0 %v4779
  %v4846 = vpop.xlane.xlu0 %4845
  %4847 = vmax.xlane.f32.xlu0 %v4784
  %v4848 = vpop.xlane.xlu0 %4847
  %4849 = vmax.xlane.f32.xlu0 %v4789
  %v4850 = vpop.xlane.xlu0 %4849
  %4851 = vmax.xlane.f32.xlu0 %v4794
  %v4852 = vpop.xlane.xlu0 %4851
  %4853 = vmax.xlane.f32.xlu0 %v4799
  %v4854 = vpop.xlane.xlu0 %4853
  %4855 = vmax.xlane.f32.xlu0 %v4804
  %v4856 = vpop.xlane.xlu0 %4855
  %4857 = vmax.xlane.f32.xlu0 %v4809
  %v4858 = vpop.xlane.xlu0 %4857
  %4859 = vmax.xlane.f32.xlu0 %v4814
  %v4860 = vpop.xlane.xlu0 %4859
  %4861 = vmax.xlane.f32.xlu0 %v4819
  %v4862 = vpop.xlane.xlu0 %4861
  %4863 = vmax.xlane.f32.xlu0 %v4824
  %v4864 = vpop.xlane.xlu0 %4863
  %4865 = vmax.xlane.f32.xlu0 %v4829
  %v4866 = vpop.xlane.xlu0 %4865
  %4867 = vmax.xlane.f32.xlu0 %v4834
  %v4868 = vpop.xlane.xlu0 %4867
  %v4869 = vsub.f32 %v4759, %v4838
  %v4870 = vsub.f32 %v4764, %v4840
  %v4871 = vsub.f32 %v4769, %v4842
  %v4872 = vsub.f32 %v4774, %v4844
  %v4873 = vsub.f32 %v4779, %v4846
  %v4874 = vsub.f32 %v4784, %v4848
  %v4875 = vsub.f32 %v4789, %v4850
  %v4876 = vsub.f32 %v4794, %v4852
  %v4877 = vsub.f32 %v4799, %v4854
  %v4878 = vsub.f32 %v4804, %v4856
  %v4879 = vsub.f32 %v4809, %v4858
  %v4880 = vsub.f32 %v4814, %v4860
  %v4881 = vsub.f32 %v4819, %v4862
  %v4882 = vsub.f32 %v4824, %v4864
  %v4883 = vsub.f32 %v4829, %v4866
  %v4884 = vsub.f32 %v4834, %v4868
  %v4885 = vmul.f32 %v4869, 1.442695
  %v4886 = vpow.pop %v4885
  %v4887 = vmul.f32 %v4870, 1.442695
  %v4888 = vpow.pop %v4887
  %v4889 = vmul.f32 %v4871, 1.442695
  %v4890 = vpow.pop %v4889
  %v4891 = vmul.f32 %v4872, 1.442695
  %v4892 = vpow.pop %v4891
  %v4893 = vmul.f32 %v4873, 1.442695
  %v4894 = vpow.pop %v4893
  %v4895 = vmul.f32 %v4874, 1.442695
  %v4896 = vpow.pop %v4895
  %v4897 = vmul.f32 %v4875, 1.442695
  %v4898 = vpow.pop %v4897
  %v4899 = vmul.f32 %v4876, 1.442695
  %v4900 = vpow.pop %v4899
  %v4901 = vmul.f32 %v4877, 1.442695
  %v4902 = vpow.pop %v4901
  %v4903 = vmul.f32 %v4878, 1.442695
  %v4904 = vpow.pop %v4903
  %v4905 = vmul.f32 %v4879, 1.442695
  %v4906 = vpow.pop %v4905
  %v4907 = vmul.f32 %v4880, 1.442695
  %v4908 = vpow.pop %v4907
  %v4909 = vmul.f32 %v4881, 1.442695
  %v4910 = vpow.pop %v4909
  %v4911 = vmul.f32 %v4882, 1.442695
  %v4912 = vpow.pop %v4911
  %v4913 = vmul.f32 %v4883, 1.442695
  %v4914 = vpow.pop %v4913
  %v4915 = vmul.f32 %v4884, 1.442695
  %v4916 = vpow.pop %v4915
  %4917 = vadd.xlane.f32.xlu0 %v4886
  %v4918 = vpop.xlane.xlu0 %4917
  %4919 = vadd.xlane.f32.xlu0 %v4888
  %v4920 = vpop.xlane.xlu0 %4919
  %4921 = vadd.xlane.f32.xlu0 %v4890
  %v4922 = vpop.xlane.xlu0 %4921
  %4923 = vadd.xlane.f32.xlu0 %v4892
  %v4924 = vpop.xlane.xlu0 %4923
  %4925 = vadd.xlane.f32.xlu0 %v4894
  %v4926 = vpop.xlane.xlu0 %4925
  %4927 = vadd.xlane.f32.xlu0 %v4896
  %v4928 = vpop.xlane.xlu0 %4927
  %4929 = vadd.xlane.f32.xlu0 %v4898
  %v4930 = vpop.xlane.xlu0 %4929
  %4931 = vadd.xlane.f32.xlu0 %v4900
  %v4932 = vpop.xlane.xlu0 %4931
  %4933 = vadd.xlane.f32.xlu0 %v4902
  %v4934 = vpop.xlane.xlu0 %4933
  %4935 = vadd.xlane.f32.xlu0 %v4904
  %v4936 = vpop.xlane.xlu0 %4935
  %4937 = vadd.xlane.f32.xlu0 %v4906
  %v4938 = vpop.xlane.xlu0 %4937
  %4939 = vadd.xlane.f32.xlu0 %v4908
  %v4940 = vpop.xlane.xlu0 %4939
  %4941 = vadd.xlane.f32.xlu0 %v4910
  %v4942 = vpop.xlane.xlu0 %4941
  %4943 = vadd.xlane.f32.xlu0 %v4912
  %v4944 = vpop.xlane.xlu0 %4943
  %4945 = vadd.xlane.f32.xlu0 %v4914
  %v4946 = vpop.xlane.xlu0 %4945
  %4947 = vadd.xlane.f32.xlu0 %v4916
  %v4948 = vpop.xlane.xlu0 %4947
  %v4949 = vrcp.pop %v4918
  %v4950 = vmul.f32 %v4886, %v4949
  %v4951 = vrcp.pop %v4920
  %v4952 = vmul.f32 %v4888, %v4951
  %v4953 = vrcp.pop %v4922
  %v4954 = vmul.f32 %v4890, %v4953
  %v4955 = vrcp.pop %v4924
  %v4956 = vmul.f32 %v4892, %v4955
  %v4957 = vrcp.pop %v4926
  %v4958 = vmul.f32 %v4894, %v4957
  %v4959 = vrcp.pop %v4928
  %v4960 = vmul.f32 %v4896, %v4959
  %v4961 = vrcp.pop %v4930
  %v4962 = vmul.f32 %v4898, %v4961
  %v4963 = vrcp.pop %v4932
  %v4964 = vmul.f32 %v4900, %v4963
  %v4965 = vrcp.pop %v4934
  %v4966 = vmul.f32 %v4902, %v4965
  %v4967 = vrcp.pop %v4936
  %v4968 = vmul.f32 %v4904, %v4967
  %v4969 = vrcp.pop %v4938
  %v4970 = vmul.f32 %v4906, %v4969
  %v4971 = vrcp.pop %v4940
  %v4972 = vmul.f32 %v4908, %v4971
  %v4973 = vrcp.pop %v4942
  %v4974 = vmul.f32 %v4910, %v4973
  %v4975 = vrcp.pop %v4944
  %v4976 = vmul.f32 %v4912, %v4975
  %v4977 = vrcp.pop %v4946
  %v4978 = vmul.f32 %v4914, %v4977
  %v4979 = vrcp.pop %v4948
  %v4980 = vmul.f32 %v4916, %v4979
  %4981 = vmatprep.subr.mxu0 0.0
  %4982 = vmatpush1.xpose.msra.mxu0 0.0
  %4983 = vmatprep.subr.mxu0 0.0
  %4984 = vmatpush1.xpose.msra.mxu0 0.0
  %4985 = vmatprep.subr.mxu0 0.0
  %4986 = vmatpush1.xpose.msra.mxu0 0.0
  %4987 = vmatprep.subr.mxu0 0.0
  %4988 = vmatpush1.xpose.msra.mxu0 0.0
  %4989 = vmatprep.subr.mxu0 0.0
  %4990 = vmatpush1.xpose.msra.mxu0 0.0
  %4991 = vmatprep.subr.mxu0 0.0
  %4992 = vmatpush1.xpose.msra.mxu0 0.0
  %4993 = vmatprep.subr.mxu0 0.0
  %4994 = vmatpush1.xpose.msra.mxu0 0.0
  %4995 = vmatprep.subr.mxu0 0.0
  %4996 = vmatpush1.xpose.msra.mxu0 0.0
  %4997 = vmatprep.subr.mxu0 0.0
  %4998 = vmatpush1.xpose.msra.mxu0 0.0
  %4999 = vmatprep.subr.mxu0 0.0
  %5000 = vmatpush1.xpose.msra.mxu0 0.0
  %5001 = vmatprep.subr.mxu0 0.0
  %5002 = vmatpush1.xpose.msra.mxu0 0.0
  %5003 = vmatprep.subr.mxu0 0.0
  %5004 = vmatpush1.xpose.msra.mxu0 0.0
  %5005 = vmatprep.subr.mxu0 0.0
  %5006 = vmatpush1.xpose.msra.mxu0 0.0
  %5007 = vmatprep.subr.mxu0 0.0
  %5008 = vmatpush1.xpose.msra.mxu0 0.0
  %5009 = vmatprep.subr.mxu0 0.0
  %5010 = vmatpush1.xpose.msra.mxu0 0.0
  %5011 = vmatprep.subr.mxu0 0.0
  %5012 = vmatpush1.xpose.msra.mxu0 %v511
  %5013 = vmatprep.subr.mxu0 0.0
  %5014 = vmatpush2.xpose.msra.mxu0 0.0
  %5015 = vmatprep.subr.mxu0 0.0
  %5016 = vmatpush2.xpose.msra.mxu0 0.0
  %5017 = vmatprep.subr.mxu0 0.0
  %5018 = vmatpush2.xpose.msra.mxu0 0.0
  %5019 = vmatprep.subr.mxu0 0.0
  %5020 = vmatpush2.xpose.msra.mxu0 0.0
  %5021 = vmatprep.subr.mxu0 0.0
  %5022 = vmatpush2.xpose.msra.mxu0 0.0
  %5023 = vmatprep.subr.mxu0 0.0
  %5024 = vmatpush2.xpose.msra.mxu0 0.0
  %5025 = vmatprep.subr.mxu0 0.0
  %5026 = vmatpush2.xpose.msra.mxu0 0.0
  %5027 = vmatprep.subr.mxu0 0.0
  %5028 = vmatpush2.xpose.msra.mxu0 0.0
  %5029 = vmatprep.subr.mxu0 0.0
  %5030 = vmatpush2.xpose.msra.mxu0 0.0
  %5031 = vmatprep.subr.mxu0 0.0
  %5032 = vmatpush2.xpose.msra.mxu0 0.0
  %5033 = vmatprep.subr.mxu0 0.0
  %5034 = vmatpush2.xpose.msra.mxu0 0.0
  %5035 = vmatprep.subr.mxu0 0.0
  %5036 = vmatpush2.xpose.msra.mxu0 0.0
  %5037 = vmatprep.subr.mxu0 0.0
  %5038 = vmatpush2.xpose.msra.mxu0 0.0
  %5039 = vmatprep.subr.mxu0 0.0
  %5040 = vmatpush2.xpose.msra.mxu0 0.0
  %5041 = vmatprep.subr.mxu0 0.0
  %5042 = vmatpush2.xpose.msra.mxu0 0.0
  %5043 = vmatprep.subr.mxu0 0.0
  %5044 = vmatpush2.xpose.msra.mxu0 0.0
  %5045 = vmatprep.mubr.f32.mxu0 0.0
  %5046 = vmatmul.mubr.f32.gmra.mxu0 %v4950
  %v5047 = vpop.f32.mrf.mxu0
  %v5048 = vadd.f32 0.0, %v5047
  %v5049 = vpop.f32.mrf.mxu0
  %5050 = vmatprep.mubr.f32.mxu0 0.0
  %5051 = vmatmul.mubr.f32.gmra.mxu0 %v4952
  %v5052 = vpop.f32.mrf.mxu0
  %v5053 = vadd.f32 0.0, %v5052
  %v5054 = vpop.f32.mrf.mxu0
  %5055 = vmatprep.mubr.f32.mxu0 0.0
  %5056 = vmatmul.mubr.f32.gmra.mxu0 %v4954
  %v5057 = vpop.f32.mrf.mxu0
  %v5058 = vadd.f32 0.0, %v5057
  %v5059 = vpop.f32.mrf.mxu0
  %5060 = vmatprep.mubr.f32.mxu0 0.0
  %5061 = vmatmul.mubr.f32.gmra.mxu0 %v4956
  %v5062 = vpop.f32.mrf.mxu0
  %v5063 = vadd.f32 0.0, %v5062
  %v5064 = vpop.f32.mrf.mxu0
  %5065 = vmatprep.mubr.f32.mxu0 0.0
  %5066 = vmatmul.mubr.f32.gmra.mxu0 %v4958
  %v5067 = vpop.f32.mrf.mxu0
  %v5068 = vadd.f32 0.0, %v5067
  %v5069 = vpop.f32.mrf.mxu0
  %5070 = vmatprep.mubr.f32.mxu0 0.0
  %5071 = vmatmul.mubr.f32.gmra.mxu0 %v4960
  %v5072 = vpop.f32.mrf.mxu0
  %v5073 = vadd.f32 0.0, %v5072
  %v5074 = vpop.f32.mrf.mxu0
  %5075 = vmatprep.mubr.f32.mxu0 0.0
  %5076 = vmatmul.mubr.f32.gmra.mxu0 %v4962
  %v5077 = vpop.f32.mrf.mxu0
  %v5078 = vadd.f32 0.0, %v5077
  %v5079 = vpop.f32.mrf.mxu0
  %5080 = vmatprep.mubr.f32.mxu0 0.0
  %5081 = vmatmul.mubr.f32.gmra.mxu0 %v4964
  %v5082 = vpop.f32.mrf.mxu0
  %v5083 = vadd.f32 0.0, %v5082
  %v5084 = vpop.f32.mrf.mxu0
  %5085 = vmatprep.mubr.f32.mxu0 0.0
  %5086 = vmatmul.mubr.f32.gmra.mxu0 %v4966
  %v5087 = vpop.f32.mrf.mxu0
  %v5088 = vadd.f32 0.0, %v5087
  %v5089 = vpop.f32.mrf.mxu0
  %5090 = vmatprep.mubr.f32.mxu0 0.0
  %5091 = vmatmul.mubr.f32.gmra.mxu0 %v4968
  %v5092 = vpop.f32.mrf.mxu0
  %v5093 = vadd.f32 0.0, %v5092
  %v5094 = vpop.f32.mrf.mxu0
  %5095 = vmatprep.mubr.f32.mxu0 0.0
  %5096 = vmatmul.mubr.f32.gmra.mxu0 %v4970
  %v5097 = vpop.f32.mrf.mxu0
  %v5098 = vadd.f32 0.0, %v5097
  %v5099 = vpop.f32.mrf.mxu0
  %5100 = vmatprep.mubr.f32.mxu0 0.0
  %5101 = vmatmul.mubr.f32.gmra.mxu0 %v4972
  %v5102 = vpop.f32.mrf.mxu0
  %v5103 = vadd.f32 0.0, %v5102
  %v5104 = vpop.f32.mrf.mxu0
  %5105 = vmatprep.mubr.f32.mxu0 0.0
  %5106 = vmatmul.mubr.f32.gmra.mxu0 %v4974
  %v5107 = vpop.f32.mrf.mxu0
  %v5108 = vadd.f32 0.0, %v5107
  %v5109 = vpop.f32.mrf.mxu0
  %5110 = vmatprep.mubr.f32.mxu0 0.0
  %5111 = vmatmul.mubr.f32.gmra.mxu0 %v4976
  %v5112 = vpop.f32.mrf.mxu0
  %v5113 = vadd.f32 0.0, %v5112
  %v5114 = vpop.f32.mrf.mxu0
  %5115 = vmatprep.mubr.f32.mxu0 0.0
  %5116 = vmatmul.mubr.f32.gmra.mxu0 %v4978
  %v5117 = vpop.f32.mrf.mxu0
  %v5118 = vadd.f32 0.0, %v5117
  %v5119 = vpop.f32.mrf.mxu0
  %5120 = vmatprep.mubr.f32.mxu0 0.0
  %5121 = vmatmul.mubr.f32.gmra.mxu0 %v4980
  %v5122 = vpop.f32.mrf.mxu0
  %v5123 = vadd.f32 0.0, %v5122
  %v5124 = vpop.f32.mrf.mxu0
  %5125 = vdwg.mxu0
  %5142 = vrot.lane.b32.xlu0 %v5048, 24
  %v5143 = vpop.permute.xlu0 %5142
  %5144 = vrot.lane.b32.xlu0 %v5053, 24
  %v5145 = vpop.permute.xlu0 %5144
  %5146 = vrot.lane.b32.xlu0 %v5058, 24
  %v5147 = vpop.permute.xlu0 %5146
  %5148 = vrot.lane.b32.xlu0 %v5063, 24
  %v5149 = vpop.permute.xlu0 %5148
  %5150 = vrot.lane.b32.xlu0 %v5068, 24
  %v5151 = vpop.permute.xlu0 %5150
  %5152 = vrot.lane.b32.xlu0 %v5073, 24
  %v5153 = vpop.permute.xlu0 %5152
  %5154 = vrot.lane.b32.xlu0 %v5078, 24
  %v5155 = vpop.permute.xlu0 %5154
  %5156 = vrot.lane.b32.xlu0 %v5083, 24
  %v5157 = vpop.permute.xlu0 %5156
  %5158 = vrot.lane.b32.xlu0 %v5088, 24
  %v5159 = vpop.permute.xlu0 %5158
  %5160 = vrot.lane.b32.xlu0 %v5093, 24
  %v5161 = vpop.permute.xlu0 %5160
  %5162 = vrot.lane.b32.xlu0 %v5098, 24
  %v5163 = vpop.permute.xlu0 %5162
  %5164 = vrot.lane.b32.xlu0 %v5103, 24
  %v5165 = vpop.permute.xlu0 %5164
  %5166 = vrot.lane.b32.xlu0 %v5108, 24
  %v5167 = vpop.permute.xlu0 %5166
  %5168 = vrot.lane.b32.xlu0 %v5113, 24
  %v5169 = vpop.permute.xlu0 %5168
  %5170 = vrot.lane.b32.xlu0 %v5118, 24
  %v5171 = vpop.permute.xlu0 %5170
  %5172 = vrot.lane.b32.xlu0 %v5123, 24
  %v5173 = vpop.permute.xlu0 %5172
  %5190 = vst.msk [vmem:[#allocation2] sm:$0xff] %vm2764, %v5143
  %5191 = vst.msk [vmem:[#allocation2 + $0x8] sm:$0xff] %vm2764, %v5145
  %5192 = vst.msk [vmem:[#allocation2 + $0x10] sm:$0xff] %vm2764, %v5147
  %5193 = vst.msk [vmem:[#allocation2 + $0x18] sm:$0xff] %vm2764, %v5149
  %5194 = vst.msk [vmem:[#allocation2 + $0x20] sm:$0xff] %vm2764, %v5151
  %5195 = vst.msk [vmem:[#allocation2 + $0x28] sm:$0xff] %vm2764, %v5153
  %5196 = vst.msk [vmem:[#allocation2 + $0x30] sm:$0xff] %vm2764, %v5155
  %5197 = vst.msk [vmem:[#allocation2 + $0x38] sm:$0xff] %vm2764, %v5157
  %5198 = vst.msk [vmem:[#allocation2 + $0x40] sm:$0xff] %vm2764, %v5159
  %5199 = vst.msk [vmem:[#allocation2 + $0x48] sm:$0xff] %vm2764, %v5161
  %5200 = vst.msk [vmem:[#allocation2 + $0x50] sm:$0xff] %vm2764, %v5163
  %5201 = vst.msk [vmem:[#allocation2 + $0x58] sm:$0xff] %vm2764, %v5165
  %5202 = vst.msk [vmem:[#allocation2 + $0x60] sm:$0xff] %vm2764, %v5167
  %5203 = vst.msk [vmem:[#allocation2 + $0x68] sm:$0xff] %vm2764, %v5169
  %5204 = vst.msk [vmem:[#allocation2 + $0x70] sm:$0xff] %vm2764, %v5171
  %5205 = vst.msk [vmem:[#allocation2 + $0x78] sm:$0xff] %vm2764, %v5173
  %v5206 = vld [vmem:[#allocation2] sm:$0xff]
  %v5207 = vld [vmem:[#allocation2 + $0x8] sm:$0xff]
  %v5208 = vld [vmem:[#allocation2 + $0x10] sm:$0xff]
  %v5209 = vld [vmem:[#allocation2 + $0x18] sm:$0xff]
  %v5210 = vld [vmem:[#allocation2 + $0x20] sm:$0xff]
  %v5211 = vld [vmem:[#allocation2 + $0x28] sm:$0xff]
  %v5212 = vld [vmem:[#allocation2 + $0x30] sm:$0xff]
  %v5213 = vld [vmem:[#allocation2 + $0x38] sm:$0xff]
  %v5214 = vld [vmem:[#allocation2 + $0x40] sm:$0xff]
  %v5215 = vld [vmem:[#allocation2 + $0x48] sm:$0xff]
  %v5216 = vld [vmem:[#allocation2 + $0x50] sm:$0xff]
  %v5217 = vld [vmem:[#allocation2 + $0x58] sm:$0xff]
  %v5218 = vld [vmem:[#allocation2 + $0x60] sm:$0xff]
  %v5219 = vld [vmem:[#allocation2 + $0x68] sm:$0xff]
  %v5220 = vld [vmem:[#allocation2 + $0x70] sm:$0xff]
  %v5221 = vld [vmem:[#allocation2 + $0x78] sm:$0xff]
  %v5223 = vsel %vm339, %v5206, 0
  %v5226 = vsel %vm339, %v5207, 0
  %v5229 = vsel %vm339, %v5208, 0
  %v5232 = vsel %vm339, %v5209, 0
  %v5235 = vsel %vm339, %v5210, 0
  %v5238 = vsel %vm339, %v5211, 0
  %v5241 = vsel %vm339, %v5212, 0
  %v5244 = vsel %vm339, %v5213, 0
  %v5247 = vsel %vm339, %v5214, 0
  %v5250 = vsel %vm339, %v5215, 0
  %v5253 = vsel %vm339, %v5216, 0
  %v5256 = vsel %vm339, %v5217, 0
  %v5259 = vsel %vm339, %v5218, 0
  %v5262 = vsel %vm339, %v5219, 0
  %v5265 = vsel %vm339, %v5220, 0
  %v5268 = vsel %vm339, %v5221, 0
  %5270 = vmatprep.subr.mxu0 0.0
  %5271 = vmatpush1.xpose.msra.mxu0 %v5268
  %5272 = vmatprep.subr.mxu0 0.0
  %5273 = vmatpush1.xpose.msra.mxu0 %v5265
  %5274 = vmatprep.subr.mxu0 0.0
  %5275 = vmatpush1.xpose.msra.mxu0 %v5262
  %5276 = vmatprep.subr.mxu0 0.0
  %5277 = vmatpush1.xpose.msra.mxu0 %v5259
  %5278 = vmatprep.subr.mxu0 0.0
  %5279 = vmatpush1.xpose.msra.mxu0 %v5256
  %5280 = vmatprep.subr.mxu0 0.0
  %5281 = vmatpush1.xpose.msra.mxu0 %v5253
  %5282 = vmatprep.subr.mxu0 0.0
  %5283 = vmatpush1.xpose.msra.mxu0 %v5250
  %5284 = vmatprep.subr.mxu0 0.0
  %5285 = vmatpush1.xpose.msra.mxu0 %v5247
  %5286 = vmatprep.subr.mxu0 0.0
  %5287 = vmatpush1.xpose.msra.mxu0 %v5244
  %5288 = vmatprep.subr.mxu0 0.0
  %5289 = vmatpush1.xpose.msra.mxu0 %v5241
  %5290 = vmatprep.subr.mxu0 0.0
  %5291 = vmatpush1.xpose.msra.mxu0 %v5238
  %5292 = vmatprep.subr.mxu0 0.0
  %5293 = vmatpush1.xpose.msra.mxu0 %v5235
  %5294 = vmatprep.subr.mxu0 0.0
  %5295 = vmatpush1.xpose.msra.mxu0 %v5232
  %5296 = vmatprep.subr.mxu0 0.0
  %5297 = vmatpush1.xpose.msra.mxu0 %v5229
  %5298 = vmatprep.subr.mxu0 0.0
  %5299 = vmatpush1.xpose.msra.mxu0 %v5226
  %5300 = vmatprep.subr.mxu0 0.0
  %5301 = vmatpush1.xpose.msra.mxu0 %v5223
  %5302 = vmatprep.subr.mxu0 0.0
  %5303 = vmatpush2.xpose.msra.mxu0 0.0
  %5304 = vmatprep.subr.mxu0 0.0
  %5305 = vmatpush2.xpose.msra.mxu0 0.0
  %5306 = vmatprep.subr.mxu0 0.0
  %5307 = vmatpush2.xpose.msra.mxu0 0.0
  %5308 = vmatprep.subr.mxu0 0.0
  %5309 = vmatpush2.xpose.msra.mxu0 0.0
  %5310 = vmatprep.subr.mxu0 0.0
  %5311 = vmatpush2.xpose.msra.mxu0 0.0
  %5312 = vmatprep.subr.mxu0 0.0
  %5313 = vmatpush2.xpose.msra.mxu0 0.0
  %5314 = vmatprep.subr.mxu0 0.0
  %5315 = vmatpush2.xpose.msra.mxu0 0.0
  %5316 = vmatprep.subr.mxu0 0.0
  %5317 = vmatpush2.xpose.msra.mxu0 0.0
  %5318 = vmatprep.subr.mxu0 0.0
  %5319 = vmatpush2.xpose.msra.mxu0 0.0
  %5320 = vmatprep.subr.mxu0 0.0
  %5321 = vmatpush2.xpose.msra.mxu0 0.0
  %5322 = vmatprep.subr.mxu0 0.0
  %5323 = vmatpush2.xpose.msra.mxu0 0.0
  %5324 = vmatprep.subr.mxu0 0.0
  %5325 = vmatpush2.xpose.msra.mxu0 0.0
  %5326 = vmatprep.subr.mxu0 0.0
  %5327 = vmatpush2.xpose.msra.mxu0 0.0
  %5328 = vmatprep.subr.mxu0 0.0
  %5329 = vmatpush2.xpose.msra.mxu0 0.0
  %5330 = vmatprep.subr.mxu0 0.0
  %5331 = vmatpush2.xpose.msra.mxu0 0.0
  %5332 = vmatprep.subr.mxu0 0.0
  %5333 = vmatpush2.xpose.msra.mxu0 0.0
  %5334 = vmatprep.mubr.f32.mxu0 0.0
  %5335 = vmatmul.mubr.f32.gmra.mxu0 %v2798
  %v5336 = vpop.f32.mrf.mxu0
  %v5337 = vadd.f32 0.0, %v5336
  %v5338 = vpop.f32.mrf.mxu0
  %5339 = vmatprep.mubr.f32.mxu0 0.0
  %5340 = vmatmul.mubr.f32.gmra.mxu0 %v2801
  %v5341 = vpop.f32.mrf.mxu0
  %v5342 = vadd.f32 0.0, %v5341
  %v5343 = vpop.f32.mrf.mxu0
  %5344 = vmatprep.mubr.f32.mxu0 0.0
  %5345 = vmatmul.mubr.f32.gmra.mxu0 %v2804
  %v5346 = vpop.f32.mrf.mxu0
  %v5347 = vadd.f32 0.0, %v5346
  %v5348 = vpop.f32.mrf.mxu0
  %5349 = vmatprep.mubr.f32.mxu0 0.0
  %5350 = vmatmul.mubr.f32.gmra.mxu0 %v2807
  %v5351 = vpop.f32.mrf.mxu0
  %v5352 = vadd.f32 0.0, %v5351
  %v5353 = vpop.f32.mrf.mxu0
  %5354 = vdwg.mxu0
  %5356 = vset.pattern.permute.xlu0 0
  %5357 = vperm.xlu0 %5356, %v99
  %v5358 = vpop.permute.xlu0 %5357
  %5361 = vset.pattern.permute.xlu0 0
  %5362 = vperm.xlu0 %5361, %v100
  %v5363 = vpop.permute.xlu0 %5362
  %5366 = vset.pattern.permute.xlu0 0
  %5367 = vperm.xlu0 %5366, %v101
  %v5368 = vpop.permute.xlu0 %5367
  %5371 = vset.pattern.permute.xlu0 0
  %5372 = vperm.xlu0 %5371, %v102
  %v5373 = vpop.permute.xlu0 %5372
  %v5375 = vadd.f32 %v2924, %v5358
  %v5376 = vadd.f32 %v5337, %v5358
  %v5377 = vadd.f32 %v2929, %v5363
  %v5378 = vadd.f32 %v5342, %v5363
  %v5379 = vadd.f32 %v2934, %v5368
  %v5380 = vadd.f32 %v5347, %v5368
  %v5381 = vadd.f32 %v2939, %v5373
  %v5382 = vadd.f32 %v5352, %v5373
  %v5383 = vadd.f32 %v271, %v5375
  %v5384 = vadd.f32 %v272, %v5376
  %v5385 = vadd.f32 %v273, %v5377
  %v5386 = vadd.f32 %v274, %v5378
  %v5387 = vadd.f32 %v275, %v5379
  %v5388 = vadd.f32 %v276, %v5380
  %v5389 = vadd.f32 %v277, %v5381
  %v5390 = vadd.f32 %v278, %v5382
  %v5391 = vadd.f32 %v5383, %v5385
  %v5392 = vadd.f32 %v5391, %v5387
  %v5393 = vadd.f32 %v5392, %v5389
  %v5394 = vrot.slane %v5393, 4
  %v5395 = vadd.f32 %v5393, %v5394
  %v5396 = vrot.slane %v5395, 2
  %v5397 = vadd.f32 %v5395, %v5396
  %v5398 = vrot.slane %v5397, 1
  %v5399 = vadd.f32 %v5397, %v5398
  %v5400 = vadd.f32 %v5384, %v5386
  %v5401 = vadd.f32 %v5400, %v5388
  %v5402 = vadd.f32 %v5401, %v5390
  %v5403 = vrot.slane %v5402, 4
  %v5404 = vadd.f32 %v5402, %v5403
  %v5405 = vrot.slane %v5404, 2
  %v5406 = vadd.f32 %v5404, %v5405
  %v5407 = vrot.slane %v5406, 1
  %v5408 = vadd.f32 %v5406, %v5407
  %v5409 = vmul.f32 %v5399, 0.03125
  %v5410 = vmul.f32 %v5408, 0.03125
  %v5411 = vsub.f32 %v5383, %v5409
  %v5412 = vsub.f32 %v5384, %v5410
  %v5413 = vsub.f32 %v5385, %v5409
  %v5414 = vsub.f32 %v5386, %v5410
  %v5415 = vsub.f32 %v5387, %v5409
  %v5416 = vsub.f32 %v5388, %v5410
  %v5417 = vsub.f32 %v5389, %v5409
  %v5418 = vsub.f32 %v5390, %v5410
  %v5419 = vmul.f32 %v5411, %v5411
  %v5420 = vmul.f32 %v5412, %v5412
  %v5421 = vmul.f32 %v5413, %v5413
  %v5422 = vmul.f32 %v5414, %v5414
  %v5423 = vmul.f32 %v5415, %v5415
  %v5424 = vmul.f32 %v5416, %v5416
  %v5425 = vmul.f32 %v5417, %v5417
  %v5426 = vmul.f32 %v5418, %v5418
  %v5427 = vadd.f32 %v5419, %v5421
  %v5428 = vadd.f32 %v5427, %v5423
  %v5429 = vadd.f32 %v5428, %v5425
  %v5430 = vrot.slane %v5429, 4
  %v5431 = vadd.f32 %v5429, %v5430
  %v5432 = vrot.slane %v5431, 2
  %v5433 = vadd.f32 %v5431, %v5432
  %v5434 = vrot.slane %v5433, 1
  %v5435 = vadd.f32 %v5433, %v5434
  %v5436 = vadd.f32 %v5420, %v5422
  %v5437 = vadd.f32 %v5436, %v5424
  %v5438 = vadd.f32 %v5437, %v5426
  %v5439 = vrot.slane %v5438, 4
  %v5440 = vadd.f32 %v5438, %v5439
  %v5441 = vrot.slane %v5440, 2
  %v5442 = vadd.f32 %v5440, %v5441
  %v5443 = vrot.slane %v5442, 1
  %v5444 = vadd.f32 %v5442, %v5443
  %v5445 = vmul.f32 %v5435, 0.03125
  %v5446 = vmul.f32 %v5444, 0.03125
  %v5447 = vadd.f32 %v5445, 1e-05
  %v5448 = vadd.f32 %v5446, 1e-05
  %v5449 = vrsqrt.pop %v5447
  %v5450 = vrsqrt.pop %v5448
  %v5451 = vmul.f32 %v5411, %v5449
  %v5452 = vmul.f32 %v5412, %v5450
  %v5453 = vmul.f32 %v5413, %v5449
  %v5454 = vmul.f32 %v5414, %v5450
  %v5455 = vmul.f32 %v5415, %v5449
  %v5456 = vmul.f32 %v5416, %v5450
  %v5457 = vmul.f32 %v5417, %v5449
  %v5458 = vmul.f32 %v5418, %v5450
  %5460 = vset.pattern.permute.xlu0 0
  %5461 = vperm.xlu0 %5460, %v103
  %v5462 = vpop.permute.xlu0 %5461
  %5465 = vset.pattern.permute.xlu0 0
  %5466 = vperm.xlu0 %5465, %v104
  %v5467 = vpop.permute.xlu0 %5466
  %5470 = vset.pattern.permute.xlu0 0
  %5471 = vperm.xlu0 %5470, %v105
  %v5472 = vpop.permute.xlu0 %5471
  %5475 = vset.pattern.permute.xlu0 0
  %5476 = vperm.xlu0 %5475, %v106
  %v5477 = vpop.permute.xlu0 %5476
  %v5479 = vmul.f32 %v5451, %v5462
  %v5480 = vmul.f32 %v5452, %v5462
  %v5481 = vmul.f32 %v5453, %v5467
  %v5482 = vmul.f32 %v5454, %v5467
  %v5483 = vmul.f32 %v5455, %v5472
  %v5484 = vmul.f32 %v5456, %v5472
  %v5485 = vmul.f32 %v5457, %v5477
  %v5486 = vmul.f32 %v5458, %v5477
  %5488 = vset.pattern.permute.xlu0 0
  %5489 = vperm.xlu0 %5488, %v107
  %v5490 = vpop.permute.xlu0 %5489
  %5493 = vset.pattern.permute.xlu0 0
  %5494 = vperm.xlu0 %5493, %v108
  %v5495 = vpop.permute.xlu0 %5494
  %5498 = vset.pattern.permute.xlu0 0
  %5499 = vperm.xlu0 %5498, %v109
  %v5500 = vpop.permute.xlu0 %5499
  %5503 = vset.pattern.permute.xlu0 0
  %5504 = vperm.xlu0 %5503, %v110
  %v5505 = vpop.permute.xlu0 %5504
  %v5507 = vadd.f32 %v5479, %v5490
  %v5508 = vadd.f32 %v5480, %v5490
  %v5509 = vadd.f32 %v5481, %v5495
  %v5510 = vadd.f32 %v5482, %v5495
  %v5511 = vadd.f32 %v5483, %v5500
  %v5512 = vadd.f32 %v5484, %v5500
  %v5513 = vadd.f32 %v5485, %v5505
  %v5514 = vadd.f32 %v5486, %v5505
  %v5515 = vadd.f32 %v31, %v35
  %v5516 = vadd.f32 %v5515, %v39
  %v5517 = vadd.f32 %v5516, %v43
  %v5518 = vrot.slane %v5517, 4
  %v5519 = vadd.f32 %v5517, %v5518
  %v5520 = vrot.slane %v5519, 2
  %v5521 = vadd.f32 %v5519, %v5520
  %v5522 = vrot.slane %v5521, 1
  %v5523 = vadd.f32 %v5521, %v5522
  %v5524 = vadd.f32 %v32, %v36
  %v5525 = vadd.f32 %v5524, %v40
  %v5526 = vadd.f32 %v5525, %v44
  %v5527 = vrot.slane %v5526, 4
  %v5528 = vadd.f32 %v5526, %v5527
  %v5529 = vrot.slane %v5528, 2
  %v5530 = vadd.f32 %v5528, %v5529
  %v5531 = vrot.slane %v5530, 1
  %v5532 = vadd.f32 %v5530, %v5531
  %v5533 = vadd.f32 %v33, %v37
  %v5534 = vadd.f32 %v5533, %v41
  %v5535 = vadd.f32 %v5534, %v45
  %v5536 = vrot.slane %v5535, 4
  %v5537 = vadd.f32 %v5535, %v5536
  %v5538 = vrot.slane %v5537, 2
  %v5539 = vadd.f32 %v5537, %v5538
  %v5540 = vrot.slane %v5539, 1
  %v5541 = vadd.f32 %v5539, %v5540
  %v5542 = vadd.f32 %v34, %v38
  %v5543 = vadd.f32 %v5542, %v42
  %v5544 = vadd.f32 %v5543, %v46
  %v5545 = vrot.slane %v5544, 4
  %v5546 = vadd.f32 %v5544, %v5545
  %v5547 = vrot.slane %v5546, 2
  %v5548 = vadd.f32 %v5546, %v5547
  %v5549 = vrot.slane %v5548, 1
  %v5550 = vadd.f32 %v5548, %v5549
  %v5551 = vmul.f32 %v5523, 0.03125
  %v5552 = vmul.f32 %v5532, 0.03125
  %v5553 = vmul.f32 %v5541, 0.03125
  %v5554 = vmul.f32 %v5550, 0.03125
  %v5555 = vsub.f32 %v31, %v5551
  %v5556 = vsub.f32 %v32, %v5552
  %v5557 = vsub.f32 %v33, %v5553
  %v5558 = vsub.f32 %v34, %v5554
  %v5559 = vsub.f32 %v35, %v5551
  %v5560 = vsub.f32 %v36, %v5552
  %v5561 = vsub.f32 %v37, %v5553
  %v5562 = vsub.f32 %v38, %v5554
  %v5563 = vsub.f32 %v39, %v5551
  %v5564 = vsub.f32 %v40, %v5552
  %v5565 = vsub.f32 %v41, %v5553
  %v5566 = vsub.f32 %v42, %v5554
  %v5567 = vsub.f32 %v43, %v5551
  %v5568 = vsub.f32 %v44, %v5552
  %v5569 = vsub.f32 %v45, %v5553
  %v5570 = vsub.f32 %v46, %v5554
  %v5571 = vmul.f32 %v5555, %v5555
  %v5572 = vmul.f32 %v5556, %v5556
  %v5573 = vmul.f32 %v5557, %v5557
  %v5574 = vmul.f32 %v5558, %v5558
  %v5575 = vmul.f32 %v5559, %v5559
  %v5576 = vmul.f32 %v5560, %v5560
  %v5577 = vmul.f32 %v5561, %v5561
  %v5578 = vmul.f32 %v5562, %v5562
  %v5579 = vmul.f32 %v5563, %v5563
  %v5580 = vmul.f32 %v5564, %v5564
  %v5581 = vmul.f32 %v5565, %v5565
  %v5582 = vmul.f32 %v5566, %v5566
  %v5583 = vmul.f32 %v5567, %v5567
  %v5584 = vmul.f32 %v5568, %v5568
  %v5585 = vmul.f32 %v5569, %v5569
  %v5586 = vmul.f32 %v5570, %v5570
  %v5587 = vadd.f32 %v5571, %v5575
  %v5588 = vadd.f32 %v5587, %v5579
  %v5589 = vadd.f32 %v5588, %v5583
  %v5590 = vrot.slane %v5589, 4
  %v5591 = vadd.f32 %v5589, %v5590
  %v5592 = vrot.slane %v5591, 2
  %v5593 = vadd.f32 %v5591, %v5592
  %v5594 = vrot.slane %v5593, 1
  %v5595 = vadd.f32 %v5593, %v5594
  %v5596 = vadd.f32 %v5572, %v5576
  %v5597 = vadd.f32 %v5596, %v5580
  %v5598 = vadd.f32 %v5597, %v5584
  %v5599 = vrot.slane %v5598, 4
  %v5600 = vadd.f32 %v5598, %v5599
  %v5601 = vrot.slane %v5600, 2
  %v5602 = vadd.f32 %v5600, %v5601
  %v5603 = vrot.slane %v5602, 1
  %v5604 = vadd.f32 %v5602, %v5603
  %v5605 = vadd.f32 %v5573, %v5577
  %v5606 = vadd.f32 %v5605, %v5581
  %v5607 = vadd.f32 %v5606, %v5585
  %v5608 = vrot.slane %v5607, 4
  %v5609 = vadd.f32 %v5607, %v5608
  %v5610 = vrot.slane %v5609, 2
  %v5611 = vadd.f32 %v5609, %v5610
  %v5612 = vrot.slane %v5611, 1
  %v5613 = vadd.f32 %v5611, %v5612
  %v5614 = vadd.f32 %v5574, %v5578
  %v5615 = vadd.f32 %v5614, %v5582
  %v5616 = vadd.f32 %v5615, %v5586
  %v5617 = vrot.slane %v5616, 4
  %v5618 = vadd.f32 %v5616, %v5617
  %v5619 = vrot.slane %v5618, 2
  %v5620 = vadd.f32 %v5618, %v5619
  %v5621 = vrot.slane %v5620, 1
  %v5622 = vadd.f32 %v5620, %v5621
  %v5623 = vmul.f32 %v5595, 0.03125
  %v5624 = vmul.f32 %v5604, 0.03125
  %v5625 = vmul.f32 %v5613, 0.03125
  %v5626 = vmul.f32 %v5622, 0.03125
  %v5627 = vadd.f32 %v5623, 1e-05
  %v5628 = vadd.f32 %v5624, 1e-05
  %v5629 = vadd.f32 %v5625, 1e-05
  %v5630 = vadd.f32 %v5626, 1e-05
  %v5631 = vrsqrt.pop %v5627
  %v5632 = vrsqrt.pop %v5628
  %v5633 = vrsqrt.pop %v5629
  %v5634 = vrsqrt.pop %v5630
  %v5635 = vmul.f32 %v5555, %v5631
  %v5636 = vmul.f32 %v5556, %v5632
  %v5637 = vmul.f32 %v5557, %v5633
  %v5638 = vmul.f32 %v5558, %v5634
  %v5639 = vmul.f32 %v5559, %v5631
  %v5640 = vmul.f32 %v5560, %v5632
  %v5641 = vmul.f32 %v5561, %v5633
  %v5642 = vmul.f32 %v5562, %v5634
  %v5643 = vmul.f32 %v5563, %v5631
  %v5644 = vmul.f32 %v5564, %v5632
  %v5645 = vmul.f32 %v5565, %v5633
  %v5646 = vmul.f32 %v5566, %v5634
  %v5647 = vmul.f32 %v5567, %v5631
  %v5648 = vmul.f32 %v5568, %v5632
  %v5649 = vmul.f32 %v5569, %v5633
  %v5650 = vmul.f32 %v5570, %v5634
  %5652 = vset.pattern.permute.xlu0 0
  %5653 = vperm.xlu0 %5652, %v111
  %v5654 = vpop.permute.xlu0 %5653
  %5657 = vset.pattern.permute.xlu0 0
  %5658 = vperm.xlu0 %5657, %v112
  %v5659 = vpop.permute.xlu0 %5658
  %5662 = vset.pattern.permute.xlu0 0
  %5663 = vperm.xlu0 %5662, %v113
  %v5664 = vpop.permute.xlu0 %5663
  %5667 = vset.pattern.permute.xlu0 0
  %5668 = vperm.xlu0 %5667, %v114
  %v5669 = vpop.permute.xlu0 %5668
  %v5671 = vmul.f32 %v5635, %v5654
  %v5672 = vmul.f32 %v5636, %v5654
  %v5673 = vmul.f32 %v5637, %v5654
  %v5674 = vmul.f32 %v5638, %v5654
  %v5675 = vmul.f32 %v5639, %v5659
  %v5676 = vmul.f32 %v5640, %v5659
  %v5677 = vmul.f32 %v5641, %v5659
  %v5678 = vmul.f32 %v5642, %v5659
  %v5679 = vmul.f32 %v5643, %v5664
  %v5680 = vmul.f32 %v5644, %v5664
  %v5681 = vmul.f32 %v5645, %v5664
  %v5682 = vmul.f32 %v5646, %v5664
  %v5683 = vmul.f32 %v5647, %v5669
  %v5684 = vmul.f32 %v5648, %v5669
  %v5685 = vmul.f32 %v5649, %v5669
  %v5686 = vmul.f32 %v5650, %v5669
  %5688 = vset.pattern.permute.xlu0 0
  %5689 = vperm.xlu0 %5688, %v115
  %v5690 = vpop.permute.xlu0 %5689
  %5693 = vset.pattern.permute.xlu0 0
  %5694 = vperm.xlu0 %5693, %v116
  %v5695 = vpop.permute.xlu0 %5694
  %5698 = vset.pattern.permute.xlu0 0
  %5699 = vperm.xlu0 %5698, %v117
  %v5700 = vpop.permute.xlu0 %5699
  %5703 = vset.pattern.permute.xlu0 0
  %5704 = vperm.xlu0 %5703, %v118
  %v5705 = vpop.permute.xlu0 %5704
  %v5707 = vadd.f32 %v5671, %v5690
  %v5708 = vadd.f32 %v5672, %v5690
  %v5709 = vadd.f32 %v5673, %v5690
  %v5710 = vadd.f32 %v5674, %v5690
  %v5711 = vadd.f32 %v5675, %v5695
  %v5712 = vadd.f32 %v5676, %v5695
  %v5713 = vadd.f32 %v5677, %v5695
  %v5714 = vadd.f32 %v5678, %v5695
  %v5715 = vadd.f32 %v5679, %v5700
  %v5716 = vadd.f32 %v5680, %v5700
  %v5717 = vadd.f32 %v5681, %v5700
  %v5718 = vadd.f32 %v5682, %v5700
  %v5719 = vadd.f32 %v5683, %v5705
  %v5720 = vadd.f32 %v5684, %v5705
  %v5721 = vadd.f32 %v5685, %v5705
  %v5722 = vadd.f32 %v5686, %v5705
  %5724 = vset.pattern.permute.xlu0 0
  %5725 = vperm.xlu0 %5724, %v119
  %v5726 = vpop.permute.xlu0 %5725
  %5729 = vset.pattern.permute.xlu0 0
  %5730 = vperm.xlu0 %5729, %v120
  %v5731 = vpop.permute.xlu0 %5730
  %5734 = vset.pattern.permute.xlu0 0
  %5735 = vperm.xlu0 %5734, %v121
  %v5736 = vpop.permute.xlu0 %5735
  %5739 = vset.pattern.permute.xlu0 0
  %5740 = vperm.xlu0 %5739, %v122
  %v5741 = vpop.permute.xlu0 %5740
  %v5744 = vsel %vm339, %v63, 0
  %v5747 = vsel %vm339, %v64, 0
  %v5750 = vsel %vm339, %v65, 0
  %v5753 = vsel %vm339, %v66, 0
  %5755 = vmatprep.subr.mxu0 0.0
  %5756 = vmatpush1.msra.mxu0 0.0
  %5757 = vmatprep.subr.mxu0 0.0
  %5758 = vmatpush1.msra.mxu0 0.0
  %5759 = vmatprep.subr.mxu0 0.0
  %5760 = vmatpush1.msra.mxu0 0.0
  %5761 = vmatprep.subr.mxu0 0.0
  %5762 = vmatpush1.msra.mxu0 0.0
  %5763 = vmatprep.subr.mxu0 0.0
  %5764 = vmatpush1.msra.mxu0 0.0
  %5765 = vmatprep.subr.mxu0 0.0
  %5766 = vmatpush1.msra.mxu0 0.0
  %5767 = vmatprep.subr.mxu0 0.0
  %5768 = vmatpush1.msra.mxu0 0.0
  %5769 = vmatprep.subr.mxu0 0.0
  %5770 = vmatpush1.msra.mxu0 0.0
  %5771 = vmatprep.subr.mxu0 0.0
  %5772 = vmatpush1.msra.mxu0 0.0
  %5773 = vmatprep.subr.mxu0 0.0
  %5774 = vmatpush1.msra.mxu0 0.0
  %5775 = vmatprep.subr.mxu0 0.0
  %5776 = vmatpush1.msra.mxu0 0.0
  %5777 = vmatprep.subr.mxu0 0.0
  %5778 = vmatpush1.msra.mxu0 0.0
  %5779 = vmatprep.subr.mxu0 %v5514
  %5780 = vmatpush1.msra.mxu0 %v5513
  %5781 = vmatprep.subr.mxu0 %v5512
  %5782 = vmatpush1.msra.mxu0 %v5511
  %5783 = vmatprep.subr.mxu0 %v5510
  %5784 = vmatpush1.msra.mxu0 %v5509
  %5785 = vmatprep.subr.mxu0 %v5508
  %5786 = vmatpush1.msra.mxu0 %v5507
  %5787 = vmatprep.subr.mxu0 0.0
  %5788 = vmatpush2.msra.mxu0 0.0
  %5789 = vmatprep.subr.mxu0 0.0
  %5790 = vmatpush2.msra.mxu0 0.0
  %5791 = vmatprep.subr.mxu0 0.0
  %5792 = vmatpush2.msra.mxu0 0.0
  %5793 = vmatprep.subr.mxu0 0.0
  %5794 = vmatpush2.msra.mxu0 0.0
  %5795 = vmatprep.subr.mxu0 0.0
  %5796 = vmatpush2.msra.mxu0 0.0
  %5797 = vmatprep.subr.mxu0 0.0
  %5798 = vmatpush2.msra.mxu0 0.0
  %5799 = vmatprep.subr.mxu0 0.0
  %5800 = vmatpush2.msra.mxu0 0.0
  %5801 = vmatprep.subr.mxu0 0.0
  %5802 = vmatpush2.msra.mxu0 0.0
  %5803 = vmatprep.subr.mxu0 0.0
  %5804 = vmatpush2.msra.mxu0 0.0
  %5805 = vmatprep.subr.mxu0 0.0
  %5806 = vmatpush2.msra.mxu0 0.0
  %5807 = vmatprep.subr.mxu0 0.0
  %5808 = vmatpush2.msra.mxu0 0.0
  %5809 = vmatprep.subr.mxu0 0.0
  %5810 = vmatpush2.msra.mxu0 0.0
  %5811 = vmatprep.subr.mxu0 0.0
  %5812 = vmatpush2.msra.mxu0 0.0
  %5813 = vmatprep.subr.mxu0 0.0
  %5814 = vmatpush2.msra.mxu0 0.0
  %5815 = vmatprep.subr.mxu0 0.0
  %5816 = vmatpush2.msra.mxu0 0.0
  %5817 = vmatprep.subr.mxu0 0.0
  %5818 = vmatpush2.msra.mxu0 0.0
  %5819 = vmatprep.mubr.f32.mxu0 0.0
  %5820 = vmatmul.mubr.f32.gmra.mxu0 %v5744
  %v5821 = vpop.f32.mrf.mxu0
  %v5822 = vadd.f32 %v5726, %v5821
  %v5823 = vpop.f32.mrf.mxu0
  %v5824 = vadd.f32 %v5726, %v5823
  %5825 = vmatprep.mubr.f32.mxu0 0.0
  %5826 = vmatmul.mubr.f32.gmra.mxu0 %v5747
  %v5827 = vpop.f32.mrf.mxu0
  %v5828 = vadd.f32 %v5731, %v5827
  %v5829 = vpop.f32.mrf.mxu0
  %v5830 = vadd.f32 %v5731, %v5829
  %5831 = vmatprep.mubr.f32.mxu0 0.0
  %5832 = vmatmul.mubr.f32.gmra.mxu0 %v5750
  %v5833 = vpop.f32.mrf.mxu0
  %v5834 = vadd.f32 %v5736, %v5833
  %v5835 = vpop.f32.mrf.mxu0
  %v5836 = vadd.f32 %v5736, %v5835
  %5837 = vmatprep.mubr.f32.mxu0 0.0
  %5838 = vmatmul.mubr.f32.gmra.mxu0 %v5753
  %v5839 = vpop.f32.mrf.mxu0
  %v5840 = vadd.f32 %v5741, %v5839
  %v5841 = vpop.f32.mrf.mxu0
  %v5842 = vadd.f32 %v5741, %v5841
  %5843 = vdwg.mxu0
  %v5844 = vld [vmem:[%s3] sm:$0xff]
  %v5845 = vld [vmem:[%s3 + $0x8] sm:$0xff]
  %v5846 = vld [vmem:[%s3 + $0x10] sm:$0xff]
  %v5847 = vld [vmem:[%s3 + $0x18] sm:$0xff]
  %v5848 = vld [vmem:[%s3 + $0x20] sm:$0xff]
  %v5849 = vld [vmem:[%s3 + $0x28] sm:$0xff]
  %v5850 = vld [vmem:[%s3 + $0x30] sm:$0xff]
  %v5851 = vld [vmem:[%s3 + $0x38] sm:$0xff]
  %5853 = vset.pattern.permute.xlu0 0
  %5854 = vperm.xlu0 %5853, %v123
  %v5855 = vpop.permute.xlu0 %5854
  %5858 = vset.pattern.permute.xlu0 0
  %5859 = vperm.xlu0 %5858, %v124
  %v5860 = vpop.permute.xlu0 %5859
  %5863 = vset.pattern.permute.xlu0 0
  %5864 = vperm.xlu0 %5863, %v125
  %v5865 = vpop.permute.xlu0 %5864
  %5868 = vset.pattern.permute.xlu0 0
  %5869 = vperm.xlu0 %5868, %v126
  %v5870 = vpop.permute.xlu0 %5869
  %5873 = vset.pattern.permute.xlu0 0
  %5874 = vperm.xlu0 %5873, %v127
  %v5875 = vpop.permute.xlu0 %5874
  %5878 = vset.pattern.permute.xlu0 0
  %5879 = vperm.xlu0 %5878, %v128
  %v5880 = vpop.permute.xlu0 %5879
  %5883 = vset.pattern.permute.xlu0 0
  %5884 = vperm.xlu0 %5883, %v129
  %v5885 = vpop.permute.xlu0 %5884
  %5888 = vset.pattern.permute.xlu0 0
  %5889 = vperm.xlu0 %5888, %v130
  %v5890 = vpop.permute.xlu0 %5889
  %v5893 = vsel %vm339, %v5844, 0
  %v5896 = vsel %vm339, %v5845, 0
  %v5899 = vsel %vm339, %v5846, 0
  %v5902 = vsel %vm339, %v5847, 0
  %v5905 = vsel %vm339, %v5848, 0
  %v5908 = vsel %vm339, %v5849, 0
  %v5911 = vsel %vm339, %v5850, 0
  %v5914 = vsel %vm339, %v5851, 0
  %5916 = vmatprep.subr.mxu0 0.0
  %5917 = vmatpush1.msra.mxu0 0.0
  %5918 = vmatprep.subr.mxu0 0.0
  %5919 = vmatpush1.msra.mxu0 0.0
  %5920 = vmatprep.subr.mxu0 0.0
  %5921 = vmatpush1.msra.mxu0 0.0
  %5922 = vmatprep.subr.mxu0 0.0
  %5923 = vmatpush1.msra.mxu0 0.0
  %5924 = vmatprep.subr.mxu0 0.0
  %5925 = vmatpush1.msra.mxu0 0.0
  %5926 = vmatprep.subr.mxu0 0.0
  %5927 = vmatpush1.msra.mxu0 0.0
  %5928 = vmatprep.subr.mxu0 0.0
  %5929 = vmatpush1.msra.mxu0 0.0
  %5930 = vmatprep.subr.mxu0 0.0
  %5931 = vmatpush1.msra.mxu0 0.0
  %5932 = vmatprep.subr.mxu0 0.0
  %5933 = vmatpush1.msra.mxu0 0.0
  %5934 = vmatprep.subr.mxu0 0.0
  %5935 = vmatpush1.msra.mxu0 0.0
  %5936 = vmatprep.subr.mxu0 0.0
  %5937 = vmatpush1.msra.mxu0 0.0
  %5938 = vmatprep.subr.mxu0 0.0
  %5939 = vmatpush1.msra.mxu0 0.0
  %5940 = vmatprep.subr.mxu0 %v5720
  %5941 = vmatpush1.msra.mxu0 %v5719
  %5942 = vmatprep.subr.mxu0 %v5716
  %5943 = vmatpush1.msra.mxu0 %v5715
  %5944 = vmatprep.subr.mxu0 %v5712
  %5945 = vmatpush1.msra.mxu0 %v5711
  %5946 = vmatprep.subr.mxu0 %v5708
  %5947 = vmatpush1.msra.mxu0 %v5707
  %5948 = vmatprep.subr.mxu0 0.0
  %5949 = vmatpush2.msra.mxu0 0.0
  %5950 = vmatprep.subr.mxu0 0.0
  %5951 = vmatpush2.msra.mxu0 0.0
  %5952 = vmatprep.subr.mxu0 0.0
  %5953 = vmatpush2.msra.mxu0 0.0
  %5954 = vmatprep.subr.mxu0 0.0
  %5955 = vmatpush2.msra.mxu0 0.0
  %5956 = vmatprep.subr.mxu0 0.0
  %5957 = vmatpush2.msra.mxu0 0.0
  %5958 = vmatprep.subr.mxu0 0.0
  %5959 = vmatpush2.msra.mxu0 0.0
  %5960 = vmatprep.subr.mxu0 0.0
  %5961 = vmatpush2.msra.mxu0 0.0
  %5962 = vmatprep.subr.mxu0 0.0
  %5963 = vmatpush2.msra.mxu0 0.0
  %5964 = vmatprep.subr.mxu0 0.0
  %5965 = vmatpush2.msra.mxu0 0.0
  %5966 = vmatprep.subr.mxu0 0.0
  %5967 = vmatpush2.msra.mxu0 0.0
  %5968 = vmatprep.subr.mxu0 0.0
  %5969 = vmatpush2.msra.mxu0 0.0
  %5970 = vmatprep.subr.mxu0 0.0
  %5971 = vmatpush2.msra.mxu0 0.0
  %5972 = vmatprep.subr.mxu0 0.0
  %5973 = vmatpush2.msra.mxu0 0.0
  %5974 = vmatprep.subr.mxu0 0.0
  %5975 = vmatpush2.msra.mxu0 0.0
  %5976 = vmatprep.subr.mxu0 0.0
  %5977 = vmatpush2.msra.mxu0 0.0
  %5978 = vmatprep.subr.mxu0 0.0
  %5979 = vmatpush2.msra.mxu0 0.0
  %5980 = vmatprep.mubr.f32.mxu0 0.0
  %5981 = vmatmul.mubr.f32.gmra.mxu0 %v5893
  %v5982 = vpop.f32.mrf.mxu0
  %v5983 = vadd.f32 %v5855, %v5982
  %v5984 = vpop.f32.mrf.mxu0
  %v5985 = vadd.f32 %v5855, %v5984
  %5986 = vmatprep.mubr.f32.mxu0 0.0
  %5987 = vmatmul.mubr.f32.gmra.mxu0 %v5896
  %v5988 = vpop.f32.mrf.mxu0
  %v5989 = vadd.f32 %v5860, %v5988
  %v5990 = vpop.f32.mrf.mxu0
  %v5991 = vadd.f32 %v5860, %v5990
  %5992 = vmatprep.mubr.f32.mxu0 0.0
  %5993 = vmatmul.mubr.f32.gmra.mxu0 %v5899
  %v5994 = vpop.f32.mrf.mxu0
  %v5995 = vadd.f32 %v5865, %v5994
  %v5996 = vpop.f32.mrf.mxu0
  %v5997 = vadd.f32 %v5865, %v5996
  %5998 = vmatprep.mubr.f32.mxu0 0.0
  %5999 = vmatmul.mubr.f32.gmra.mxu0 %v5902
  %v6000 = vpop.f32.mrf.mxu0
  %v6001 = vadd.f32 %v5870, %v6000
  %v6002 = vpop.f32.mrf.mxu0
  %v6003 = vadd.f32 %v5870, %v6002
  %6004 = vmatprep.mubr.f32.mxu0 0.0
  %6005 = vmatmul.mubr.f32.gmra.mxu0 %v5905
  %v6006 = vpop.f32.mrf.mxu0
  %v6007 = vadd.f32 %v5875, %v6006
  %v6008 = vpop.f32.mrf.mxu0
  %v6009 = vadd.f32 %v5875, %v6008
  %6010 = vmatprep.mubr.f32.mxu0 0.0
  %6011 = vmatmul.mubr.f32.gmra.mxu0 %v5908
  %v6012 = vpop.f32.mrf.mxu0
  %v6013 = vadd.f32 %v5880, %v6012
  %v6014 = vpop.f32.mrf.mxu0
  %v6015 = vadd.f32 %v5880, %v6014
  %6016 = vmatprep.mubr.f32.mxu0 0.0
  %6017 = vmatmul.mubr.f32.gmra.mxu0 %v5911
  %v6018 = vpop.f32.mrf.mxu0
  %v6019 = vadd.f32 %v5885, %v6018
  %v6020 = vpop.f32.mrf.mxu0
  %v6021 = vadd.f32 %v5885, %v6020
  %6022 = vmatprep.mubr.f32.mxu0 0.0
  %6023 = vmatmul.mubr.f32.gmra.mxu0 %v5914
  %v6024 = vpop.f32.mrf.mxu0
  %v6025 = vadd.f32 %v5890, %v6024
  %v6026 = vpop.f32.mrf.mxu0
  %v6027 = vadd.f32 %v5890, %v6026
  %6028 = vdwg.mxu0
  %6029 = vmatprep.subr.mxu0 0.0
  %6030 = vmatpush1.msra.mxu0 0.0
  %6031 = vmatprep.subr.mxu0 0.0
  %6032 = vmatpush1.msra.mxu0 0.0
  %6033 = vmatprep.subr.mxu0 0.0
  %6034 = vmatpush1.msra.mxu0 0.0
  %6035 = vmatprep.subr.mxu0 0.0
  %6036 = vmatpush1.msra.mxu0 0.0
  %6037 = vmatprep.subr.mxu0 0.0
  %6038 = vmatpush1.msra.mxu0 0.0
  %6039 = vmatprep.subr.mxu0 0.0
  %6040 = vmatpush1.msra.mxu0 0.0
  %6041 = vmatprep.subr.mxu0 0.0
  %6042 = vmatpush1.msra.mxu0 0.0
  %6043 = vmatprep.subr.mxu0 0.0
  %6044 = vmatpush1.msra.mxu0 0.0
  %6045 = vmatprep.subr.mxu0 0.0
  %6046 = vmatpush1.msra.mxu0 0.0
  %6047 = vmatprep.subr.mxu0 0.0
  %6048 = vmatpush1.msra.mxu0 0.0
  %6049 = vmatprep.subr.mxu0 0.0
  %6050 = vmatpush1.msra.mxu0 0.0
  %6051 = vmatprep.subr.mxu0 0.0
  %6052 = vmatpush1.msra.mxu0 0.0
  %6053 = vmatprep.subr.mxu0 %v5722
  %6054 = vmatpush1.msra.mxu0 %v5721
  %6055 = vmatprep.subr.mxu0 %v5718
  %6056 = vmatpush1.msra.mxu0 %v5717
  %6057 = vmatprep.subr.mxu0 %v5714
  %6058 = vmatpush1.msra.mxu0 %v5713
  %6059 = vmatprep.subr.mxu0 %v5710
  %6060 = vmatpush1.msra.mxu0 %v5709
  %6061 = vmatprep.subr.mxu0 0.0
  %6062 = vmatpush2.msra.mxu0 0.0
  %6063 = vmatprep.subr.mxu0 0.0
  %6064 = vmatpush2.msra.mxu0 0.0
  %6065 = vmatprep.subr.mxu0 0.0
  %6066 = vmatpush2.msra.mxu0 0.0
  %6067 = vmatprep.subr.mxu0 0.0
  %6068 = vmatpush2.msra.mxu0 0.0
  %6069 = vmatprep.subr.mxu0 0.0
  %6070 = vmatpush2.msra.mxu0 0.0
  %6071 = vmatprep.subr.mxu0 0.0
  %6072 = vmatpush2.msra.mxu0 0.0
  %6073 = vmatprep.subr.mxu0 0.0
  %6074 = vmatpush2.msra.mxu0 0.0
  %6075 = vmatprep.subr.mxu0 0.0
  %6076 = vmatpush2.msra.mxu0 0.0
  %6077 = vmatprep.subr.mxu0 0.0
  %6078 = vmatpush2.msra.mxu0 0.0
  %6079 = vmatprep.subr.mxu0 0.0
  %6080 = vmatpush2.msra.mxu0 0.0
  %6081 = vmatprep.subr.mxu0 0.0
  %6082 = vmatpush2.msra.mxu0 0.0
  %6083 = vmatprep.subr.mxu0 0.0
  %6084 = vmatpush2.msra.mxu0 0.0
  %6085 = vmatprep.subr.mxu0 0.0
  %6086 = vmatpush2.msra.mxu0 0.0
  %6087 = vmatprep.subr.mxu0 0.0
  %6088 = vmatpush2.msra.mxu0 0.0
  %6089 = vmatprep.subr.mxu0 0.0
  %6090 = vmatpush2.msra.mxu0 0.0
  %6091 = vmatprep.subr.mxu0 0.0
  %6092 = vmatpush2.msra.mxu0 0.0
  %6093 = vmatprep.mubr.f32.mxu0 0.0
  %6094 = vmatmul.mubr.f32.gmra.mxu0 %v5893
  %v6095 = vpop.f32.mrf.mxu0
  %v6096 = vadd.f32 %v5855, %v6095
  %v6097 = vpop.f32.mrf.mxu0
  %v6098 = vadd.f32 %v5855, %v6097
  %6099 = vmatprep.mubr.f32.mxu0 0.0
  %6100 = vmatmul.mubr.f32.gmra.mxu0 %v5896
  %v6101 = vpop.f32.mrf.mxu0
  %v6102 = vadd.f32 %v5860, %v6101
  %v6103 = vpop.f32.mrf.mxu0
  %v6104 = vadd.f32 %v5860, %v6103
  %6105 = vmatprep.mubr.f32.mxu0 0.0
  %6106 = vmatmul.mubr.f32.gmra.mxu0 %v5899
  %v6107 = vpop.f32.mrf.mxu0
  %v6108 = vadd.f32 %v5865, %v6107
  %v6109 = vpop.f32.mrf.mxu0
  %v6110 = vadd.f32 %v5865, %v6109
  %6111 = vmatprep.mubr.f32.mxu0 0.0
  %6112 = vmatmul.mubr.f32.gmra.mxu0 %v5902
  %v6113 = vpop.f32.mrf.mxu0
  %v6114 = vadd.f32 %v5870, %v6113
  %v6115 = vpop.f32.mrf.mxu0
  %v6116 = vadd.f32 %v5870, %v6115
  %6117 = vmatprep.mubr.f32.mxu0 0.0
  %6118 = vmatmul.mubr.f32.gmra.mxu0 %v5905
  %v6119 = vpop.f32.mrf.mxu0
  %v6120 = vadd.f32 %v5875, %v6119
  %v6121 = vpop.f32.mrf.mxu0
  %v6122 = vadd.f32 %v5875, %v6121
  %6123 = vmatprep.mubr.f32.mxu0 0.0
  %6124 = vmatmul.mubr.f32.gmra.mxu0 %v5908
  %v6125 = vpop.f32.mrf.mxu0
  %v6126 = vadd.f32 %v5880, %v6125
  %v6127 = vpop.f32.mrf.mxu0
  %v6128 = vadd.f32 %v5880, %v6127
  %6129 = vmatprep.mubr.f32.mxu0 0.0
  %6130 = vmatmul.mubr.f32.gmra.mxu0 %v5911
  %v6131 = vpop.f32.mrf.mxu0
  %v6132 = vadd.f32 %v5885, %v6131
  %v6133 = vpop.f32.mrf.mxu0
  %v6134 = vadd.f32 %v5885, %v6133
  %6135 = vmatprep.mubr.f32.mxu0 0.0
  %6136 = vmatmul.mubr.f32.gmra.mxu0 %v5914
  %v6137 = vpop.f32.mrf.mxu0
  %v6138 = vadd.f32 %v5890, %v6137
  %v6139 = vpop.f32.mrf.mxu0
  %v6140 = vadd.f32 %v5890, %v6139
  %6141 = vdwg.mxu0
  %6142 = vxpose.xlu0.b32.start [1/16] %v5822, 128
  %6143 = vxpose.xlu0.b32.cont [2/16] %v5828, 128
  %6144 = vxpose.xlu0.b32.cont [3/16] %v5834, 128
  %6145 = vxpose.xlu0.b32.cont [4/16] %v5840, 128
  %6146 = vxpose.xlu0.b32.cont [5/16] 0.0, 128
  %6147 = vxpose.xlu0.b32.cont [6/16] 0.0, 128
  %6148 = vxpose.xlu0.b32.cont [7/16] 0.0, 128
  %6149 = vxpose.xlu0.b32.cont [8/16] 0.0, 128
  %6150 = vxpose.xlu0.b32.cont [9/16] 0.0, 128
  %6151 = vxpose.xlu0.b32.cont [10/16] 0.0, 128
  %6152 = vxpose.xlu0.b32.cont [11/16] 0.0, 128
  %6153 = vxpose.xlu0.b32.cont [12/16] 0.0, 128
  %6154 = vxpose.xlu0.b32.cont [13/16] 0.0, 128
  %6155 = vxpose.xlu0.b32.cont [14/16] 0.0, 128
  %6156 = vxpose.xlu0.b32.cont [15/16] 0.0, 128
  %6157 = vxpose.xlu0.b32.end [16/16] 0.0, 128
  %v6158 = vpop.trf.xlu0
  %v6159 = vpop.trf.xlu0
  %v6160 = vpop.trf.xlu0
  %v6161 = vpop.trf.xlu0
  %v6162 = vpop.trf.xlu0
  %v6163 = vpop.trf.xlu0
  %v6164 = vpop.trf.xlu0
  %v6165 = vpop.trf.xlu0
  %v6166 = vpop.trf.xlu0
  %v6167 = vpop.trf.xlu0
  %v6168 = vpop.trf.xlu0
  %v6169 = vpop.trf.xlu0
  %v6170 = vpop.trf.xlu0
  %v6171 = vpop.trf.xlu0
  %v6172 = vpop.trf.xlu0
  %v6173 = vpop.trf.xlu0
  %v6175 = vsel %vm545, %v6158, 0
  %v6178 = vsel %vm545, %v6159, 0
  %v6181 = vsel %vm545, %v6160, 0
  %v6184 = vsel %vm545, %v6161, 0
  %v6187 = vsel %vm545, %v6162, 0
  %v6190 = vsel %vm545, %v6163, 0
  %v6193 = vsel %vm545, %v6164, 0
  %v6196 = vsel %vm545, %v6165, 0
  %v6199 = vsel %vm545, %v6166, 0
  %v6202 = vsel %vm545, %v6167, 0
  %v6205 = vsel %vm545, %v6168, 0
  %v6208 = vsel %vm545, %v6169, 0
  %v6211 = vsel %vm545, %v6170, 0
  %v6214 = vsel %vm545, %v6171, 0
  %v6217 = vsel %vm545, %v6172, 0
  %v6220 = vsel %vm545, %v6173, 0
  %6222 = vmatprep.subr.mxu0 0.0
  %6223 = vmatpush1.msra.mxu0 0.0
  %6224 = vmatprep.subr.mxu0 0.0
  %6225 = vmatpush1.msra.mxu0 0.0
  %6226 = vmatprep.subr.mxu0 0.0
  %6227 = vmatpush1.msra.mxu0 0.0
  %6228 = vmatprep.subr.mxu0 0.0
  %6229 = vmatpush1.msra.mxu0 0.0
  %6230 = vmatprep.subr.mxu0 0.0
  %6231 = vmatpush1.msra.mxu0 0.0
  %6232 = vmatprep.subr.mxu0 0.0
  %6233 = vmatpush1.msra.mxu0 0.0
  %6234 = vmatprep.subr.mxu0 0.0
  %6235 = vmatpush1.msra.mxu0 0.0
  %6236 = vmatprep.subr.mxu0 0.0
  %6237 = vmatpush1.msra.mxu0 0.0
  %6238 = vmatprep.subr.mxu0 0.0
  %6239 = vmatpush1.msra.mxu0 0.0
  %6240 = vmatprep.subr.mxu0 0.0
  %6241 = vmatpush1.msra.mxu0 0.0
  %6242 = vmatprep.subr.mxu0 0.0
  %6243 = vmatpush1.msra.mxu0 0.0
  %6244 = vmatprep.subr.mxu0 0.0
  %6245 = vmatpush1.msra.mxu0 0.0
  %6246 = vmatprep.subr.mxu0 0.0
  %6247 = vmatpush1.msra.mxu0 0.0
  %6248 = vmatprep.subr.mxu0 0.0
  %6249 = vmatpush1.msra.mxu0 0.0
  %6250 = vmatprep.subr.mxu0 0.0
  %6251 = vmatpush1.msra.mxu0 0.0
  %6252 = vmatprep.subr.mxu0 %v5985
  %6253 = vmatpush1.msra.mxu0 %v5983
  %6254 = vmatprep.subr.mxu0 0.0
  %6255 = vmatpush2.msra.mxu0 0.0
  %6256 = vmatprep.subr.mxu0 0.0
  %6257 = vmatpush2.msra.mxu0 0.0
  %6258 = vmatprep.subr.mxu0 0.0
  %6259 = vmatpush2.msra.mxu0 0.0
  %6260 = vmatprep.subr.mxu0 0.0
  %6261 = vmatpush2.msra.mxu0 0.0
  %6262 = vmatprep.subr.mxu0 0.0
  %6263 = vmatpush2.msra.mxu0 0.0
  %6264 = vmatprep.subr.mxu0 0.0
  %6265 = vmatpush2.msra.mxu0 0.0
  %6266 = vmatprep.subr.mxu0 0.0
  %6267 = vmatpush2.msra.mxu0 0.0
  %6268 = vmatprep.subr.mxu0 0.0
  %6269 = vmatpush2.msra.mxu0 0.0
  %6270 = vmatprep.subr.mxu0 0.0
  %6271 = vmatpush2.msra.mxu0 0.0
  %6272 = vmatprep.subr.mxu0 0.0
  %6273 = vmatpush2.msra.mxu0 0.0
  %6274 = vmatprep.subr.mxu0 0.0
  %6275 = vmatpush2.msra.mxu0 0.0
  %6276 = vmatprep.subr.mxu0 0.0
  %6277 = vmatpush2.msra.mxu0 0.0
  %6278 = vmatprep.subr.mxu0 0.0
  %6279 = vmatpush2.msra.mxu0 0.0
  %6280 = vmatprep.subr.mxu0 0.0
  %6281 = vmatpush2.msra.mxu0 0.0
  %6282 = vmatprep.subr.mxu0 0.0
  %6283 = vmatpush2.msra.mxu0 0.0
  %6284 = vmatprep.subr.mxu0 0.0
  %6285 = vmatpush2.msra.mxu0 0.0
  %6286 = vmatprep.mubr.f32.mxu0 0.0
  %6287 = vmatmul.mubr.f32.gmra.mxu0 %v6175
  %v6288 = vpop.f32.mrf.mxu0
  %v6289 = vadd.f32 0.0, %v6288
  %v6290 = vpop.f32.mrf.mxu0
  %v6291 = vadd.f32 0.0, %v6290
  %6292 = vmatprep.mubr.f32.mxu0 0.0
  %6293 = vmatmul.mubr.f32.gmra.mxu0 %v6178
  %v6294 = vpop.f32.mrf.mxu0
  %v6295 = vadd.f32 0.0, %v6294
  %v6296 = vpop.f32.mrf.mxu0
  %v6297 = vadd.f32 0.0, %v6296
  %6298 = vmatprep.mubr.f32.mxu0 0.0
  %6299 = vmatmul.mubr.f32.gmra.mxu0 %v6181
  %v6300 = vpop.f32.mrf.mxu0
  %v6301 = vadd.f32 0.0, %v6300
  %v6302 = vpop.f32.mrf.mxu0
  %v6303 = vadd.f32 0.0, %v6302
  %6304 = vmatprep.mubr.f32.mxu0 0.0
  %6305 = vmatmul.mubr.f32.gmra.mxu0 %v6184
  %v6306 = vpop.f32.mrf.mxu0
  %v6307 = vadd.f32 0.0, %v6306
  %v6308 = vpop.f32.mrf.mxu0
  %v6309 = vadd.f32 0.0, %v6308
  %6310 = vmatprep.mubr.f32.mxu0 0.0
  %6311 = vmatmul.mubr.f32.gmra.mxu0 %v6187
  %v6312 = vpop.f32.mrf.mxu0
  %v6313 = vadd.f32 0.0, %v6312
  %v6314 = vpop.f32.mrf.mxu0
  %v6315 = vadd.f32 0.0, %v6314
  %6316 = vmatprep.mubr.f32.mxu0 0.0
  %6317 = vmatmul.mubr.f32.gmra.mxu0 %v6190
  %v6318 = vpop.f32.mrf.mxu0
  %v6319 = vadd.f32 0.0, %v6318
  %v6320 = vpop.f32.mrf.mxu0
  %v6321 = vadd.f32 0.0, %v6320
  %6322 = vmatprep.mubr.f32.mxu0 0.0
  %6323 = vmatmul.mubr.f32.gmra.mxu0 %v6193
  %v6324 = vpop.f32.mrf.mxu0
  %v6325 = vadd.f32 0.0, %v6324
  %v6326 = vpop.f32.mrf.mxu0
  %v6327 = vadd.f32 0.0, %v6326
  %6328 = vmatprep.mubr.f32.mxu0 0.0
  %6329 = vmatmul.mubr.f32.gmra.mxu0 %v6196
  %v6330 = vpop.f32.mrf.mxu0
  %v6331 = vadd.f32 0.0, %v6330
  %v6332 = vpop.f32.mrf.mxu0
  %v6333 = vadd.f32 0.0, %v6332
  %6334 = vmatprep.mubr.f32.mxu0 0.0
  %6335 = vmatmul.mubr.f32.gmra.mxu0 %v6199
  %v6336 = vpop.f32.mrf.mxu0
  %v6337 = vadd.f32 0.0, %v6336
  %v6338 = vpop.f32.mrf.mxu0
  %v6339 = vadd.f32 0.0, %v6338
  %6340 = vmatprep.mubr.f32.mxu0 0.0
  %6341 = vmatmul.mubr.f32.gmra.mxu0 %v6202
  %v6342 = vpop.f32.mrf.mxu0
  %v6343 = vadd.f32 0.0, %v6342
  %v6344 = vpop.f32.mrf.mxu0
  %v6345 = vadd.f32 0.0, %v6344
  %6346 = vmatprep.mubr.f32.mxu0 0.0
  %6347 = vmatmul.mubr.f32.gmra.mxu0 %v6205
  %v6348 = vpop.f32.mrf.mxu0
  %v6349 = vadd.f32 0.0, %v6348
  %v6350 = vpop.f32.mrf.mxu0
  %v6351 = vadd.f32 0.0, %v6350
  %6352 = vmatprep.mubr.f32.mxu0 0.0
  %6353 = vmatmul.mubr.f32.gmra.mxu0 %v6208
  %v6354 = vpop.f32.mrf.mxu0
  %v6355 = vadd.f32 0.0, %v6354
  %v6356 = vpop.f32.mrf.mxu0
  %v6357 = vadd.f32 0.0, %v6356
  %6358 = vmatprep.mubr.f32.mxu0 0.0
  %6359 = vmatmul.mubr.f32.gmra.mxu0 %v6211
  %v6360 = vpop.f32.mrf.mxu0
  %v6361 = vadd.f32 0.0, %v6360
  %v6362 = vpop.f32.mrf.mxu0
  %v6363 = vadd.f32 0.0, %v6362
  %6364 = vmatprep.mubr.f32.mxu0 0.0
  %6365 = vmatmul.mubr.f32.gmra.mxu0 %v6214
  %v6366 = vpop.f32.mrf.mxu0
  %v6367 = vadd.f32 0.0, %v6366
  %v6368 = vpop.f32.mrf.mxu0
  %v6369 = vadd.f32 0.0, %v6368
  %6370 = vmatprep.mubr.f32.mxu0 0.0
  %6371 = vmatmul.mubr.f32.gmra.mxu0 %v6217
  %v6372 = vpop.f32.mrf.mxu0
  %v6373 = vadd.f32 0.0, %v6372
  %v6374 = vpop.f32.mrf.mxu0
  %v6375 = vadd.f32 0.0, %v6374
  %6376 = vmatprep.mubr.f32.mxu0 0.0
  %6377 = vmatmul.mubr.f32.gmra.mxu0 %v6220
  %v6378 = vpop.f32.mrf.mxu0
  %v6379 = vadd.f32 0.0, %v6378
  %v6380 = vpop.f32.mrf.mxu0
  %v6381 = vadd.f32 0.0, %v6380
  %6382 = vdwg.mxu0
  %v6383 = vmax.f32 %v6289, %v6291
  %6384 = vmax.xlane.f32.xlu0 %v6383
  %v6385 = vpop.xlane.xlu0 %6384
  %v6386 = vmax.f32 %v6295, %v6297
  %6387 = vmax.xlane.f32.xlu0 %v6386
  %v6388 = vpop.xlane.xlu0 %6387
  %v6389 = vmax.f32 %v6301, %v6303
  %6390 = vmax.xlane.f32.xlu0 %v6389
  %v6391 = vpop.xlane.xlu0 %6390
  %v6392 = vmax.f32 %v6307, %v6309
  %6393 = vmax.xlane.f32.xlu0 %v6392
  %v6394 = vpop.xlane.xlu0 %6393
  %v6395 = vmax.f32 %v6313, %v6315
  %6396 = vmax.xlane.f32.xlu0 %v6395
  %v6397 = vpop.xlane.xlu0 %6396
  %v6398 = vmax.f32 %v6319, %v6321
  %6399 = vmax.xlane.f32.xlu0 %v6398
  %v6400 = vpop.xlane.xlu0 %6399
  %v6401 = vmax.f32 %v6325, %v6327
  %6402 = vmax.xlane.f32.xlu0 %v6401
  %v6403 = vpop.xlane.xlu0 %6402
  %v6404 = vmax.f32 %v6331, %v6333
  %6405 = vmax.xlane.f32.xlu0 %v6404
  %v6406 = vpop.xlane.xlu0 %6405
  %v6407 = vmax.f32 %v6337, %v6339
  %6408 = vmax.xlane.f32.xlu0 %v6407
  %v6409 = vpop.xlane.xlu0 %6408
  %v6410 = vmax.f32 %v6343, %v6345
  %6411 = vmax.xlane.f32.xlu0 %v6410
  %v6412 = vpop.xlane.xlu0 %6411
  %v6413 = vmax.f32 %v6349, %v6351
  %6414 = vmax.xlane.f32.xlu0 %v6413
  %v6415 = vpop.xlane.xlu0 %6414
  %v6416 = vmax.f32 %v6355, %v6357
  %6417 = vmax.xlane.f32.xlu0 %v6416
  %v6418 = vpop.xlane.xlu0 %6417
  %v6419 = vmax.f32 %v6361, %v6363
  %6420 = vmax.xlane.f32.xlu0 %v6419
  %v6421 = vpop.xlane.xlu0 %6420
  %v6422 = vmax.f32 %v6367, %v6369
  %6423 = vmax.xlane.f32.xlu0 %v6422
  %v6424 = vpop.xlane.xlu0 %6423
  %v6425 = vmax.f32 %v6373, %v6375
  %6426 = vmax.xlane.f32.xlu0 %v6425
  %v6427 = vpop.xlane.xlu0 %6426
  %v6428 = vmax.f32 %v6379, %v6381
  %6429 = vmax.xlane.f32.xlu0 %v6428
  %v6430 = vpop.xlane.xlu0 %6429
  %v6431 = vsub.f32 %v6289, %v6385
  %v6432 = vsub.f32 %v6291, %v6385
  %v6433 = vsub.f32 %v6295, %v6388
  %v6434 = vsub.f32 %v6297, %v6388
  %v6435 = vsub.f32 %v6301, %v6391
  %v6436 = vsub.f32 %v6303, %v6391
  %v6437 = vsub.f32 %v6307, %v6394
  %v6438 = vsub.f32 %v6309, %v6394
  %v6439 = vsub.f32 %v6313, %v6397
  %v6440 = vsub.f32 %v6315, %v6397
  %v6441 = vsub.f32 %v6319, %v6400
  %v6442 = vsub.f32 %v6321, %v6400
  %v6443 = vsub.f32 %v6325, %v6403
  %v6444 = vsub.f32 %v6327, %v6403
  %v6445 = vsub.f32 %v6331, %v6406
  %v6446 = vsub.f32 %v6333, %v6406
  %v6447 = vsub.f32 %v6337, %v6409
  %v6448 = vsub.f32 %v6339, %v6409
  %v6449 = vsub.f32 %v6343, %v6412
  %v6450 = vsub.f32 %v6345, %v6412
  %v6451 = vsub.f32 %v6349, %v6415
  %v6452 = vsub.f32 %v6351, %v6415
  %v6453 = vsub.f32 %v6355, %v6418
  %v6454 = vsub.f32 %v6357, %v6418
  %v6455 = vsub.f32 %v6361, %v6421
  %v6456 = vsub.f32 %v6363, %v6421
  %v6457 = vsub.f32 %v6367, %v6424
  %v6458 = vsub.f32 %v6369, %v6424
  %v6459 = vsub.f32 %v6373, %v6427
  %v6460 = vsub.f32 %v6375, %v6427
  %v6461 = vsub.f32 %v6379, %v6430
  %v6462 = vsub.f32 %v6381, %v6430
  %v6463 = vmul.f32 %v6431, 1.442695
  %v6464 = vpow.pop %v6463
  %v6465 = vmul.f32 %v6432, 1.442695
  %v6466 = vpow.pop %v6465
  %v6467 = vmul.f32 %v6433, 1.442695
  %v6468 = vpow.pop %v6467
  %v6469 = vmul.f32 %v6434, 1.442695
  %v6470 = vpow.pop %v6469
  %v6471 = vmul.f32 %v6435, 1.442695
  %v6472 = vpow.pop %v6471
  %v6473 = vmul.f32 %v6436, 1.442695
  %v6474 = vpow.pop %v6473
  %v6475 = vmul.f32 %v6437, 1.442695
  %v6476 = vpow.pop %v6475
  %v6477 = vmul.f32 %v6438, 1.442695
  %v6478 = vpow.pop %v6477
  %v6479 = vmul.f32 %v6439, 1.442695
  %v6480 = vpow.pop %v6479
  %v6481 = vmul.f32 %v6440, 1.442695
  %v6482 = vpow.pop %v6481
  %v6483 = vmul.f32 %v6441, 1.442695
  %v6484 = vpow.pop %v6483
  %v6485 = vmul.f32 %v6442, 1.442695
  %v6486 = vpow.pop %v6485
  %v6487 = vmul.f32 %v6443, 1.442695
  %v6488 = vpow.pop %v6487
  %v6489 = vmul.f32 %v6444, 1.442695
  %v6490 = vpow.pop %v6489
  %v6491 = vmul.f32 %v6445, 1.442695
  %v6492 = vpow.pop %v6491
  %v6493 = vmul.f32 %v6446, 1.442695
  %v6494 = vpow.pop %v6493
  %v6495 = vmul.f32 %v6447, 1.442695
  %v6496 = vpow.pop %v6495
  %v6497 = vmul.f32 %v6448, 1.442695
  %v6498 = vpow.pop %v6497
  %v6499 = vmul.f32 %v6449, 1.442695
  %v6500 = vpow.pop %v6499
  %v6501 = vmul.f32 %v6450, 1.442695
  %v6502 = vpow.pop %v6501
  %v6503 = vmul.f32 %v6451, 1.442695
  %v6504 = vpow.pop %v6503
  %v6505 = vmul.f32 %v6452, 1.442695
  %v6506 = vpow.pop %v6505
  %v6507 = vmul.f32 %v6453, 1.442695
  %v6508 = vpow.pop %v6507
  %v6509 = vmul.f32 %v6454, 1.442695
  %v6510 = vpow.pop %v6509
  %v6511 = vmul.f32 %v6455, 1.442695
  %v6512 = vpow.pop %v6511
  %v6513 = vmul.f32 %v6456, 1.442695
  %v6514 = vpow.pop %v6513
  %v6515 = vmul.f32 %v6457, 1.442695
  %v6516 = vpow.pop %v6515
  %v6517 = vmul.f32 %v6458, 1.442695
  %v6518 = vpow.pop %v6517
  %v6519 = vmul.f32 %v6459, 1.442695
  %v6520 = vpow.pop %v6519
  %v6521 = vmul.f32 %v6460, 1.442695
  %v6522 = vpow.pop %v6521
  %v6523 = vmul.f32 %v6461, 1.442695
  %v6524 = vpow.pop %v6523
  %v6525 = vmul.f32 %v6462, 1.442695
  %v6526 = vpow.pop %v6525
  %v6527 = vadd.f32 %v6464, %v6466
  %6528 = vadd.xlane.f32.xlu0 %v6527
  %v6529 = vpop.xlane.xlu0 %6528
  %v6530 = vadd.f32 %v6468, %v6470
  %6531 = vadd.xlane.f32.xlu0 %v6530
  %v6532 = vpop.xlane.xlu0 %6531
  %v6533 = vadd.f32 %v6472, %v6474
  %6534 = vadd.xlane.f32.xlu0 %v6533
  %v6535 = vpop.xlane.xlu0 %6534
  %v6536 = vadd.f32 %v6476, %v6478
  %6537 = vadd.xlane.f32.xlu0 %v6536
  %v6538 = vpop.xlane.xlu0 %6537
  %v6539 = vadd.f32 %v6480, %v6482
  %6540 = vadd.xlane.f32.xlu0 %v6539
  %v6541 = vpop.xlane.xlu0 %6540
  %v6542 = vadd.f32 %v6484, %v6486
  %6543 = vadd.xlane.f32.xlu0 %v6542
  %v6544 = vpop.xlane.xlu0 %6543
  %v6545 = vadd.f32 %v6488, %v6490
  %6546 = vadd.xlane.f32.xlu0 %v6545
  %v6547 = vpop.xlane.xlu0 %6546
  %v6548 = vadd.f32 %v6492, %v6494
  %6549 = vadd.xlane.f32.xlu0 %v6548
  %v6550 = vpop.xlane.xlu0 %6549
  %v6551 = vadd.f32 %v6496, %v6498
  %6552 = vadd.xlane.f32.xlu0 %v6551
  %v6553 = vpop.xlane.xlu0 %6552
  %v6554 = vadd.f32 %v6500, %v6502
  %6555 = vadd.xlane.f32.xlu0 %v6554
  %v6556 = vpop.xlane.xlu0 %6555
  %v6557 = vadd.f32 %v6504, %v6506
  %6558 = vadd.xlane.f32.xlu0 %v6557
  %v6559 = vpop.xlane.xlu0 %6558
  %v6560 = vadd.f32 %v6508, %v6510
  %6561 = vadd.xlane.f32.xlu0 %v6560
  %v6562 = vpop.xlane.xlu0 %6561
  %v6563 = vadd.f32 %v6512, %v6514
  %6564 = vadd.xlane.f32.xlu0 %v6563
  %v6565 = vpop.xlane.xlu0 %6564
  %v6566 = vadd.f32 %v6516, %v6518
  %6567 = vadd.xlane.f32.xlu0 %v6566
  %v6568 = vpop.xlane.xlu0 %6567
  %v6569 = vadd.f32 %v6520, %v6522
  %6570 = vadd.xlane.f32.xlu0 %v6569
  %v6571 = vpop.xlane.xlu0 %6570
  %v6572 = vadd.f32 %v6524, %v6526
  %6573 = vadd.xlane.f32.xlu0 %v6572
  %v6574 = vpop.xlane.xlu0 %6573
  %v6575 = vrcp.pop %v6529
  %v6576 = vmul.f32 %v6464, %v6575
  %v6577 = vmul.f32 %v6466, %v6575
  %v6578 = vrcp.pop %v6532
  %v6579 = vmul.f32 %v6468, %v6578
  %v6580 = vmul.f32 %v6470, %v6578
  %v6581 = vrcp.pop %v6535
  %v6582 = vmul.f32 %v6472, %v6581
  %v6583 = vmul.f32 %v6474, %v6581
  %v6584 = vrcp.pop %v6538
  %v6585 = vmul.f32 %v6476, %v6584
  %v6586 = vmul.f32 %v6478, %v6584
  %v6587 = vrcp.pop %v6541
  %v6588 = vmul.f32 %v6480, %v6587
  %v6589 = vmul.f32 %v6482, %v6587
  %v6590 = vrcp.pop %v6544
  %v6591 = vmul.f32 %v6484, %v6590
  %v6592 = vmul.f32 %v6486, %v6590
  %v6593 = vrcp.pop %v6547
  %v6594 = vmul.f32 %v6488, %v6593
  %v6595 = vmul.f32 %v6490, %v6593
  %v6596 = vrcp.pop %v6550
  %v6597 = vmul.f32 %v6492, %v6596
  %v6598 = vmul.f32 %v6494, %v6596
  %v6599 = vrcp.pop %v6553
  %v6600 = vmul.f32 %v6496, %v6599
  %v6601 = vmul.f32 %v6498, %v6599
  %v6602 = vrcp.pop %v6556
  %v6603 = vmul.f32 %v6500, %v6602
  %v6604 = vmul.f32 %v6502, %v6602
  %v6605 = vrcp.pop %v6559
  %v6606 = vmul.f32 %v6504, %v6605
  %v6607 = vmul.f32 %v6506, %v6605
  %v6608 = vrcp.pop %v6562
  %v6609 = vmul.f32 %v6508, %v6608
  %v6610 = vmul.f32 %v6510, %v6608
  %v6611 = vrcp.pop %v6565
  %v6612 = vmul.f32 %v6512, %v6611
  %v6613 = vmul.f32 %v6514, %v6611
  %v6614 = vrcp.pop %v6568
  %v6615 = vmul.f32 %v6516, %v6614
  %v6616 = vmul.f32 %v6518, %v6614
  %v6617 = vrcp.pop %v6571
  %v6618 = vmul.f32 %v6520, %v6617
  %v6619 = vmul.f32 %v6522, %v6617
  %v6620 = vrcp.pop %v6574
  %v6621 = vmul.f32 %v6524, %v6620
  %v6622 = vmul.f32 %v6526, %v6620
  %6623 = vmatprep.subr.mxu0 0.0
  %6624 = vmatpush1.xpose.msra.mxu0 0.0
  %6625 = vmatprep.subr.mxu0 0.0
  %6626 = vmatpush1.xpose.msra.mxu0 0.0
  %6627 = vmatprep.subr.mxu0 0.0
  %6628 = vmatpush1.xpose.msra.mxu0 0.0
  %6629 = vmatprep.subr.mxu0 0.0
  %6630 = vmatpush1.xpose.msra.mxu0 0.0
  %6631 = vmatprep.subr.mxu0 0.0
  %6632 = vmatpush1.xpose.msra.mxu0 0.0
  %6633 = vmatprep.subr.mxu0 0.0
  %6634 = vmatpush1.xpose.msra.mxu0 0.0
  %6635 = vmatprep.subr.mxu0 0.0
  %6636 = vmatpush1.xpose.msra.mxu0 0.0
  %6637 = vmatprep.subr.mxu0 0.0
  %6638 = vmatpush1.xpose.msra.mxu0 0.0
  %6639 = vmatprep.subr.mxu0 0.0
  %6640 = vmatpush1.xpose.msra.mxu0 0.0
  %6641 = vmatprep.subr.mxu0 0.0
  %6642 = vmatpush1.xpose.msra.mxu0 0.0
  %6643 = vmatprep.subr.mxu0 0.0
  %6644 = vmatpush1.xpose.msra.mxu0 0.0
  %6645 = vmatprep.subr.mxu0 0.0
  %6646 = vmatpush1.xpose.msra.mxu0 0.0
  %6647 = vmatprep.subr.mxu0 0.0
  %6648 = vmatpush1.xpose.msra.mxu0 0.0
  %6649 = vmatprep.subr.mxu0 0.0
  %6650 = vmatpush1.xpose.msra.mxu0 0.0
  %6651 = vmatprep.subr.mxu0 0.0
  %6652 = vmatpush1.xpose.msra.mxu0 0.0
  %6653 = vmatprep.subr.mxu0 %v6009
  %6654 = vmatpush1.xpose.msra.mxu0 %v6007
  %6655 = vmatprep.subr.mxu0 0.0
  %6656 = vmatpush2.xpose.msra.mxu0 0.0
  %6657 = vmatprep.subr.mxu0 0.0
  %6658 = vmatpush2.xpose.msra.mxu0 0.0
  %6659 = vmatprep.subr.mxu0 0.0
  %6660 = vmatpush2.xpose.msra.mxu0 0.0
  %6661 = vmatprep.subr.mxu0 0.0
  %6662 = vmatpush2.xpose.msra.mxu0 0.0
  %6663 = vmatprep.subr.mxu0 0.0
  %6664 = vmatpush2.xpose.msra.mxu0 0.0
  %6665 = vmatprep.subr.mxu0 0.0
  %6666 = vmatpush2.xpose.msra.mxu0 0.0
  %6667 = vmatprep.subr.mxu0 0.0
  %6668 = vmatpush2.xpose.msra.mxu0 0.0
  %6669 = vmatprep.subr.mxu0 0.0
  %6670 = vmatpush2.xpose.msra.mxu0 0.0
  %6671 = vmatprep.subr.mxu0 0.0
  %6672 = vmatpush2.xpose.msra.mxu0 0.0
  %6673 = vmatprep.subr.mxu0 0.0
  %6674 = vmatpush2.xpose.msra.mxu0 0.0
  %6675 = vmatprep.subr.mxu0 0.0
  %6676 = vmatpush2.xpose.msra.mxu0 0.0
  %6677 = vmatprep.subr.mxu0 0.0
  %6678 = vmatpush2.xpose.msra.mxu0 0.0
  %6679 = vmatprep.subr.mxu0 0.0
  %6680 = vmatpush2.xpose.msra.mxu0 0.0
  %6681 = vmatprep.subr.mxu0 0.0
  %6682 = vmatpush2.xpose.msra.mxu0 0.0
  %6683 = vmatprep.subr.mxu0 0.0
  %6684 = vmatpush2.xpose.msra.mxu0 0.0
  %6685 = vmatprep.subr.mxu0 0.0
  %6686 = vmatpush2.xpose.msra.mxu0 0.0
  %6687 = vmatprep.mubr.f32.mxu0 %v6577
  %6688 = vmatmul.mubr.f32.gmra.mxu0 %v6576
  %v6689 = vpop.f32.mrf.mxu0
  %v6690 = vadd.f32 0.0, %v6689
  %v6691 = vpop.f32.mrf.mxu0
  %6692 = vmatprep.mubr.f32.mxu0 %v6580
  %6693 = vmatmul.mubr.f32.gmra.mxu0 %v6579
  %v6694 = vpop.f32.mrf.mxu0
  %v6695 = vadd.f32 0.0, %v6694
  %v6696 = vpop.f32.mrf.mxu0
  %6697 = vmatprep.mubr.f32.mxu0 %v6583
  %6698 = vmatmul.mubr.f32.gmra.mxu0 %v6582
  %v6699 = vpop.f32.mrf.mxu0
  %v6700 = vadd.f32 0.0, %v6699
  %v6701 = vpop.f32.mrf.mxu0
  %6702 = vmatprep.mubr.f32.mxu0 %v6586
  %6703 = vmatmul.mubr.f32.gmra.mxu0 %v6585
  %v6704 = vpop.f32.mrf.mxu0
  %v6705 = vadd.f32 0.0, %v6704
  %v6706 = vpop.f32.mrf.mxu0
  %6707 = vmatprep.mubr.f32.mxu0 %v6589
  %6708 = vmatmul.mubr.f32.gmra.mxu0 %v6588
  %v6709 = vpop.f32.mrf.mxu0
  %v6710 = vadd.f32 0.0, %v6709
  %v6711 = vpop.f32.mrf.mxu0
  %6712 = vmatprep.mubr.f32.mxu0 %v6592
  %6713 = vmatmul.mubr.f32.gmra.mxu0 %v6591
  %v6714 = vpop.f32.mrf.mxu0
  %v6715 = vadd.f32 0.0, %v6714
  %v6716 = vpop.f32.mrf.mxu0
  %6717 = vmatprep.mubr.f32.mxu0 %v6595
  %6718 = vmatmul.mubr.f32.gmra.mxu0 %v6594
  %v6719 = vpop.f32.mrf.mxu0
  %v6720 = vadd.f32 0.0, %v6719
  %v6721 = vpop.f32.mrf.mxu0
  %6722 = vmatprep.mubr.f32.mxu0 %v6598
  %6723 = vmatmul.mubr.f32.gmra.mxu0 %v6597
  %v6724 = vpop.f32.mrf.mxu0
  %v6725 = vadd.f32 0.0, %v6724
  %v6726 = vpop.f32.mrf.mxu0
  %6727 = vmatprep.mubr.f32.mxu0 %v6601
  %6728 = vmatmul.mubr.f32.gmra.mxu0 %v6600
  %v6729 = vpop.f32.mrf.mxu0
  %v6730 = vadd.f32 0.0, %v6729
  %v6731 = vpop.f32.mrf.mxu0
  %6732 = vmatprep.mubr.f32.mxu0 %v6604
  %6733 = vmatmul.mubr.f32.gmra.mxu0 %v6603
  %v6734 = vpop.f32.mrf.mxu0
  %v6735 = vadd.f32 0.0, %v6734
  %v6736 = vpop.f32.mrf.mxu0
  %6737 = vmatprep.mubr.f32.mxu0 %v6607
  %6738 = vmatmul.mubr.f32.gmra.mxu0 %v6606
  %v6739 = vpop.f32.mrf.mxu0
  %v6740 = vadd.f32 0.0, %v6739
  %v6741 = vpop.f32.mrf.mxu0
  %6742 = vmatprep.mubr.f32.mxu0 %v6610
  %6743 = vmatmul.mubr.f32.gmra.mxu0 %v6609
  %v6744 = vpop.f32.mrf.mxu0
  %v6745 = vadd.f32 0.0, %v6744
  %v6746 = vpop.f32.mrf.mxu0
  %6747 = vmatprep.mubr.f32.mxu0 %v6613
  %6748 = vmatmul.mubr.f32.gmra.mxu0 %v6612
  %v6749 = vpop.f32.mrf.mxu0
  %v6750 = vadd.f32 0.0, %v6749
  %v6751 = vpop.f32.mrf.mxu0
  %6752 = vmatprep.mubr.f32.mxu0 %v6616
  %6753 = vmatmul.mubr.f32.gmra.mxu0 %v6615
  %v6754 = vpop.f32.mrf.mxu0
  %v6755 = vadd.f32 0.0, %v6754
  %v6756 = vpop.f32.mrf.mxu0
  %6757 = vmatprep.mubr.f32.mxu0 %v6619
  %6758 = vmatmul.mubr.f32.gmra.mxu0 %v6618
  %v6759 = vpop.f32.mrf.mxu0
  %v6760 = vadd.f32 0.0, %v6759
  %v6761 = vpop.f32.mrf.mxu0
  %6762 = vmatprep.mubr.f32.mxu0 %v6622
  %6763 = vmatmul.mubr.f32.gmra.mxu0 %v6621
  %v6764 = vpop.f32.mrf.mxu0
  %v6765 = vadd.f32 0.0, %v6764
  %v6766 = vpop.f32.mrf.mxu0
  %6767 = vdwg.mxu0
  %6768 = vst.msk [vmem:[#allocation2] sm:$0xff] %vm545, %v6690
  %6769 = vst.msk [vmem:[#allocation2 + $0x8] sm:$0xff] %vm545, %v6695
  %6770 = vst.msk [vmem:[#allocation2 + $0x10] sm:$0xff] %vm545, %v6700
  %6771 = vst.msk [vmem:[#allocation2 + $0x18] sm:$0xff] %vm545, %v6705
  %6772 = vst.msk [vmem:[#allocation2 + $0x20] sm:$0xff] %vm545, %v6710
  %6773 = vst.msk [vmem:[#allocation2 + $0x28] sm:$0xff] %vm545, %v6715
  %6774 = vst.msk [vmem:[#allocation2 + $0x30] sm:$0xff] %vm545, %v6720
  %6775 = vst.msk [vmem:[#allocation2 + $0x38] sm:$0xff] %vm545, %v6725
  %6776 = vst.msk [vmem:[#allocation2 + $0x40] sm:$0xff] %vm545, %v6730
  %6777 = vst.msk [vmem:[#allocation2 + $0x48] sm:$0xff] %vm545, %v6735
  %6778 = vst.msk [vmem:[#allocation2 + $0x50] sm:$0xff] %vm545, %v6740
  %6779 = vst.msk [vmem:[#allocation2 + $0x58] sm:$0xff] %vm545, %v6745
  %6780 = vst.msk [vmem:[#allocation2 + $0x60] sm:$0xff] %vm545, %v6750
  %6781 = vst.msk [vmem:[#allocation2 + $0x68] sm:$0xff] %vm545, %v6755
  %6782 = vst.msk [vmem:[#allocation2 + $0x70] sm:$0xff] %vm545, %v6760
  %6783 = vst.msk [vmem:[#allocation2 + $0x78] sm:$0xff] %vm545, %v6765
  %6784 = vrot.lane.b32.xlu0 %v6158, 120
  %v6785 = vpop.permute.xlu0 %6784
  %6786 = vrot.lane.b32.xlu0 %v6159, 120
  %v6787 = vpop.permute.xlu0 %6786
  %6788 = vrot.lane.b32.xlu0 %v6160, 120
  %v6789 = vpop.permute.xlu0 %6788
  %6790 = vrot.lane.b32.xlu0 %v6161, 120
  %v6791 = vpop.permute.xlu0 %6790
  %6792 = vrot.lane.b32.xlu0 %v6162, 120
  %v6793 = vpop.permute.xlu0 %6792
  %6794 = vrot.lane.b32.xlu0 %v6163, 120
  %v6795 = vpop.permute.xlu0 %6794
  %6796 = vrot.lane.b32.xlu0 %v6164, 120
  %v6797 = vpop.permute.xlu0 %6796
  %6798 = vrot.lane.b32.xlu0 %v6165, 120
  %v6799 = vpop.permute.xlu0 %6798
  %6800 = vrot.lane.b32.xlu0 %v6166, 120
  %v6801 = vpop.permute.xlu0 %6800
  %6802 = vrot.lane.b32.xlu0 %v6167, 120
  %v6803 = vpop.permute.xlu0 %6802
  %6804 = vrot.lane.b32.xlu0 %v6168, 120
  %v6805 = vpop.permute.xlu0 %6804
  %6806 = vrot.lane.b32.xlu0 %v6169, 120
  %v6807 = vpop.permute.xlu0 %6806
  %6808 = vrot.lane.b32.xlu0 %v6170, 120
  %v6809 = vpop.permute.xlu0 %6808
  %6810 = vrot.lane.b32.xlu0 %v6171, 120
  %v6811 = vpop.permute.xlu0 %6810
  %6812 = vrot.lane.b32.xlu0 %v6172, 120
  %v6813 = vpop.permute.xlu0 %6812
  %6814 = vrot.lane.b32.xlu0 %v6173, 120
  %v6815 = vpop.permute.xlu0 %6814
  %v6816 = vsel %vm545, %v6785, 0
  %v6818 = vsel %vm545, %v6787, 0
  %v6820 = vsel %vm545, %v6789, 0
  %v6822 = vsel %vm545, %v6791, 0
  %v6824 = vsel %vm545, %v6793, 0
  %v6826 = vsel %vm545, %v6795, 0
  %v6828 = vsel %vm545, %v6797, 0
  %v6830 = vsel %vm545, %v6799, 0
  %v6832 = vsel %vm545, %v6801, 0
  %v6834 = vsel %vm545, %v6803, 0
  %v6836 = vsel %vm545, %v6805, 0
  %v6838 = vsel %vm545, %v6807, 0
  %v6840 = vsel %vm545, %v6809, 0
  %v6842 = vsel %vm545, %v6811, 0
  %v6844 = vsel %vm545, %v6813, 0
  %v6846 = vsel %vm545, %v6815, 0
  %6848 = vmatprep.subr.mxu0 0.0
  %6849 = vmatpush1.msra.mxu0 0.0
  %6850 = vmatprep.subr.mxu0 0.0
  %6851 = vmatpush1.msra.mxu0 0.0
  %6852 = vmatprep.subr.mxu0 0.0
  %6853 = vmatpush1.msra.mxu0 0.0
  %6854 = vmatprep.subr.mxu0 0.0
  %6855 = vmatpush1.msra.mxu0 0.0
  %6856 = vmatprep.subr.mxu0 0.0
  %6857 = vmatpush1.msra.mxu0 0.0
  %6858 = vmatprep.subr.mxu0 0.0
  %6859 = vmatpush1.msra.mxu0 0.0
  %6860 = vmatprep.subr.mxu0 0.0
  %6861 = vmatpush1.msra.mxu0 0.0
  %6862 = vmatprep.subr.mxu0 0.0
  %6863 = vmatpush1.msra.mxu0 0.0
  %6864 = vmatprep.subr.mxu0 0.0
  %6865 = vmatpush1.msra.mxu0 0.0
  %6866 = vmatprep.subr.mxu0 0.0
  %6867 = vmatpush1.msra.mxu0 0.0
  %6868 = vmatprep.subr.mxu0 0.0
  %6869 = vmatpush1.msra.mxu0 0.0
  %6870 = vmatprep.subr.mxu0 0.0
  %6871 = vmatpush1.msra.mxu0 0.0
  %6872 = vmatprep.subr.mxu0 0.0
  %6873 = vmatpush1.msra.mxu0 0.0
  %6874 = vmatprep.subr.mxu0 0.0
  %6875 = vmatpush1.msra.mxu0 0.0
  %6876 = vmatprep.subr.mxu0 0.0
  %6877 = vmatpush1.msra.mxu0 0.0
  %6878 = vmatprep.subr.mxu0 %v5991
  %6879 = vmatpush1.msra.mxu0 %v5989
  %6880 = vmatprep.subr.mxu0 0.0
  %6881 = vmatpush2.msra.mxu0 0.0
  %6882 = vmatprep.subr.mxu0 0.0
  %6883 = vmatpush2.msra.mxu0 0.0
  %6884 = vmatprep.subr.mxu0 0.0
  %6885 = vmatpush2.msra.mxu0 0.0
  %6886 = vmatprep.subr.mxu0 0.0
  %6887 = vmatpush2.msra.mxu0 0.0
  %6888 = vmatprep.subr.mxu0 0.0
  %6889 = vmatpush2.msra.mxu0 0.0
  %6890 = vmatprep.subr.mxu0 0.0
  %6891 = vmatpush2.msra.mxu0 0.0
  %6892 = vmatprep.subr.mxu0 0.0
  %6893 = vmatpush2.msra.mxu0 0.0
  %6894 = vmatprep.subr.mxu0 0.0
  %6895 = vmatpush2.msra.mxu0 0.0
  %6896 = vmatprep.subr.mxu0 0.0
  %6897 = vmatpush2.msra.mxu0 0.0
  %6898 = vmatprep.subr.mxu0 0.0
  %6899 = vmatpush2.msra.mxu0 0.0
  %6900 = vmatprep.subr.mxu0 0.0
  %6901 = vmatpush2.msra.mxu0 0.0
  %6902 = vmatprep.subr.mxu0 0.0
  %6903 = vmatpush2.msra.mxu0 0.0
  %6904 = vmatprep.subr.mxu0 0.0
  %6905 = vmatpush2.msra.mxu0 0.0
  %6906 = vmatprep.subr.mxu0 0.0
  %6907 = vmatpush2.msra.mxu0 0.0
  %6908 = vmatprep.subr.mxu0 0.0
  %6909 = vmatpush2.msra.mxu0 0.0
  %6910 = vmatprep.subr.mxu0 0.0
  %6911 = vmatpush2.msra.mxu0 0.0
  %6912 = vmatprep.mubr.f32.mxu0 0.0
  %6913 = vmatmul.mubr.f32.gmra.mxu0 %v6816
  %v6914 = vpop.f32.mrf.mxu0
  %v6915 = vadd.f32 0.0, %v6914
  %v6916 = vpop.f32.mrf.mxu0
  %v6917 = vadd.f32 0.0, %v6916
  %6918 = vmatprep.mubr.f32.mxu0 0.0
  %6919 = vmatmul.mubr.f32.gmra.mxu0 %v6818
  %v6920 = vpop.f32.mrf.mxu0
  %v6921 = vadd.f32 0.0, %v6920
  %v6922 = vpop.f32.mrf.mxu0
  %v6923 = vadd.f32 0.0, %v6922
  %6924 = vmatprep.mubr.f32.mxu0 0.0
  %6925 = vmatmul.mubr.f32.gmra.mxu0 %v6820
  %v6926 = vpop.f32.mrf.mxu0
  %v6927 = vadd.f32 0.0, %v6926
  %v6928 = vpop.f32.mrf.mxu0
  %v6929 = vadd.f32 0.0, %v6928
  %6930 = vmatprep.mubr.f32.mxu0 0.0
  %6931 = vmatmul.mubr.f32.gmra.mxu0 %v6822
  %v6932 = vpop.f32.mrf.mxu0
  %v6933 = vadd.f32 0.0, %v6932
  %v6934 = vpop.f32.mrf.mxu0
  %v6935 = vadd.f32 0.0, %v6934
  %6936 = vmatprep.mubr.f32.mxu0 0.0
  %6937 = vmatmul.mubr.f32.gmra.mxu0 %v6824
  %v6938 = vpop.f32.mrf.mxu0
  %v6939 = vadd.f32 0.0, %v6938
  %v6940 = vpop.f32.mrf.mxu0
  %v6941 = vadd.f32 0.0, %v6940
  %6942 = vmatprep.mubr.f32.mxu0 0.0
  %6943 = vmatmul.mubr.f32.gmra.mxu0 %v6826
  %v6944 = vpop.f32.mrf.mxu0
  %v6945 = vadd.f32 0.0, %v6944
  %v6946 = vpop.f32.mrf.mxu0
  %v6947 = vadd.f32 0.0, %v6946
  %6948 = vmatprep.mubr.f32.mxu0 0.0
  %6949 = vmatmul.mubr.f32.gmra.mxu0 %v6828
  %v6950 = vpop.f32.mrf.mxu0
  %v6951 = vadd.f32 0.0, %v6950
  %v6952 = vpop.f32.mrf.mxu0
  %v6953 = vadd.f32 0.0, %v6952
  %6954 = vmatprep.mubr.f32.mxu0 0.0
  %6955 = vmatmul.mubr.f32.gmra.mxu0 %v6830
  %v6956 = vpop.f32.mrf.mxu0
  %v6957 = vadd.f32 0.0, %v6956
  %v6958 = vpop.f32.mrf.mxu0
  %v6959 = vadd.f32 0.0, %v6958
  %6960 = vmatprep.mubr.f32.mxu0 0.0
  %6961 = vmatmul.mubr.f32.gmra.mxu0 %v6832
  %v6962 = vpop.f32.mrf.mxu0
  %v6963 = vadd.f32 0.0, %v6962
  %v6964 = vpop.f32.mrf.mxu0
  %v6965 = vadd.f32 0.0, %v6964
  %6966 = vmatprep.mubr.f32.mxu0 0.0
  %6967 = vmatmul.mubr.f32.gmra.mxu0 %v6834
  %v6968 = vpop.f32.mrf.mxu0
  %v6969 = vadd.f32 0.0, %v6968
  %v6970 = vpop.f32.mrf.mxu0
  %v6971 = vadd.f32 0.0, %v6970
  %6972 = vmatprep.mubr.f32.mxu0 0.0
  %6973 = vmatmul.mubr.f32.gmra.mxu0 %v6836
  %v6974 = vpop.f32.mrf.mxu0
  %v6975 = vadd.f32 0.0, %v6974
  %v6976 = vpop.f32.mrf.mxu0
  %v6977 = vadd.f32 0.0, %v6976
  %6978 = vmatprep.mubr.f32.mxu0 0.0
  %6979 = vmatmul.mubr.f32.gmra.mxu0 %v6838
  %v6980 = vpop.f32.mrf.mxu0
  %v6981 = vadd.f32 0.0, %v6980
  %v6982 = vpop.f32.mrf.mxu0
  %v6983 = vadd.f32 0.0, %v6982
  %6984 = vmatprep.mubr.f32.mxu0 0.0
  %6985 = vmatmul.mubr.f32.gmra.mxu0 %v6840
  %v6986 = vpop.f32.mrf.mxu0
  %v6987 = vadd.f32 0.0, %v6986
  %v6988 = vpop.f32.mrf.mxu0
  %v6989 = vadd.f32 0.0, %v6988
  %6990 = vmatprep.mubr.f32.mxu0 0.0
  %6991 = vmatmul.mubr.f32.gmra.mxu0 %v6842
  %v6992 = vpop.f32.mrf.mxu0
  %v6993 = vadd.f32 0.0, %v6992
  %v6994 = vpop.f32.mrf.mxu0
  %v6995 = vadd.f32 0.0, %v6994
  %6996 = vmatprep.mubr.f32.mxu0 0.0
  %6997 = vmatmul.mubr.f32.gmra.mxu0 %v6844
  %v6998 = vpop.f32.mrf.mxu0
  %v6999 = vadd.f32 0.0, %v6998
  %v7000 = vpop.f32.mrf.mxu0
  %v7001 = vadd.f32 0.0, %v7000
  %7002 = vmatprep.mubr.f32.mxu0 0.0
  %7003 = vmatmul.mubr.f32.gmra.mxu0 %v6846
  %v7004 = vpop.f32.mrf.mxu0
  %v7005 = vadd.f32 0.0, %v7004
  %v7006 = vpop.f32.mrf.mxu0
  %v7007 = vadd.f32 0.0, %v7006
  %7008 = vdwg.mxu0
  %v7009 = vmax.f32 %v6915, %v6917
  %7010 = vmax.xlane.f32.xlu0 %v7009
  %v7011 = vpop.xlane.xlu0 %7010
  %v7012 = vmax.f32 %v6921, %v6923
  %7013 = vmax.xlane.f32.xlu0 %v7012
  %v7014 = vpop.xlane.xlu0 %7013
  %v7015 = vmax.f32 %v6927, %v6929
  %7016 = vmax.xlane.f32.xlu0 %v7015
  %v7017 = vpop.xlane.xlu0 %7016
  %v7018 = vmax.f32 %v6933, %v6935
  %7019 = vmax.xlane.f32.xlu0 %v7018
  %v7020 = vpop.xlane.xlu0 %7019
  %v7021 = vmax.f32 %v6939, %v6941
  %7022 = vmax.xlane.f32.xlu0 %v7021
  %v7023 = vpop.xlane.xlu0 %7022
  %v7024 = vmax.f32 %v6945, %v6947
  %7025 = vmax.xlane.f32.xlu0 %v7024
  %v7026 = vpop.xlane.xlu0 %7025
  %v7027 = vmax.f32 %v6951, %v6953
  %7028 = vmax.xlane.f32.xlu0 %v7027
  %v7029 = vpop.xlane.xlu0 %7028
  %v7030 = vmax.f32 %v6957, %v6959
  %7031 = vmax.xlane.f32.xlu0 %v7030
  %v7032 = vpop.xlane.xlu0 %7031
  %v7033 = vmax.f32 %v6963, %v6965
  %7034 = vmax.xlane.f32.xlu0 %v7033
  %v7035 = vpop.xlane.xlu0 %7034
  %v7036 = vmax.f32 %v6969, %v6971
  %7037 = vmax.xlane.f32.xlu0 %v7036
  %v7038 = vpop.xlane.xlu0 %7037
  %v7039 = vmax.f32 %v6975, %v6977
  %7040 = vmax.xlane.f32.xlu0 %v7039
  %v7041 = vpop.xlane.xlu0 %7040
  %v7042 = vmax.f32 %v6981, %v6983
  %7043 = vmax.xlane.f32.xlu0 %v7042
  %v7044 = vpop.xlane.xlu0 %7043
  %v7045 = vmax.f32 %v6987, %v6989
  %7046 = vmax.xlane.f32.xlu0 %v7045
  %v7047 = vpop.xlane.xlu0 %7046
  %v7048 = vmax.f32 %v6993, %v6995
  %7049 = vmax.xlane.f32.xlu0 %v7048
  %v7050 = vpop.xlane.xlu0 %7049
  %v7051 = vmax.f32 %v6999, %v7001
  %7052 = vmax.xlane.f32.xlu0 %v7051
  %v7053 = vpop.xlane.xlu0 %7052
  %v7054 = vmax.f32 %v7005, %v7007
  %7055 = vmax.xlane.f32.xlu0 %v7054
  %v7056 = vpop.xlane.xlu0 %7055
  %v7057 = vsub.f32 %v6915, %v7011
  %v7058 = vsub.f32 %v6917, %v7011
  %v7059 = vsub.f32 %v6921, %v7014
  %v7060 = vsub.f32 %v6923, %v7014
  %v7061 = vsub.f32 %v6927, %v7017
  %v7062 = vsub.f32 %v6929, %v7017
  %v7063 = vsub.f32 %v6933, %v7020
  %v7064 = vsub.f32 %v6935, %v7020
  %v7065 = vsub.f32 %v6939, %v7023
  %v7066 = vsub.f32 %v6941, %v7023
  %v7067 = vsub.f32 %v6945, %v7026
  %v7068 = vsub.f32 %v6947, %v7026
  %v7069 = vsub.f32 %v6951, %v7029
  %v7070 = vsub.f32 %v6953, %v7029
  %v7071 = vsub.f32 %v6957, %v7032
  %v7072 = vsub.f32 %v6959, %v7032
  %v7073 = vsub.f32 %v6963, %v7035
  %v7074 = vsub.f32 %v6965, %v7035
  %v7075 = vsub.f32 %v6969, %v7038
  %v7076 = vsub.f32 %v6971, %v7038
  %v7077 = vsub.f32 %v6975, %v7041
  %v7078 = vsub.f32 %v6977, %v7041
  %v7079 = vsub.f32 %v6981, %v7044
  %v7080 = vsub.f32 %v6983, %v7044
  %v7081 = vsub.f32 %v6987, %v7047
  %v7082 = vsub.f32 %v6989, %v7047
  %v7083 = vsub.f32 %v6993, %v7050
  %v7084 = vsub.f32 %v6995, %v7050
  %v7085 = vsub.f32 %v6999, %v7053
  %v7086 = vsub.f32 %v7001, %v7053
  %v7087 = vsub.f32 %v7005, %v7056
  %v7088 = vsub.f32 %v7007, %v7056
  %v7089 = vmul.f32 %v7057, 1.442695
  %v7090 = vpow.pop %v7089
  %v7091 = vmul.f32 %v7058, 1.442695
  %v7092 = vpow.pop %v7091
  %v7093 = vmul.f32 %v7059, 1.442695
  %v7094 = vpow.pop %v7093
  %v7095 = vmul.f32 %v7060, 1.442695
  %v7096 = vpow.pop %v7095
  %v7097 = vmul.f32 %v7061, 1.442695
  %v7098 = vpow.pop %v7097
  %v7099 = vmul.f32 %v7062, 1.442695
  %v7100 = vpow.pop %v7099
  %v7101 = vmul.f32 %v7063, 1.442695
  %v7102 = vpow.pop %v7101
  %v7103 = vmul.f32 %v7064, 1.442695
  %v7104 = vpow.pop %v7103
  %v7105 = vmul.f32 %v7065, 1.442695
  %v7106 = vpow.pop %v7105
  %v7107 = vmul.f32 %v7066, 1.442695
  %v7108 = vpow.pop %v7107
  %v7109 = vmul.f32 %v7067, 1.442695
  %v7110 = vpow.pop %v7109
  %v7111 = vmul.f32 %v7068, 1.442695
  %v7112 = vpow.pop %v7111
  %v7113 = vmul.f32 %v7069, 1.442695
  %v7114 = vpow.pop %v7113
  %v7115 = vmul.f32 %v7070, 1.442695
  %v7116 = vpow.pop %v7115
  %v7117 = vmul.f32 %v7071, 1.442695
  %v7118 = vpow.pop %v7117
  %v7119 = vmul.f32 %v7072, 1.442695
  %v7120 = vpow.pop %v7119
  %v7121 = vmul.f32 %v7073, 1.442695
  %v7122 = vpow.pop %v7121
  %v7123 = vmul.f32 %v7074, 1.442695
  %v7124 = vpow.pop %v7123
  %v7125 = vmul.f32 %v7075, 1.442695
  %v7126 = vpow.pop %v7125
  %v7127 = vmul.f32 %v7076, 1.442695
  %v7128 = vpow.pop %v7127
  %v7129 = vmul.f32 %v7077, 1.442695
  %v7130 = vpow.pop %v7129
  %v7131 = vmul.f32 %v7078, 1.442695
  %v7132 = vpow.pop %v7131
  %v7133 = vmul.f32 %v7079, 1.442695
  %v7134 = vpow.pop %v7133
  %v7135 = vmul.f32 %v7080, 1.442695
  %v7136 = vpow.pop %v7135
  %v7137 = vmul.f32 %v7081, 1.442695
  %v7138 = vpow.pop %v7137
  %v7139 = vmul.f32 %v7082, 1.442695
  %v7140 = vpow.pop %v7139
  %v7141 = vmul.f32 %v7083, 1.442695
  %v7142 = vpow.pop %v7141
  %v7143 = vmul.f32 %v7084, 1.442695
  %v7144 = vpow.pop %v7143
  %v7145 = vmul.f32 %v7085, 1.442695
  %v7146 = vpow.pop %v7145
  %v7147 = vmul.f32 %v7086, 1.442695
  %v7148 = vpow.pop %v7147
  %v7149 = vmul.f32 %v7087, 1.442695
  %v7150 = vpow.pop %v7149
  %v7151 = vmul.f32 %v7088, 1.442695
  %v7152 = vpow.pop %v7151
  %v7153 = vadd.f32 %v7090, %v7092
  %7154 = vadd.xlane.f32.xlu0 %v7153
  %v7155 = vpop.xlane.xlu0 %7154
  %v7156 = vadd.f32 %v7094, %v7096
  %7157 = vadd.xlane.f32.xlu0 %v7156
  %v7158 = vpop.xlane.xlu0 %7157
  %v7159 = vadd.f32 %v7098, %v7100
  %7160 = vadd.xlane.f32.xlu0 %v7159
  %v7161 = vpop.xlane.xlu0 %7160
  %v7162 = vadd.f32 %v7102, %v7104
  %7163 = vadd.xlane.f32.xlu0 %v7162
  %v7164 = vpop.xlane.xlu0 %7163
  %v7165 = vadd.f32 %v7106, %v7108
  %7166 = vadd.xlane.f32.xlu0 %v7165
  %v7167 = vpop.xlane.xlu0 %7166
  %v7168 = vadd.f32 %v7110, %v7112
  %7169 = vadd.xlane.f32.xlu0 %v7168
  %v7170 = vpop.xlane.xlu0 %7169
  %v7171 = vadd.f32 %v7114, %v7116
  %7172 = vadd.xlane.f32.xlu0 %v7171
  %v7173 = vpop.xlane.xlu0 %7172
  %v7174 = vadd.f32 %v7118, %v7120
  %7175 = vadd.xlane.f32.xlu0 %v7174
  %v7176 = vpop.xlane.xlu0 %7175
  %v7177 = vadd.f32 %v7122, %v7124
  %7178 = vadd.xlane.f32.xlu0 %v7177
  %v7179 = vpop.xlane.xlu0 %7178
  %v7180 = vadd.f32 %v7126, %v7128
  %7181 = vadd.xlane.f32.xlu0 %v7180
  %v7182 = vpop.xlane.xlu0 %7181
  %v7183 = vadd.f32 %v7130, %v7132
  %7184 = vadd.xlane.f32.xlu0 %v7183
  %v7185 = vpop.xlane.xlu0 %7184
  %v7186 = vadd.f32 %v7134, %v7136
  %7187 = vadd.xlane.f32.xlu0 %v7186
  %v7188 = vpop.xlane.xlu0 %7187
  %v7189 = vadd.f32 %v7138, %v7140
  %7190 = vadd.xlane.f32.xlu0 %v7189
  %v7191 = vpop.xlane.xlu0 %7190
  %v7192 = vadd.f32 %v7142, %v7144
  %7193 = vadd.xlane.f32.xlu0 %v7192
  %v7194 = vpop.xlane.xlu0 %7193
  %v7195 = vadd.f32 %v7146, %v7148
  %7196 = vadd.xlane.f32.xlu0 %v7195
  %v7197 = vpop.xlane.xlu0 %7196
  %v7198 = vadd.f32 %v7150, %v7152
  %7199 = vadd.xlane.f32.xlu0 %v7198
  %v7200 = vpop.xlane.xlu0 %7199
  %v7201 = vrcp.pop %v7155
  %v7202 = vmul.f32 %v7090, %v7201
  %v7203 = vmul.f32 %v7092, %v7201
  %v7204 = vrcp.pop %v7158
  %v7205 = vmul.f32 %v7094, %v7204
  %v7206 = vmul.f32 %v7096, %v7204
  %v7207 = vrcp.pop %v7161
  %v7208 = vmul.f32 %v7098, %v7207
  %v7209 = vmul.f32 %v7100, %v7207
  %v7210 = vrcp.pop %v7164
  %v7211 = vmul.f32 %v7102, %v7210
  %v7212 = vmul.f32 %v7104, %v7210
  %v7213 = vrcp.pop %v7167
  %v7214 = vmul.f32 %v7106, %v7213
  %v7215 = vmul.f32 %v7108, %v7213
  %v7216 = vrcp.pop %v7170
  %v7217 = vmul.f32 %v7110, %v7216
  %v7218 = vmul.f32 %v7112, %v7216
  %v7219 = vrcp.pop %v7173
  %v7220 = vmul.f32 %v7114, %v7219
  %v7221 = vmul.f32 %v7116, %v7219
  %v7222 = vrcp.pop %v7176
  %v7223 = vmul.f32 %v7118, %v7222
  %v7224 = vmul.f32 %v7120, %v7222
  %v7225 = vrcp.pop %v7179
  %v7226 = vmul.f32 %v7122, %v7225
  %v7227 = vmul.f32 %v7124, %v7225
  %v7228 = vrcp.pop %v7182
  %v7229 = vmul.f32 %v7126, %v7228
  %v7230 = vmul.f32 %v7128, %v7228
  %v7231 = vrcp.pop %v7185
  %v7232 = vmul.f32 %v7130, %v7231
  %v7233 = vmul.f32 %v7132, %v7231
  %v7234 = vrcp.pop %v7188
  %v7235 = vmul.f32 %v7134, %v7234
  %v7236 = vmul.f32 %v7136, %v7234
  %v7237 = vrcp.pop %v7191
  %v7238 = vmul.f32 %v7138, %v7237
  %v7239 = vmul.f32 %v7140, %v7237
  %v7240 = vrcp.pop %v7194
  %v7241 = vmul.f32 %v7142, %v7240
  %v7242 = vmul.f32 %v7144, %v7240
  %v7243 = vrcp.pop %v7197
  %v7244 = vmul.f32 %v7146, %v7243
  %v7245 = vmul.f32 %v7148, %v7243
  %v7246 = vrcp.pop %v7200
  %v7247 = vmul.f32 %v7150, %v7246
  %v7248 = vmul.f32 %v7152, %v7246
  %7249 = vmatprep.subr.mxu0 0.0
  %7250 = vmatpush1.xpose.msra.mxu0 0.0
  %7251 = vmatprep.subr.mxu0 0.0
  %7252 = vmatpush1.xpose.msra.mxu0 0.0
  %7253 = vmatprep.subr.mxu0 0.0
  %7254 = vmatpush1.xpose.msra.mxu0 0.0
  %7255 = vmatprep.subr.mxu0 0.0
  %7256 = vmatpush1.xpose.msra.mxu0 0.0
  %7257 = vmatprep.subr.mxu0 0.0
  %7258 = vmatpush1.xpose.msra.mxu0 0.0
  %7259 = vmatprep.subr.mxu0 0.0
  %7260 = vmatpush1.xpose.msra.mxu0 0.0
  %7261 = vmatprep.subr.mxu0 0.0
  %7262 = vmatpush1.xpose.msra.mxu0 0.0
  %7263 = vmatprep.subr.mxu0 0.0
  %7264 = vmatpush1.xpose.msra.mxu0 0.0
  %7265 = vmatprep.subr.mxu0 0.0
  %7266 = vmatpush1.xpose.msra.mxu0 0.0
  %7267 = vmatprep.subr.mxu0 0.0
  %7268 = vmatpush1.xpose.msra.mxu0 0.0
  %7269 = vmatprep.subr.mxu0 0.0
  %7270 = vmatpush1.xpose.msra.mxu0 0.0
  %7271 = vmatprep.subr.mxu0 0.0
  %7272 = vmatpush1.xpose.msra.mxu0 0.0
  %7273 = vmatprep.subr.mxu0 0.0
  %7274 = vmatpush1.xpose.msra.mxu0 0.0
  %7275 = vmatprep.subr.mxu0 0.0
  %7276 = vmatpush1.xpose.msra.mxu0 0.0
  %7277 = vmatprep.subr.mxu0 0.0
  %7278 = vmatpush1.xpose.msra.mxu0 0.0
  %7279 = vmatprep.subr.mxu0 %v6015
  %7280 = vmatpush1.xpose.msra.mxu0 %v6013
  %7281 = vmatprep.subr.mxu0 0.0
  %7282 = vmatpush2.xpose.msra.mxu0 0.0
  %7283 = vmatprep.subr.mxu0 0.0
  %7284 = vmatpush2.xpose.msra.mxu0 0.0
  %7285 = vmatprep.subr.mxu0 0.0
  %7286 = vmatpush2.xpose.msra.mxu0 0.0
  %7287 = vmatprep.subr.mxu0 0.0
  %7288 = vmatpush2.xpose.msra.mxu0 0.0
  %7289 = vmatprep.subr.mxu0 0.0
  %7290 = vmatpush2.xpose.msra.mxu0 0.0
  %7291 = vmatprep.subr.mxu0 0.0
  %7292 = vmatpush2.xpose.msra.mxu0 0.0
  %7293 = vmatprep.subr.mxu0 0.0
  %7294 = vmatpush2.xpose.msra.mxu0 0.0
  %7295 = vmatprep.subr.mxu0 0.0
  %7296 = vmatpush2.xpose.msra.mxu0 0.0
  %7297 = vmatprep.subr.mxu0 0.0
  %7298 = vmatpush2.xpose.msra.mxu0 0.0
  %7299 = vmatprep.subr.mxu0 0.0
  %7300 = vmatpush2.xpose.msra.mxu0 0.0
  %7301 = vmatprep.subr.mxu0 0.0
  %7302 = vmatpush2.xpose.msra.mxu0 0.0
  %7303 = vmatprep.subr.mxu0 0.0
  %7304 = vmatpush2.xpose.msra.mxu0 0.0
  %7305 = vmatprep.subr.mxu0 0.0
  %7306 = vmatpush2.xpose.msra.mxu0 0.0
  %7307 = vmatprep.subr.mxu0 0.0
  %7308 = vmatpush2.xpose.msra.mxu0 0.0
  %7309 = vmatprep.subr.mxu0 0.0
  %7310 = vmatpush2.xpose.msra.mxu0 0.0
  %7311 = vmatprep.subr.mxu0 0.0
  %7312 = vmatpush2.xpose.msra.mxu0 0.0
  %7313 = vmatprep.mubr.f32.mxu0 %v7203
  %7314 = vmatmul.mubr.f32.gmra.mxu0 %v7202
  %v7315 = vpop.f32.mrf.mxu0
  %v7316 = vadd.f32 0.0, %v7315
  %v7317 = vpop.f32.mrf.mxu0
  %7318 = vmatprep.mubr.f32.mxu0 %v7206
  %7319 = vmatmul.mubr.f32.gmra.mxu0 %v7205
  %v7320 = vpop.f32.mrf.mxu0
  %v7321 = vadd.f32 0.0, %v7320
  %v7322 = vpop.f32.mrf.mxu0
  %7323 = vmatprep.mubr.f32.mxu0 %v7209
  %7324 = vmatmul.mubr.f32.gmra.mxu0 %v7208
  %v7325 = vpop.f32.mrf.mxu0
  %v7326 = vadd.f32 0.0, %v7325
  %v7327 = vpop.f32.mrf.mxu0
  %7328 = vmatprep.mubr.f32.mxu0 %v7212
  %7329 = vmatmul.mubr.f32.gmra.mxu0 %v7211
  %v7330 = vpop.f32.mrf.mxu0
  %v7331 = vadd.f32 0.0, %v7330
  %v7332 = vpop.f32.mrf.mxu0
  %7333 = vmatprep.mubr.f32.mxu0 %v7215
  %7334 = vmatmul.mubr.f32.gmra.mxu0 %v7214
  %v7335 = vpop.f32.mrf.mxu0
  %v7336 = vadd.f32 0.0, %v7335
  %v7337 = vpop.f32.mrf.mxu0
  %7338 = vmatprep.mubr.f32.mxu0 %v7218
  %7339 = vmatmul.mubr.f32.gmra.mxu0 %v7217
  %v7340 = vpop.f32.mrf.mxu0
  %v7341 = vadd.f32 0.0, %v7340
  %v7342 = vpop.f32.mrf.mxu0
  %7343 = vmatprep.mubr.f32.mxu0 %v7221
  %7344 = vmatmul.mubr.f32.gmra.mxu0 %v7220
  %v7345 = vpop.f32.mrf.mxu0
  %v7346 = vadd.f32 0.0, %v7345
  %v7347 = vpop.f32.mrf.mxu0
  %7348 = vmatprep.mubr.f32.mxu0 %v7224
  %7349 = vmatmul.mubr.f32.gmra.mxu0 %v7223
  %v7350 = vpop.f32.mrf.mxu0
  %v7351 = vadd.f32 0.0, %v7350
  %v7352 = vpop.f32.mrf.mxu0
  %7353 = vmatprep.mubr.f32.mxu0 %v7227
  %7354 = vmatmul.mubr.f32.gmra.mxu0 %v7226
  %v7355 = vpop.f32.mrf.mxu0
  %v7356 = vadd.f32 0.0, %v7355
  %v7357 = vpop.f32.mrf.mxu0
  %7358 = vmatprep.mubr.f32.mxu0 %v7230
  %7359 = vmatmul.mubr.f32.gmra.mxu0 %v7229
  %v7360 = vpop.f32.mrf.mxu0
  %v7361 = vadd.f32 0.0, %v7360
  %v7362 = vpop.f32.mrf.mxu0
  %7363 = vmatprep.mubr.f32.mxu0 %v7233
  %7364 = vmatmul.mubr.f32.gmra.mxu0 %v7232
  %v7365 = vpop.f32.mrf.mxu0
  %v7366 = vadd.f32 0.0, %v7365
  %v7367 = vpop.f32.mrf.mxu0
  %7368 = vmatprep.mubr.f32.mxu0 %v7236
  %7369 = vmatmul.mubr.f32.gmra.mxu0 %v7235
  %v7370 = vpop.f32.mrf.mxu0
  %v7371 = vadd.f32 0.0, %v7370
  %v7372 = vpop.f32.mrf.mxu0
  %7373 = vmatprep.mubr.f32.mxu0 %v7239
  %7374 = vmatmul.mubr.f32.gmra.mxu0 %v7238
  %v7375 = vpop.f32.mrf.mxu0
  %v7376 = vadd.f32 0.0, %v7375
  %v7377 = vpop.f32.mrf.mxu0
  %7378 = vmatprep.mubr.f32.mxu0 %v7242
  %7379 = vmatmul.mubr.f32.gmra.mxu0 %v7241
  %v7380 = vpop.f32.mrf.mxu0
  %v7381 = vadd.f32 0.0, %v7380
  %v7382 = vpop.f32.mrf.mxu0
  %7383 = vmatprep.mubr.f32.mxu0 %v7245
  %7384 = vmatmul.mubr.f32.gmra.mxu0 %v7244
  %v7385 = vpop.f32.mrf.mxu0
  %v7386 = vadd.f32 0.0, %v7385
  %v7387 = vpop.f32.mrf.mxu0
  %7388 = vmatprep.mubr.f32.mxu0 %v7248
  %7389 = vmatmul.mubr.f32.gmra.mxu0 %v7247
  %v7390 = vpop.f32.mrf.mxu0
  %v7391 = vadd.f32 0.0, %v7390
  %v7392 = vpop.f32.mrf.mxu0
  %7393 = vdwg.mxu0
  %7410 = vrot.lane.b32.xlu0 %v7316, 8
  %v7411 = vpop.permute.xlu0 %7410
  %7412 = vrot.lane.b32.xlu0 %v7321, 8
  %v7413 = vpop.permute.xlu0 %7412
  %7414 = vrot.lane.b32.xlu0 %v7326, 8
  %v7415 = vpop.permute.xlu0 %7414
  %7416 = vrot.lane.b32.xlu0 %v7331, 8
  %v7417 = vpop.permute.xlu0 %7416
  %7418 = vrot.lane.b32.xlu0 %v7336, 8
  %v7419 = vpop.permute.xlu0 %7418
  %7420 = vrot.lane.b32.xlu0 %v7341, 8
  %v7421 = vpop.permute.xlu0 %7420
  %7422 = vrot.lane.b32.xlu0 %v7346, 8
  %v7423 = vpop.permute.xlu0 %7422
  %7424 = vrot.lane.b32.xlu0 %v7351, 8
  %v7425 = vpop.permute.xlu0 %7424
  %7426 = vrot.lane.b32.xlu0 %v7356, 8
  %v7427 = vpop.permute.xlu0 %7426
  %7428 = vrot.lane.b32.xlu0 %v7361, 8
  %v7429 = vpop.permute.xlu0 %7428
  %7430 = vrot.lane.b32.xlu0 %v7366, 8
  %v7431 = vpop.permute.xlu0 %7430
  %7432 = vrot.lane.b32.xlu0 %v7371, 8
  %v7433 = vpop.permute.xlu0 %7432
  %7434 = vrot.lane.b32.xlu0 %v7376, 8
  %v7435 = vpop.permute.xlu0 %7434
  %7436 = vrot.lane.b32.xlu0 %v7381, 8
  %v7437 = vpop.permute.xlu0 %7436
  %7438 = vrot.lane.b32.xlu0 %v7386, 8
  %v7439 = vpop.permute.xlu0 %7438
  %7440 = vrot.lane.b32.xlu0 %v7391, 8
  %v7441 = vpop.permute.xlu0 %7440
  %7458 = vst.msk [vmem:[#allocation2] sm:$0xff] %vm1606, %v7411
  %7459 = vst.msk [vmem:[#allocation2 + $0x8] sm:$0xff] %vm1606, %v7413
  %7460 = vst.msk [vmem:[#allocation2 + $0x10] sm:$0xff] %vm1606, %v7415
  %7461 = vst.msk [vmem:[#allocation2 + $0x18] sm:$0xff] %vm1606, %v7417
  %7462 = vst.msk [vmem:[#allocation2 + $0x20] sm:$0xff] %vm1606, %v7419
  %7463 = vst.msk [vmem:[#allocation2 + $0x28] sm:$0xff] %vm1606, %v7421
  %7464 = vst.msk [vmem:[#allocation2 + $0x30] sm:$0xff] %vm1606, %v7423
  %7465 = vst.msk [vmem:[#allocation2 + $0x38] sm:$0xff] %vm1606, %v7425
  %7466 = vst.msk [vmem:[#allocation2 + $0x40] sm:$0xff] %vm1606, %v7427
  %7467 = vst.msk [vmem:[#allocation2 + $0x48] sm:$0xff] %vm1606, %v7429
  %7468 = vst.msk [vmem:[#allocation2 + $0x50] sm:$0xff] %vm1606, %v7431
  %7469 = vst.msk [vmem:[#allocation2 + $0x58] sm:$0xff] %vm1606, %v7433
  %7470 = vst.msk [vmem:[#allocation2 + $0x60] sm:$0xff] %vm1606, %v7435
  %7471 = vst.msk [vmem:[#allocation2 + $0x68] sm:$0xff] %vm1606, %v7437
  %7472 = vst.msk [vmem:[#allocation2 + $0x70] sm:$0xff] %vm1606, %v7439
  %7473 = vst.msk [vmem:[#allocation2 + $0x78] sm:$0xff] %vm1606, %v7441
  %7474 = vrot.lane.b32.xlu0 %v6158, 112
  %v7475 = vpop.permute.xlu0 %7474
  %7476 = vrot.lane.b32.xlu0 %v6159, 112
  %v7477 = vpop.permute.xlu0 %7476
  %7478 = vrot.lane.b32.xlu0 %v6160, 112
  %v7479 = vpop.permute.xlu0 %7478
  %7480 = vrot.lane.b32.xlu0 %v6161, 112
  %v7481 = vpop.permute.xlu0 %7480
  %7482 = vrot.lane.b32.xlu0 %v6162, 112
  %v7483 = vpop.permute.xlu0 %7482
  %7484 = vrot.lane.b32.xlu0 %v6163, 112
  %v7485 = vpop.permute.xlu0 %7484
  %7486 = vrot.lane.b32.xlu0 %v6164, 112
  %v7487 = vpop.permute.xlu0 %7486
  %7488 = vrot.lane.b32.xlu0 %v6165, 112
  %v7489 = vpop.permute.xlu0 %7488
  %7490 = vrot.lane.b32.xlu0 %v6166, 112
  %v7491 = vpop.permute.xlu0 %7490
  %7492 = vrot.lane.b32.xlu0 %v6167, 112
  %v7493 = vpop.permute.xlu0 %7492
  %7494 = vrot.lane.b32.xlu0 %v6168, 112
  %v7495 = vpop.permute.xlu0 %7494
  %7496 = vrot.lane.b32.xlu0 %v6169, 112
  %v7497 = vpop.permute.xlu0 %7496
  %7498 = vrot.lane.b32.xlu0 %v6170, 112
  %v7499 = vpop.permute.xlu0 %7498
  %7500 = vrot.lane.b32.xlu0 %v6171, 112
  %v7501 = vpop.permute.xlu0 %7500
  %7502 = vrot.lane.b32.xlu0 %v6172, 112
  %v7503 = vpop.permute.xlu0 %7502
  %7504 = vrot.lane.b32.xlu0 %v6173, 112
  %v7505 = vpop.permute.xlu0 %7504
  %v7506 = vsel %vm545, %v7475, 0
  %v7508 = vsel %vm545, %v7477, 0
  %v7510 = vsel %vm545, %v7479, 0
  %v7512 = vsel %vm545, %v7481, 0
  %v7514 = vsel %vm545, %v7483, 0
  %v7516 = vsel %vm545, %v7485, 0
  %v7518 = vsel %vm545, %v7487, 0
  %v7520 = vsel %vm545, %v7489, 0
  %v7522 = vsel %vm545, %v7491, 0
  %v7524 = vsel %vm545, %v7493, 0
  %v7526 = vsel %vm545, %v7495, 0
  %v7528 = vsel %vm545, %v7497, 0
  %v7530 = vsel %vm545, %v7499, 0
  %v7532 = vsel %vm545, %v7501, 0
  %v7534 = vsel %vm545, %v7503, 0
  %v7536 = vsel %vm545, %v7505, 0
  %7538 = vmatprep.subr.mxu0 0.0
  %7539 = vmatpush1.msra.mxu0 0.0
  %7540 = vmatprep.subr.mxu0 0.0
  %7541 = vmatpush1.msra.mxu0 0.0
  %7542 = vmatprep.subr.mxu0 0.0
  %7543 = vmatpush1.msra.mxu0 0.0
  %7544 = vmatprep.subr.mxu0 0.0
  %7545 = vmatpush1.msra.mxu0 0.0
  %7546 = vmatprep.subr.mxu0 0.0
  %7547 = vmatpush1.msra.mxu0 0.0
  %7548 = vmatprep.subr.mxu0 0.0
  %7549 = vmatpush1.msra.mxu0 0.0
  %7550 = vmatprep.subr.mxu0 0.0
  %7551 = vmatpush1.msra.mxu0 0.0
  %7552 = vmatprep.subr.mxu0 0.0
  %7553 = vmatpush1.msra.mxu0 0.0
  %7554 = vmatprep.subr.mxu0 0.0
  %7555 = vmatpush1.msra.mxu0 0.0
  %7556 = vmatprep.subr.mxu0 0.0
  %7557 = vmatpush1.msra.mxu0 0.0
  %7558 = vmatprep.subr.mxu0 0.0
  %7559 = vmatpush1.msra.mxu0 0.0
  %7560 = vmatprep.subr.mxu0 0.0
  %7561 = vmatpush1.msra.mxu0 0.0
  %7562 = vmatprep.subr.mxu0 0.0
  %7563 = vmatpush1.msra.mxu0 0.0
  %7564 = vmatprep.subr.mxu0 0.0
  %7565 = vmatpush1.msra.mxu0 0.0
  %7566 = vmatprep.subr.mxu0 0.0
  %7567 = vmatpush1.msra.mxu0 0.0
  %7568 = vmatprep.subr.mxu0 %v5997
  %7569 = vmatpush1.msra.mxu0 %v5995
  %7570 = vmatprep.subr.mxu0 0.0
  %7571 = vmatpush2.msra.mxu0 0.0
  %7572 = vmatprep.subr.mxu0 0.0
  %7573 = vmatpush2.msra.mxu0 0.0
  %7574 = vmatprep.subr.mxu0 0.0
  %7575 = vmatpush2.msra.mxu0 0.0
  %7576 = vmatprep.subr.mxu0 0.0
  %7577 = vmatpush2.msra.mxu0 0.0
  %7578 = vmatprep.subr.mxu0 0.0
  %7579 = vmatpush2.msra.mxu0 0.0
  %7580 = vmatprep.subr.mxu0 0.0
  %7581 = vmatpush2.msra.mxu0 0.0
  %7582 = vmatprep.subr.mxu0 0.0
  %7583 = vmatpush2.msra.mxu0 0.0
  %7584 = vmatprep.subr.mxu0 0.0
  %7585 = vmatpush2.msra.mxu0 0.0
  %7586 = vmatprep.subr.mxu0 0.0
  %7587 = vmatpush2.msra.mxu0 0.0
  %7588 = vmatprep.subr.mxu0 0.0
  %7589 = vmatpush2.msra.mxu0 0.0
  %7590 = vmatprep.subr.mxu0 0.0
  %7591 = vmatpush2.msra.mxu0 0.0
  %7592 = vmatprep.subr.mxu0 0.0
  %7593 = vmatpush2.msra.mxu0 0.0
  %7594 = vmatprep.subr.mxu0 0.0
  %7595 = vmatpush2.msra.mxu0 0.0
  %7596 = vmatprep.subr.mxu0 0.0
  %7597 = vmatpush2.msra.mxu0 0.0
  %7598 = vmatprep.subr.mxu0 0.0
  %7599 = vmatpush2.msra.mxu0 0.0
  %7600 = vmatprep.subr.mxu0 0.0
  %7601 = vmatpush2.msra.mxu0 0.0
  %7602 = vmatprep.mubr.f32.mxu0 0.0
  %7603 = vmatmul.mubr.f32.gmra.mxu0 %v7506
  %v7604 = vpop.f32.mrf.mxu0
  %v7605 = vadd.f32 0.0, %v7604
  %v7606 = vpop.f32.mrf.mxu0
  %v7607 = vadd.f32 0.0, %v7606
  %7608 = vmatprep.mubr.f32.mxu0 0.0
  %7609 = vmatmul.mubr.f32.gmra.mxu0 %v7508
  %v7610 = vpop.f32.mrf.mxu0
  %v7611 = vadd.f32 0.0, %v7610
  %v7612 = vpop.f32.mrf.mxu0
  %v7613 = vadd.f32 0.0, %v7612
  %7614 = vmatprep.mubr.f32.mxu0 0.0
  %7615 = vmatmul.mubr.f32.gmra.mxu0 %v7510
  %v7616 = vpop.f32.mrf.mxu0
  %v7617 = vadd.f32 0.0, %v7616
  %v7618 = vpop.f32.mrf.mxu0
  %v7619 = vadd.f32 0.0, %v7618
  %7620 = vmatprep.mubr.f32.mxu0 0.0
  %7621 = vmatmul.mubr.f32.gmra.mxu0 %v7512
  %v7622 = vpop.f32.mrf.mxu0
  %v7623 = vadd.f32 0.0, %v7622
  %v7624 = vpop.f32.mrf.mxu0
  %v7625 = vadd.f32 0.0, %v7624
  %7626 = vmatprep.mubr.f32.mxu0 0.0
  %7627 = vmatmul.mubr.f32.gmra.mxu0 %v7514
  %v7628 = vpop.f32.mrf.mxu0
  %v7629 = vadd.f32 0.0, %v7628
  %v7630 = vpop.f32.mrf.mxu0
  %v7631 = vadd.f32 0.0, %v7630
  %7632 = vmatprep.mubr.f32.mxu0 0.0
  %7633 = vmatmul.mubr.f32.gmra.mxu0 %v7516
  %v7634 = vpop.f32.mrf.mxu0
  %v7635 = vadd.f32 0.0, %v7634
  %v7636 = vpop.f32.mrf.mxu0
  %v7637 = vadd.f32 0.0, %v7636
  %7638 = vmatprep.mubr.f32.mxu0 0.0
  %7639 = vmatmul.mubr.f32.gmra.mxu0 %v7518
  %v7640 = vpop.f32.mrf.mxu0
  %v7641 = vadd.f32 0.0, %v7640
  %v7642 = vpop.f32.mrf.mxu0
  %v7643 = vadd.f32 0.0, %v7642
  %7644 = vmatprep.mubr.f32.mxu0 0.0
  %7645 = vmatmul.mubr.f32.gmra.mxu0 %v7520
  %v7646 = vpop.f32.mrf.mxu0
  %v7647 = vadd.f32 0.0, %v7646
  %v7648 = vpop.f32.mrf.mxu0
  %v7649 = vadd.f32 0.0, %v7648
  %7650 = vmatprep.mubr.f32.mxu0 0.0
  %7651 = vmatmul.mubr.f32.gmra.mxu0 %v7522
  %v7652 = vpop.f32.mrf.mxu0
  %v7653 = vadd.f32 0.0, %v7652
  %v7654 = vpop.f32.mrf.mxu0
  %v7655 = vadd.f32 0.0, %v7654
  %7656 = vmatprep.mubr.f32.mxu0 0.0
  %7657 = vmatmul.mubr.f32.gmra.mxu0 %v7524
  %v7658 = vpop.f32.mrf.mxu0
  %v7659 = vadd.f32 0.0, %v7658
  %v7660 = vpop.f32.mrf.mxu0
  %v7661 = vadd.f32 0.0, %v7660
  %7662 = vmatprep.mubr.f32.mxu0 0.0
  %7663 = vmatmul.mubr.f32.gmra.mxu0 %v7526
  %v7664 = vpop.f32.mrf.mxu0
  %v7665 = vadd.f32 0.0, %v7664
  %v7666 = vpop.f32.mrf.mxu0
  %v7667 = vadd.f32 0.0, %v7666
  %7668 = vmatprep.mubr.f32.mxu0 0.0
  %7669 = vmatmul.mubr.f32.gmra.mxu0 %v7528
  %v7670 = vpop.f32.mrf.mxu0
  %v7671 = vadd.f32 0.0, %v7670
  %v7672 = vpop.f32.mrf.mxu0
  %v7673 = vadd.f32 0.0, %v7672
  %7674 = vmatprep.mubr.f32.mxu0 0.0
  %7675 = vmatmul.mubr.f32.gmra.mxu0 %v7530
  %v7676 = vpop.f32.mrf.mxu0
  %v7677 = vadd.f32 0.0, %v7676
  %v7678 = vpop.f32.mrf.mxu0
  %v7679 = vadd.f32 0.0, %v7678
  %7680 = vmatprep.mubr.f32.mxu0 0.0
  %7681 = vmatmul.mubr.f32.gmra.mxu0 %v7532
  %v7682 = vpop.f32.mrf.mxu0
  %v7683 = vadd.f32 0.0, %v7682
  %v7684 = vpop.f32.mrf.mxu0
  %v7685 = vadd.f32 0.0, %v7684
  %7686 = vmatprep.mubr.f32.mxu0 0.0
  %7687 = vmatmul.mubr.f32.gmra.mxu0 %v7534
  %v7688 = vpop.f32.mrf.mxu0
  %v7689 = vadd.f32 0.0, %v7688
  %v7690 = vpop.f32.mrf.mxu0
  %v7691 = vadd.f32 0.0, %v7690
  %7692 = vmatprep.mubr.f32.mxu0 0.0
  %7693 = vmatmul.mubr.f32.gmra.mxu0 %v7536
  %v7694 = vpop.f32.mrf.mxu0
  %v7695 = vadd.f32 0.0, %v7694
  %v7696 = vpop.f32.mrf.mxu0
  %v7697 = vadd.f32 0.0, %v7696
  %7698 = vdwg.mxu0
  %v7699 = vmax.f32 %v7605, %v7607
  %7700 = vmax.xlane.f32.xlu0 %v7699
  %v7701 = vpop.xlane.xlu0 %7700
  %v7702 = vmax.f32 %v7611, %v7613
  %7703 = vmax.xlane.f32.xlu0 %v7702
  %v7704 = vpop.xlane.xlu0 %7703
  %v7705 = vmax.f32 %v7617, %v7619
  %7706 = vmax.xlane.f32.xlu0 %v7705
  %v7707 = vpop.xlane.xlu0 %7706
  %v7708 = vmax.f32 %v7623, %v7625
  %7709 = vmax.xlane.f32.xlu0 %v7708
  %v7710 = vpop.xlane.xlu0 %7709
  %v7711 = vmax.f32 %v7629, %v7631
  %7712 = vmax.xlane.f32.xlu0 %v7711
  %v7713 = vpop.xlane.xlu0 %7712
  %v7714 = vmax.f32 %v7635, %v7637
  %7715 = vmax.xlane.f32.xlu0 %v7714
  %v7716 = vpop.xlane.xlu0 %7715
  %v7717 = vmax.f32 %v7641, %v7643
  %7718 = vmax.xlane.f32.xlu0 %v7717
  %v7719 = vpop.xlane.xlu0 %7718
  %v7720 = vmax.f32 %v7647, %v7649
  %7721 = vmax.xlane.f32.xlu0 %v7720
  %v7722 = vpop.xlane.xlu0 %7721
  %v7723 = vmax.f32 %v7653, %v7655
  %7724 = vmax.xlane.f32.xlu0 %v7723
  %v7725 = vpop.xlane.xlu0 %7724
  %v7726 = vmax.f32 %v7659, %v7661
  %7727 = vmax.xlane.f32.xlu0 %v7726
  %v7728 = vpop.xlane.xlu0 %7727
  %v7729 = vmax.f32 %v7665, %v7667
  %7730 = vmax.xlane.f32.xlu0 %v7729
  %v7731 = vpop.xlane.xlu0 %7730
  %v7732 = vmax.f32 %v7671, %v7673
  %7733 = vmax.xlane.f32.xlu0 %v7732
  %v7734 = vpop.xlane.xlu0 %7733
  %v7735 = vmax.f32 %v7677, %v7679
  %7736 = vmax.xlane.f32.xlu0 %v7735
  %v7737 = vpop.xlane.xlu0 %7736
  %v7738 = vmax.f32 %v7683, %v7685
  %7739 = vmax.xlane.f32.xlu0 %v7738
  %v7740 = vpop.xlane.xlu0 %7739
  %v7741 = vmax.f32 %v7689, %v7691
  %7742 = vmax.xlane.f32.xlu0 %v7741
  %v7743 = vpop.xlane.xlu0 %7742
  %v7744 = vmax.f32 %v7695, %v7697
  %7745 = vmax.xlane.f32.xlu0 %v7744
  %v7746 = vpop.xlane.xlu0 %7745
  %v7747 = vsub.f32 %v7605, %v7701
  %v7748 = vsub.f32 %v7607, %v7701
  %v7749 = vsub.f32 %v7611, %v7704
  %v7750 = vsub.f32 %v7613, %v7704
  %v7751 = vsub.f32 %v7617, %v7707
  %v7752 = vsub.f32 %v7619, %v7707
  %v7753 = vsub.f32 %v7623, %v7710
  %v7754 = vsub.f32 %v7625, %v7710
  %v7755 = vsub.f32 %v7629, %v7713
  %v7756 = vsub.f32 %v7631, %v7713
  %v7757 = vsub.f32 %v7635, %v7716
  %v7758 = vsub.f32 %v7637, %v7716
  %v7759 = vsub.f32 %v7641, %v7719
  %v7760 = vsub.f32 %v7643, %v7719
  %v7761 = vsub.f32 %v7647, %v7722
  %v7762 = vsub.f32 %v7649, %v7722
  %v7763 = vsub.f32 %v7653, %v7725
  %v7764 = vsub.f32 %v7655, %v7725
  %v7765 = vsub.f32 %v7659, %v7728
  %v7766 = vsub.f32 %v7661, %v7728
  %v7767 = vsub.f32 %v7665, %v7731
  %v7768 = vsub.f32 %v7667, %v7731
  %v7769 = vsub.f32 %v7671, %v7734
  %v7770 = vsub.f32 %v7673, %v7734
  %v7771 = vsub.f32 %v7677, %v7737
  %v7772 = vsub.f32 %v7679, %v7737
  %v7773 = vsub.f32 %v7683, %v7740
  %v7774 = vsub.f32 %v7685, %v7740
  %v7775 = vsub.f32 %v7689, %v7743
  %v7776 = vsub.f32 %v7691, %v7743
  %v7777 = vsub.f32 %v7695, %v7746
  %v7778 = vsub.f32 %v7697, %v7746
  %v7779 = vmul.f32 %v7747, 1.442695
  %v7780 = vpow.pop %v7779
  %v7781 = vmul.f32 %v7748, 1.442695
  %v7782 = vpow.pop %v7781
  %v7783 = vmul.f32 %v7749, 1.442695
  %v7784 = vpow.pop %v7783
  %v7785 = vmul.f32 %v7750, 1.442695
  %v7786 = vpow.pop %v7785
  %v7787 = vmul.f32 %v7751, 1.442695
  %v7788 = vpow.pop %v7787
  %v7789 = vmul.f32 %v7752, 1.442695
  %v7790 = vpow.pop %v7789
  %v7791 = vmul.f32 %v7753, 1.442695
  %v7792 = vpow.pop %v7791
  %v7793 = vmul.f32 %v7754, 1.442695
  %v7794 = vpow.pop %v7793
  %v7795 = vmul.f32 %v7755, 1.442695
  %v7796 = vpow.pop %v7795
  %v7797 = vmul.f32 %v7756, 1.442695
  %v7798 = vpow.pop %v7797
  %v7799 = vmul.f32 %v7757, 1.442695
  %v7800 = vpow.pop %v7799
  %v7801 = vmul.f32 %v7758, 1.442695
  %v7802 = vpow.pop %v7801
  %v7803 = vmul.f32 %v7759, 1.442695
  %v7804 = vpow.pop %v7803
  %v7805 = vmul.f32 %v7760, 1.442695
  %v7806 = vpow.pop %v7805
  %v7807 = vmul.f32 %v7761, 1.442695
  %v7808 = vpow.pop %v7807
  %v7809 = vmul.f32 %v7762, 1.442695
  %v7810 = vpow.pop %v7809
  %v7811 = vmul.f32 %v7763, 1.442695
  %v7812 = vpow.pop %v7811
  %v7813 = vmul.f32 %v7764, 1.442695
  %v7814 = vpow.pop %v7813
  %v7815 = vmul.f32 %v7765, 1.442695
  %v7816 = vpow.pop %v7815
  %v7817 = vmul.f32 %v7766, 1.442695
  %v7818 = vpow.pop %v7817
  %v7819 = vmul.f32 %v7767, 1.442695
  %v7820 = vpow.pop %v7819
  %v7821 = vmul.f32 %v7768, 1.442695
  %v7822 = vpow.pop %v7821
  %v7823 = vmul.f32 %v7769, 1.442695
  %v7824 = vpow.pop %v7823
  %v7825 = vmul.f32 %v7770, 1.442695
  %v7826 = vpow.pop %v7825
  %v7827 = vmul.f32 %v7771, 1.442695
  %v7828 = vpow.pop %v7827
  %v7829 = vmul.f32 %v7772, 1.442695
  %v7830 = vpow.pop %v7829
  %v7831 = vmul.f32 %v7773, 1.442695
  %v7832 = vpow.pop %v7831
  %v7833 = vmul.f32 %v7774, 1.442695
  %v7834 = vpow.pop %v7833
  %v7835 = vmul.f32 %v7775, 1.442695
  %v7836 = vpow.pop %v7835
  %v7837 = vmul.f32 %v7776, 1.442695
  %v7838 = vpow.pop %v7837
  %v7839 = vmul.f32 %v7777, 1.442695
  %v7840 = vpow.pop %v7839
  %v7841 = vmul.f32 %v7778, 1.442695
  %v7842 = vpow.pop %v7841
  %v7843 = vadd.f32 %v7780, %v7782
  %7844 = vadd.xlane.f32.xlu0 %v7843
  %v7845 = vpop.xlane.xlu0 %7844
  %v7846 = vadd.f32 %v7784, %v7786
  %7847 = vadd.xlane.f32.xlu0 %v7846
  %v7848 = vpop.xlane.xlu0 %7847
  %v7849 = vadd.f32 %v7788, %v7790
  %7850 = vadd.xlane.f32.xlu0 %v7849
  %v7851 = vpop.xlane.xlu0 %7850
  %v7852 = vadd.f32 %v7792, %v7794
  %7853 = vadd.xlane.f32.xlu0 %v7852
  %v7854 = vpop.xlane.xlu0 %7853
  %v7855 = vadd.f32 %v7796, %v7798
  %7856 = vadd.xlane.f32.xlu0 %v7855
  %v7857 = vpop.xlane.xlu0 %7856
  %v7858 = vadd.f32 %v7800, %v7802
  %7859 = vadd.xlane.f32.xlu0 %v7858
  %v7860 = vpop.xlane.xlu0 %7859
  %v7861 = vadd.f32 %v7804, %v7806
  %7862 = vadd.xlane.f32.xlu0 %v7861
  %v7863 = vpop.xlane.xlu0 %7862
  %v7864 = vadd.f32 %v7808, %v7810
  %7865 = vadd.xlane.f32.xlu0 %v7864
  %v7866 = vpop.xlane.xlu0 %7865
  %v7867 = vadd.f32 %v7812, %v7814
  %7868 = vadd.xlane.f32.xlu0 %v7867
  %v7869 = vpop.xlane.xlu0 %7868
  %v7870 = vadd.f32 %v7816, %v7818
  %7871 = vadd.xlane.f32.xlu0 %v7870
  %v7872 = vpop.xlane.xlu0 %7871
  %v7873 = vadd.f32 %v7820, %v7822
  %7874 = vadd.xlane.f32.xlu0 %v7873
  %v7875 = vpop.xlane.xlu0 %7874
  %v7876 = vadd.f32 %v7824, %v7826
  %7877 = vadd.xlane.f32.xlu0 %v7876
  %v7878 = vpop.xlane.xlu0 %7877
  %v7879 = vadd.f32 %v7828, %v7830
  %7880 = vadd.xlane.f32.xlu0 %v7879
  %v7881 = vpop.xlane.xlu0 %7880
  %v7882 = vadd.f32 %v7832, %v7834
  %7883 = vadd.xlane.f32.xlu0 %v7882
  %v7884 = vpop.xlane.xlu0 %7883
  %v7885 = vadd.f32 %v7836, %v7838
  %7886 = vadd.xlane.f32.xlu0 %v7885
  %v7887 = vpop.xlane.xlu0 %7886
  %v7888 = vadd.f32 %v7840, %v7842
  %7889 = vadd.xlane.f32.xlu0 %v7888
  %v7890 = vpop.xlane.xlu0 %7889
  %v7891 = vrcp.pop %v7845
  %v7892 = vmul.f32 %v7780, %v7891
  %v7893 = vmul.f32 %v7782, %v7891
  %v7894 = vrcp.pop %v7848
  %v7895 = vmul.f32 %v7784, %v7894
  %v7896 = vmul.f32 %v7786, %v7894
  %v7897 = vrcp.pop %v7851
  %v7898 = vmul.f32 %v7788, %v7897
  %v7899 = vmul.f32 %v7790, %v7897
  %v7900 = vrcp.pop %v7854
  %v7901 = vmul.f32 %v7792, %v7900
  %v7902 = vmul.f32 %v7794, %v7900
  %v7903 = vrcp.pop %v7857
  %v7904 = vmul.f32 %v7796, %v7903
  %v7905 = vmul.f32 %v7798, %v7903
  %v7906 = vrcp.pop %v7860
  %v7907 = vmul.f32 %v7800, %v7906
  %v7908 = vmul.f32 %v7802, %v7906
  %v7909 = vrcp.pop %v7863
  %v7910 = vmul.f32 %v7804, %v7909
  %v7911 = vmul.f32 %v7806, %v7909
  %v7912 = vrcp.pop %v7866
  %v7913 = vmul.f32 %v7808, %v7912
  %v7914 = vmul.f32 %v7810, %v7912
  %v7915 = vrcp.pop %v7869
  %v7916 = vmul.f32 %v7812, %v7915
  %v7917 = vmul.f32 %v7814, %v7915
  %v7918 = vrcp.pop %v7872
  %v7919 = vmul.f32 %v7816, %v7918
  %v7920 = vmul.f32 %v7818, %v7918
  %v7921 = vrcp.pop %v7875
  %v7922 = vmul.f32 %v7820, %v7921
  %v7923 = vmul.f32 %v7822, %v7921
  %v7924 = vrcp.pop %v7878
  %v7925 = vmul.f32 %v7824, %v7924
  %v7926 = vmul.f32 %v7826, %v7924
  %v7927 = vrcp.pop %v7881
  %v7928 = vmul.f32 %v7828, %v7927
  %v7929 = vmul.f32 %v7830, %v7927
  %v7930 = vrcp.pop %v7884
  %v7931 = vmul.f32 %v7832, %v7930
  %v7932 = vmul.f32 %v7834, %v7930
  %v7933 = vrcp.pop %v7887
  %v7934 = vmul.f32 %v7836, %v7933
  %v7935 = vmul.f32 %v7838, %v7933
  %v7936 = vrcp.pop %v7890
  %v7937 = vmul.f32 %v7840, %v7936
  %v7938 = vmul.f32 %v7842, %v7936
  %7939 = vmatprep.subr.mxu0 0.0
  %7940 = vmatpush1.xpose.msra.mxu0 0.0
  %7941 = vmatprep.subr.mxu0 0.0
  %7942 = vmatpush1.xpose.msra.mxu0 0.0
  %7943 = vmatprep.subr.mxu0 0.0
  %7944 = vmatpush1.xpose.msra.mxu0 0.0
  %7945 = vmatprep.subr.mxu0 0.0
  %7946 = vmatpush1.xpose.msra.mxu0 0.0
  %7947 = vmatprep.subr.mxu0 0.0
  %7948 = vmatpush1.xpose.msra.mxu0 0.0
  %7949 = vmatprep.subr.mxu0 0.0
  %7950 = vmatpush1.xpose.msra.mxu0 0.0
  %7951 = vmatprep.subr.mxu0 0.0
  %7952 = vmatpush1.xpose.msra.mxu0 0.0
  %7953 = vmatprep.subr.mxu0 0.0
  %7954 = vmatpush1.xpose.msra.mxu0 0.0
  %7955 = vmatprep.subr.mxu0 0.0
  %7956 = vmatpush1.xpose.msra.mxu0 0.0
  %7957 = vmatprep.subr.mxu0 0.0
  %7958 = vmatpush1.xpose.msra.mxu0 0.0
  %7959 = vmatprep.subr.mxu0 0.0
  %7960 = vmatpush1.xpose.msra.mxu0 0.0
  %7961 = vmatprep.subr.mxu0 0.0
  %7962 = vmatpush1.xpose.msra.mxu0 0.0
  %7963 = vmatprep.subr.mxu0 0.0
  %7964 = vmatpush1.xpose.msra.mxu0 0.0
  %7965 = vmatprep.subr.mxu0 0.0
  %7966 = vmatpush1.xpose.msra.mxu0 0.0
  %7967 = vmatprep.subr.mxu0 0.0
  %7968 = vmatpush1.xpose.msra.mxu0 0.0
  %7969 = vmatprep.subr.mxu0 %v6021
  %7970 = vmatpush1.xpose.msra.mxu0 %v6019
  %7971 = vmatprep.subr.mxu0 0.0
  %7972 = vmatpush2.xpose.msra.mxu0 0.0
  %7973 = vmatprep.subr.mxu0 0.0
  %7974 = vmatpush2.xpose.msra.mxu0 0.0
  %7975 = vmatprep.subr.mxu0 0.0
  %7976 = vmatpush2.xpose.msra.mxu0 0.0
  %7977 = vmatprep.subr.mxu0 0.0
  %7978 = vmatpush2.xpose.msra.mxu0 0.0
  %7979 = vmatprep.subr.mxu0 0.0
  %7980 = vmatpush2.xpose.msra.mxu0 0.0
  %7981 = vmatprep.subr.mxu0 0.0
  %7982 = vmatpush2.xpose.msra.mxu0 0.0
  %7983 = vmatprep.subr.mxu0 0.0
  %7984 = vmatpush2.xpose.msra.mxu0 0.0
  %7985 = vmatprep.subr.mxu0 0.0
  %7986 = vmatpush2.xpose.msra.mxu0 0.0
  %7987 = vmatprep.subr.mxu0 0.0
  %7988 = vmatpush2.xpose.msra.mxu0 0.0
  %7989 = vmatprep.subr.mxu0 0.0
  %7990 = vmatpush2.xpose.msra.mxu0 0.0
  %7991 = vmatprep.subr.mxu0 0.0
  %7992 = vmatpush2.xpose.msra.mxu0 0.0
  %7993 = vmatprep.subr.mxu0 0.0
  %7994 = vmatpush2.xpose.msra.mxu0 0.0
  %7995 = vmatprep.subr.mxu0 0.0
  %7996 = vmatpush2.xpose.msra.mxu0 0.0
  %7997 = vmatprep.subr.mxu0 0.0
  %7998 = vmatpush2.xpose.msra.mxu0 0.0
  %7999 = vmatprep.subr.mxu0 0.0
  %8000 = vmatpush2.xpose.msra.mxu0 0.0
  %8001 = vmatprep.subr.mxu0 0.0
  %8002 = vmatpush2.xpose.msra.mxu0 0.0
  %8003 = vmatprep.mubr.f32.mxu0 %v7893
  %8004 = vmatmul.mubr.f32.gmra.mxu0 %v7892
  %v8005 = vpop.f32.mrf.mxu0
  %v8006 = vadd.f32 0.0, %v8005
  %v8007 = vpop.f32.mrf.mxu0
  %8008 = vmatprep.mubr.f32.mxu0 %v7896
  %8009 = vmatmul.mubr.f32.gmra.mxu0 %v7895
  %v8010 = vpop.f32.mrf.mxu0
  %v8011 = vadd.f32 0.0, %v8010
  %v8012 = vpop.f32.mrf.mxu0
  %8013 = vmatprep.mubr.f32.mxu0 %v7899
  %8014 = vmatmul.mubr.f32.gmra.mxu0 %v7898
  %v8015 = vpop.f32.mrf.mxu0
  %v8016 = vadd.f32 0.0, %v8015
  %v8017 = vpop.f32.mrf.mxu0
  %8018 = vmatprep.mubr.f32.mxu0 %v7902
  %8019 = vmatmul.mubr.f32.gmra.mxu0 %v7901
  %v8020 = vpop.f32.mrf.mxu0
  %v8021 = vadd.f32 0.0, %v8020
  %v8022 = vpop.f32.mrf.mxu0
  %8023 = vmatprep.mubr.f32.mxu0 %v7905
  %8024 = vmatmul.mubr.f32.gmra.mxu0 %v7904
  %v8025 = vpop.f32.mrf.mxu0
  %v8026 = vadd.f32 0.0, %v8025
  %v8027 = vpop.f32.mrf.mxu0
  %8028 = vmatprep.mubr.f32.mxu0 %v7908
  %8029 = vmatmul.mubr.f32.gmra.mxu0 %v7907
  %v8030 = vpop.f32.mrf.mxu0
  %v8031 = vadd.f32 0.0, %v8030
  %v8032 = vpop.f32.mrf.mxu0
  %8033 = vmatprep.mubr.f32.mxu0 %v7911
  %8034 = vmatmul.mubr.f32.gmra.mxu0 %v7910
  %v8035 = vpop.f32.mrf.mxu0
  %v8036 = vadd.f32 0.0, %v8035
  %v8037 = vpop.f32.mrf.mxu0
  %8038 = vmatprep.mubr.f32.mxu0 %v7914
  %8039 = vmatmul.mubr.f32.gmra.mxu0 %v7913
  %v8040 = vpop.f32.mrf.mxu0
  %v8041 = vadd.f32 0.0, %v8040
  %v8042 = vpop.f32.mrf.mxu0
  %8043 = vmatprep.mubr.f32.mxu0 %v7917
  %8044 = vmatmul.mubr.f32.gmra.mxu0 %v7916
  %v8045 = vpop.f32.mrf.mxu0
  %v8046 = vadd.f32 0.0, %v8045
  %v8047 = vpop.f32.mrf.mxu0
  %8048 = vmatprep.mubr.f32.mxu0 %v7920
  %8049 = vmatmul.mubr.f32.gmra.mxu0 %v7919
  %v8050 = vpop.f32.mrf.mxu0
  %v8051 = vadd.f32 0.0, %v8050
  %v8052 = vpop.f32.mrf.mxu0
  %8053 = vmatprep.mubr.f32.mxu0 %v7923
  %8054 = vmatmul.mubr.f32.gmra.mxu0 %v7922
  %v8055 = vpop.f32.mrf.mxu0
  %v8056 = vadd.f32 0.0, %v8055
  %v8057 = vpop.f32.mrf.mxu0
  %8058 = vmatprep.mubr.f32.mxu0 %v7926
  %8059 = vmatmul.mubr.f32.gmra.mxu0 %v7925
  %v8060 = vpop.f32.mrf.mxu0
  %v8061 = vadd.f32 0.0, %v8060
  %v8062 = vpop.f32.mrf.mxu0
  %8063 = vmatprep.mubr.f32.mxu0 %v7929
  %8064 = vmatmul.mubr.f32.gmra.mxu0 %v7928
  %v8065 = vpop.f32.mrf.mxu0
  %v8066 = vadd.f32 0.0, %v8065
  %v8067 = vpop.f32.mrf.mxu0
  %8068 = vmatprep.mubr.f32.mxu0 %v7932
  %8069 = vmatmul.mubr.f32.gmra.mxu0 %v7931
  %v8070 = vpop.f32.mrf.mxu0
  %v8071 = vadd.f32 0.0, %v8070
  %v8072 = vpop.f32.mrf.mxu0
  %8073 = vmatprep.mubr.f32.mxu0 %v7935
  %8074 = vmatmul.mubr.f32.gmra.mxu0 %v7934
  %v8075 = vpop.f32.mrf.mxu0
  %v8076 = vadd.f32 0.0, %v8075
  %v8077 = vpop.f32.mrf.mxu0
  %8078 = vmatprep.mubr.f32.mxu0 %v7938
  %8079 = vmatmul.mubr.f32.gmra.mxu0 %v7937
  %v8080 = vpop.f32.mrf.mxu0
  %v8081 = vadd.f32 0.0, %v8080
  %v8082 = vpop.f32.mrf.mxu0
  %8083 = vdwg.mxu0
  %8100 = vrot.lane.b32.xlu0 %v8006, 16
  %v8101 = vpop.permute.xlu0 %8100
  %8102 = vrot.lane.b32.xlu0 %v8011, 16
  %v8103 = vpop.permute.xlu0 %8102
  %8104 = vrot.lane.b32.xlu0 %v8016, 16
  %v8105 = vpop.permute.xlu0 %8104
  %8106 = vrot.lane.b32.xlu0 %v8021, 16
  %v8107 = vpop.permute.xlu0 %8106
  %8108 = vrot.lane.b32.xlu0 %v8026, 16
  %v8109 = vpop.permute.xlu0 %8108
  %8110 = vrot.lane.b32.xlu0 %v8031, 16
  %v8111 = vpop.permute.xlu0 %8110
  %8112 = vrot.lane.b32.xlu0 %v8036, 16
  %v8113 = vpop.permute.xlu0 %8112
  %8114 = vrot.lane.b32.xlu0 %v8041, 16
  %v8115 = vpop.permute.xlu0 %8114
  %8116 = vrot.lane.b32.xlu0 %v8046, 16
  %v8117 = vpop.permute.xlu0 %8116
  %8118 = vrot.lane.b32.xlu0 %v8051, 16
  %v8119 = vpop.permute.xlu0 %8118
  %8120 = vrot.lane.b32.xlu0 %v8056, 16
  %v8121 = vpop.permute.xlu0 %8120
  %8122 = vrot.lane.b32.xlu0 %v8061, 16
  %v8123 = vpop.permute.xlu0 %8122
  %8124 = vrot.lane.b32.xlu0 %v8066, 16
  %v8125 = vpop.permute.xlu0 %8124
  %8126 = vrot.lane.b32.xlu0 %v8071, 16
  %v8127 = vpop.permute.xlu0 %8126
  %8128 = vrot.lane.b32.xlu0 %v8076, 16
  %v8129 = vpop.permute.xlu0 %8128
  %8130 = vrot.lane.b32.xlu0 %v8081, 16
  %v8131 = vpop.permute.xlu0 %8130
  %8148 = vst.msk [vmem:[#allocation2] sm:$0xff] %vm2185, %v8101
  %8149 = vst.msk [vmem:[#allocation2 + $0x8] sm:$0xff] %vm2185, %v8103
  %8150 = vst.msk [vmem:[#allocation2 + $0x10] sm:$0xff] %vm2185, %v8105
  %8151 = vst.msk [vmem:[#allocation2 + $0x18] sm:$0xff] %vm2185, %v8107
  %8152 = vst.msk [vmem:[#allocation2 + $0x20] sm:$0xff] %vm2185, %v8109
  %8153 = vst.msk [vmem:[#allocation2 + $0x28] sm:$0xff] %vm2185, %v8111
  %8154 = vst.msk [vmem:[#allocation2 + $0x30] sm:$0xff] %vm2185, %v8113
  %8155 = vst.msk [vmem:[#allocation2 + $0x38] sm:$0xff] %vm2185, %v8115
  %8156 = vst.msk [vmem:[#allocation2 + $0x40] sm:$0xff] %vm2185, %v8117
  %8157 = vst.msk [vmem:[#allocation2 + $0x48] sm:$0xff] %vm2185, %v8119
  %8158 = vst.msk [vmem:[#allocation2 + $0x50] sm:$0xff] %vm2185, %v8121
  %8159 = vst.msk [vmem:[#allocation2 + $0x58] sm:$0xff] %vm2185, %v8123
  %8160 = vst.msk [vmem:[#allocation2 + $0x60] sm:$0xff] %vm2185, %v8125
  %8161 = vst.msk [vmem:[#allocation2 + $0x68] sm:$0xff] %vm2185, %v8127
  %8162 = vst.msk [vmem:[#allocation2 + $0x70] sm:$0xff] %vm2185, %v8129
  %8163 = vst.msk [vmem:[#allocation2 + $0x78] sm:$0xff] %vm2185, %v8131
  %8164 = vrot.lane.b32.xlu0 %v6158, 104
  %v8165 = vpop.permute.xlu0 %8164
  %8166 = vrot.lane.b32.xlu0 %v6159, 104
  %v8167 = vpop.permute.xlu0 %8166
  %8168 = vrot.lane.b32.xlu0 %v6160, 104
  %v8169 = vpop.permute.xlu0 %8168
  %8170 = vrot.lane.b32.xlu0 %v6161, 104
  %v8171 = vpop.permute.xlu0 %8170
  %8172 = vrot.lane.b32.xlu0 %v6162, 104
  %v8173 = vpop.permute.xlu0 %8172
  %8174 = vrot.lane.b32.xlu0 %v6163, 104
  %v8175 = vpop.permute.xlu0 %8174
  %8176 = vrot.lane.b32.xlu0 %v6164, 104
  %v8177 = vpop.permute.xlu0 %8176
  %8178 = vrot.lane.b32.xlu0 %v6165, 104
  %v8179 = vpop.permute.xlu0 %8178
  %8180 = vrot.lane.b32.xlu0 %v6166, 104
  %v8181 = vpop.permute.xlu0 %8180
  %8182 = vrot.lane.b32.xlu0 %v6167, 104
  %v8183 = vpop.permute.xlu0 %8182
  %8184 = vrot.lane.b32.xlu0 %v6168, 104
  %v8185 = vpop.permute.xlu0 %8184
  %8186 = vrot.lane.b32.xlu0 %v6169, 104
  %v8187 = vpop.permute.xlu0 %8186
  %8188 = vrot.lane.b32.xlu0 %v6170, 104
  %v8189 = vpop.permute.xlu0 %8188
  %8190 = vrot.lane.b32.xlu0 %v6171, 104
  %v8191 = vpop.permute.xlu0 %8190
  %8192 = vrot.lane.b32.xlu0 %v6172, 104
  %v8193 = vpop.permute.xlu0 %8192
  %8194 = vrot.lane.b32.xlu0 %v6173, 104
  %v8195 = vpop.permute.xlu0 %8194
  %v8196 = vsel %vm545, %v8165, 0
  %v8198 = vsel %vm545, %v8167, 0
  %v8200 = vsel %vm545, %v8169, 0
  %v8202 = vsel %vm545, %v8171, 0
  %v8204 = vsel %vm545, %v8173, 0
  %v8206 = vsel %vm545, %v8175, 0
  %v8208 = vsel %vm545, %v8177, 0
  %v8210 = vsel %vm545, %v8179, 0
  %v8212 = vsel %vm545, %v8181, 0
  %v8214 = vsel %vm545, %v8183, 0
  %v8216 = vsel %vm545, %v8185, 0
  %v8218 = vsel %vm545, %v8187, 0
  %v8220 = vsel %vm545, %v8189, 0
  %v8222 = vsel %vm545, %v8191, 0
  %v8224 = vsel %vm545, %v8193, 0
  %v8226 = vsel %vm545, %v8195, 0
  %8228 = vmatprep.subr.mxu0 0.0
  %8229 = vmatpush1.msra.mxu0 0.0
  %8230 = vmatprep.subr.mxu0 0.0
  %8231 = vmatpush1.msra.mxu0 0.0
  %8232 = vmatprep.subr.mxu0 0.0
  %8233 = vmatpush1.msra.mxu0 0.0
  %8234 = vmatprep.subr.mxu0 0.0
  %8235 = vmatpush1.msra.mxu0 0.0
  %8236 = vmatprep.subr.mxu0 0.0
  %8237 = vmatpush1.msra.mxu0 0.0
  %8238 = vmatprep.subr.mxu0 0.0
  %8239 = vmatpush1.msra.mxu0 0.0
  %8240 = vmatprep.subr.mxu0 0.0
  %8241 = vmatpush1.msra.mxu0 0.0
  %8242 = vmatprep.subr.mxu0 0.0
  %8243 = vmatpush1.msra.mxu0 0.0
  %8244 = vmatprep.subr.mxu0 0.0
  %8245 = vmatpush1.msra.mxu0 0.0
  %8246 = vmatprep.subr.mxu0 0.0
  %8247 = vmatpush1.msra.mxu0 0.0
  %8248 = vmatprep.subr.mxu0 0.0
  %8249 = vmatpush1.msra.mxu0 0.0
  %8250 = vmatprep.subr.mxu0 0.0
  %8251 = vmatpush1.msra.mxu0 0.0
  %8252 = vmatprep.subr.mxu0 0.0
  %8253 = vmatpush1.msra.mxu0 0.0
  %8254 = vmatprep.subr.mxu0 0.0
  %8255 = vmatpush1.msra.mxu0 0.0
  %8256 = vmatprep.subr.mxu0 0.0
  %8257 = vmatpush1.msra.mxu0 0.0
  %8258 = vmatprep.subr.mxu0 %v6003
  %8259 = vmatpush1.msra.mxu0 %v6001
  %8260 = vmatprep.subr.mxu0 0.0
  %8261 = vmatpush2.msra.mxu0 0.0
  %8262 = vmatprep.subr.mxu0 0.0
  %8263 = vmatpush2.msra.mxu0 0.0
  %8264 = vmatprep.subr.mxu0 0.0
  %8265 = vmatpush2.msra.mxu0 0.0
  %8266 = vmatprep.subr.mxu0 0.0
  %8267 = vmatpush2.msra.mxu0 0.0
  %8268 = vmatprep.subr.mxu0 0.0
  %8269 = vmatpush2.msra.mxu0 0.0
  %8270 = vmatprep.subr.mxu0 0.0
  %8271 = vmatpush2.msra.mxu0 0.0
  %8272 = vmatprep.subr.mxu0 0.0
  %8273 = vmatpush2.msra.mxu0 0.0
  %8274 = vmatprep.subr.mxu0 0.0
  %8275 = vmatpush2.msra.mxu0 0.0
  %8276 = vmatprep.subr.mxu0 0.0
  %8277 = vmatpush2.msra.mxu0 0.0
  %8278 = vmatprep.subr.mxu0 0.0
  %8279 = vmatpush2.msra.mxu0 0.0
  %8280 = vmatprep.subr.mxu0 0.0
  %8281 = vmatpush2.msra.mxu0 0.0
  %8282 = vmatprep.subr.mxu0 0.0
  %8283 = vmatpush2.msra.mxu0 0.0
  %8284 = vmatprep.subr.mxu0 0.0
  %8285 = vmatpush2.msra.mxu0 0.0
  %8286 = vmatprep.subr.mxu0 0.0
  %8287 = vmatpush2.msra.mxu0 0.0
  %8288 = vmatprep.subr.mxu0 0.0
  %8289 = vmatpush2.msra.mxu0 0.0
  %8290 = vmatprep.subr.mxu0 0.0
  %8291 = vmatpush2.msra.mxu0 0.0
  %8292 = vmatprep.mubr.f32.mxu0 0.0
  %8293 = vmatmul.mubr.f32.gmra.mxu0 %v8196
  %v8294 = vpop.f32.mrf.mxu0
  %v8295 = vadd.f32 0.0, %v8294
  %v8296 = vpop.f32.mrf.mxu0
  %v8297 = vadd.f32 0.0, %v8296
  %8298 = vmatprep.mubr.f32.mxu0 0.0
  %8299 = vmatmul.mubr.f32.gmra.mxu0 %v8198
  %v8300 = vpop.f32.mrf.mxu0
  %v8301 = vadd.f32 0.0, %v8300
  %v8302 = vpop.f32.mrf.mxu0
  %v8303 = vadd.f32 0.0, %v8302
  %8304 = vmatprep.mubr.f32.mxu0 0.0
  %8305 = vmatmul.mubr.f32.gmra.mxu0 %v8200
  %v8306 = vpop.f32.mrf.mxu0
  %v8307 = vadd.f32 0.0, %v8306
  %v8308 = vpop.f32.mrf.mxu0
  %v8309 = vadd.f32 0.0, %v8308
  %8310 = vmatprep.mubr.f32.mxu0 0.0
  %8311 = vmatmul.mubr.f32.gmra.mxu0 %v8202
  %v8312 = vpop.f32.mrf.mxu0
  %v8313 = vadd.f32 0.0, %v8312
  %v8314 = vpop.f32.mrf.mxu0
  %v8315 = vadd.f32 0.0, %v8314
  %8316 = vmatprep.mubr.f32.mxu0 0.0
  %8317 = vmatmul.mubr.f32.gmra.mxu0 %v8204
  %v8318 = vpop.f32.mrf.mxu0
  %v8319 = vadd.f32 0.0, %v8318
  %v8320 = vpop.f32.mrf.mxu0
  %v8321 = vadd.f32 0.0, %v8320
  %8322 = vmatprep.mubr.f32.mxu0 0.0
  %8323 = vmatmul.mubr.f32.gmra.mxu0 %v8206
  %v8324 = vpop.f32.mrf.mxu0
  %v8325 = vadd.f32 0.0, %v8324
  %v8326 = vpop.f32.mrf.mxu0
  %v8327 = vadd.f32 0.0, %v8326
  %8328 = vmatprep.mubr.f32.mxu0 0.0
  %8329 = vmatmul.mubr.f32.gmra.mxu0 %v8208
  %v8330 = vpop.f32.mrf.mxu0
  %v8331 = vadd.f32 0.0, %v8330
  %v8332 = vpop.f32.mrf.mxu0
  %v8333 = vadd.f32 0.0, %v8332
  %8334 = vmatprep.mubr.f32.mxu0 0.0
  %8335 = vmatmul.mubr.f32.gmra.mxu0 %v8210
  %v8336 = vpop.f32.mrf.mxu0
  %v8337 = vadd.f32 0.0, %v8336
  %v8338 = vpop.f32.mrf.mxu0
  %v8339 = vadd.f32 0.0, %v8338
  %8340 = vmatprep.mubr.f32.mxu0 0.0
  %8341 = vmatmul.mubr.f32.gmra.mxu0 %v8212
  %v8342 = vpop.f32.mrf.mxu0
  %v8343 = vadd.f32 0.0, %v8342
  %v8344 = vpop.f32.mrf.mxu0
  %v8345 = vadd.f32 0.0, %v8344
  %8346 = vmatprep.mubr.f32.mxu0 0.0
  %8347 = vmatmul.mubr.f32.gmra.mxu0 %v8214
  %v8348 = vpop.f32.mrf.mxu0
  %v8349 = vadd.f32 0.0, %v8348
  %v8350 = vpop.f32.mrf.mxu0
  %v8351 = vadd.f32 0.0, %v8350
  %8352 = vmatprep.mubr.f32.mxu0 0.0
  %8353 = vmatmul.mubr.f32.gmra.mxu0 %v8216
  %v8354 = vpop.f32.mrf.mxu0
  %v8355 = vadd.f32 0.0, %v8354
  %v8356 = vpop.f32.mrf.mxu0
  %v8357 = vadd.f32 0.0, %v8356
  %8358 = vmatprep.mubr.f32.mxu0 0.0
  %8359 = vmatmul.mubr.f32.gmra.mxu0 %v8218
  %v8360 = vpop.f32.mrf.mxu0
  %v8361 = vadd.f32 0.0, %v8360
  %v8362 = vpop.f32.mrf.mxu0
  %v8363 = vadd.f32 0.0, %v8362
  %8364 = vmatprep.mubr.f32.mxu0 0.0
  %8365 = vmatmul.mubr.f32.gmra.mxu0 %v8220
  %v8366 = vpop.f32.mrf.mxu0
  %v8367 = vadd.f32 0.0, %v8366
  %v8368 = vpop.f32.mrf.mxu0
  %v8369 = vadd.f32 0.0, %v8368
  %8370 = vmatprep.mubr.f32.mxu0 0.0
  %8371 = vmatmul.mubr.f32.gmra.mxu0 %v8222
  %v8372 = vpop.f32.mrf.mxu0
  %v8373 = vadd.f32 0.0, %v8372
  %v8374 = vpop.f32.mrf.mxu0
  %v8375 = vadd.f32 0.0, %v8374
  %8376 = vmatprep.mubr.f32.mxu0 0.0
  %8377 = vmatmul.mubr.f32.gmra.mxu0 %v8224
  %v8378 = vpop.f32.mrf.mxu0
  %v8379 = vadd.f32 0.0, %v8378
  %v8380 = vpop.f32.mrf.mxu0
  %v8381 = vadd.f32 0.0, %v8380
  %8382 = vmatprep.mubr.f32.mxu0 0.0
  %8383 = vmatmul.mubr.f32.gmra.mxu0 %v8226
  %v8384 = vpop.f32.mrf.mxu0
  %v8385 = vadd.f32 0.0, %v8384
  %v8386 = vpop.f32.mrf.mxu0
  %v8387 = vadd.f32 0.0, %v8386
  %8388 = vdwg.mxu0
  %v8389 = vmax.f32 %v8295, %v8297
  %8390 = vmax.xlane.f32.xlu0 %v8389
  %v8391 = vpop.xlane.xlu0 %8390
  %v8392 = vmax.f32 %v8301, %v8303
  %8393 = vmax.xlane.f32.xlu0 %v8392
  %v8394 = vpop.xlane.xlu0 %8393
  %v8395 = vmax.f32 %v8307, %v8309
  %8396 = vmax.xlane.f32.xlu0 %v8395
  %v8397 = vpop.xlane.xlu0 %8396
  %v8398 = vmax.f32 %v8313, %v8315
  %8399 = vmax.xlane.f32.xlu0 %v8398
  %v8400 = vpop.xlane.xlu0 %8399
  %v8401 = vmax.f32 %v8319, %v8321
  %8402 = vmax.xlane.f32.xlu0 %v8401
  %v8403 = vpop.xlane.xlu0 %8402
  %v8404 = vmax.f32 %v8325, %v8327
  %8405 = vmax.xlane.f32.xlu0 %v8404
  %v8406 = vpop.xlane.xlu0 %8405
  %v8407 = vmax.f32 %v8331, %v8333
  %8408 = vmax.xlane.f32.xlu0 %v8407
  %v8409 = vpop.xlane.xlu0 %8408
  %v8410 = vmax.f32 %v8337, %v8339
  %8411 = vmax.xlane.f32.xlu0 %v8410
  %v8412 = vpop.xlane.xlu0 %8411
  %v8413 = vmax.f32 %v8343, %v8345
  %8414 = vmax.xlane.f32.xlu0 %v8413
  %v8415 = vpop.xlane.xlu0 %8414
  %v8416 = vmax.f32 %v8349, %v8351
  %8417 = vmax.xlane.f32.xlu0 %v8416
  %v8418 = vpop.xlane.xlu0 %8417
  %v8419 = vmax.f32 %v8355, %v8357
  %8420 = vmax.xlane.f32.xlu0 %v8419
  %v8421 = vpop.xlane.xlu0 %8420
  %v8422 = vmax.f32 %v8361, %v8363
  %8423 = vmax.xlane.f32.xlu0 %v8422
  %v8424 = vpop.xlane.xlu0 %8423
  %v8425 = vmax.f32 %v8367, %v8369
  %8426 = vmax.xlane.f32.xlu0 %v8425
  %v8427 = vpop.xlane.xlu0 %8426
  %v8428 = vmax.f32 %v8373, %v8375
  %8429 = vmax.xlane.f32.xlu0 %v8428
  %v8430 = vpop.xlane.xlu0 %8429
  %v8431 = vmax.f32 %v8379, %v8381
  %8432 = vmax.xlane.f32.xlu0 %v8431
  %v8433 = vpop.xlane.xlu0 %8432
  %v8434 = vmax.f32 %v8385, %v8387
  %8435 = vmax.xlane.f32.xlu0 %v8434
  %v8436 = vpop.xlane.xlu0 %8435
  %v8437 = vsub.f32 %v8295, %v8391
  %v8438 = vsub.f32 %v8297, %v8391
  %v8439 = vsub.f32 %v8301, %v8394
  %v8440 = vsub.f32 %v8303, %v8394
  %v8441 = vsub.f32 %v8307, %v8397
  %v8442 = vsub.f32 %v8309, %v8397
  %v8443 = vsub.f32 %v8313, %v8400
  %v8444 = vsub.f32 %v8315, %v8400
  %v8445 = vsub.f32 %v8319, %v8403
  %v8446 = vsub.f32 %v8321, %v8403
  %v8447 = vsub.f32 %v8325, %v8406
  %v8448 = vsub.f32 %v8327, %v8406
  %v8449 = vsub.f32 %v8331, %v8409
  %v8450 = vsub.f32 %v8333, %v8409
  %v8451 = vsub.f32 %v8337, %v8412
  %v8452 = vsub.f32 %v8339, %v8412
  %v8453 = vsub.f32 %v8343, %v8415
  %v8454 = vsub.f32 %v8345, %v8415
  %v8455 = vsub.f32 %v8349, %v8418
  %v8456 = vsub.f32 %v8351, %v8418
  %v8457 = vsub.f32 %v8355, %v8421
  %v8458 = vsub.f32 %v8357, %v8421
  %v8459 = vsub.f32 %v8361, %v8424
  %v8460 = vsub.f32 %v8363, %v8424
  %v8461 = vsub.f32 %v8367, %v8427
  %v8462 = vsub.f32 %v8369, %v8427
  %v8463 = vsub.f32 %v8373, %v8430
  %v8464 = vsub.f32 %v8375, %v8430
  %v8465 = vsub.f32 %v8379, %v8433
  %v8466 = vsub.f32 %v8381, %v8433
  %v8467 = vsub.f32 %v8385, %v8436
  %v8468 = vsub.f32 %v8387, %v8436
  %v8469 = vmul.f32 %v8437, 1.442695
  %v8470 = vpow.pop %v8469
  %v8471 = vmul.f32 %v8438, 1.442695
  %v8472 = vpow.pop %v8471
  %v8473 = vmul.f32 %v8439, 1.442695
  %v8474 = vpow.pop %v8473
  %v8475 = vmul.f32 %v8440, 1.442695
  %v8476 = vpow.pop %v8475
  %v8477 = vmul.f32 %v8441, 1.442695
  %v8478 = vpow.pop %v8477
  %v8479 = vmul.f32 %v8442, 1.442695
  %v8480 = vpow.pop %v8479
  %v8481 = vmul.f32 %v8443, 1.442695
  %v8482 = vpow.pop %v8481
  %v8483 = vmul.f32 %v8444, 1.442695
  %v8484 = vpow.pop %v8483
  %v8485 = vmul.f32 %v8445, 1.442695
  %v8486 = vpow.pop %v8485
  %v8487 = vmul.f32 %v8446, 1.442695
  %v8488 = vpow.pop %v8487
  %v8489 = vmul.f32 %v8447, 1.442695
  %v8490 = vpow.pop %v8489
  %v8491 = vmul.f32 %v8448, 1.442695
  %v8492 = vpow.pop %v8491
  %v8493 = vmul.f32 %v8449, 1.442695
  %v8494 = vpow.pop %v8493
  %v8495 = vmul.f32 %v8450, 1.442695
  %v8496 = vpow.pop %v8495
  %v8497 = vmul.f32 %v8451, 1.442695
  %v8498 = vpow.pop %v8497
  %v8499 = vmul.f32 %v8452, 1.442695
  %v8500 = vpow.pop %v8499
  %v8501 = vmul.f32 %v8453, 1.442695
  %v8502 = vpow.pop %v8501
  %v8503 = vmul.f32 %v8454, 1.442695
  %v8504 = vpow.pop %v8503
  %v8505 = vmul.f32 %v8455, 1.442695
  %v8506 = vpow.pop %v8505
  %v8507 = vmul.f32 %v8456, 1.442695
  %v8508 = vpow.pop %v8507
  %v8509 = vmul.f32 %v8457, 1.442695
  %v8510 = vpow.pop %v8509
  %v8511 = vmul.f32 %v8458, 1.442695
  %v8512 = vpow.pop %v8511
  %v8513 = vmul.f32 %v8459, 1.442695
  %v8514 = vpow.pop %v8513
  %v8515 = vmul.f32 %v8460, 1.442695
  %v8516 = vpow.pop %v8515
  %v8517 = vmul.f32 %v8461, 1.442695
  %v8518 = vpow.pop %v8517
  %v8519 = vmul.f32 %v8462, 1.442695
  %v8520 = vpow.pop %v8519
  %v8521 = vmul.f32 %v8463, 1.442695
  %v8522 = vpow.pop %v8521
  %v8523 = vmul.f32 %v8464, 1.442695
  %v8524 = vpow.pop %v8523
  %v8525 = vmul.f32 %v8465, 1.442695
  %v8526 = vpow.pop %v8525
  %v8527 = vmul.f32 %v8466, 1.442695
  %v8528 = vpow.pop %v8527
  %v8529 = vmul.f32 %v8467, 1.442695
  %v8530 = vpow.pop %v8529
  %v8531 = vmul.f32 %v8468, 1.442695
  %v8532 = vpow.pop %v8531
  %v8533 = vadd.f32 %v8470, %v8472
  %8534 = vadd.xlane.f32.xlu0 %v8533
  %v8535 = vpop.xlane.xlu0 %8534
  %v8536 = vadd.f32 %v8474, %v8476
  %8537 = vadd.xlane.f32.xlu0 %v8536
  %v8538 = vpop.xlane.xlu0 %8537
  %v8539 = vadd.f32 %v8478, %v8480
  %8540 = vadd.xlane.f32.xlu0 %v8539
  %v8541 = vpop.xlane.xlu0 %8540
  %v8542 = vadd.f32 %v8482, %v8484
  %8543 = vadd.xlane.f32.xlu0 %v8542
  %v8544 = vpop.xlane.xlu0 %8543
  %v8545 = vadd.f32 %v8486, %v8488
  %8546 = vadd.xlane.f32.xlu0 %v8545
  %v8547 = vpop.xlane.xlu0 %8546
  %v8548 = vadd.f32 %v8490, %v8492
  %8549 = vadd.xlane.f32.xlu0 %v8548
  %v8550 = vpop.xlane.xlu0 %8549
  %v8551 = vadd.f32 %v8494, %v8496
  %8552 = vadd.xlane.f32.xlu0 %v8551
  %v8553 = vpop.xlane.xlu0 %8552
  %v8554 = vadd.f32 %v8498, %v8500
  %8555 = vadd.xlane.f32.xlu0 %v8554
  %v8556 = vpop.xlane.xlu0 %8555
  %v8557 = vadd.f32 %v8502, %v8504
  %8558 = vadd.xlane.f32.xlu0 %v8557
  %v8559 = vpop.xlane.xlu0 %8558
  %v8560 = vadd.f32 %v8506, %v8508
  %8561 = vadd.xlane.f32.xlu0 %v8560
  %v8562 = vpop.xlane.xlu0 %8561
  %v8563 = vadd.f32 %v8510, %v8512
  %8564 = vadd.xlane.f32.xlu0 %v8563
  %v8565 = vpop.xlane.xlu0 %8564
  %v8566 = vadd.f32 %v8514, %v8516
  %8567 = vadd.xlane.f32.xlu0 %v8566
  %v8568 = vpop.xlane.xlu0 %8567
  %v8569 = vadd.f32 %v8518, %v8520
  %8570 = vadd.xlane.f32.xlu0 %v8569
  %v8571 = vpop.xlane.xlu0 %8570
  %v8572 = vadd.f32 %v8522, %v8524
  %8573 = vadd.xlane.f32.xlu0 %v8572
  %v8574 = vpop.xlane.xlu0 %8573
  %v8575 = vadd.f32 %v8526, %v8528
  %8576 = vadd.xlane.f32.xlu0 %v8575
  %v8577 = vpop.xlane.xlu0 %8576
  %v8578 = vadd.f32 %v8530, %v8532
  %8579 = vadd.xlane.f32.xlu0 %v8578
  %v8580 = vpop.xlane.xlu0 %8579
  %v8581 = vrcp.pop %v8535
  %v8582 = vmul.f32 %v8470, %v8581
  %v8583 = vmul.f32 %v8472, %v8581
  %v8584 = vrcp.pop %v8538
  %v8585 = vmul.f32 %v8474, %v8584
  %v8586 = vmul.f32 %v8476, %v8584
  %v8587 = vrcp.pop %v8541
  %v8588 = vmul.f32 %v8478, %v8587
  %v8589 = vmul.f32 %v8480, %v8587
  %v8590 = vrcp.pop %v8544
  %v8591 = vmul.f32 %v8482, %v8590
  %v8592 = vmul.f32 %v8484, %v8590
  %v8593 = vrcp.pop %v8547
  %v8594 = vmul.f32 %v8486, %v8593
  %v8595 = vmul.f32 %v8488, %v8593
  %v8596 = vrcp.pop %v8550
  %v8597 = vmul.f32 %v8490, %v8596
  %v8598 = vmul.f32 %v8492, %v8596
  %v8599 = vrcp.pop %v8553
  %v8600 = vmul.f32 %v8494, %v8599
  %v8601 = vmul.f32 %v8496, %v8599
  %v8602 = vrcp.pop %v8556
  %v8603 = vmul.f32 %v8498, %v8602
  %v8604 = vmul.f32 %v8500, %v8602
  %v8605 = vrcp.pop %v8559
  %v8606 = vmul.f32 %v8502, %v8605
  %v8607 = vmul.f32 %v8504, %v8605
  %v8608 = vrcp.pop %v8562
  %v8609 = vmul.f32 %v8506, %v8608
  %v8610 = vmul.f32 %v8508, %v8608
  %v8611 = vrcp.pop %v8565
  %v8612 = vmul.f32 %v8510, %v8611
  %v8613 = vmul.f32 %v8512, %v8611
  %v8614 = vrcp.pop %v8568
  %v8615 = vmul.f32 %v8514, %v8614
  %v8616 = vmul.f32 %v8516, %v8614
  %v8617 = vrcp.pop %v8571
  %v8618 = vmul.f32 %v8518, %v8617
  %v8619 = vmul.f32 %v8520, %v8617
  %v8620 = vrcp.pop %v8574
  %v8621 = vmul.f32 %v8522, %v8620
  %v8622 = vmul.f32 %v8524, %v8620
  %v8623 = vrcp.pop %v8577
  %v8624 = vmul.f32 %v8526, %v8623
  %v8625 = vmul.f32 %v8528, %v8623
  %v8626 = vrcp.pop %v8580
  %v8627 = vmul.f32 %v8530, %v8626
  %v8628 = vmul.f32 %v8532, %v8626
  %8629 = vmatprep.subr.mxu0 0.0
  %8630 = vmatpush1.xpose.msra.mxu0 0.0
  %8631 = vmatprep.subr.mxu0 0.0
  %8632 = vmatpush1.xpose.msra.mxu0 0.0
  %8633 = vmatprep.subr.mxu0 0.0
  %8634 = vmatpush1.xpose.msra.mxu0 0.0
  %8635 = vmatprep.subr.mxu0 0.0
  %8636 = vmatpush1.xpose.msra.mxu0 0.0
  %8637 = vmatprep.subr.mxu0 0.0
  %8638 = vmatpush1.xpose.msra.mxu0 0.0
  %8639 = vmatprep.subr.mxu0 0.0
  %8640 = vmatpush1.xpose.msra.mxu0 0.0
  %8641 = vmatprep.subr.mxu0 0.0
  %8642 = vmatpush1.xpose.msra.mxu0 0.0
  %8643 = vmatprep.subr.mxu0 0.0
  %8644 = vmatpush1.xpose.msra.mxu0 0.0
  %8645 = vmatprep.subr.mxu0 0.0
  %8646 = vmatpush1.xpose.msra.mxu0 0.0
  %8647 = vmatprep.subr.mxu0 0.0
  %8648 = vmatpush1.xpose.msra.mxu0 0.0
  %8649 = vmatprep.subr.mxu0 0.0
  %8650 = vmatpush1.xpose.msra.mxu0 0.0
  %8651 = vmatprep.subr.mxu0 0.0
  %8652 = vmatpush1.xpose.msra.mxu0 0.0
  %8653 = vmatprep.subr.mxu0 0.0
  %8654 = vmatpush1.xpose.msra.mxu0 0.0
  %8655 = vmatprep.subr.mxu0 0.0
  %8656 = vmatpush1.xpose.msra.mxu0 0.0
  %8657 = vmatprep.subr.mxu0 0.0
  %8658 = vmatpush1.xpose.msra.mxu0 0.0
  %8659 = vmatprep.subr.mxu0 %v6027
  %8660 = vmatpush1.xpose.msra.mxu0 %v6025
  %8661 = vmatprep.subr.mxu0 0.0
  %8662 = vmatpush2.xpose.msra.mxu0 0.0
  %8663 = vmatprep.subr.mxu0 0.0
  %8664 = vmatpush2.xpose.msra.mxu0 0.0
  %8665 = vmatprep.subr.mxu0 0.0
  %8666 = vmatpush2.xpose.msra.mxu0 0.0
  %8667 = vmatprep.subr.mxu0 0.0
  %8668 = vmatpush2.xpose.msra.mxu0 0.0
  %8669 = vmatprep.subr.mxu0 0.0
  %8670 = vmatpush2.xpose.msra.mxu0 0.0
  %8671 = vmatprep.subr.mxu0 0.0
  %8672 = vmatpush2.xpose.msra.mxu0 0.0
  %8673 = vmatprep.subr.mxu0 0.0
  %8674 = vmatpush2.xpose.msra.mxu0 0.0
  %8675 = vmatprep.subr.mxu0 0.0
  %8676 = vmatpush2.xpose.msra.mxu0 0.0
  %8677 = vmatprep.subr.mxu0 0.0
  %8678 = vmatpush2.xpose.msra.mxu0 0.0
  %8679 = vmatprep.subr.mxu0 0.0
  %8680 = vmatpush2.xpose.msra.mxu0 0.0
  %8681 = vmatprep.subr.mxu0 0.0
  %8682 = vmatpush2.xpose.msra.mxu0 0.0
  %8683 = vmatprep.subr.mxu0 0.0
  %8684 = vmatpush2.xpose.msra.mxu0 0.0
  %8685 = vmatprep.subr.mxu0 0.0
  %8686 = vmatpush2.xpose.msra.mxu0 0.0
  %8687 = vmatprep.subr.mxu0 0.0
  %8688 = vmatpush2.xpose.msra.mxu0 0.0
  %8689 = vmatprep.subr.mxu0 0.0
  %8690 = vmatpush2.xpose.msra.mxu0 0.0
  %8691 = vmatprep.subr.mxu0 0.0
  %8692 = vmatpush2.xpose.msra.mxu0 0.0
  %8693 = vmatprep.mubr.f32.mxu0 %v8583
  %8694 = vmatmul.mubr.f32.gmra.mxu0 %v8582
  %v8695 = vpop.f32.mrf.mxu0
  %v8696 = vadd.f32 0.0, %v8695
  %v8697 = vpop.f32.mrf.mxu0
  %8698 = vmatprep.mubr.f32.mxu0 %v8586
  %8699 = vmatmul.mubr.f32.gmra.mxu0 %v8585
  %v8700 = vpop.f32.mrf.mxu0
  %v8701 = vadd.f32 0.0, %v8700
  %v8702 = vpop.f32.mrf.mxu0
  %8703 = vmatprep.mubr.f32.mxu0 %v8589
  %8704 = vmatmul.mubr.f32.gmra.mxu0 %v8588
  %v8705 = vpop.f32.mrf.mxu0
  %v8706 = vadd.f32 0.0, %v8705
  %v8707 = vpop.f32.mrf.mxu0
  %8708 = vmatprep.mubr.f32.mxu0 %v8592
  %8709 = vmatmul.mubr.f32.gmra.mxu0 %v8591
  %v8710 = vpop.f32.mrf.mxu0
  %v8711 = vadd.f32 0.0, %v8710
  %v8712 = vpop.f32.mrf.mxu0
  %8713 = vmatprep.mubr.f32.mxu0 %v8595
  %8714 = vmatmul.mubr.f32.gmra.mxu0 %v8594
  %v8715 = vpop.f32.mrf.mxu0
  %v8716 = vadd.f32 0.0, %v8715
  %v8717 = vpop.f32.mrf.mxu0
  %8718 = vmatprep.mubr.f32.mxu0 %v8598
  %8719 = vmatmul.mubr.f32.gmra.mxu0 %v8597
  %v8720 = vpop.f32.mrf.mxu0
  %v8721 = vadd.f32 0.0, %v8720
  %v8722 = vpop.f32.mrf.mxu0
  %8723 = vmatprep.mubr.f32.mxu0 %v8601
  %8724 = vmatmul.mubr.f32.gmra.mxu0 %v8600
  %v8725 = vpop.f32.mrf.mxu0
  %v8726 = vadd.f32 0.0, %v8725
  %v8727 = vpop.f32.mrf.mxu0
  %8728 = vmatprep.mubr.f32.mxu0 %v8604
  %8729 = vmatmul.mubr.f32.gmra.mxu0 %v8603
  %v8730 = vpop.f32.mrf.mxu0
  %v8731 = vadd.f32 0.0, %v8730
  %v8732 = vpop.f32.mrf.mxu0
  %8733 = vmatprep.mubr.f32.mxu0 %v8607
  %8734 = vmatmul.mubr.f32.gmra.mxu0 %v8606
  %v8735 = vpop.f32.mrf.mxu0
  %v8736 = vadd.f32 0.0, %v8735
  %v8737 = vpop.f32.mrf.mxu0
  %8738 = vmatprep.mubr.f32.mxu0 %v8610
  %8739 = vmatmul.mubr.f32.gmra.mxu0 %v8609
  %v8740 = vpop.f32.mrf.mxu0
  %v8741 = vadd.f32 0.0, %v8740
  %v8742 = vpop.f32.mrf.mxu0
  %8743 = vmatprep.mubr.f32.mxu0 %v8613
  %8744 = vmatmul.mubr.f32.gmra.mxu0 %v8612
  %v8745 = vpop.f32.mrf.mxu0
  %v8746 = vadd.f32 0.0, %v8745
  %v8747 = vpop.f32.mrf.mxu0
  %8748 = vmatprep.mubr.f32.mxu0 %v8616
  %8749 = vmatmul.mubr.f32.gmra.mxu0 %v8615
  %v8750 = vpop.f32.mrf.mxu0
  %v8751 = vadd.f32 0.0, %v8750
  %v8752 = vpop.f32.mrf.mxu0
  %8753 = vmatprep.mubr.f32.mxu0 %v8619
  %8754 = vmatmul.mubr.f32.gmra.mxu0 %v8618
  %v8755 = vpop.f32.mrf.mxu0
  %v8756 = vadd.f32 0.0, %v8755
  %v8757 = vpop.f32.mrf.mxu0
  %8758 = vmatprep.mubr.f32.mxu0 %v8622
  %8759 = vmatmul.mubr.f32.gmra.mxu0 %v8621
  %v8760 = vpop.f32.mrf.mxu0
  %v8761 = vadd.f32 0.0, %v8760
  %v8762 = vpop.f32.mrf.mxu0
  %8763 = vmatprep.mubr.f32.mxu0 %v8625
  %8764 = vmatmul.mubr.f32.gmra.mxu0 %v8624
  %v8765 = vpop.f32.mrf.mxu0
  %v8766 = vadd.f32 0.0, %v8765
  %v8767 = vpop.f32.mrf.mxu0
  %8768 = vmatprep.mubr.f32.mxu0 %v8628
  %8769 = vmatmul.mubr.f32.gmra.mxu0 %v8627
  %v8770 = vpop.f32.mrf.mxu0
  %v8771 = vadd.f32 0.0, %v8770
  %v8772 = vpop.f32.mrf.mxu0
  %8773 = vdwg.mxu0
  %8790 = vrot.lane.b32.xlu0 %v8696, 24
  %v8791 = vpop.permute.xlu0 %8790
  %8792 = vrot.lane.b32.xlu0 %v8701, 24
  %v8793 = vpop.permute.xlu0 %8792
  %8794 = vrot.lane.b32.xlu0 %v8706, 24
  %v8795 = vpop.permute.xlu0 %8794
  %8796 = vrot.lane.b32.xlu0 %v8711, 24
  %v8797 = vpop.permute.xlu0 %8796
  %8798 = vrot.lane.b32.xlu0 %v8716, 24
  %v8799 = vpop.permute.xlu0 %8798
  %8800 = vrot.lane.b32.xlu0 %v8721, 24
  %v8801 = vpop.permute.xlu0 %8800
  %8802 = vrot.lane.b32.xlu0 %v8726, 24
  %v8803 = vpop.permute.xlu0 %8802
  %8804 = vrot.lane.b32.xlu0 %v8731, 24
  %v8805 = vpop.permute.xlu0 %8804
  %8806 = vrot.lane.b32.xlu0 %v8736, 24
  %v8807 = vpop.permute.xlu0 %8806
  %8808 = vrot.lane.b32.xlu0 %v8741, 24
  %v8809 = vpop.permute.xlu0 %8808
  %8810 = vrot.lane.b32.xlu0 %v8746, 24
  %v8811 = vpop.permute.xlu0 %8810
  %8812 = vrot.lane.b32.xlu0 %v8751, 24
  %v8813 = vpop.permute.xlu0 %8812
  %8814 = vrot.lane.b32.xlu0 %v8756, 24
  %v8815 = vpop.permute.xlu0 %8814
  %8816 = vrot.lane.b32.xlu0 %v8761, 24
  %v8817 = vpop.permute.xlu0 %8816
  %8818 = vrot.lane.b32.xlu0 %v8766, 24
  %v8819 = vpop.permute.xlu0 %8818
  %8820 = vrot.lane.b32.xlu0 %v8771, 24
  %v8821 = vpop.permute.xlu0 %8820
  %8838 = vst.msk [vmem:[#allocation2] sm:$0xff] %vm2764, %v8791
  %8839 = vst.msk [vmem:[#allocation2 + $0x8] sm:$0xff] %vm2764, %v8793
  %8840 = vst.msk [vmem:[#allocation2 + $0x10] sm:$0xff] %vm2764, %v8795
  %8841 = vst.msk [vmem:[#allocation2 + $0x18] sm:$0xff] %vm2764, %v8797
  %8842 = vst.msk [vmem:[#allocation2 + $0x20] sm:$0xff] %vm2764, %v8799
  %8843 = vst.msk [vmem:[#allocation2 + $0x28] sm:$0xff] %vm2764, %v8801
  %8844 = vst.msk [vmem:[#allocation2 + $0x30] sm:$0xff] %vm2764, %v8803
  %8845 = vst.msk [vmem:[#allocation2 + $0x38] sm:$0xff] %vm2764, %v8805
  %8846 = vst.msk [vmem:[#allocation2 + $0x40] sm:$0xff] %vm2764, %v8807
  %8847 = vst.msk [vmem:[#allocation2 + $0x48] sm:$0xff] %vm2764, %v8809
  %8848 = vst.msk [vmem:[#allocation2 + $0x50] sm:$0xff] %vm2764, %v8811
  %8849 = vst.msk [vmem:[#allocation2 + $0x58] sm:$0xff] %vm2764, %v8813
  %8850 = vst.msk [vmem:[#allocation2 + $0x60] sm:$0xff] %vm2764, %v8815
  %8851 = vst.msk [vmem:[#allocation2 + $0x68] sm:$0xff] %vm2764, %v8817
  %8852 = vst.msk [vmem:[#allocation2 + $0x70] sm:$0xff] %vm2764, %v8819
  %8853 = vst.msk [vmem:[#allocation2 + $0x78] sm:$0xff] %vm2764, %v8821
  %v8854 = vld [vmem:[#allocation2] sm:$0xff]
  %v8855 = vld [vmem:[#allocation2 + $0x8] sm:$0xff]
  %v8856 = vld [vmem:[#allocation2 + $0x10] sm:$0xff]
  %v8857 = vld [vmem:[#allocation2 + $0x18] sm:$0xff]
  %v8858 = vld [vmem:[#allocation2 + $0x20] sm:$0xff]
  %v8859 = vld [vmem:[#allocation2 + $0x28] sm:$0xff]
  %v8860 = vld [vmem:[#allocation2 + $0x30] sm:$0xff]
  %v8861 = vld [vmem:[#allocation2 + $0x38] sm:$0xff]
  %v8862 = vld [vmem:[#allocation2 + $0x40] sm:$0xff]
  %v8863 = vld [vmem:[#allocation2 + $0x48] sm:$0xff]
  %v8864 = vld [vmem:[#allocation2 + $0x50] sm:$0xff]
  %v8865 = vld [vmem:[#allocation2 + $0x58] sm:$0xff]
  %v8866 = vld [vmem:[#allocation2 + $0x60] sm:$0xff]
  %v8867 = vld [vmem:[#allocation2 + $0x68] sm:$0xff]
  %v8868 = vld [vmem:[#allocation2 + $0x70] sm:$0xff]
  %v8869 = vld [vmem:[#allocation2 + $0x78] sm:$0xff]
  %v8871 = vsel %vm339, %v67, 0
  %v8874 = vsel %vm339, %v68, 0
  %v8877 = vsel %vm339, %v69, 0
  %v8880 = vsel %vm339, %v70, 0
  %v8883 = vsel %vm339, %v8854, 0
  %v8886 = vsel %vm339, %v8855, 0
  %v8889 = vsel %vm339, %v8856, 0
  %v8892 = vsel %vm339, %v8857, 0
  %v8895 = vsel %vm339, %v8858, 0
  %v8898 = vsel %vm339, %v8859, 0
  %v8901 = vsel %vm339, %v8860, 0
  %v8904 = vsel %vm339, %v8861, 0
  %v8907 = vsel %vm339, %v8862, 0
  %v8910 = vsel %vm339, %v8863, 0
  %v8913 = vsel %vm339, %v8864, 0
  %v8916 = vsel %vm339, %v8865, 0
  %v8919 = vsel %vm339, %v8866, 0
  %v8922 = vsel %vm339, %v8867, 0
  %v8925 = vsel %vm339, %v8868, 0
  %v8928 = vsel %vm339, %v8869, 0
  %8930 = vmatprep.subr.mxu0 0.0
  %8931 = vmatpush1.xpose.msra.mxu0 %v8928
  %8932 = vmatprep.subr.mxu0 0.0
  %8933 = vmatpush1.xpose.msra.mxu0 %v8925
  %8934 = vmatprep.subr.mxu0 0.0
  %8935 = vmatpush1.xpose.msra.mxu0 %v8922
  %8936 = vmatprep.subr.mxu0 0.0
  %8937 = vmatpush1.xpose.msra.mxu0 %v8919
  %8938 = vmatprep.subr.mxu0 0.0
  %8939 = vmatpush1.xpose.msra.mxu0 %v8916
  %8940 = vmatprep.subr.mxu0 0.0
  %8941 = vmatpush1.xpose.msra.mxu0 %v8913
  %8942 = vmatprep.subr.mxu0 0.0
  %8943 = vmatpush1.xpose.msra.mxu0 %v8910
  %8944 = vmatprep.subr.mxu0 0.0
  %8945 = vmatpush1.xpose.msra.mxu0 %v8907
  %8946 = vmatprep.subr.mxu0 0.0
  %8947 = vmatpush1.xpose.msra.mxu0 %v8904
  %8948 = vmatprep.subr.mxu0 0.0
  %8949 = vmatpush1.xpose.msra.mxu0 %v8901
  %8950 = vmatprep.subr.mxu0 0.0
  %8951 = vmatpush1.xpose.msra.mxu0 %v8898
  %8952 = vmatprep.subr.mxu0 0.0
  %8953 = vmatpush1.xpose.msra.mxu0 %v8895
  %8954 = vmatprep.subr.mxu0 0.0
  %8955 = vmatpush1.xpose.msra.mxu0 %v8892
  %8956 = vmatprep.subr.mxu0 0.0
  %8957 = vmatpush1.xpose.msra.mxu0 %v8889
  %8958 = vmatprep.subr.mxu0 0.0
  %8959 = vmatpush1.xpose.msra.mxu0 %v8886
  %8960 = vmatprep.subr.mxu0 0.0
  %8961 = vmatpush1.xpose.msra.mxu0 %v8883
  %8962 = vmatprep.subr.mxu0 0.0
  %8963 = vmatpush2.xpose.msra.mxu0 0.0
  %8964 = vmatprep.subr.mxu0 0.0
  %8965 = vmatpush2.xpose.msra.mxu0 0.0
  %8966 = vmatprep.subr.mxu0 0.0
  %8967 = vmatpush2.xpose.msra.mxu0 0.0
  %8968 = vmatprep.subr.mxu0 0.0
  %8969 = vmatpush2.xpose.msra.mxu0 0.0
  %8970 = vmatprep.subr.mxu0 0.0
  %8971 = vmatpush2.xpose.msra.mxu0 0.0
  %8972 = vmatprep.subr.mxu0 0.0
  %8973 = vmatpush2.xpose.msra.mxu0 0.0
  %8974 = vmatprep.subr.mxu0 0.0
  %8975 = vmatpush2.xpose.msra.mxu0 0.0
  %8976 = vmatprep.subr.mxu0 0.0
  %8977 = vmatpush2.xpose.msra.mxu0 0.0
  %8978 = vmatprep.subr.mxu0 0.0
  %8979 = vmatpush2.xpose.msra.mxu0 0.0
  %8980 = vmatprep.subr.mxu0 0.0
  %8981 = vmatpush2.xpose.msra.mxu0 0.0
  %8982 = vmatprep.subr.mxu0 0.0
  %8983 = vmatpush2.xpose.msra.mxu0 0.0
  %8984 = vmatprep.subr.mxu0 0.0
  %8985 = vmatpush2.xpose.msra.mxu0 0.0
  %8986 = vmatprep.subr.mxu0 0.0
  %8987 = vmatpush2.xpose.msra.mxu0 0.0
  %8988 = vmatprep.subr.mxu0 0.0
  %8989 = vmatpush2.xpose.msra.mxu0 0.0
  %8990 = vmatprep.subr.mxu0 0.0
  %8991 = vmatpush2.xpose.msra.mxu0 0.0
  %8992 = vmatprep.subr.mxu0 0.0
  %8993 = vmatpush2.xpose.msra.mxu0 0.0
  %8994 = vmatprep.mubr.f32.mxu0 0.0
  %8995 = vmatmul.mubr.f32.gmra.mxu0 %v8871
  %v8996 = vpop.f32.mrf.mxu0
  %v8997 = vadd.f32 0.0, %v8996
  %v8998 = vpop.f32.mrf.mxu0
  %8999 = vmatprep.mubr.f32.mxu0 0.0
  %9000 = vmatmul.mubr.f32.gmra.mxu0 %v8874
  %v9001 = vpop.f32.mrf.mxu0
  %v9002 = vadd.f32 0.0, %v9001
  %v9003 = vpop.f32.mrf.mxu0
  %9004 = vmatprep.mubr.f32.mxu0 0.0
  %9005 = vmatmul.mubr.f32.gmra.mxu0 %v8877
  %v9006 = vpop.f32.mrf.mxu0
  %v9007 = vadd.f32 0.0, %v9006
  %v9008 = vpop.f32.mrf.mxu0
  %9009 = vmatprep.mubr.f32.mxu0 0.0
  %9010 = vmatmul.mubr.f32.gmra.mxu0 %v8880
  %v9011 = vpop.f32.mrf.mxu0
  %v9012 = vadd.f32 0.0, %v9011
  %v9013 = vpop.f32.mrf.mxu0
  %9014 = vdwg.mxu0
  %9015 = vxpose.xlu0.b32.start [1/16] %v5824, 128
  %9016 = vxpose.xlu0.b32.cont [2/16] %v5830, 128
  %9017 = vxpose.xlu0.b32.cont [3/16] %v5836, 128
  %9018 = vxpose.xlu0.b32.cont [4/16] %v5842, 128
  %9019 = vxpose.xlu0.b32.cont [5/16] 0.0, 128
  %9020 = vxpose.xlu0.b32.cont [6/16] 0.0, 128
  %9021 = vxpose.xlu0.b32.cont [7/16] 0.0, 128
  %9022 = vxpose.xlu0.b32.cont [8/16] 0.0, 128
  %9023 = vxpose.xlu0.b32.cont [9/16] 0.0, 128
  %9024 = vxpose.xlu0.b32.cont [10/16] 0.0, 128
  %9025 = vxpose.xlu0.b32.cont [11/16] 0.0, 128
  %9026 = vxpose.xlu0.b32.cont [12/16] 0.0, 128
  %9027 = vxpose.xlu0.b32.cont [13/16] 0.0, 128
  %9028 = vxpose.xlu0.b32.cont [14/16] 0.0, 128
  %9029 = vxpose.xlu0.b32.cont [15/16] 0.0, 128
  %9030 = vxpose.xlu0.b32.end [16/16] 0.0, 128
  %v9031 = vpop.trf.xlu0
  %v9032 = vpop.trf.xlu0
  %v9033 = vpop.trf.xlu0
  %v9034 = vpop.trf.xlu0
  %v9035 = vpop.trf.xlu0
  %v9036 = vpop.trf.xlu0
  %v9037 = vpop.trf.xlu0
  %v9038 = vpop.trf.xlu0
  %v9039 = vpop.trf.xlu0
  %v9040 = vpop.trf.xlu0
  %v9041 = vpop.trf.xlu0
  %v9042 = vpop.trf.xlu0
  %v9043 = vpop.trf.xlu0
  %v9044 = vpop.trf.xlu0
  %v9045 = vpop.trf.xlu0
  %v9046 = vpop.trf.xlu0
  %v9048 = vsel %vm545, %v9031, 0
  %v9051 = vsel %vm545, %v9032, 0
  %v9054 = vsel %vm545, %v9033, 0
  %v9057 = vsel %vm545, %v9034, 0
  %v9060 = vsel %vm545, %v9035, 0
  %v9063 = vsel %vm545, %v9036, 0
  %v9066 = vsel %vm545, %v9037, 0
  %v9069 = vsel %vm545, %v9038, 0
  %v9072 = vsel %vm545, %v9039, 0
  %v9075 = vsel %vm545, %v9040, 0
  %v9078 = vsel %vm545, %v9041, 0
  %v9081 = vsel %vm545, %v9042, 0
  %v9084 = vsel %vm545, %v9043, 0
  %v9087 = vsel %vm545, %v9044, 0
  %v9090 = vsel %vm545, %v9045, 0
  %v9093 = vsel %vm545, %v9046, 0
  %9095 = vmatprep.subr.mxu0 0.0
  %9096 = vmatpush1.msra.mxu0 0.0
  %9097 = vmatprep.subr.mxu0 0.0
  %9098 = vmatpush1.msra.mxu0 0.0
  %9099 = vmatprep.subr.mxu0 0.0
  %9100 = vmatpush1.msra.mxu0 0.0
  %9101 = vmatprep.subr.mxu0 0.0
  %9102 = vmatpush1.msra.mxu0 0.0
  %9103 = vmatprep.subr.mxu0 0.0
  %9104 = vmatpush1.msra.mxu0 0.0
  %9105 = vmatprep.subr.mxu0 0.0
  %9106 = vmatpush1.msra.mxu0 0.0
  %9107 = vmatprep.subr.mxu0 0.0
  %9108 = vmatpush1.msra.mxu0 0.0
  %9109 = vmatprep.subr.mxu0 0.0
  %9110 = vmatpush1.msra.mxu0 0.0
  %9111 = vmatprep.subr.mxu0 0.0
  %9112 = vmatpush1.msra.mxu0 0.0
  %9113 = vmatprep.subr.mxu0 0.0
  %9114 = vmatpush1.msra.mxu0 0.0
  %9115 = vmatprep.subr.mxu0 0.0
  %9116 = vmatpush1.msra.mxu0 0.0
  %9117 = vmatprep.subr.mxu0 0.0
  %9118 = vmatpush1.msra.mxu0 0.0
  %9119 = vmatprep.subr.mxu0 0.0
  %9120 = vmatpush1.msra.mxu0 0.0
  %9121 = vmatprep.subr.mxu0 0.0
  %9122 = vmatpush1.msra.mxu0 0.0
  %9123 = vmatprep.subr.mxu0 0.0
  %9124 = vmatpush1.msra.mxu0 0.0
  %9125 = vmatprep.subr.mxu0 %v6098
  %9126 = vmatpush1.msra.mxu0 %v6096
  %9127 = vmatprep.subr.mxu0 0.0
  %9128 = vmatpush2.msra.mxu0 0.0
  %9129 = vmatprep.subr.mxu0 0.0
  %9130 = vmatpush2.msra.mxu0 0.0
  %9131 = vmatprep.subr.mxu0 0.0
  %9132 = vmatpush2.msra.mxu0 0.0
  %9133 = vmatprep.subr.mxu0 0.0
  %9134 = vmatpush2.msra.mxu0 0.0
  %9135 = vmatprep.subr.mxu0 0.0
  %9136 = vmatpush2.msra.mxu0 0.0
  %9137 = vmatprep.subr.mxu0 0.0
  %9138 = vmatpush2.msra.mxu0 0.0
  %9139 = vmatprep.subr.mxu0 0.0
  %9140 = vmatpush2.msra.mxu0 0.0
  %9141 = vmatprep.subr.mxu0 0.0
  %9142 = vmatpush2.msra.mxu0 0.0
  %9143 = vmatprep.subr.mxu0 0.0
  %9144 = vmatpush2.msra.mxu0 0.0
  %9145 = vmatprep.subr.mxu0 0.0
  %9146 = vmatpush2.msra.mxu0 0.0
  %9147 = vmatprep.subr.mxu0 0.0
  %9148 = vmatpush2.msra.mxu0 0.0
  %9149 = vmatprep.subr.mxu0 0.0
  %9150 = vmatpush2.msra.mxu0 0.0
  %9151 = vmatprep.subr.mxu0 0.0
  %9152 = vmatpush2.msra.mxu0 0.0
  %9153 = vmatprep.subr.mxu0 0.0
  %9154 = vmatpush2.msra.mxu0 0.0
  %9155 = vmatprep.subr.mxu0 0.0
  %9156 = vmatpush2.msra.mxu0 0.0
  %9157 = vmatprep.subr.mxu0 0.0
  %9158 = vmatpush2.msra.mxu0 0.0
  %9159 = vmatprep.mubr.f32.mxu0 0.0
  %9160 = vmatmul.mubr.f32.gmra.mxu0 %v9048
  %v9161 = vpop.f32.mrf.mxu0
  %v9162 = vadd.f32 0.0, %v9161
  %v9163 = vpop.f32.mrf.mxu0
  %v9164 = vadd.f32 0.0, %v9163
  %9165 = vmatprep.mubr.f32.mxu0 0.0
  %9166 = vmatmul.mubr.f32.gmra.mxu0 %v9051
  %v9167 = vpop.f32.mrf.mxu0
  %v9168 = vadd.f32 0.0, %v9167
  %v9169 = vpop.f32.mrf.mxu0
  %v9170 = vadd.f32 0.0, %v9169
  %9171 = vmatprep.mubr.f32.mxu0 0.0
  %9172 = vmatmul.mubr.f32.gmra.mxu0 %v9054
  %v9173 = vpop.f32.mrf.mxu0
  %v9174 = vadd.f32 0.0, %v9173
  %v9175 = vpop.f32.mrf.mxu0
  %v9176 = vadd.f32 0.0, %v9175
  %9177 = vmatprep.mubr.f32.mxu0 0.0
  %9178 = vmatmul.mubr.f32.gmra.mxu0 %v9057
  %v9179 = vpop.f32.mrf.mxu0
  %v9180 = vadd.f32 0.0, %v9179
  %v9181 = vpop.f32.mrf.mxu0
  %v9182 = vadd.f32 0.0, %v9181
  %9183 = vmatprep.mubr.f32.mxu0 0.0
  %9184 = vmatmul.mubr.f32.gmra.mxu0 %v9060
  %v9185 = vpop.f32.mrf.mxu0
  %v9186 = vadd.f32 0.0, %v9185
  %v9187 = vpop.f32.mrf.mxu0
  %v9188 = vadd.f32 0.0, %v9187
  %9189 = vmatprep.mubr.f32.mxu0 0.0
  %9190 = vmatmul.mubr.f32.gmra.mxu0 %v9063
  %v9191 = vpop.f32.mrf.mxu0
  %v9192 = vadd.f32 0.0, %v9191
  %v9193 = vpop.f32.mrf.mxu0
  %v9194 = vadd.f32 0.0, %v9193
  %9195 = vmatprep.mubr.f32.mxu0 0.0
  %9196 = vmatmul.mubr.f32.gmra.mxu0 %v9066
  %v9197 = vpop.f32.mrf.mxu0
  %v9198 = vadd.f32 0.0, %v9197
  %v9199 = vpop.f32.mrf.mxu0
  %v9200 = vadd.f32 0.0, %v9199
  %9201 = vmatprep.mubr.f32.mxu0 0.0
  %9202 = vmatmul.mubr.f32.gmra.mxu0 %v9069
  %v9203 = vpop.f32.mrf.mxu0
  %v9204 = vadd.f32 0.0, %v9203
  %v9205 = vpop.f32.mrf.mxu0
  %v9206 = vadd.f32 0.0, %v9205
  %9207 = vmatprep.mubr.f32.mxu0 0.0
  %9208 = vmatmul.mubr.f32.gmra.mxu0 %v9072
  %v9209 = vpop.f32.mrf.mxu0
  %v9210 = vadd.f32 0.0, %v9209
  %v9211 = vpop.f32.mrf.mxu0
  %v9212 = vadd.f32 0.0, %v9211
  %9213 = vmatprep.mubr.f32.mxu0 0.0
  %9214 = vmatmul.mubr.f32.gmra.mxu0 %v9075
  %v9215 = vpop.f32.mrf.mxu0
  %v9216 = vadd.f32 0.0, %v9215
  %v9217 = vpop.f32.mrf.mxu0
  %v9218 = vadd.f32 0.0, %v9217
  %9219 = vmatprep.mubr.f32.mxu0 0.0
  %9220 = vmatmul.mubr.f32.gmra.mxu0 %v9078
  %v9221 = vpop.f32.mrf.mxu0
  %v9222 = vadd.f32 0.0, %v9221
  %v9223 = vpop.f32.mrf.mxu0
  %v9224 = vadd.f32 0.0, %v9223
  %9225 = vmatprep.mubr.f32.mxu0 0.0
  %9226 = vmatmul.mubr.f32.gmra.mxu0 %v9081
  %v9227 = vpop.f32.mrf.mxu0
  %v9228 = vadd.f32 0.0, %v9227
  %v9229 = vpop.f32.mrf.mxu0
  %v9230 = vadd.f32 0.0, %v9229
  %9231 = vmatprep.mubr.f32.mxu0 0.0
  %9232 = vmatmul.mubr.f32.gmra.mxu0 %v9084
  %v9233 = vpop.f32.mrf.mxu0
  %v9234 = vadd.f32 0.0, %v9233
  %v9235 = vpop.f32.mrf.mxu0
  %v9236 = vadd.f32 0.0, %v9235
  %9237 = vmatprep.mubr.f32.mxu0 0.0
  %9238 = vmatmul.mubr.f32.gmra.mxu0 %v9087
  %v9239 = vpop.f32.mrf.mxu0
  %v9240 = vadd.f32 0.0, %v9239
  %v9241 = vpop.f32.mrf.mxu0
  %v9242 = vadd.f32 0.0, %v9241
  %9243 = vmatprep.mubr.f32.mxu0 0.0
  %9244 = vmatmul.mubr.f32.gmra.mxu0 %v9090
  %v9245 = vpop.f32.mrf.mxu0
  %v9246 = vadd.f32 0.0, %v9245
  %v9247 = vpop.f32.mrf.mxu0
  %v9248 = vadd.f32 0.0, %v9247
  %9249 = vmatprep.mubr.f32.mxu0 0.0
  %9250 = vmatmul.mubr.f32.gmra.mxu0 %v9093
  %v9251 = vpop.f32.mrf.mxu0
  %v9252 = vadd.f32 0.0, %v9251
  %v9253 = vpop.f32.mrf.mxu0
  %v9254 = vadd.f32 0.0, %v9253
  %9255 = vdwg.mxu0
  %v9256 = vmax.f32 %v9162, %v9164
  %9257 = vmax.xlane.f32.xlu0 %v9256
  %v9258 = vpop.xlane.xlu0 %9257
  %v9259 = vmax.f32 %v9168, %v9170
  %9260 = vmax.xlane.f32.xlu0 %v9259
  %v9261 = vpop.xlane.xlu0 %9260
  %v9262 = vmax.f32 %v9174, %v9176
  %9263 = vmax.xlane.f32.xlu0 %v9262
  %v9264 = vpop.xlane.xlu0 %9263
  %v9265 = vmax.f32 %v9180, %v9182
  %9266 = vmax.xlane.f32.xlu0 %v9265
  %v9267 = vpop.xlane.xlu0 %9266
  %v9268 = vmax.f32 %v9186, %v9188
  %9269 = vmax.xlane.f32.xlu0 %v9268
  %v9270 = vpop.xlane.xlu0 %9269
  %v9271 = vmax.f32 %v9192, %v9194
  %9272 = vmax.xlane.f32.xlu0 %v9271
  %v9273 = vpop.xlane.xlu0 %9272
  %v9274 = vmax.f32 %v9198, %v9200
  %9275 = vmax.xlane.f32.xlu0 %v9274
  %v9276 = vpop.xlane.xlu0 %9275
  %v9277 = vmax.f32 %v9204, %v9206
  %9278 = vmax.xlane.f32.xlu0 %v9277
  %v9279 = vpop.xlane.xlu0 %9278
  %v9280 = vmax.f32 %v9210, %v9212
  %9281 = vmax.xlane.f32.xlu0 %v9280
  %v9282 = vpop.xlane.xlu0 %9281
  %v9283 = vmax.f32 %v9216, %v9218
  %9284 = vmax.xlane.f32.xlu0 %v9283
  %v9285 = vpop.xlane.xlu0 %9284
  %v9286 = vmax.f32 %v9222, %v9224
  %9287 = vmax.xlane.f32.xlu0 %v9286
  %v9288 = vpop.xlane.xlu0 %9287
  %v9289 = vmax.f32 %v9228, %v9230
  %9290 = vmax.xlane.f32.xlu0 %v9289
  %v9291 = vpop.xlane.xlu0 %9290
  %v9292 = vmax.f32 %v9234, %v9236
  %9293 = vmax.xlane.f32.xlu0 %v9292
  %v9294 = vpop.xlane.xlu0 %9293
  %v9295 = vmax.f32 %v9240, %v9242
  %9296 = vmax.xlane.f32.xlu0 %v9295
  %v9297 = vpop.xlane.xlu0 %9296
  %v9298 = vmax.f32 %v9246, %v9248
  %9299 = vmax.xlane.f32.xlu0 %v9298
  %v9300 = vpop.xlane.xlu0 %9299
  %v9301 = vmax.f32 %v9252, %v9254
  %9302 = vmax.xlane.f32.xlu0 %v9301
  %v9303 = vpop.xlane.xlu0 %9302
  %v9304 = vsub.f32 %v9162, %v9258
  %v9305 = vsub.f32 %v9164, %v9258
  %v9306 = vsub.f32 %v9168, %v9261
  %v9307 = vsub.f32 %v9170, %v9261
  %v9308 = vsub.f32 %v9174, %v9264
  %v9309 = vsub.f32 %v9176, %v9264
  %v9310 = vsub.f32 %v9180, %v9267
  %v9311 = vsub.f32 %v9182, %v9267
  %v9312 = vsub.f32 %v9186, %v9270
  %v9313 = vsub.f32 %v9188, %v9270
  %v9314 = vsub.f32 %v9192, %v9273
  %v9315 = vsub.f32 %v9194, %v9273
  %v9316 = vsub.f32 %v9198, %v9276
  %v9317 = vsub.f32 %v9200, %v9276
  %v9318 = vsub.f32 %v9204, %v9279
  %v9319 = vsub.f32 %v9206, %v9279
  %v9320 = vsub.f32 %v9210, %v9282
  %v9321 = vsub.f32 %v9212, %v9282
  %v9322 = vsub.f32 %v9216, %v9285
  %v9323 = vsub.f32 %v9218, %v9285
  %v9324 = vsub.f32 %v9222, %v9288
  %v9325 = vsub.f32 %v9224, %v9288
  %v9326 = vsub.f32 %v9228, %v9291
  %v9327 = vsub.f32 %v9230, %v9291
  %v9328 = vsub.f32 %v9234, %v9294
  %v9329 = vsub.f32 %v9236, %v9294
  %v9330 = vsub.f32 %v9240, %v9297
  %v9331 = vsub.f32 %v9242, %v9297
  %v9332 = vsub.f32 %v9246, %v9300
  %v9333 = vsub.f32 %v9248, %v9300
  %v9334 = vsub.f32 %v9252, %v9303
  %v9335 = vsub.f32 %v9254, %v9303
  %v9336 = vmul.f32 %v9304, 1.442695
  %v9337 = vpow.pop %v9336
  %v9338 = vmul.f32 %v9305, 1.442695
  %v9339 = vpow.pop %v9338
  %v9340 = vmul.f32 %v9306, 1.442695
  %v9341 = vpow.pop %v9340
  %v9342 = vmul.f32 %v9307, 1.442695
  %v9343 = vpow.pop %v9342
  %v9344 = vmul.f32 %v9308, 1.442695
  %v9345 = vpow.pop %v9344
  %v9346 = vmul.f32 %v9309, 1.442695
  %v9347 = vpow.pop %v9346
  %v9348 = vmul.f32 %v9310, 1.442695
  %v9349 = vpow.pop %v9348
  %v9350 = vmul.f32 %v9311, 1.442695
  %v9351 = vpow.pop %v9350
  %v9352 = vmul.f32 %v9312, 1.442695
  %v9353 = vpow.pop %v9352
  %v9354 = vmul.f32 %v9313, 1.442695
  %v9355 = vpow.pop %v9354
  %v9356 = vmul.f32 %v9314, 1.442695
  %v9357 = vpow.pop %v9356
  %v9358 = vmul.f32 %v9315, 1.442695
  %v9359 = vpow.pop %v9358
  %v9360 = vmul.f32 %v9316, 1.442695
  %v9361 = vpow.pop %v9360
  %v9362 = vmul.f32 %v9317, 1.442695
  %v9363 = vpow.pop %v9362
  %v9364 = vmul.f32 %v9318, 1.442695
  %v9365 = vpow.pop %v9364
  %v9366 = vmul.f32 %v9319, 1.442695
  %v9367 = vpow.pop %v9366
  %v9368 = vmul.f32 %v9320, 1.442695
  %v9369 = vpow.pop %v9368
  %v9370 = vmul.f32 %v9321, 1.442695
  %v9371 = vpow.pop %v9370
  %v9372 = vmul.f32 %v9322, 1.442695
  %v9373 = vpow.pop %v9372
  %v9374 = vmul.f32 %v9323, 1.442695
  %v9375 = vpow.pop %v9374
  %v9376 = vmul.f32 %v9324, 1.442695
  %v9377 = vpow.pop %v9376
  %v9378 = vmul.f32 %v9325, 1.442695
  %v9379 = vpow.pop %v9378
  %v9380 = vmul.f32 %v9326, 1.442695
  %v9381 = vpow.pop %v9380
  %v9382 = vmul.f32 %v9327, 1.442695
  %v9383 = vpow.pop %v9382
  %v9384 = vmul.f32 %v9328, 1.442695
  %v9385 = vpow.pop %v9384
  %v9386 = vmul.f32 %v9329, 1.442695
  %v9387 = vpow.pop %v9386
  %v9388 = vmul.f32 %v9330, 1.442695
  %v9389 = vpow.pop %v9388
  %v9390 = vmul.f32 %v9331, 1.442695
  %v9391 = vpow.pop %v9390
  %v9392 = vmul.f32 %v9332, 1.442695
  %v9393 = vpow.pop %v9392
  %v9394 = vmul.f32 %v9333, 1.442695
  %v9395 = vpow.pop %v9394
  %v9396 = vmul.f32 %v9334, 1.442695
  %v9397 = vpow.pop %v9396
  %v9398 = vmul.f32 %v9335, 1.442695
  %v9399 = vpow.pop %v9398
  %v9400 = vadd.f32 %v9337, %v9339
  %9401 = vadd.xlane.f32.xlu0 %v9400
  %v9402 = vpop.xlane.xlu0 %9401
  %v9403 = vadd.f32 %v9341, %v9343
  %9404 = vadd.xlane.f32.xlu0 %v9403
  %v9405 = vpop.xlane.xlu0 %9404
  %v9406 = vadd.f32 %v9345, %v9347
  %9407 = vadd.xlane.f32.xlu0 %v9406
  %v9408 = vpop.xlane.xlu0 %9407
  %v9409 = vadd.f32 %v9349, %v9351
  %9410 = vadd.xlane.f32.xlu0 %v9409
  %v9411 = vpop.xlane.xlu0 %9410
  %v9412 = vadd.f32 %v9353, %v9355
  %9413 = vadd.xlane.f32.xlu0 %v9412
  %v9414 = vpop.xlane.xlu0 %9413
  %v9415 = vadd.f32 %v9357, %v9359
  %9416 = vadd.xlane.f32.xlu0 %v9415
  %v9417 = vpop.xlane.xlu0 %9416
  %v9418 = vadd.f32 %v9361, %v9363
  %9419 = vadd.xlane.f32.xlu0 %v9418
  %v9420 = vpop.xlane.xlu0 %9419
  %v9421 = vadd.f32 %v9365, %v9367
  %9422 = vadd.xlane.f32.xlu0 %v9421
  %v9423 = vpop.xlane.xlu0 %9422
  %v9424 = vadd.f32 %v9369, %v9371
  %9425 = vadd.xlane.f32.xlu0 %v9424
  %v9426 = vpop.xlane.xlu0 %9425
  %v9427 = vadd.f32 %v9373, %v9375
  %9428 = vadd.xlane.f32.xlu0 %v9427
  %v9429 = vpop.xlane.xlu0 %9428
  %v9430 = vadd.f32 %v9377, %v9379
  %9431 = vadd.xlane.f32.xlu0 %v9430
  %v9432 = vpop.xlane.xlu0 %9431
  %v9433 = vadd.f32 %v9381, %v9383
  %9434 = vadd.xlane.f32.xlu0 %v9433
  %v9435 = vpop.xlane.xlu0 %9434
  %v9436 = vadd.f32 %v9385, %v9387
  %9437 = vadd.xlane.f32.xlu0 %v9436
  %v9438 = vpop.xlane.xlu0 %9437
  %v9439 = vadd.f32 %v9389, %v9391
  %9440 = vadd.xlane.f32.xlu0 %v9439
  %v9441 = vpop.xlane.xlu0 %9440
  %v9442 = vadd.f32 %v9393, %v9395
  %9443 = vadd.xlane.f32.xlu0 %v9442
  %v9444 = vpop.xlane.xlu0 %9443
  %v9445 = vadd.f32 %v9397, %v9399
  %9446 = vadd.xlane.f32.xlu0 %v9445
  %v9447 = vpop.xlane.xlu0 %9446
  %v9448 = vrcp.pop %v9402
  %v9449 = vmul.f32 %v9337, %v9448
  %v9450 = vmul.f32 %v9339, %v9448
  %v9451 = vrcp.pop %v9405
  %v9452 = vmul.f32 %v9341, %v9451
  %v9453 = vmul.f32 %v9343, %v9451
  %v9454 = vrcp.pop %v9408
  %v9455 = vmul.f32 %v9345, %v9454
  %v9456 = vmul.f32 %v9347, %v9454
  %v9457 = vrcp.pop %v9411
  %v9458 = vmul.f32 %v9349, %v9457
  %v9459 = vmul.f32 %v9351, %v9457
  %v9460 = vrcp.pop %v9414
  %v9461 = vmul.f32 %v9353, %v9460
  %v9462 = vmul.f32 %v9355, %v9460
  %v9463 = vrcp.pop %v9417
  %v9464 = vmul.f32 %v9357, %v9463
  %v9465 = vmul.f32 %v9359, %v9463
  %v9466 = vrcp.pop %v9420
  %v9467 = vmul.f32 %v9361, %v9466
  %v9468 = vmul.f32 %v9363, %v9466
  %v9469 = vrcp.pop %v9423
  %v9470 = vmul.f32 %v9365, %v9469
  %v9471 = vmul.f32 %v9367, %v9469
  %v9472 = vrcp.pop %v9426
  %v9473 = vmul.f32 %v9369, %v9472
  %v9474 = vmul.f32 %v9371, %v9472
  %v9475 = vrcp.pop %v9429
  %v9476 = vmul.f32 %v9373, %v9475
  %v9477 = vmul.f32 %v9375, %v9475
  %v9478 = vrcp.pop %v9432
  %v9479 = vmul.f32 %v9377, %v9478
  %v9480 = vmul.f32 %v9379, %v9478
  %v9481 = vrcp.pop %v9435
  %v9482 = vmul.f32 %v9381, %v9481
  %v9483 = vmul.f32 %v9383, %v9481
  %v9484 = vrcp.pop %v9438
  %v9485 = vmul.f32 %v9385, %v9484
  %v9486 = vmul.f32 %v9387, %v9484
  %v9487 = vrcp.pop %v9441
  %v9488 = vmul.f32 %v9389, %v9487
  %v9489 = vmul.f32 %v9391, %v9487
  %v9490 = vrcp.pop %v9444
  %v9491 = vmul.f32 %v9393, %v9490
  %v9492 = vmul.f32 %v9395, %v9490
  %v9493 = vrcp.pop %v9447
  %v9494 = vmul.f32 %v9397, %v9493
  %v9495 = vmul.f32 %v9399, %v9493
  %9496 = vmatprep.subr.mxu0 0.0
  %9497 = vmatpush1.xpose.msra.mxu0 0.0
  %9498 = vmatprep.subr.mxu0 0.0
  %9499 = vmatpush1.xpose.msra.mxu0 0.0
  %9500 = vmatprep.subr.mxu0 0.0
  %9501 = vmatpush1.xpose.msra.mxu0 0.0
  %9502 = vmatprep.subr.mxu0 0.0
  %9503 = vmatpush1.xpose.msra.mxu0 0.0
  %9504 = vmatprep.subr.mxu0 0.0
  %9505 = vmatpush1.xpose.msra.mxu0 0.0
  %9506 = vmatprep.subr.mxu0 0.0
  %9507 = vmatpush1.xpose.msra.mxu0 0.0
  %9508 = vmatprep.subr.mxu0 0.0
  %9509 = vmatpush1.xpose.msra.mxu0 0.0
  %9510 = vmatprep.subr.mxu0 0.0
  %9511 = vmatpush1.xpose.msra.mxu0 0.0
  %9512 = vmatprep.subr.mxu0 0.0
  %9513 = vmatpush1.xpose.msra.mxu0 0.0
  %9514 = vmatprep.subr.mxu0 0.0
  %9515 = vmatpush1.xpose.msra.mxu0 0.0
  %9516 = vmatprep.subr.mxu0 0.0
  %9517 = vmatpush1.xpose.msra.mxu0 0.0
  %9518 = vmatprep.subr.mxu0 0.0
  %9519 = vmatpush1.xpose.msra.mxu0 0.0
  %9520 = vmatprep.subr.mxu0 0.0
  %9521 = vmatpush1.xpose.msra.mxu0 0.0
  %9522 = vmatprep.subr.mxu0 0.0
  %9523 = vmatpush1.xpose.msra.mxu0 0.0
  %9524 = vmatprep.subr.mxu0 0.0
  %9525 = vmatpush1.xpose.msra.mxu0 0.0
  %9526 = vmatprep.subr.mxu0 %v6122
  %9527 = vmatpush1.xpose.msra.mxu0 %v6120
  %9528 = vmatprep.subr.mxu0 0.0
  %9529 = vmatpush2.xpose.msra.mxu0 0.0
  %9530 = vmatprep.subr.mxu0 0.0
  %9531 = vmatpush2.xpose.msra.mxu0 0.0
  %9532 = vmatprep.subr.mxu0 0.0
  %9533 = vmatpush2.xpose.msra.mxu0 0.0
  %9534 = vmatprep.subr.mxu0 0.0
  %9535 = vmatpush2.xpose.msra.mxu0 0.0
  %9536 = vmatprep.subr.mxu0 0.0
  %9537 = vmatpush2.xpose.msra.mxu0 0.0
  %9538 = vmatprep.subr.mxu0 0.0
  %9539 = vmatpush2.xpose.msra.mxu0 0.0
  %9540 = vmatprep.subr.mxu0 0.0
  %9541 = vmatpush2.xpose.msra.mxu0 0.0
  %9542 = vmatprep.subr.mxu0 0.0
  %9543 = vmatpush2.xpose.msra.mxu0 0.0
  %9544 = vmatprep.subr.mxu0 0.0
  %9545 = vmatpush2.xpose.msra.mxu0 0.0
  %9546 = vmatprep.subr.mxu0 0.0
  %9547 = vmatpush2.xpose.msra.mxu0 0.0
  %9548 = vmatprep.subr.mxu0 0.0
  %9549 = vmatpush2.xpose.msra.mxu0 0.0
  %9550 = vmatprep.subr.mxu0 0.0
  %9551 = vmatpush2.xpose.msra.mxu0 0.0
  %9552 = vmatprep.subr.mxu0 0.0
  %9553 = vmatpush2.xpose.msra.mxu0 0.0
  %9554 = vmatprep.subr.mxu0 0.0
  %9555 = vmatpush2.xpose.msra.mxu0 0.0
  %9556 = vmatprep.subr.mxu0 0.0
  %9557 = vmatpush2.xpose.msra.mxu0 0.0
  %9558 = vmatprep.subr.mxu0 0.0
  %9559 = vmatpush2.xpose.msra.mxu0 0.0
  %9560 = vmatprep.mubr.f32.mxu0 %v9450
  %9561 = vmatmul.mubr.f32.gmra.mxu0 %v9449
  %v9562 = vpop.f32.mrf.mxu0
  %v9563 = vadd.f32 0.0, %v9562
  %v9564 = vpop.f32.mrf.mxu0
  %9565 = vmatprep.mubr.f32.mxu0 %v9453
  %9566 = vmatmul.mubr.f32.gmra.mxu0 %v9452
  %v9567 = vpop.f32.mrf.mxu0
  %v9568 = vadd.f32 0.0, %v9567
  %v9569 = vpop.f32.mrf.mxu0
  %9570 = vmatprep.mubr.f32.mxu0 %v9456
  %9571 = vmatmul.mubr.f32.gmra.mxu0 %v9455
  %v9572 = vpop.f32.mrf.mxu0
  %v9573 = vadd.f32 0.0, %v9572
  %v9574 = vpop.f32.mrf.mxu0
  %9575 = vmatprep.mubr.f32.mxu0 %v9459
  %9576 = vmatmul.mubr.f32.gmra.mxu0 %v9458
  %v9577 = vpop.f32.mrf.mxu0
  %v9578 = vadd.f32 0.0, %v9577
  %v9579 = vpop.f32.mrf.mxu0
  %9580 = vmatprep.mubr.f32.mxu0 %v9462
  %9581 = vmatmul.mubr.f32.gmra.mxu0 %v9461
  %v9582 = vpop.f32.mrf.mxu0
  %v9583 = vadd.f32 0.0, %v9582
  %v9584 = vpop.f32.mrf.mxu0
  %9585 = vmatprep.mubr.f32.mxu0 %v9465
  %9586 = vmatmul.mubr.f32.gmra.mxu0 %v9464
  %v9587 = vpop.f32.mrf.mxu0
  %v9588 = vadd.f32 0.0, %v9587
  %v9589 = vpop.f32.mrf.mxu0
  %9590 = vmatprep.mubr.f32.mxu0 %v9468
  %9591 = vmatmul.mubr.f32.gmra.mxu0 %v9467
  %v9592 = vpop.f32.mrf.mxu0
  %v9593 = vadd.f32 0.0, %v9592
  %v9594 = vpop.f32.mrf.mxu0
  %9595 = vmatprep.mubr.f32.mxu0 %v9471
  %9596 = vmatmul.mubr.f32.gmra.mxu0 %v9470
  %v9597 = vpop.f32.mrf.mxu0
  %v9598 = vadd.f32 0.0, %v9597
  %v9599 = vpop.f32.mrf.mxu0
  %9600 = vmatprep.mubr.f32.mxu0 %v9474
  %9601 = vmatmul.mubr.f32.gmra.mxu0 %v9473
  %v9602 = vpop.f32.mrf.mxu0
  %v9603 = vadd.f32 0.0, %v9602
  %v9604 = vpop.f32.mrf.mxu0
  %9605 = vmatprep.mubr.f32.mxu0 %v9477
  %9606 = vmatmul.mubr.f32.gmra.mxu0 %v9476
  %v9607 = vpop.f32.mrf.mxu0
  %v9608 = vadd.f32 0.0, %v9607
  %v9609 = vpop.f32.mrf.mxu0
  %9610 = vmatprep.mubr.f32.mxu0 %v9480
  %9611 = vmatmul.mubr.f32.gmra.mxu0 %v9479
  %v9612 = vpop.f32.mrf.mxu0
  %v9613 = vadd.f32 0.0, %v9612
  %v9614 = vpop.f32.mrf.mxu0
  %9615 = vmatprep.mubr.f32.mxu0 %v9483
  %9616 = vmatmul.mubr.f32.gmra.mxu0 %v9482
  %v9617 = vpop.f32.mrf.mxu0
  %v9618 = vadd.f32 0.0, %v9617
  %v9619 = vpop.f32.mrf.mxu0
  %9620 = vmatprep.mubr.f32.mxu0 %v9486
  %9621 = vmatmul.mubr.f32.gmra.mxu0 %v9485
  %v9622 = vpop.f32.mrf.mxu0
  %v9623 = vadd.f32 0.0, %v9622
  %v9624 = vpop.f32.mrf.mxu0
  %9625 = vmatprep.mubr.f32.mxu0 %v9489
  %9626 = vmatmul.mubr.f32.gmra.mxu0 %v9488
  %v9627 = vpop.f32.mrf.mxu0
  %v9628 = vadd.f32 0.0, %v9627
  %v9629 = vpop.f32.mrf.mxu0
  %9630 = vmatprep.mubr.f32.mxu0 %v9492
  %9631 = vmatmul.mubr.f32.gmra.mxu0 %v9491
  %v9632 = vpop.f32.mrf.mxu0
  %v9633 = vadd.f32 0.0, %v9632
  %v9634 = vpop.f32.mrf.mxu0
  %9635 = vmatprep.mubr.f32.mxu0 %v9495
  %9636 = vmatmul.mubr.f32.gmra.mxu0 %v9494
  %v9637 = vpop.f32.mrf.mxu0
  %v9638 = vadd.f32 0.0, %v9637
  %v9639 = vpop.f32.mrf.mxu0
  %9640 = vdwg.mxu0
  %9641 = vst.msk [vmem:[#allocation2] sm:$0xff] %vm545, %v9563
  %9642 = vst.msk [vmem:[#allocation2 + $0x8] sm:$0xff] %vm545, %v9568
  %9643 = vst.msk [vmem:[#allocation2 + $0x10] sm:$0xff] %vm545, %v9573
  %9644 = vst.msk [vmem:[#allocation2 + $0x18] sm:$0xff] %vm545, %v9578
  %9645 = vst.msk [vmem:[#allocation2 + $0x20] sm:$0xff] %vm545, %v9583
  %9646 = vst.msk [vmem:[#allocation2 + $0x28] sm:$0xff] %vm545, %v9588
  %9647 = vst.msk [vmem:[#allocation2 + $0x30] sm:$0xff] %vm545, %v9593
  %9648 = vst.msk [vmem:[#allocation2 + $0x38] sm:$0xff] %vm545, %v9598
  %9649 = vst.msk [vmem:[#allocation2 + $0x40] sm:$0xff] %vm545, %v9603
  %9650 = vst.msk [vmem:[#allocation2 + $0x48] sm:$0xff] %vm545, %v9608
  %9651 = vst.msk [vmem:[#allocation2 + $0x50] sm:$0xff] %vm545, %v9613
  %9652 = vst.msk [vmem:[#allocation2 + $0x58] sm:$0xff] %vm545, %v9618
  %9653 = vst.msk [vmem:[#allocation2 + $0x60] sm:$0xff] %vm545, %v9623
  %9654 = vst.msk [vmem:[#allocation2 + $0x68] sm:$0xff] %vm545, %v9628
  %9655 = vst.msk [vmem:[#allocation2 + $0x70] sm:$0xff] %vm545, %v9633
  %9656 = vst.msk [vmem:[#allocation2 + $0x78] sm:$0xff] %vm545, %v9638
  %9657 = vrot.lane.b32.xlu0 %v9031, 120
  %v9658 = vpop.permute.xlu0 %9657
  %9659 = vrot.lane.b32.xlu0 %v9032, 120
  %v9660 = vpop.permute.xlu0 %9659
  %9661 = vrot.lane.b32.xlu0 %v9033, 120
  %v9662 = vpop.permute.xlu0 %9661
  %9663 = vrot.lane.b32.xlu0 %v9034, 120
  %v9664 = vpop.permute.xlu0 %9663
  %9665 = vrot.lane.b32.xlu0 %v9035, 120
  %v9666 = vpop.permute.xlu0 %9665
  %9667 = vrot.lane.b32.xlu0 %v9036, 120
  %v9668 = vpop.permute.xlu0 %9667
  %9669 = vrot.lane.b32.xlu0 %v9037, 120
  %v9670 = vpop.permute.xlu0 %9669
  %9671 = vrot.lane.b32.xlu0 %v9038, 120
  %v9672 = vpop.permute.xlu0 %9671
  %9673 = vrot.lane.b32.xlu0 %v9039, 120
  %v9674 = vpop.permute.xlu0 %9673
  %9675 = vrot.lane.b32.xlu0 %v9040, 120
  %v9676 = vpop.permute.xlu0 %9675
  %9677 = vrot.lane.b32.xlu0 %v9041, 120
  %v9678 = vpop.permute.xlu0 %9677
  %9679 = vrot.lane.b32.xlu0 %v9042, 120
  %v9680 = vpop.permute.xlu0 %9679
  %9681 = vrot.lane.b32.xlu0 %v9043, 120
  %v9682 = vpop.permute.xlu0 %9681
  %9683 = vrot.lane.b32.xlu0 %v9044, 120
  %v9684 = vpop.permute.xlu0 %9683
  %9685 = vrot.lane.b32.xlu0 %v9045, 120
  %v9686 = vpop.permute.xlu0 %9685
  %9687 = vrot.lane.b32.xlu0 %v9046, 120
  %v9688 = vpop.permute.xlu0 %9687
  %v9689 = vsel %vm545, %v9658, 0
  %v9691 = vsel %vm545, %v9660, 0
  %v9693 = vsel %vm545, %v9662, 0
  %v9695 = vsel %vm545, %v9664, 0
  %v9697 = vsel %vm545, %v9666, 0
  %v9699 = vsel %vm545, %v9668, 0
  %v9701 = vsel %vm545, %v9670, 0
  %v9703 = vsel %vm545, %v9672, 0
  %v9705 = vsel %vm545, %v9674, 0
  %v9707 = vsel %vm545, %v9676, 0
  %v9709 = vsel %vm545, %v9678, 0
  %v9711 = vsel %vm545, %v9680, 0
  %v9713 = vsel %vm545, %v9682, 0
  %v9715 = vsel %vm545, %v9684, 0
  %v9717 = vsel %vm545, %v9686, 0
  %v9719 = vsel %vm545, %v9688, 0
  %9721 = vmatprep.subr.mxu0 0.0
  %9722 = vmatpush1.msra.mxu0 0.0
  %9723 = vmatprep.subr.mxu0 0.0
  %9724 = vmatpush1.msra.mxu0 0.0
  %9725 = vmatprep.subr.mxu0 0.0
  %9726 = vmatpush1.msra.mxu0 0.0
  %9727 = vmatprep.subr.mxu0 0.0
  %9728 = vmatpush1.msra.mxu0 0.0
  %9729 = vmatprep.subr.mxu0 0.0
  %9730 = vmatpush1.msra.mxu0 0.0
  %9731 = vmatprep.subr.mxu0 0.0
  %9732 = vmatpush1.msra.mxu0 0.0
  %9733 = vmatprep.subr.mxu0 0.0
  %9734 = vmatpush1.msra.mxu0 0.0
  %9735 = vmatprep.subr.mxu0 0.0
  %9736 = vmatpush1.msra.mxu0 0.0
  %9737 = vmatprep.subr.mxu0 0.0
  %9738 = vmatpush1.msra.mxu0 0.0
  %9739 = vmatprep.subr.mxu0 0.0
  %9740 = vmatpush1.msra.mxu0 0.0
  %9741 = vmatprep.subr.mxu0 0.0
  %9742 = vmatpush1.msra.mxu0 0.0
  %9743 = vmatprep.subr.mxu0 0.0
  %9744 = vmatpush1.msra.mxu0 0.0
  %9745 = vmatprep.subr.mxu0 0.0
  %9746 = vmatpush1.msra.mxu0 0.0
  %9747 = vmatprep.subr.mxu0 0.0
  %9748 = vmatpush1.msra.mxu0 0.0
  %9749 = vmatprep.subr.mxu0 0.0
  %9750 = vmatpush1.msra.mxu0 0.0
  %9751 = vmatprep.subr.mxu0 %v6104
  %9752 = vmatpush1.msra.mxu0 %v6102
  %9753 = vmatprep.subr.mxu0 0.0
  %9754 = vmatpush2.msra.mxu0 0.0
  %9755 = vmatprep.subr.mxu0 0.0
  %9756 = vmatpush2.msra.mxu0 0.0
  %9757 = vmatprep.subr.mxu0 0.0
  %9758 = vmatpush2.msra.mxu0 0.0
  %9759 = vmatprep.subr.mxu0 0.0
  %9760 = vmatpush2.msra.mxu0 0.0
  %9761 = vmatprep.subr.mxu0 0.0
  %9762 = vmatpush2.msra.mxu0 0.0
  %9763 = vmatprep.subr.mxu0 0.0
  %9764 = vmatpush2.msra.mxu0 0.0
  %9765 = vmatprep.subr.mxu0 0.0
  %9766 = vmatpush2.msra.mxu0 0.0
  %9767 = vmatprep.subr.mxu0 0.0
  %9768 = vmatpush2.msra.mxu0 0.0
  %9769 = vmatprep.subr.mxu0 0.0
  %9770 = vmatpush2.msra.mxu0 0.0
  %9771 = vmatprep.subr.mxu0 0.0
  %9772 = vmatpush2.msra.mxu0 0.0
  %9773 = vmatprep.subr.mxu0 0.0
  %9774 = vmatpush2.msra.mxu0 0.0
  %9775 = vmatprep.subr.mxu0 0.0
  %9776 = vmatpush2.msra.mxu0 0.0
  %9777 = vmatprep.subr.mxu0 0.0
  %9778 = vmatpush2.msra.mxu0 0.0
  %9779 = vmatprep.subr.mxu0 0.0
  %9780 = vmatpush2.msra.mxu0 0.0
  %9781 = vmatprep.subr.mxu0 0.0
  %9782 = vmatpush2.msra.mxu0 0.0
  %9783 = vmatprep.subr.mxu0 0.0
  %9784 = vmatpush2.msra.mxu0 0.0
  %9785 = vmatprep.mubr.f32.mxu0 0.0
  %9786 = vmatmul.mubr.f32.gmra.mxu0 %v9689
  %v9787 = vpop.f32.mrf.mxu0
  %v9788 = vadd.f32 0.0, %v9787
  %v9789 = vpop.f32.mrf.mxu0
  %v9790 = vadd.f32 0.0, %v9789
  %9791 = vmatprep.mubr.f32.mxu0 0.0
  %9792 = vmatmul.mubr.f32.gmra.mxu0 %v9691
  %v9793 = vpop.f32.mrf.mxu0
  %v9794 = vadd.f32 0.0, %v9793
  %v9795 = vpop.f32.mrf.mxu0
  %v9796 = vadd.f32 0.0, %v9795
  %9797 = vmatprep.mubr.f32.mxu0 0.0
  %9798 = vmatmul.mubr.f32.gmra.mxu0 %v9693
  %v9799 = vpop.f32.mrf.mxu0
  %v9800 = vadd.f32 0.0, %v9799
  %v9801 = vpop.f32.mrf.mxu0
  %v9802 = vadd.f32 0.0, %v9801
  %9803 = vmatprep.mubr.f32.mxu0 0.0
  %9804 = vmatmul.mubr.f32.gmra.mxu0 %v9695
  %v9805 = vpop.f32.mrf.mxu0
  %v9806 = vadd.f32 0.0, %v9805
  %v9807 = vpop.f32.mrf.mxu0
  %v9808 = vadd.f32 0.0, %v9807
  %9809 = vmatprep.mubr.f32.mxu0 0.0
  %9810 = vmatmul.mubr.f32.gmra.mxu0 %v9697
  %v9811 = vpop.f32.mrf.mxu0
  %v9812 = vadd.f32 0.0, %v9811
  %v9813 = vpop.f32.mrf.mxu0
  %v9814 = vadd.f32 0.0, %v9813
  %9815 = vmatprep.mubr.f32.mxu0 0.0
  %9816 = vmatmul.mubr.f32.gmra.mxu0 %v9699
  %v9817 = vpop.f32.mrf.mxu0
  %v9818 = vadd.f32 0.0, %v9817
  %v9819 = vpop.f32.mrf.mxu0
  %v9820 = vadd.f32 0.0, %v9819
  %9821 = vmatprep.mubr.f32.mxu0 0.0
  %9822 = vmatmul.mubr.f32.gmra.mxu0 %v9701
  %v9823 = vpop.f32.mrf.mxu0
  %v9824 = vadd.f32 0.0, %v9823
  %v9825 = vpop.f32.mrf.mxu0
  %v9826 = vadd.f32 0.0, %v9825
  %9827 = vmatprep.mubr.f32.mxu0 0.0
  %9828 = vmatmul.mubr.f32.gmra.mxu0 %v9703
  %v9829 = vpop.f32.mrf.mxu0
  %v9830 = vadd.f32 0.0, %v9829
  %v9831 = vpop.f32.mrf.mxu0
  %v9832 = vadd.f32 0.0, %v9831
  %9833 = vmatprep.mubr.f32.mxu0 0.0
  %9834 = vmatmul.mubr.f32.gmra.mxu0 %v9705
  %v9835 = vpop.f32.mrf.mxu0
  %v9836 = vadd.f32 0.0, %v9835
  %v9837 = vpop.f32.mrf.mxu0
  %v9838 = vadd.f32 0.0, %v9837
  %9839 = vmatprep.mubr.f32.mxu0 0.0
  %9840 = vmatmul.mubr.f32.gmra.mxu0 %v9707
  %v9841 = vpop.f32.mrf.mxu0
  %v9842 = vadd.f32 0.0, %v9841
  %v9843 = vpop.f32.mrf.mxu0
  %v9844 = vadd.f32 0.0, %v9843
  %9845 = vmatprep.mubr.f32.mxu0 0.0
  %9846 = vmatmul.mubr.f32.gmra.mxu0 %v9709
  %v9847 = vpop.f32.mrf.mxu0
  %v9848 = vadd.f32 0.0, %v9847
  %v9849 = vpop.f32.mrf.mxu0
  %v9850 = vadd.f32 0.0, %v9849
  %9851 = vmatprep.mubr.f32.mxu0 0.0
  %9852 = vmatmul.mubr.f32.gmra.mxu0 %v9711
  %v9853 = vpop.f32.mrf.mxu0
  %v9854 = vadd.f32 0.0, %v9853
  %v9855 = vpop.f32.mrf.mxu0
  %v9856 = vadd.f32 0.0, %v9855
  %9857 = vmatprep.mubr.f32.mxu0 0.0
  %9858 = vmatmul.mubr.f32.gmra.mxu0 %v9713
  %v9859 = vpop.f32.mrf.mxu0
  %v9860 = vadd.f32 0.0, %v9859
  %v9861 = vpop.f32.mrf.mxu0
  %v9862 = vadd.f32 0.0, %v9861
  %9863 = vmatprep.mubr.f32.mxu0 0.0
  %9864 = vmatmul.mubr.f32.gmra.mxu0 %v9715
  %v9865 = vpop.f32.mrf.mxu0
  %v9866 = vadd.f32 0.0, %v9865
  %v9867 = vpop.f32.mrf.mxu0
  %v9868 = vadd.f32 0.0, %v9867
  %9869 = vmatprep.mubr.f32.mxu0 0.0
  %9870 = vmatmul.mubr.f32.gmra.mxu0 %v9717
  %v9871 = vpop.f32.mrf.mxu0
  %v9872 = vadd.f32 0.0, %v9871
  %v9873 = vpop.f32.mrf.mxu0
  %v9874 = vadd.f32 0.0, %v9873
  %9875 = vmatprep.mubr.f32.mxu0 0.0
  %9876 = vmatmul.mubr.f32.gmra.mxu0 %v9719
  %v9877 = vpop.f32.mrf.mxu0
  %v9878 = vadd.f32 0.0, %v9877
  %v9879 = vpop.f32.mrf.mxu0
  %v9880 = vadd.f32 0.0, %v9879
  %9881 = vdwg.mxu0
  %v9882 = vmax.f32 %v9788, %v9790
  %9883 = vmax.xlane.f32.xlu0 %v9882
  %v9884 = vpop.xlane.xlu0 %9883
  %v9885 = vmax.f32 %v9794, %v9796
  %9886 = vmax.xlane.f32.xlu0 %v9885
  %v9887 = vpop.xlane.xlu0 %9886
  %v9888 = vmax.f32 %v9800, %v9802
  %9889 = vmax.xlane.f32.xlu0 %v9888
  %v9890 = vpop.xlane.xlu0 %9889
  %v9891 = vmax.f32 %v9806, %v9808
  %9892 = vmax.xlane.f32.xlu0 %v9891
  %v9893 = vpop.xlane.xlu0 %9892
  %v9894 = vmax.f32 %v9812, %v9814
  %9895 = vmax.xlane.f32.xlu0 %v9894
  %v9896 = vpop.xlane.xlu0 %9895
  %v9897 = vmax.f32 %v9818, %v9820
  %9898 = vmax.xlane.f32.xlu0 %v9897
  %v9899 = vpop.xlane.xlu0 %9898
  %v9900 = vmax.f32 %v9824, %v9826
  %9901 = vmax.xlane.f32.xlu0 %v9900
  %v9902 = vpop.xlane.xlu0 %9901
  %v9903 = vmax.f32 %v9830, %v9832
  %9904 = vmax.xlane.f32.xlu0 %v9903
  %v9905 = vpop.xlane.xlu0 %9904
  %v9906 = vmax.f32 %v9836, %v9838
  %9907 = vmax.xlane.f32.xlu0 %v9906
  %v9908 = vpop.xlane.xlu0 %9907
  %v9909 = vmax.f32 %v9842, %v9844
  %9910 = vmax.xlane.f32.xlu0 %v9909
  %v9911 = vpop.xlane.xlu0 %9910
  %v9912 = vmax.f32 %v9848, %v9850
  %9913 = vmax.xlane.f32.xlu0 %v9912
  %v9914 = vpop.xlane.xlu0 %9913
  %v9915 = vmax.f32 %v9854, %v9856
  %9916 = vmax.xlane.f32.xlu0 %v9915
  %v9917 = vpop.xlane.xlu0 %9916
  %v9918 = vmax.f32 %v9860, %v9862
  %9919 = vmax.xlane.f32.xlu0 %v9918
  %v9920 = vpop.xlane.xlu0 %9919
  %v9921 = vmax.f32 %v9866, %v9868
  %9922 = vmax.xlane.f32.xlu0 %v9921
  %v9923 = vpop.xlane.xlu0 %9922
  %v9924 = vmax.f32 %v9872, %v9874
  %9925 = vmax.xlane.f32.xlu0 %v9924
  %v9926 = vpop.xlane.xlu0 %9925
  %v9927 = vmax.f32 %v9878, %v9880
  %9928 = vmax.xlane.f32.xlu0 %v9927
  %v9929 = vpop.xlane.xlu0 %9928
  %v9930 = vsub.f32 %v9788, %v9884
  %v9931 = vsub.f32 %v9790, %v9884
  %v9932 = vsub.f32 %v9794, %v9887
  %v9933 = vsub.f32 %v9796, %v9887
  %v9934 = vsub.f32 %v9800, %v9890
  %v9935 = vsub.f32 %v9802, %v9890
  %v9936 = vsub.f32 %v9806, %v9893
  %v9937 = vsub.f32 %v9808, %v9893
  %v9938 = vsub.f32 %v9812, %v9896
  %v9939 = vsub.f32 %v9814, %v9896
  %v9940 = vsub.f32 %v9818, %v9899
  %v9941 = vsub.f32 %v9820, %v9899
  %v9942 = vsub.f32 %v9824, %v9902
  %v9943 = vsub.f32 %v9826, %v9902
  %v9944 = vsub.f32 %v9830, %v9905
  %v9945 = vsub.f32 %v9832, %v9905
  %v9946 = vsub.f32 %v9836, %v9908
  %v9947 = vsub.f32 %v9838, %v9908
  %v9948 = vsub.f32 %v9842, %v9911
  %v9949 = vsub.f32 %v9844, %v9911
  %v9950 = vsub.f32 %v9848, %v9914
  %v9951 = vsub.f32 %v9850, %v9914
  %v9952 = vsub.f32 %v9854, %v9917
  %v9953 = vsub.f32 %v9856, %v9917
  %v9954 = vsub.f32 %v9860, %v9920
  %v9955 = vsub.f32 %v9862, %v9920
  %v9956 = vsub.f32 %v9866, %v9923
  %v9957 = vsub.f32 %v9868, %v9923
  %v9958 = vsub.f32 %v9872, %v9926
  %v9959 = vsub.f32 %v9874, %v9926
  %v9960 = vsub.f32 %v9878, %v9929
  %v9961 = vsub.f32 %v9880, %v9929
  %v9962 = vmul.f32 %v9930, 1.442695
  %v9963 = vpow.pop %v9962
  %v9964 = vmul.f32 %v9931, 1.442695
  %v9965 = vpow.pop %v9964
  %v9966 = vmul.f32 %v9932, 1.442695
  %v9967 = vpow.pop %v9966
  %v9968 = vmul.f32 %v9933, 1.442695
  %v9969 = vpow.pop %v9968
  %v9970 = vmul.f32 %v9934, 1.442695
  %v9971 = vpow.pop %v9970
  %v9972 = vmul.f32 %v9935, 1.442695
  %v9973 = vpow.pop %v9972
  %v9974 = vmul.f32 %v9936, 1.442695
  %v9975 = vpow.pop %v9974
  %v9976 = vmul.f32 %v9937, 1.442695
  %v9977 = vpow.pop %v9976
  %v9978 = vmul.f32 %v9938, 1.442695
  %v9979 = vpow.pop %v9978
  %v9980 = vmul.f32 %v9939, 1.442695
  %v9981 = vpow.pop %v9980
  %v9982 = vmul.f32 %v9940, 1.442695
  %v9983 = vpow.pop %v9982
  %v9984 = vmul.f32 %v9941, 1.442695
  %v9985 = vpow.pop %v9984
  %v9986 = vmul.f32 %v9942, 1.442695
  %v9987 = vpow.pop %v9986
  %v9988 = vmul.f32 %v9943, 1.442695
  %v9989 = vpow.pop %v9988
  %v9990 = vmul.f32 %v9944, 1.442695
  %v9991 = vpow.pop %v9990
  %v9992 = vmul.f32 %v9945, 1.442695
  %v9993 = vpow.pop %v9992
  %v9994 = vmul.f32 %v9946, 1.442695
  %v9995 = vpow.pop %v9994
  %v9996 = vmul.f32 %v9947, 1.442695
  %v9997 = vpow.pop %v9996
  %v9998 = vmul.f32 %v9948, 1.442695
  %v9999 = vpow.pop %v9998
  %v10000 = vmul.f32 %v9949, 1.442695
  %v10001 = vpow.pop %v10000
  %v10002 = vmul.f32 %v9950, 1.442695
  %v10003 = vpow.pop %v10002
  %v10004 = vmul.f32 %v9951, 1.442695
  %v10005 = vpow.pop %v10004
  %v10006 = vmul.f32 %v9952, 1.442695
  %v10007 = vpow.pop %v10006
  %v10008 = vmul.f32 %v9953, 1.442695
  %v10009 = vpow.pop %v10008
  %v10010 = vmul.f32 %v9954, 1.442695
  %v10011 = vpow.pop %v10010
  %v10012 = vmul.f32 %v9955, 1.442695
  %v10013 = vpow.pop %v10012
  %v10014 = vmul.f32 %v9956, 1.442695
  %v10015 = vpow.pop %v10014
  %v10016 = vmul.f32 %v9957, 1.442695
  %v10017 = vpow.pop %v10016
  %v10018 = vmul.f32 %v9958, 1.442695
  %v10019 = vpow.pop %v10018
  %v10020 = vmul.f32 %v9959, 1.442695
  %v10021 = vpow.pop %v10020
  %v10022 = vmul.f32 %v9960, 1.442695
  %v10023 = vpow.pop %v10022
  %v10024 = vmul.f32 %v9961, 1.442695
  %v10025 = vpow.pop %v10024
  %v10026 = vadd.f32 %v9963, %v9965
  %10027 = vadd.xlane.f32.xlu0 %v10026
  %v10028 = vpop.xlane.xlu0 %10027
  %v10029 = vadd.f32 %v9967, %v9969
  %10030 = vadd.xlane.f32.xlu0 %v10029
  %v10031 = vpop.xlane.xlu0 %10030
  %v10032 = vadd.f32 %v9971, %v9973
  %10033 = vadd.xlane.f32.xlu0 %v10032
  %v10034 = vpop.xlane.xlu0 %10033
  %v10035 = vadd.f32 %v9975, %v9977
  %10036 = vadd.xlane.f32.xlu0 %v10035
  %v10037 = vpop.xlane.xlu0 %10036
  %v10038 = vadd.f32 %v9979, %v9981
  %10039 = vadd.xlane.f32.xlu0 %v10038
  %v10040 = vpop.xlane.xlu0 %10039
  %v10041 = vadd.f32 %v9983, %v9985
  %10042 = vadd.xlane.f32.xlu0 %v10041
  %v10043 = vpop.xlane.xlu0 %10042
  %v10044 = vadd.f32 %v9987, %v9989
  %10045 = vadd.xlane.f32.xlu0 %v10044
  %v10046 = vpop.xlane.xlu0 %10045
  %v10047 = vadd.f32 %v9991, %v9993
  %10048 = vadd.xlane.f32.xlu0 %v10047
  %v10049 = vpop.xlane.xlu0 %10048
  %v10050 = vadd.f32 %v9995, %v9997
  %10051 = vadd.xlane.f32.xlu0 %v10050
  %v10052 = vpop.xlane.xlu0 %10051
  %v10053 = vadd.f32 %v9999, %v10001
  %10054 = vadd.xlane.f32.xlu0 %v10053
  %v10055 = vpop.xlane.xlu0 %10054
  %v10056 = vadd.f32 %v10003, %v10005
  %10057 = vadd.xlane.f32.xlu0 %v10056
  %v10058 = vpop.xlane.xlu0 %10057
  %v10059 = vadd.f32 %v10007, %v10009
  %10060 = vadd.xlane.f32.xlu0 %v10059
  %v10061 = vpop.xlane.xlu0 %10060
  %v10062 = vadd.f32 %v10011, %v10013
  %10063 = vadd.xlane.f32.xlu0 %v10062
  %v10064 = vpop.xlane.xlu0 %10063
  %v10065 = vadd.f32 %v10015, %v10017
  %10066 = vadd.xlane.f32.xlu0 %v10065
  %v10067 = vpop.xlane.xlu0 %10066
  %v10068 = vadd.f32 %v10019, %v10021
  %10069 = vadd.xlane.f32.xlu0 %v10068
  %v10070 = vpop.xlane.xlu0 %10069
  %v10071 = vadd.f32 %v10023, %v10025
  %10072 = vadd.xlane.f32.xlu0 %v10071
  %v10073 = vpop.xlane.xlu0 %10072
  %v10074 = vrcp.pop %v10028
  %v10075 = vmul.f32 %v9963, %v10074
  %v10076 = vmul.f32 %v9965, %v10074
  %v10077 = vrcp.pop %v10031
  %v10078 = vmul.f32 %v9967, %v10077
  %v10079 = vmul.f32 %v9969, %v10077
  %v10080 = vrcp.pop %v10034
  %v10081 = vmul.f32 %v9971, %v10080
  %v10082 = vmul.f32 %v9973, %v10080
  %v10083 = vrcp.pop %v10037
  %v10084 = vmul.f32 %v9975, %v10083
  %v10085 = vmul.f32 %v9977, %v10083
  %v10086 = vrcp.pop %v10040
  %v10087 = vmul.f32 %v9979, %v10086
  %v10088 = vmul.f32 %v9981, %v10086
  %v10089 = vrcp.pop %v10043
  %v10090 = vmul.f32 %v9983, %v10089
  %v10091 = vmul.f32 %v9985, %v10089
  %v10092 = vrcp.pop %v10046
  %v10093 = vmul.f32 %v9987, %v10092
  %v10094 = vmul.f32 %v9989, %v10092
  %v10095 = vrcp.pop %v10049
  %v10096 = vmul.f32 %v9991, %v10095
  %v10097 = vmul.f32 %v9993, %v10095
  %v10098 = vrcp.pop %v10052
  %v10099 = vmul.f32 %v9995, %v10098
  %v10100 = vmul.f32 %v9997, %v10098
  %v10101 = vrcp.pop %v10055
  %v10102 = vmul.f32 %v9999, %v10101
  %v10103 = vmul.f32 %v10001, %v10101
  %v10104 = vrcp.pop %v10058
  %v10105 = vmul.f32 %v10003, %v10104
  %v10106 = vmul.f32 %v10005, %v10104
  %v10107 = vrcp.pop %v10061
  %v10108 = vmul.f32 %v10007, %v10107
  %v10109 = vmul.f32 %v10009, %v10107
  %v10110 = vrcp.pop %v10064
  %v10111 = vmul.f32 %v10011, %v10110
  %v10112 = vmul.f32 %v10013, %v10110
  %v10113 = vrcp.pop %v10067
  %v10114 = vmul.f32 %v10015, %v10113
  %v10115 = vmul.f32 %v10017, %v10113
  %v10116 = vrcp.pop %v10070
  %v10117 = vmul.f32 %v10019, %v10116
  %v10118 = vmul.f32 %v10021, %v10116
  %v10119 = vrcp.pop %v10073
  %v10120 = vmul.f32 %v10023, %v10119
  %v10121 = vmul.f32 %v10025, %v10119
  %10122 = vmatprep.subr.mxu0 0.0
  %10123 = vmatpush1.xpose.msra.mxu0 0.0
  %10124 = vmatprep.subr.mxu0 0.0
  %10125 = vmatpush1.xpose.msra.mxu0 0.0
  %10126 = vmatprep.subr.mxu0 0.0
  %10127 = vmatpush1.xpose.msra.mxu0 0.0
  %10128 = vmatprep.subr.mxu0 0.0
  %10129 = vmatpush1.xpose.msra.mxu0 0.0
  %10130 = vmatprep.subr.mxu0 0.0
  %10131 = vmatpush1.xpose.msra.mxu0 0.0
  %10132 = vmatprep.subr.mxu0 0.0
  %10133 = vmatpush1.xpose.msra.mxu0 0.0
  %10134 = vmatprep.subr.mxu0 0.0
  %10135 = vmatpush1.xpose.msra.mxu0 0.0
  %10136 = vmatprep.subr.mxu0 0.0
  %10137 = vmatpush1.xpose.msra.mxu0 0.0
  %10138 = vmatprep.subr.mxu0 0.0
  %10139 = vmatpush1.xpose.msra.mxu0 0.0
  %10140 = vmatprep.subr.mxu0 0.0
  %10141 = vmatpush1.xpose.msra.mxu0 0.0
  %10142 = vmatprep.subr.mxu0 0.0
  %10143 = vmatpush1.xpose.msra.mxu0 0.0
  %10144 = vmatprep.subr.mxu0 0.0
  %10145 = vmatpush1.xpose.msra.mxu0 0.0
  %10146 = vmatprep.subr.mxu0 0.0
  %10147 = vmatpush1.xpose.msra.mxu0 0.0
  %10148 = vmatprep.subr.mxu0 0.0
  %10149 = vmatpush1.xpose.msra.mxu0 0.0
  %10150 = vmatprep.subr.mxu0 0.0
  %10151 = vmatpush1.xpose.msra.mxu0 0.0
  %10152 = vmatprep.subr.mxu0 %v6128
  %10153 = vmatpush1.xpose.msra.mxu0 %v6126
  %10154 = vmatprep.subr.mxu0 0.0
  %10155 = vmatpush2.xpose.msra.mxu0 0.0
  %10156 = vmatprep.subr.mxu0 0.0
  %10157 = vmatpush2.xpose.msra.mxu0 0.0
  %10158 = vmatprep.subr.mxu0 0.0
  %10159 = vmatpush2.xpose.msra.mxu0 0.0
  %10160 = vmatprep.subr.mxu0 0.0
  %10161 = vmatpush2.xpose.msra.mxu0 0.0
  %10162 = vmatprep.subr.mxu0 0.0
  %10163 = vmatpush2.xpose.msra.mxu0 0.0
  %10164 = vmatprep.subr.mxu0 0.0
  %10165 = vmatpush2.xpose.msra.mxu0 0.0
  %10166 = vmatprep.subr.mxu0 0.0
  %10167 = vmatpush2.xpose.msra.mxu0 0.0
  %10168 = vmatprep.subr.mxu0 0.0
  %10169 = vmatpush2.xpose.msra.mxu0 0.0
  %10170 = vmatprep.subr.mxu0 0.0
  %10171 = vmatpush2.xpose.msra.mxu0 0.0
  %10172 = vmatprep.subr.mxu0 0.0
  %10173 = vmatpush2.xpose.msra.mxu0 0.0
  %10174 = vmatprep.subr.mxu0 0.0
  %10175 = vmatpush2.xpose.msra.mxu0 0.0
  %10176 = vmatprep.subr.mxu0 0.0
  %10177 = vmatpush2.xpose.msra.mxu0 0.0
  %10178 = vmatprep.subr.mxu0 0.0
  %10179 = vmatpush2.xpose.msra.mxu0 0.0
  %10180 = vmatprep.subr.mxu0 0.0
  %10181 = vmatpush2.xpose.msra.mxu0 0.0
  %10182 = vmatprep.subr.mxu0 0.0
  %10183 = vmatpush2.xpose.msra.mxu0 0.0
  %10184 = vmatprep.subr.mxu0 0.0
  %10185 = vmatpush2.xpose.msra.mxu0 0.0
  %10186 = vmatprep.mubr.f32.mxu0 %v10076
  %10187 = vmatmul.mubr.f32.gmra.mxu0 %v10075
  %v10188 = vpop.f32.mrf.mxu0
  %v10189 = vadd.f32 0.0, %v10188
  %v10190 = vpop.f32.mrf.mxu0
  %10191 = vmatprep.mubr.f32.mxu0 %v10079
  %10192 = vmatmul.mubr.f32.gmra.mxu0 %v10078
  %v10193 = vpop.f32.mrf.mxu0
  %v10194 = vadd.f32 0.0, %v10193
  %v10195 = vpop.f32.mrf.mxu0
  %10196 = vmatprep.mubr.f32.mxu0 %v10082
  %10197 = vmatmul.mubr.f32.gmra.mxu0 %v10081
  %v10198 = vpop.f32.mrf.mxu0
  %v10199 = vadd.f32 0.0, %v10198
  %v10200 = vpop.f32.mrf.mxu0
  %10201 = vmatprep.mubr.f32.mxu0 %v10085
  %10202 = vmatmul.mubr.f32.gmra.mxu0 %v10084
  %v10203 = vpop.f32.mrf.mxu0
  %v10204 = vadd.f32 0.0, %v10203
  %v10205 = vpop.f32.mrf.mxu0
  %10206 = vmatprep.mubr.f32.mxu0 %v10088
  %10207 = vmatmul.mubr.f32.gmra.mxu0 %v10087
  %v10208 = vpop.f32.mrf.mxu0
  %v10209 = vadd.f32 0.0, %v10208
  %v10210 = vpop.f32.mrf.mxu0
  %10211 = vmatprep.mubr.f32.mxu0 %v10091
  %10212 = vmatmul.mubr.f32.gmra.mxu0 %v10090
  %v10213 = vpop.f32.mrf.mxu0
  %v10214 = vadd.f32 0.0, %v10213
  %v10215 = vpop.f32.mrf.mxu0
  %10216 = vmatprep.mubr.f32.mxu0 %v10094
  %10217 = vmatmul.mubr.f32.gmra.mxu0 %v10093
  %v10218 = vpop.f32.mrf.mxu0
  %v10219 = vadd.f32 0.0, %v10218
  %v10220 = vpop.f32.mrf.mxu0
  %10221 = vmatprep.mubr.f32.mxu0 %v10097
  %10222 = vmatmul.mubr.f32.gmra.mxu0 %v10096
  %v10223 = vpop.f32.mrf.mxu0
  %v10224 = vadd.f32 0.0, %v10223
  %v10225 = vpop.f32.mrf.mxu0
  %10226 = vmatprep.mubr.f32.mxu0 %v10100
  %10227 = vmatmul.mubr.f32.gmra.mxu0 %v10099
  %v10228 = vpop.f32.mrf.mxu0
  %v10229 = vadd.f32 0.0, %v10228
  %v10230 = vpop.f32.mrf.mxu0
  %10231 = vmatprep.mubr.f32.mxu0 %v10103
  %10232 = vmatmul.mubr.f32.gmra.mxu0 %v10102
  %v10233 = vpop.f32.mrf.mxu0
  %v10234 = vadd.f32 0.0, %v10233
  %v10235 = vpop.f32.mrf.mxu0
  %10236 = vmatprep.mubr.f32.mxu0 %v10106
  %10237 = vmatmul.mubr.f32.gmra.mxu0 %v10105
  %v10238 = vpop.f32.mrf.mxu0
  %v10239 = vadd.f32 0.0, %v10238
  %v10240 = vpop.f32.mrf.mxu0
  %10241 = vmatprep.mubr.f32.mxu0 %v10109
  %10242 = vmatmul.mubr.f32.gmra.mxu0 %v10108
  %v10243 = vpop.f32.mrf.mxu0
  %v10244 = vadd.f32 0.0, %v10243
  %v10245 = vpop.f32.mrf.mxu0
  %10246 = vmatprep.mubr.f32.mxu0 %v10112
  %10247 = vmatmul.mubr.f32.gmra.mxu0 %v10111
  %v10248 = vpop.f32.mrf.mxu0
  %v10249 = vadd.f32 0.0, %v10248
  %v10250 = vpop.f32.mrf.mxu0
  %10251 = vmatprep.mubr.f32.mxu0 %v10115
  %10252 = vmatmul.mubr.f32.gmra.mxu0 %v10114
  %v10253 = vpop.f32.mrf.mxu0
  %v10254 = vadd.f32 0.0, %v10253
  %v10255 = vpop.f32.mrf.mxu0
  %10256 = vmatprep.mubr.f32.mxu0 %v10118
  %10257 = vmatmul.mubr.f32.gmra.mxu0 %v10117
  %v10258 = vpop.f32.mrf.mxu0
  %v10259 = vadd.f32 0.0, %v10258
  %v10260 = vpop.f32.mrf.mxu0
  %10261 = vmatprep.mubr.f32.mxu0 %v10121
  %10262 = vmatmul.mubr.f32.gmra.mxu0 %v10120
  %v10263 = vpop.f32.mrf.mxu0
  %v10264 = vadd.f32 0.0, %v10263
  %v10265 = vpop.f32.mrf.mxu0
  %10266 = vdwg.mxu0
  %10283 = vrot.lane.b32.xlu0 %v10189, 8
  %v10284 = vpop.permute.xlu0 %10283
  %10285 = vrot.lane.b32.xlu0 %v10194, 8
  %v10286 = vpop.permute.xlu0 %10285
  %10287 = vrot.lane.b32.xlu0 %v10199, 8
  %v10288 = vpop.permute.xlu0 %10287
  %10289 = vrot.lane.b32.xlu0 %v10204, 8
  %v10290 = vpop.permute.xlu0 %10289
  %10291 = vrot.lane.b32.xlu0 %v10209, 8
  %v10292 = vpop.permute.xlu0 %10291
  %10293 = vrot.lane.b32.xlu0 %v10214, 8
  %v10294 = vpop.permute.xlu0 %10293
  %10295 = vrot.lane.b32.xlu0 %v10219, 8
  %v10296 = vpop.permute.xlu0 %10295
  %10297 = vrot.lane.b32.xlu0 %v10224, 8
  %v10298 = vpop.permute.xlu0 %10297
  %10299 = vrot.lane.b32.xlu0 %v10229, 8
  %v10300 = vpop.permute.xlu0 %10299
  %10301 = vrot.lane.b32.xlu0 %v10234, 8
  %v10302 = vpop.permute.xlu0 %10301
  %10303 = vrot.lane.b32.xlu0 %v10239, 8
  %v10304 = vpop.permute.xlu0 %10303
  %10305 = vrot.lane.b32.xlu0 %v10244, 8
  %v10306 = vpop.permute.xlu0 %10305
  %10307 = vrot.lane.b32.xlu0 %v10249, 8
  %v10308 = vpop.permute.xlu0 %10307
  %10309 = vrot.lane.b32.xlu0 %v10254, 8
  %v10310 = vpop.permute.xlu0 %10309
  %10311 = vrot.lane.b32.xlu0 %v10259, 8
  %v10312 = vpop.permute.xlu0 %10311
  %10313 = vrot.lane.b32.xlu0 %v10264, 8
  %v10314 = vpop.permute.xlu0 %10313
  %10331 = vst.msk [vmem:[#allocation2] sm:$0xff] %vm1606, %v10284
  %10332 = vst.msk [vmem:[#allocation2 + $0x8] sm:$0xff] %vm1606, %v10286
  %10333 = vst.msk [vmem:[#allocation2 + $0x10] sm:$0xff] %vm1606, %v10288
  %10334 = vst.msk [vmem:[#allocation2 + $0x18] sm:$0xff] %vm1606, %v10290
  %10335 = vst.msk [vmem:[#allocation2 + $0x20] sm:$0xff] %vm1606, %v10292
  %10336 = vst.msk [vmem:[#allocation2 + $0x28] sm:$0xff] %vm1606, %v10294
  %10337 = vst.msk [vmem:[#allocation2 + $0x30] sm:$0xff] %vm1606, %v10296
  %10338 = vst.msk [vmem:[#allocation2 + $0x38] sm:$0xff] %vm1606, %v10298
  %10339 = vst.msk [vmem:[#allocation2 + $0x40] sm:$0xff] %vm1606, %v10300
  %10340 = vst.msk [vmem:[#allocation2 + $0x48] sm:$0xff] %vm1606, %v10302
  %10341 = vst.msk [vmem:[#allocation2 + $0x50] sm:$0xff] %vm1606, %v10304
  %10342 = vst.msk [vmem:[#allocation2 + $0x58] sm:$0xff] %vm1606, %v10306
  %10343 = vst.msk [vmem:[#allocation2 + $0x60] sm:$0xff] %vm1606, %v10308
  %10344 = vst.msk [vmem:[#allocation2 + $0x68] sm:$0xff] %vm1606, %v10310
  %10345 = vst.msk [vmem:[#allocation2 + $0x70] sm:$0xff] %vm1606, %v10312
  %10346 = vst.msk [vmem:[#allocation2 + $0x78] sm:$0xff] %vm1606, %v10314
  %10347 = vrot.lane.b32.xlu0 %v9031, 112
  %v10348 = vpop.permute.xlu0 %10347
  %10349 = vrot.lane.b32.xlu0 %v9032, 112
  %v10350 = vpop.permute.xlu0 %10349
  %10351 = vrot.lane.b32.xlu0 %v9033, 112
  %v10352 = vpop.permute.xlu0 %10351
  %10353 = vrot.lane.b32.xlu0 %v9034, 112
  %v10354 = vpop.permute.xlu0 %10353
  %10355 = vrot.lane.b32.xlu0 %v9035, 112
  %v10356 = vpop.permute.xlu0 %10355
  %10357 = vrot.lane.b32.xlu0 %v9036, 112
  %v10358 = vpop.permute.xlu0 %10357
  %10359 = vrot.lane.b32.xlu0 %v9037, 112
  %v10360 = vpop.permute.xlu0 %10359
  %10361 = vrot.lane.b32.xlu0 %v9038, 112
  %v10362 = vpop.permute.xlu0 %10361
  %10363 = vrot.lane.b32.xlu0 %v9039, 112
  %v10364 = vpop.permute.xlu0 %10363
  %10365 = vrot.lane.b32.xlu0 %v9040, 112
  %v10366 = vpop.permute.xlu0 %10365
  %10367 = vrot.lane.b32.xlu0 %v9041, 112
  %v10368 = vpop.permute.xlu0 %10367
  %10369 = vrot.lane.b32.xlu0 %v9042, 112
  %v10370 = vpop.permute.xlu0 %10369
  %10371 = vrot.lane.b32.xlu0 %v9043, 112
  %v10372 = vpop.permute.xlu0 %10371
  %10373 = vrot.lane.b32.xlu0 %v9044, 112
  %v10374 = vpop.permute.xlu0 %10373
  %10375 = vrot.lane.b32.xlu0 %v9045, 112
  %v10376 = vpop.permute.xlu0 %10375
  %10377 = vrot.lane.b32.xlu0 %v9046, 112
  %v10378 = vpop.permute.xlu0 %10377
  %v10379 = vsel %vm545, %v10348, 0
  %v10381 = vsel %vm545, %v10350, 0
  %v10383 = vsel %vm545, %v10352, 0
  %v10385 = vsel %vm545, %v10354, 0
  %v10387 = vsel %vm545, %v10356, 0
  %v10389 = vsel %vm545, %v10358, 0
  %v10391 = vsel %vm545, %v10360, 0
  %v10393 = vsel %vm545, %v10362, 0
  %v10395 = vsel %vm545, %v10364, 0
  %v10397 = vsel %vm545, %v10366, 0
  %v10399 = vsel %vm545, %v10368, 0
  %v10401 = vsel %vm545, %v10370, 0
  %v10403 = vsel %vm545, %v10372, 0
  %v10405 = vsel %vm545, %v10374, 0
  %v10407 = vsel %vm545, %v10376, 0
  %v10409 = vsel %vm545, %v10378, 0
  %10411 = vmatprep.subr.mxu0 0.0
  %10412 = vmatpush1.msra.mxu0 0.0
  %10413 = vmatprep.subr.mxu0 0.0
  %10414 = vmatpush1.msra.mxu0 0.0
  %10415 = vmatprep.subr.mxu0 0.0
  %10416 = vmatpush1.msra.mxu0 0.0
  %10417 = vmatprep.subr.mxu0 0.0
  %10418 = vmatpush1.msra.mxu0 0.0
  %10419 = vmatprep.subr.mxu0 0.0
  %10420 = vmatpush1.msra.mxu0 0.0
  %10421 = vmatprep.subr.mxu0 0.0
  %10422 = vmatpush1.msra.mxu0 0.0
  %10423 = vmatprep.subr.mxu0 0.0
  %10424 = vmatpush1.msra.mxu0 0.0
  %10425 = vmatprep.subr.mxu0 0.0
  %10426 = vmatpush1.msra.mxu0 0.0
  %10427 = vmatprep.subr.mxu0 0.0
  %10428 = vmatpush1.msra.mxu0 0.0
  %10429 = vmatprep.subr.mxu0 0.0
  %10430 = vmatpush1.msra.mxu0 0.0
  %10431 = vmatprep.subr.mxu0 0.0
  %10432 = vmatpush1.msra.mxu0 0.0
  %10433 = vmatprep.subr.mxu0 0.0
  %10434 = vmatpush1.msra.mxu0 0.0
  %10435 = vmatprep.subr.mxu0 0.0
  %10436 = vmatpush1.msra.mxu0 0.0
  %10437 = vmatprep.subr.mxu0 0.0
  %10438 = vmatpush1.msra.mxu0 0.0
  %10439 = vmatprep.subr.mxu0 0.0
  %10440 = vmatpush1.msra.mxu0 0.0
  %10441 = vmatprep.subr.mxu0 %v6110
  %10442 = vmatpush1.msra.mxu0 %v6108
  %10443 = vmatprep.subr.mxu0 0.0
  %10444 = vmatpush2.msra.mxu0 0.0
  %10445 = vmatprep.subr.mxu0 0.0
  %10446 = vmatpush2.msra.mxu0 0.0
  %10447 = vmatprep.subr.mxu0 0.0
  %10448 = vmatpush2.msra.mxu0 0.0
  %10449 = vmatprep.subr.mxu0 0.0
  %10450 = vmatpush2.msra.mxu0 0.0
  %10451 = vmatprep.subr.mxu0 0.0
  %10452 = vmatpush2.msra.mxu0 0.0
  %10453 = vmatprep.subr.mxu0 0.0
  %10454 = vmatpush2.msra.mxu0 0.0
  %10455 = vmatprep.subr.mxu0 0.0
  %10456 = vmatpush2.msra.mxu0 0.0
  %10457 = vmatprep.subr.mxu0 0.0
  %10458 = vmatpush2.msra.mxu0 0.0
  %10459 = vmatprep.subr.mxu0 0.0
  %10460 = vmatpush2.msra.mxu0 0.0
  %10461 = vmatprep.subr.mxu0 0.0
  %10462 = vmatpush2.msra.mxu0 0.0
  %10463 = vmatprep.subr.mxu0 0.0
  %10464 = vmatpush2.msra.mxu0 0.0
  %10465 = vmatprep.subr.mxu0 0.0
  %10466 = vmatpush2.msra.mxu0 0.0
  %10467 = vmatprep.subr.mxu0 0.0
  %10468 = vmatpush2.msra.mxu0 0.0
  %10469 = vmatprep.subr.mxu0 0.0
  %10470 = vmatpush2.msra.mxu0 0.0
  %10471 = vmatprep.subr.mxu0 0.0
  %10472 = vmatpush2.msra.mxu0 0.0
  %10473 = vmatprep.subr.mxu0 0.0
  %10474 = vmatpush2.msra.mxu0 0.0
  %10475 = vmatprep.mubr.f32.mxu0 0.0
  %10476 = vmatmul.mubr.f32.gmra.mxu0 %v10379
  %v10477 = vpop.f32.mrf.mxu0
  %v10478 = vadd.f32 0.0, %v10477
  %v10479 = vpop.f32.mrf.mxu0
  %v10480 = vadd.f32 0.0, %v10479
  %10481 = vmatprep.mubr.f32.mxu0 0.0
  %10482 = vmatmul.mubr.f32.gmra.mxu0 %v10381
  %v10483 = vpop.f32.mrf.mxu0
  %v10484 = vadd.f32 0.0, %v10483
  %v10485 = vpop.f32.mrf.mxu0
  %v10486 = vadd.f32 0.0, %v10485
  %10487 = vmatprep.mubr.f32.mxu0 0.0
  %10488 = vmatmul.mubr.f32.gmra.mxu0 %v10383
  %v10489 = vpop.f32.mrf.mxu0
  %v10490 = vadd.f32 0.0, %v10489
  %v10491 = vpop.f32.mrf.mxu0
  %v10492 = vadd.f32 0.0, %v10491
  %10493 = vmatprep.mubr.f32.mxu0 0.0
  %10494 = vmatmul.mubr.f32.gmra.mxu0 %v10385
  %v10495 = vpop.f32.mrf.mxu0
  %v10496 = vadd.f32 0.0, %v10495
  %v10497 = vpop.f32.mrf.mxu0
  %v10498 = vadd.f32 0.0, %v10497
  %10499 = vmatprep.mubr.f32.mxu0 0.0
  %10500 = vmatmul.mubr.f32.gmra.mxu0 %v10387
  %v10501 = vpop.f32.mrf.mxu0
  %v10502 = vadd.f32 0.0, %v10501
  %v10503 = vpop.f32.mrf.mxu0
  %v10504 = vadd.f32 0.0, %v10503
  %10505 = vmatprep.mubr.f32.mxu0 0.0
  %10506 = vmatmul.mubr.f32.gmra.mxu0 %v10389
  %v10507 = vpop.f32.mrf.mxu0
  %v10508 = vadd.f32 0.0, %v10507
  %v10509 = vpop.f32.mrf.mxu0
  %v10510 = vadd.f32 0.0, %v10509
  %10511 = vmatprep.mubr.f32.mxu0 0.0
  %10512 = vmatmul.mubr.f32.gmra.mxu0 %v10391
  %v10513 = vpop.f32.mrf.mxu0
  %v10514 = vadd.f32 0.0, %v10513
  %v10515 = vpop.f32.mrf.mxu0
  %v10516 = vadd.f32 0.0, %v10515
  %10517 = vmatprep.mubr.f32.mxu0 0.0
  %10518 = vmatmul.mubr.f32.gmra.mxu0 %v10393
  %v10519 = vpop.f32.mrf.mxu0
  %v10520 = vadd.f32 0.0, %v10519
  %v10521 = vpop.f32.mrf.mxu0
  %v10522 = vadd.f32 0.0, %v10521
  %10523 = vmatprep.mubr.f32.mxu0 0.0
  %10524 = vmatmul.mubr.f32.gmra.mxu0 %v10395
  %v10525 = vpop.f32.mrf.mxu0
  %v10526 = vadd.f32 0.0, %v10525
  %v10527 = vpop.f32.mrf.mxu0
  %v10528 = vadd.f32 0.0, %v10527
  %10529 = vmatprep.mubr.f32.mxu0 0.0
  %10530 = vmatmul.mubr.f32.gmra.mxu0 %v10397
  %v10531 = vpop.f32.mrf.mxu0
  %v10532 = vadd.f32 0.0, %v10531
  %v10533 = vpop.f32.mrf.mxu0
  %v10534 = vadd.f32 0.0, %v10533
  %10535 = vmatprep.mubr.f32.mxu0 0.0
  %10536 = vmatmul.mubr.f32.gmra.mxu0 %v10399
  %v10537 = vpop.f32.mrf.mxu0
  %v10538 = vadd.f32 0.0, %v10537
  %v10539 = vpop.f32.mrf.mxu0
  %v10540 = vadd.f32 0.0, %v10539
  %10541 = vmatprep.mubr.f32.mxu0 0.0
  %10542 = vmatmul.mubr.f32.gmra.mxu0 %v10401
  %v10543 = vpop.f32.mrf.mxu0
  %v10544 = vadd.f32 0.0, %v10543
  %v10545 = vpop.f32.mrf.mxu0
  %v10546 = vadd.f32 0.0, %v10545
  %10547 = vmatprep.mubr.f32.mxu0 0.0
  %10548 = vmatmul.mubr.f32.gmra.mxu0 %v10403
  %v10549 = vpop.f32.mrf.mxu0
  %v10550 = vadd.f32 0.0, %v10549
  %v10551 = vpop.f32.mrf.mxu0
  %v10552 = vadd.f32 0.0, %v10551
  %10553 = vmatprep.mubr.f32.mxu0 0.0
  %10554 = vmatmul.mubr.f32.gmra.mxu0 %v10405
  %v10555 = vpop.f32.mrf.mxu0
  %v10556 = vadd.f32 0.0, %v10555
  %v10557 = vpop.f32.mrf.mxu0
  %v10558 = vadd.f32 0.0, %v10557
  %10559 = vmatprep.mubr.f32.mxu0 0.0
  %10560 = vmatmul.mubr.f32.gmra.mxu0 %v10407
  %v10561 = vpop.f32.mrf.mxu0
  %v10562 = vadd.f32 0.0, %v10561
  %v10563 = vpop.f32.mrf.mxu0
  %v10564 = vadd.f32 0.0, %v10563
  %10565 = vmatprep.mubr.f32.mxu0 0.0
  %10566 = vmatmul.mubr.f32.gmra.mxu0 %v10409
  %v10567 = vpop.f32.mrf.mxu0
  %v10568 = vadd.f32 0.0, %v10567
  %v10569 = vpop.f32.mrf.mxu0
  %v10570 = vadd.f32 0.0, %v10569
  %10571 = vdwg.mxu0
  %v10572 = vmax.f32 %v10478, %v10480
  %10573 = vmax.xlane.f32.xlu0 %v10572
  %v10574 = vpop.xlane.xlu0 %10573
  %v10575 = vmax.f32 %v10484, %v10486
  %10576 = vmax.xlane.f32.xlu0 %v10575
  %v10577 = vpop.xlane.xlu0 %10576
  %v10578 = vmax.f32 %v10490, %v10492
  %10579 = vmax.xlane.f32.xlu0 %v10578
  %v10580 = vpop.xlane.xlu0 %10579
  %v10581 = vmax.f32 %v10496, %v10498
  %10582 = vmax.xlane.f32.xlu0 %v10581
  %v10583 = vpop.xlane.xlu0 %10582
  %v10584 = vmax.f32 %v10502, %v10504
  %10585 = vmax.xlane.f32.xlu0 %v10584
  %v10586 = vpop.xlane.xlu0 %10585
  %v10587 = vmax.f32 %v10508, %v10510
  %10588 = vmax.xlane.f32.xlu0 %v10587
  %v10589 = vpop.xlane.xlu0 %10588
  %v10590 = vmax.f32 %v10514, %v10516
  %10591 = vmax.xlane.f32.xlu0 %v10590
  %v10592 = vpop.xlane.xlu0 %10591
  %v10593 = vmax.f32 %v10520, %v10522
  %10594 = vmax.xlane.f32.xlu0 %v10593
  %v10595 = vpop.xlane.xlu0 %10594
  %v10596 = vmax.f32 %v10526, %v10528
  %10597 = vmax.xlane.f32.xlu0 %v10596
  %v10598 = vpop.xlane.xlu0 %10597
  %v10599 = vmax.f32 %v10532, %v10534
  %10600 = vmax.xlane.f32.xlu0 %v10599
  %v10601 = vpop.xlane.xlu0 %10600
  %v10602 = vmax.f32 %v10538, %v10540
  %10603 = vmax.xlane.f32.xlu0 %v10602
  %v10604 = vpop.xlane.xlu0 %10603
  %v10605 = vmax.f32 %v10544, %v10546
  %10606 = vmax.xlane.f32.xlu0 %v10605
  %v10607 = vpop.xlane.xlu0 %10606
  %v10608 = vmax.f32 %v10550, %v10552
  %10609 = vmax.xlane.f32.xlu0 %v10608
  %v10610 = vpop.xlane.xlu0 %10609
  %v10611 = vmax.f32 %v10556, %v10558
  %10612 = vmax.xlane.f32.xlu0 %v10611
  %v10613 = vpop.xlane.xlu0 %10612
  %v10614 = vmax.f32 %v10562, %v10564
  %10615 = vmax.xlane.f32.xlu0 %v10614
  %v10616 = vpop.xlane.xlu0 %10615
  %v10617 = vmax.f32 %v10568, %v10570
  %10618 = vmax.xlane.f32.xlu0 %v10617
  %v10619 = vpop.xlane.xlu0 %10618
  %v10620 = vsub.f32 %v10478, %v10574
  %v10621 = vsub.f32 %v10480, %v10574
  %v10622 = vsub.f32 %v10484, %v10577
  %v10623 = vsub.f32 %v10486, %v10577
  %v10624 = vsub.f32 %v10490, %v10580
  %v10625 = vsub.f32 %v10492, %v10580
  %v10626 = vsub.f32 %v10496, %v10583
  %v10627 = vsub.f32 %v10498, %v10583
  %v10628 = vsub.f32 %v10502, %v10586
  %v10629 = vsub.f32 %v10504, %v10586
  %v10630 = vsub.f32 %v10508, %v10589
  %v10631 = vsub.f32 %v10510, %v10589
  %v10632 = vsub.f32 %v10514, %v10592
  %v10633 = vsub.f32 %v10516, %v10592
  %v10634 = vsub.f32 %v10520, %v10595
  %v10635 = vsub.f32 %v10522, %v10595
  %v10636 = vsub.f32 %v10526, %v10598
  %v10637 = vsub.f32 %v10528, %v10598
  %v10638 = vsub.f32 %v10532, %v10601
  %v10639 = vsub.f32 %v10534, %v10601
  %v10640 = vsub.f32 %v10538, %v10604
  %v10641 = vsub.f32 %v10540, %v10604
  %v10642 = vsub.f32 %v10544, %v10607
  %v10643 = vsub.f32 %v10546, %v10607
  %v10644 = vsub.f32 %v10550, %v10610
  %v10645 = vsub.f32 %v10552, %v10610
  %v10646 = vsub.f32 %v10556, %v10613
  %v10647 = vsub.f32 %v10558, %v10613
  %v10648 = vsub.f32 %v10562, %v10616
  %v10649 = vsub.f32 %v10564, %v10616
  %v10650 = vsub.f32 %v10568, %v10619
  %v10651 = vsub.f32 %v10570, %v10619
  %v10652 = vmul.f32 %v10620, 1.442695
  %v10653 = vpow.pop %v10652
  %v10654 = vmul.f32 %v10621, 1.442695
  %v10655 = vpow.pop %v10654
  %v10656 = vmul.f32 %v10622, 1.442695
  %v10657 = vpow.pop %v10656
  %v10658 = vmul.f32 %v10623, 1.442695
  %v10659 = vpow.pop %v10658
  %v10660 = vmul.f32 %v10624, 1.442695
  %v10661 = vpow.pop %v10660
  %v10662 = vmul.f32 %v10625, 1.442695
  %v10663 = vpow.pop %v10662
  %v10664 = vmul.f32 %v10626, 1.442695
  %v10665 = vpow.pop %v10664
  %v10666 = vmul.f32 %v10627, 1.442695
  %v10667 = vpow.pop %v10666
  %v10668 = vmul.f32 %v10628, 1.442695
  %v10669 = vpow.pop %v10668
  %v10670 = vmul.f32 %v10629, 1.442695
  %v10671 = vpow.pop %v10670
  %v10672 = vmul.f32 %v10630, 1.442695
  %v10673 = vpow.pop %v10672
  %v10674 = vmul.f32 %v10631, 1.442695
  %v10675 = vpow.pop %v10674
  %v10676 = vmul.f32 %v10632, 1.442695
  %v10677 = vpow.pop %v10676
  %v10678 = vmul.f32 %v10633, 1.442695
  %v10679 = vpow.pop %v10678
  %v10680 = vmul.f32 %v10634, 1.442695
  %v10681 = vpow.pop %v10680
  %v10682 = vmul.f32 %v10635, 1.442695
  %v10683 = vpow.pop %v10682
  %v10684 = vmul.f32 %v10636, 1.442695
  %v10685 = vpow.pop %v10684
  %v10686 = vmul.f32 %v10637, 1.442695
  %v10687 = vpow.pop %v10686
  %v10688 = vmul.f32 %v10638, 1.442695
  %v10689 = vpow.pop %v10688
  %v10690 = vmul.f32 %v10639, 1.442695
  %v10691 = vpow.pop %v10690
  %v10692 = vmul.f32 %v10640, 1.442695
  %v10693 = vpow.pop %v10692
  %v10694 = vmul.f32 %v10641, 1.442695
  %v10695 = vpow.pop %v10694
  %v10696 = vmul.f32 %v10642, 1.442695
  %v10697 = vpow.pop %v10696
  %v10698 = vmul.f32 %v10643, 1.442695
  %v10699 = vpow.pop %v10698
  %v10700 = vmul.f32 %v10644, 1.442695
  %v10701 = vpow.pop %v10700
  %v10702 = vmul.f32 %v10645, 1.442695
  %v10703 = vpow.pop %v10702
  %v10704 = vmul.f32 %v10646, 1.442695
  %v10705 = vpow.pop %v10704
  %v10706 = vmul.f32 %v10647, 1.442695
  %v10707 = vpow.pop %v10706
  %v10708 = vmul.f32 %v10648, 1.442695
  %v10709 = vpow.pop %v10708
  %v10710 = vmul.f32 %v10649, 1.442695
  %v10711 = vpow.pop %v10710
  %v10712 = vmul.f32 %v10650, 1.442695
  %v10713 = vpow.pop %v10712
  %v10714 = vmul.f32 %v10651, 1.442695
  %v10715 = vpow.pop %v10714
  %v10716 = vadd.f32 %v10653, %v10655
  %10717 = vadd.xlane.f32.xlu0 %v10716
  %v10718 = vpop.xlane.xlu0 %10717
  %v10719 = vadd.f32 %v10657, %v10659
  %10720 = vadd.xlane.f32.xlu0 %v10719
  %v10721 = vpop.xlane.xlu0 %10720
  %v10722 = vadd.f32 %v10661, %v10663
  %10723 = vadd.xlane.f32.xlu0 %v10722
  %v10724 = vpop.xlane.xlu0 %10723
  %v10725 = vadd.f32 %v10665, %v10667
  %10726 = vadd.xlane.f32.xlu0 %v10725
  %v10727 = vpop.xlane.xlu0 %10726
  %v10728 = vadd.f32 %v10669, %v10671
  %10729 = vadd.xlane.f32.xlu0 %v10728
  %v10730 = vpop.xlane.xlu0 %10729
  %v10731 = vadd.f32 %v10673, %v10675
  %10732 = vadd.xlane.f32.xlu0 %v10731
  %v10733 = vpop.xlane.xlu0 %10732
  %v10734 = vadd.f32 %v10677, %v10679
  %10735 = vadd.xlane.f32.xlu0 %v10734
  %v10736 = vpop.xlane.xlu0 %10735
  %v10737 = vadd.f32 %v10681, %v10683
  %10738 = vadd.xlane.f32.xlu0 %v10737
  %v10739 = vpop.xlane.xlu0 %10738
  %v10740 = vadd.f32 %v10685, %v10687
  %10741 = vadd.xlane.f32.xlu0 %v10740
  %v10742 = vpop.xlane.xlu0 %10741
  %v10743 = vadd.f32 %v10689, %v10691
  %10744 = vadd.xlane.f32.xlu0 %v10743
  %v10745 = vpop.xlane.xlu0 %10744
  %v10746 = vadd.f32 %v10693, %v10695
  %10747 = vadd.xlane.f32.xlu0 %v10746
  %v10748 = vpop.xlane.xlu0 %10747
  %v10749 = vadd.f32 %v10697, %v10699
  %10750 = vadd.xlane.f32.xlu0 %v10749
  %v10751 = vpop.xlane.xlu0 %10750
  %v10752 = vadd.f32 %v10701, %v10703
  %10753 = vadd.xlane.f32.xlu0 %v10752
  %v10754 = vpop.xlane.xlu0 %10753
  %v10755 = vadd.f32 %v10705, %v10707
  %10756 = vadd.xlane.f32.xlu0 %v10755
  %v10757 = vpop.xlane.xlu0 %10756
  %v10758 = vadd.f32 %v10709, %v10711
  %10759 = vadd.xlane.f32.xlu0 %v10758
  %v10760 = vpop.xlane.xlu0 %10759
  %v10761 = vadd.f32 %v10713, %v10715
  %10762 = vadd.xlane.f32.xlu0 %v10761
  %v10763 = vpop.xlane.xlu0 %10762
  %v10764 = vrcp.pop %v10718
  %v10765 = vmul.f32 %v10653, %v10764
  %v10766 = vmul.f32 %v10655, %v10764
  %v10767 = vrcp.pop %v10721
  %v10768 = vmul.f32 %v10657, %v10767
  %v10769 = vmul.f32 %v10659, %v10767
  %v10770 = vrcp.pop %v10724
  %v10771 = vmul.f32 %v10661, %v10770
  %v10772 = vmul.f32 %v10663, %v10770
  %v10773 = vrcp.pop %v10727
  %v10774 = vmul.f32 %v10665, %v10773
  %v10775 = vmul.f32 %v10667, %v10773
  %v10776 = vrcp.pop %v10730
  %v10777 = vmul.f32 %v10669, %v10776
  %v10778 = vmul.f32 %v10671, %v10776
  %v10779 = vrcp.pop %v10733
  %v10780 = vmul.f32 %v10673, %v10779
  %v10781 = vmul.f32 %v10675, %v10779
  %v10782 = vrcp.pop %v10736
  %v10783 = vmul.f32 %v10677, %v10782
  %v10784 = vmul.f32 %v10679, %v10782
  %v10785 = vrcp.pop %v10739
  %v10786 = vmul.f32 %v10681, %v10785
  %v10787 = vmul.f32 %v10683, %v10785
  %v10788 = vrcp.pop %v10742
  %v10789 = vmul.f32 %v10685, %v10788
  %v10790 = vmul.f32 %v10687, %v10788
  %v10791 = vrcp.pop %v10745
  %v10792 = vmul.f32 %v10689, %v10791
  %v10793 = vmul.f32 %v10691, %v10791
  %v10794 = vrcp.pop %v10748
  %v10795 = vmul.f32 %v10693, %v10794
  %v10796 = vmul.f32 %v10695, %v10794
  %v10797 = vrcp.pop %v10751
  %v10798 = vmul.f32 %v10697, %v10797
  %v10799 = vmul.f32 %v10699, %v10797
  %v10800 = vrcp.pop %v10754
  %v10801 = vmul.f32 %v10701, %v10800
  %v10802 = vmul.f32 %v10703, %v10800
  %v10803 = vrcp.pop %v10757
  %v10804 = vmul.f32 %v10705, %v10803
  %v10805 = vmul.f32 %v10707, %v10803
  %v10806 = vrcp.pop %v10760
  %v10807 = vmul.f32 %v10709, %v10806
  %v10808 = vmul.f32 %v10711, %v10806
  %v10809 = vrcp.pop %v10763
  %v10810 = vmul.f32 %v10713, %v10809
  %v10811 = vmul.f32 %v10715, %v10809
  %10812 = vmatprep.subr.mxu0 0.0
  %10813 = vmatpush1.xpose.msra.mxu0 0.0
  %10814 = vmatprep.subr.mxu0 0.0
  %10815 = vmatpush1.xpose.msra.mxu0 0.0
  %10816 = vmatprep.subr.mxu0 0.0
  %10817 = vmatpush1.xpose.msra.mxu0 0.0
  %10818 = vmatprep.subr.mxu0 0.0
  %10819 = vmatpush1.xpose.msra.mxu0 0.0
  %10820 = vmatprep.subr.mxu0 0.0
  %10821 = vmatpush1.xpose.msra.mxu0 0.0
  %10822 = vmatprep.subr.mxu0 0.0
  %10823 = vmatpush1.xpose.msra.mxu0 0.0
  %10824 = vmatprep.subr.mxu0 0.0
  %10825 = vmatpush1.xpose.msra.mxu0 0.0
  %10826 = vmatprep.subr.mxu0 0.0
  %10827 = vmatpush1.xpose.msra.mxu0 0.0
  %10828 = vmatprep.subr.mxu0 0.0
  %10829 = vmatpush1.xpose.msra.mxu0 0.0
  %10830 = vmatprep.subr.mxu0 0.0
  %10831 = vmatpush1.xpose.msra.mxu0 0.0
  %10832 = vmatprep.subr.mxu0 0.0
  %10833 = vmatpush1.xpose.msra.mxu0 0.0
  %10834 = vmatprep.subr.mxu0 0.0
  %10835 = vmatpush1.xpose.msra.mxu0 0.0
  %10836 = vmatprep.subr.mxu0 0.0
  %10837 = vmatpush1.xpose.msra.mxu0 0.0
  %10838 = vmatprep.subr.mxu0 0.0
  %10839 = vmatpush1.xpose.msra.mxu0 0.0
  %10840 = vmatprep.subr.mxu0 0.0
  %10841 = vmatpush1.xpose.msra.mxu0 0.0
  %10842 = vmatprep.subr.mxu0 %v6134
  %10843 = vmatpush1.xpose.msra.mxu0 %v6132
  %10844 = vmatprep.subr.mxu0 0.0
  %10845 = vmatpush2.xpose.msra.mxu0 0.0
  %10846 = vmatprep.subr.mxu0 0.0
  %10847 = vmatpush2.xpose.msra.mxu0 0.0
  %10848 = vmatprep.subr.mxu0 0.0
  %10849 = vmatpush2.xpose.msra.mxu0 0.0
  %10850 = vmatprep.subr.mxu0 0.0
  %10851 = vmatpush2.xpose.msra.mxu0 0.0
  %10852 = vmatprep.subr.mxu0 0.0
  %10853 = vmatpush2.xpose.msra.mxu0 0.0
  %10854 = vmatprep.subr.mxu0 0.0
  %10855 = vmatpush2.xpose.msra.mxu0 0.0
  %10856 = vmatprep.subr.mxu0 0.0
  %10857 = vmatpush2.xpose.msra.mxu0 0.0
  %10858 = vmatprep.subr.mxu0 0.0
  %10859 = vmatpush2.xpose.msra.mxu0 0.0
  %10860 = vmatprep.subr.mxu0 0.0
  %10861 = vmatpush2.xpose.msra.mxu0 0.0
  %10862 = vmatprep.subr.mxu0 0.0
  %10863 = vmatpush2.xpose.msra.mxu0 0.0
  %10864 = vmatprep.subr.mxu0 0.0
  %10865 = vmatpush2.xpose.msra.mxu0 0.0
  %10866 = vmatprep.subr.mxu0 0.0
  %10867 = vmatpush2.xpose.msra.mxu0 0.0
  %10868 = vmatprep.subr.mxu0 0.0
  %10869 = vmatpush2.xpose.msra.mxu0 0.0
  %10870 = vmatprep.subr.mxu0 0.0
  %10871 = vmatpush2.xpose.msra.mxu0 0.0
  %10872 = vmatprep.subr.mxu0 0.0
  %10873 = vmatpush2.xpose.msra.mxu0 0.0
  %10874 = vmatprep.subr.mxu0 0.0
  %10875 = vmatpush2.xpose.msra.mxu0 0.0
  %10876 = vmatprep.mubr.f32.mxu0 %v10766
  %10877 = vmatmul.mubr.f32.gmra.mxu0 %v10765
  %v10878 = vpop.f32.mrf.mxu0
  %v10879 = vadd.f32 0.0, %v10878
  %v10880 = vpop.f32.mrf.mxu0
  %10881 = vmatprep.mubr.f32.mxu0 %v10769
  %10882 = vmatmul.mubr.f32.gmra.mxu0 %v10768
  %v10883 = vpop.f32.mrf.mxu0
  %v10884 = vadd.f32 0.0, %v10883
  %v10885 = vpop.f32.mrf.mxu0
  %10886 = vmatprep.mubr.f32.mxu0 %v10772
  %10887 = vmatmul.mubr.f32.gmra.mxu0 %v10771
  %v10888 = vpop.f32.mrf.mxu0
  %v10889 = vadd.f32 0.0, %v10888
  %v10890 = vpop.f32.mrf.mxu0
  %10891 = vmatprep.mubr.f32.mxu0 %v10775
  %10892 = vmatmul.mubr.f32.gmra.mxu0 %v10774
  %v10893 = vpop.f32.mrf.mxu0
  %v10894 = vadd.f32 0.0, %v10893
  %v10895 = vpop.f32.mrf.mxu0
  %10896 = vmatprep.mubr.f32.mxu0 %v10778
  %10897 = vmatmul.mubr.f32.gmra.mxu0 %v10777
  %v10898 = vpop.f32.mrf.mxu0
  %v10899 = vadd.f32 0.0, %v10898
  %v10900 = vpop.f32.mrf.mxu0
  %10901 = vmatprep.mubr.f32.mxu0 %v10781
  %10902 = vmatmul.mubr.f32.gmra.mxu0 %v10780
  %v10903 = vpop.f32.mrf.mxu0
  %v10904 = vadd.f32 0.0, %v10903
  %v10905 = vpop.f32.mrf.mxu0
  %10906 = vmatprep.mubr.f32.mxu0 %v10784
  %10907 = vmatmul.mubr.f32.gmra.mxu0 %v10783
  %v10908 = vpop.f32.mrf.mxu0
  %v10909 = vadd.f32 0.0, %v10908
  %v10910 = vpop.f32.mrf.mxu0
  %10911 = vmatprep.mubr.f32.mxu0 %v10787
  %10912 = vmatmul.mubr.f32.gmra.mxu0 %v10786
  %v10913 = vpop.f32.mrf.mxu0
  %v10914 = vadd.f32 0.0, %v10913
  %v10915 = vpop.f32.mrf.mxu0
  %10916 = vmatprep.mubr.f32.mxu0 %v10790
  %10917 = vmatmul.mubr.f32.gmra.mxu0 %v10789
  %v10918 = vpop.f32.mrf.mxu0
  %v10919 = vadd.f32 0.0, %v10918
  %v10920 = vpop.f32.mrf.mxu0
  %10921 = vmatprep.mubr.f32.mxu0 %v10793
  %10922 = vmatmul.mubr.f32.gmra.mxu0 %v10792
  %v10923 = vpop.f32.mrf.mxu0
  %v10924 = vadd.f32 0.0, %v10923
  %v10925 = vpop.f32.mrf.mxu0
  %10926 = vmatprep.mubr.f32.mxu0 %v10796
  %10927 = vmatmul.mubr.f32.gmra.mxu0 %v10795
  %v10928 = vpop.f32.mrf.mxu0
  %v10929 = vadd.f32 0.0, %v10928
  %v10930 = vpop.f32.mrf.mxu0
  %10931 = vmatprep.mubr.f32.mxu0 %v10799
  %10932 = vmatmul.mubr.f32.gmra.mxu0 %v10798
  %v10933 = vpop.f32.mrf.mxu0
  %v10934 = vadd.f32 0.0, %v10933
  %v10935 = vpop.f32.mrf.mxu0
  %10936 = vmatprep.mubr.f32.mxu0 %v10802
  %10937 = vmatmul.mubr.f32.gmra.mxu0 %v10801
  %v10938 = vpop.f32.mrf.mxu0
  %v10939 = vadd.f32 0.0, %v10938
  %v10940 = vpop.f32.mrf.mxu0
  %10941 = vmatprep.mubr.f32.mxu0 %v10805
  %10942 = vmatmul.mubr.f32.gmra.mxu0 %v10804
  %v10943 = vpop.f32.mrf.mxu0
  %v10944 = vadd.f32 0.0, %v10943
  %v10945 = vpop.f32.mrf.mxu0
  %10946 = vmatprep.mubr.f32.mxu0 %v10808
  %10947 = vmatmul.mubr.f32.gmra.mxu0 %v10807
  %v10948 = vpop.f32.mrf.mxu0
  %v10949 = vadd.f32 0.0, %v10948
  %v10950 = vpop.f32.mrf.mxu0
  %10951 = vmatprep.mubr.f32.mxu0 %v10811
  %10952 = vmatmul.mubr.f32.gmra.mxu0 %v10810
  %v10953 = vpop.f32.mrf.mxu0
  %v10954 = vadd.f32 0.0, %v10953
  %v10955 = vpop.f32.mrf.mxu0
  %10956 = vdwg.mxu0
  %10973 = vrot.lane.b32.xlu0 %v10879, 16
  %v10974 = vpop.permute.xlu0 %10973
  %10975 = vrot.lane.b32.xlu0 %v10884, 16
  %v10976 = vpop.permute.xlu0 %10975
  %10977 = vrot.lane.b32.xlu0 %v10889, 16
  %v10978 = vpop.permute.xlu0 %10977
  %10979 = vrot.lane.b32.xlu0 %v10894, 16
  %v10980 = vpop.permute.xlu0 %10979
  %10981 = vrot.lane.b32.xlu0 %v10899, 16
  %v10982 = vpop.permute.xlu0 %10981
  %10983 = vrot.lane.b32.xlu0 %v10904, 16
  %v10984 = vpop.permute.xlu0 %10983
  %10985 = vrot.lane.b32.xlu0 %v10909, 16
  %v10986 = vpop.permute.xlu0 %10985
  %10987 = vrot.lane.b32.xlu0 %v10914, 16
  %v10988 = vpop.permute.xlu0 %10987
  %10989 = vrot.lane.b32.xlu0 %v10919, 16
  %v10990 = vpop.permute.xlu0 %10989
  %10991 = vrot.lane.b32.xlu0 %v10924, 16
  %v10992 = vpop.permute.xlu0 %10991
  %10993 = vrot.lane.b32.xlu0 %v10929, 16
  %v10994 = vpop.permute.xlu0 %10993
  %10995 = vrot.lane.b32.xlu0 %v10934, 16
  %v10996 = vpop.permute.xlu0 %10995
  %10997 = vrot.lane.b32.xlu0 %v10939, 16
  %v10998 = vpop.permute.xlu0 %10997
  %10999 = vrot.lane.b32.xlu0 %v10944, 16
  %v11000 = vpop.permute.xlu0 %10999
  %11001 = vrot.lane.b32.xlu0 %v10949, 16
  %v11002 = vpop.permute.xlu0 %11001
  %11003 = vrot.lane.b32.xlu0 %v10954, 16
  %v11004 = vpop.permute.xlu0 %11003
  %11021 = vst.msk [vmem:[#allocation2] sm:$0xff] %vm2185, %v10974
  %11022 = vst.msk [vmem:[#allocation2 + $0x8] sm:$0xff] %vm2185, %v10976
  %11023 = vst.msk [vmem:[#allocation2 + $0x10] sm:$0xff] %vm2185, %v10978
  %11024 = vst.msk [vmem:[#allocation2 + $0x18] sm:$0xff] %vm2185, %v10980
  %11025 = vst.msk [vmem:[#allocation2 + $0x20] sm:$0xff] %vm2185, %v10982
  %11026 = vst.msk [vmem:[#allocation2 + $0x28] sm:$0xff] %vm2185, %v10984
  %11027 = vst.msk [vmem:[#allocation2 + $0x30] sm:$0xff] %vm2185, %v10986
  %11028 = vst.msk [vmem:[#allocation2 + $0x38] sm:$0xff] %vm2185, %v10988
  %11029 = vst.msk [vmem:[#allocation2 + $0x40] sm:$0xff] %vm2185, %v10990
  %11030 = vst.msk [vmem:[#allocation2 + $0x48] sm:$0xff] %vm2185, %v10992
  %11031 = vst.msk [vmem:[#allocation2 + $0x50] sm:$0xff] %vm2185, %v10994
  %11032 = vst.msk [vmem:[#allocation2 + $0x58] sm:$0xff] %vm2185, %v10996
  %11033 = vst.msk [vmem:[#allocation2 + $0x60] sm:$0xff] %vm2185, %v10998
  %11034 = vst.msk [vmem:[#allocation2 + $0x68] sm:$0xff] %vm2185, %v11000
  %11035 = vst.msk [vmem:[#allocation2 + $0x70] sm:$0xff] %vm2185, %v11002
  %11036 = vst.msk [vmem:[#allocation2 + $0x78] sm:$0xff] %vm2185, %v11004
  %11037 = vrot.lane.b32.xlu0 %v9031, 104
  %v11038 = vpop.permute.xlu0 %11037
  %11039 = vrot.lane.b32.xlu0 %v9032, 104
  %v11040 = vpop.permute.xlu0 %11039
  %11041 = vrot.lane.b32.xlu0 %v9033, 104
  %v11042 = vpop.permute.xlu0 %11041
  %11043 = vrot.lane.b32.xlu0 %v9034, 104
  %v11044 = vpop.permute.xlu0 %11043
  %11045 = vrot.lane.b32.xlu0 %v9035, 104
  %v11046 = vpop.permute.xlu0 %11045
  %11047 = vrot.lane.b32.xlu0 %v9036, 104
  %v11048 = vpop.permute.xlu0 %11047
  %11049 = vrot.lane.b32.xlu0 %v9037, 104
  %v11050 = vpop.permute.xlu0 %11049
  %11051 = vrot.lane.b32.xlu0 %v9038, 104
  %v11052 = vpop.permute.xlu0 %11051
  %11053 = vrot.lane.b32.xlu0 %v9039, 104
  %v11054 = vpop.permute.xlu0 %11053
  %11055 = vrot.lane.b32.xlu0 %v9040, 104
  %v11056 = vpop.permute.xlu0 %11055
  %11057 = vrot.lane.b32.xlu0 %v9041, 104
  %v11058 = vpop.permute.xlu0 %11057
  %11059 = vrot.lane.b32.xlu0 %v9042, 104
  %v11060 = vpop.permute.xlu0 %11059
  %11061 = vrot.lane.b32.xlu0 %v9043, 104
  %v11062 = vpop.permute.xlu0 %11061
  %11063 = vrot.lane.b32.xlu0 %v9044, 104
  %v11064 = vpop.permute.xlu0 %11063
  %11065 = vrot.lane.b32.xlu0 %v9045, 104
  %v11066 = vpop.permute.xlu0 %11065
  %11067 = vrot.lane.b32.xlu0 %v9046, 104
  %v11068 = vpop.permute.xlu0 %11067
  %v11069 = vsel %vm545, %v11038, 0
  %v11071 = vsel %vm545, %v11040, 0
  %v11073 = vsel %vm545, %v11042, 0
  %v11075 = vsel %vm545, %v11044, 0
  %v11077 = vsel %vm545, %v11046, 0
  %v11079 = vsel %vm545, %v11048, 0
  %v11081 = vsel %vm545, %v11050, 0
  %v11083 = vsel %vm545, %v11052, 0
  %v11085 = vsel %vm545, %v11054, 0
  %v11087 = vsel %vm545, %v11056, 0
  %v11089 = vsel %vm545, %v11058, 0
  %v11091 = vsel %vm545, %v11060, 0
  %v11093 = vsel %vm545, %v11062, 0
  %v11095 = vsel %vm545, %v11064, 0
  %v11097 = vsel %vm545, %v11066, 0
  %v11099 = vsel %vm545, %v11068, 0
  %11101 = vmatprep.subr.mxu0 0.0
  %11102 = vmatpush1.msra.mxu0 0.0
  %11103 = vmatprep.subr.mxu0 0.0
  %11104 = vmatpush1.msra.mxu0 0.0
  %11105 = vmatprep.subr.mxu0 0.0
  %11106 = vmatpush1.msra.mxu0 0.0
  %11107 = vmatprep.subr.mxu0 0.0
  %11108 = vmatpush1.msra.mxu0 0.0
  %11109 = vmatprep.subr.mxu0 0.0
  %11110 = vmatpush1.msra.mxu0 0.0
  %11111 = vmatprep.subr.mxu0 0.0
  %11112 = vmatpush1.msra.mxu0 0.0
  %11113 = vmatprep.subr.mxu0 0.0
  %11114 = vmatpush1.msra.mxu0 0.0
  %11115 = vmatprep.subr.mxu0 0.0
  %11116 = vmatpush1.msra.mxu0 0.0
  %11117 = vmatprep.subr.mxu0 0.0
  %11118 = vmatpush1.msra.mxu0 0.0
  %11119 = vmatprep.subr.mxu0 0.0
  %11120 = vmatpush1.msra.mxu0 0.0
  %11121 = vmatprep.subr.mxu0 0.0
  %11122 = vmatpush1.msra.mxu0 0.0
  %11123 = vmatprep.subr.mxu0 0.0
  %11124 = vmatpush1.msra.mxu0 0.0
  %11125 = vmatprep.subr.mxu0 0.0
  %11126 = vmatpush1.msra.mxu0 0.0
  %11127 = vmatprep.subr.mxu0 0.0
  %11128 = vmatpush1.msra.mxu0 0.0
  %11129 = vmatprep.subr.mxu0 0.0
  %11130 = vmatpush1.msra.mxu0 0.0
  %11131 = vmatprep.subr.mxu0 %v6116
  %11132 = vmatpush1.msra.mxu0 %v6114
  %11133 = vmatprep.subr.mxu0 0.0
  %11134 = vmatpush2.msra.mxu0 0.0
  %11135 = vmatprep.subr.mxu0 0.0
  %11136 = vmatpush2.msra.mxu0 0.0
  %11137 = vmatprep.subr.mxu0 0.0
  %11138 = vmatpush2.msra.mxu0 0.0
  %11139 = vmatprep.subr.mxu0 0.0
  %11140 = vmatpush2.msra.mxu0 0.0
  %11141 = vmatprep.subr.mxu0 0.0
  %11142 = vmatpush2.msra.mxu0 0.0
  %11143 = vmatprep.subr.mxu0 0.0
  %11144 = vmatpush2.msra.mxu0 0.0
  %11145 = vmatprep.subr.mxu0 0.0
  %11146 = vmatpush2.msra.mxu0 0.0
  %11147 = vmatprep.subr.mxu0 0.0
  %11148 = vmatpush2.msra.mxu0 0.0
  %11149 = vmatprep.subr.mxu0 0.0
  %11150 = vmatpush2.msra.mxu0 0.0
  %11151 = vmatprep.subr.mxu0 0.0
  %11152 = vmatpush2.msra.mxu0 0.0
  %11153 = vmatprep.subr.mxu0 0.0
  %11154 = vmatpush2.msra.mxu0 0.0
  %11155 = vmatprep.subr.mxu0 0.0
  %11156 = vmatpush2.msra.mxu0 0.0
  %11157 = vmatprep.subr.mxu0 0.0
  %11158 = vmatpush2.msra.mxu0 0.0
  %11159 = vmatprep.subr.mxu0 0.0
  %11160 = vmatpush2.msra.mxu0 0.0
  %11161 = vmatprep.subr.mxu0 0.0
  %11162 = vmatpush2.msra.mxu0 0.0
  %11163 = vmatprep.subr.mxu0 0.0
  %11164 = vmatpush2.msra.mxu0 0.0
  %11165 = vmatprep.mubr.f32.mxu0 0.0
  %11166 = vmatmul.mubr.f32.gmra.mxu0 %v11069
  %v11167 = vpop.f32.mrf.mxu0
  %v11168 = vadd.f32 0.0, %v11167
  %v11169 = vpop.f32.mrf.mxu0
  %v11170 = vadd.f32 0.0, %v11169
  %11171 = vmatprep.mubr.f32.mxu0 0.0
  %11172 = vmatmul.mubr.f32.gmra.mxu0 %v11071
  %v11173 = vpop.f32.mrf.mxu0
  %v11174 = vadd.f32 0.0, %v11173
  %v11175 = vpop.f32.mrf.mxu0
  %v11176 = vadd.f32 0.0, %v11175
  %11177 = vmatprep.mubr.f32.mxu0 0.0
  %11178 = vmatmul.mubr.f32.gmra.mxu0 %v11073
  %v11179 = vpop.f32.mrf.mxu0
  %v11180 = vadd.f32 0.0, %v11179
  %v11181 = vpop.f32.mrf.mxu0
  %v11182 = vadd.f32 0.0, %v11181
  %11183 = vmatprep.mubr.f32.mxu0 0.0
  %11184 = vmatmul.mubr.f32.gmra.mxu0 %v11075
  %v11185 = vpop.f32.mrf.mxu0
  %v11186 = vadd.f32 0.0, %v11185
  %v11187 = vpop.f32.mrf.mxu0
  %v11188 = vadd.f32 0.0, %v11187
  %11189 = vmatprep.mubr.f32.mxu0 0.0
  %11190 = vmatmul.mubr.f32.gmra.mxu0 %v11077
  %v11191 = vpop.f32.mrf.mxu0
  %v11192 = vadd.f32 0.0, %v11191
  %v11193 = vpop.f32.mrf.mxu0
  %v11194 = vadd.f32 0.0, %v11193
  %11195 = vmatprep.mubr.f32.mxu0 0.0
  %11196 = vmatmul.mubr.f32.gmra.mxu0 %v11079
  %v11197 = vpop.f32.mrf.mxu0
  %v11198 = vadd.f32 0.0, %v11197
  %v11199 = vpop.f32.mrf.mxu0
  %v11200 = vadd.f32 0.0, %v11199
  %11201 = vmatprep.mubr.f32.mxu0 0.0
  %11202 = vmatmul.mubr.f32.gmra.mxu0 %v11081
  %v11203 = vpop.f32.mrf.mxu0
  %v11204 = vadd.f32 0.0, %v11203
  %v11205 = vpop.f32.mrf.mxu0
  %v11206 = vadd.f32 0.0, %v11205
  %11207 = vmatprep.mubr.f32.mxu0 0.0
  %11208 = vmatmul.mubr.f32.gmra.mxu0 %v11083
  %v11209 = vpop.f32.mrf.mxu0
  %v11210 = vadd.f32 0.0, %v11209
  %v11211 = vpop.f32.mrf.mxu0
  %v11212 = vadd.f32 0.0, %v11211
  %11213 = vmatprep.mubr.f32.mxu0 0.0
  %11214 = vmatmul.mubr.f32.gmra.mxu0 %v11085
  %v11215 = vpop.f32.mrf.mxu0
  %v11216 = vadd.f32 0.0, %v11215
  %v11217 = vpop.f32.mrf.mxu0
  %v11218 = vadd.f32 0.0, %v11217
  %11219 = vmatprep.mubr.f32.mxu0 0.0
  %11220 = vmatmul.mubr.f32.gmra.mxu0 %v11087
  %v11221 = vpop.f32.mrf.mxu0
  %v11222 = vadd.f32 0.0, %v11221
  %v11223 = vpop.f32.mrf.mxu0
  %v11224 = vadd.f32 0.0, %v11223
  %11225 = vmatprep.mubr.f32.mxu0 0.0
  %11226 = vmatmul.mubr.f32.gmra.mxu0 %v11089
  %v11227 = vpop.f32.mrf.mxu0
  %v11228 = vadd.f32 0.0, %v11227
  %v11229 = vpop.f32.mrf.mxu0
  %v11230 = vadd.f32 0.0, %v11229
  %11231 = vmatprep.mubr.f32.mxu0 0.0
  %11232 = vmatmul.mubr.f32.gmra.mxu0 %v11091
  %v11233 = vpop.f32.mrf.mxu0
  %v11234 = vadd.f32 0.0, %v11233
  %v11235 = vpop.f32.mrf.mxu0
  %v11236 = vadd.f32 0.0, %v11235
  %11237 = vmatprep.mubr.f32.mxu0 0.0
  %11238 = vmatmul.mubr.f32.gmra.mxu0 %v11093
  %v11239 = vpop.f32.mrf.mxu0
  %v11240 = vadd.f32 0.0, %v11239
  %v11241 = vpop.f32.mrf.mxu0
  %v11242 = vadd.f32 0.0, %v11241
  %11243 = vmatprep.mubr.f32.mxu0 0.0
  %11244 = vmatmul.mubr.f32.gmra.mxu0 %v11095
  %v11245 = vpop.f32.mrf.mxu0
  %v11246 = vadd.f32 0.0, %v11245
  %v11247 = vpop.f32.mrf.mxu0
  %v11248 = vadd.f32 0.0, %v11247
  %11249 = vmatprep.mubr.f32.mxu0 0.0
  %11250 = vmatmul.mubr.f32.gmra.mxu0 %v11097
  %v11251 = vpop.f32.mrf.mxu0
  %v11252 = vadd.f32 0.0, %v11251
  %v11253 = vpop.f32.mrf.mxu0
  %v11254 = vadd.f32 0.0, %v11253
  %11255 = vmatprep.mubr.f32.mxu0 0.0
  %11256 = vmatmul.mubr.f32.gmra.mxu0 %v11099
  %v11257 = vpop.f32.mrf.mxu0
  %v11258 = vadd.f32 0.0, %v11257
  %v11259 = vpop.f32.mrf.mxu0
  %v11260 = vadd.f32 0.0, %v11259
  %11261 = vdwg.mxu0
  %v11262 = vmax.f32 %v11168, %v11170
  %11263 = vmax.xlane.f32.xlu0 %v11262
  %v11264 = vpop.xlane.xlu0 %11263
  %v11265 = vmax.f32 %v11174, %v11176
  %11266 = vmax.xlane.f32.xlu0 %v11265
  %v11267 = vpop.xlane.xlu0 %11266
  %v11268 = vmax.f32 %v11180, %v11182
  %11269 = vmax.xlane.f32.xlu0 %v11268
  %v11270 = vpop.xlane.xlu0 %11269
  %v11271 = vmax.f32 %v11186, %v11188
  %11272 = vmax.xlane.f32.xlu0 %v11271
  %v11273 = vpop.xlane.xlu0 %11272
  %v11274 = vmax.f32 %v11192, %v11194
  %11275 = vmax.xlane.f32.xlu0 %v11274
  %v11276 = vpop.xlane.xlu0 %11275
  %v11277 = vmax.f32 %v11198, %v11200
  %11278 = vmax.xlane.f32.xlu0 %v11277
  %v11279 = vpop.xlane.xlu0 %11278
  %v11280 = vmax.f32 %v11204, %v11206
  %11281 = vmax.xlane.f32.xlu0 %v11280
  %v11282 = vpop.xlane.xlu0 %11281
  %v11283 = vmax.f32 %v11210, %v11212
  %11284 = vmax.xlane.f32.xlu0 %v11283
  %v11285 = vpop.xlane.xlu0 %11284
  %v11286 = vmax.f32 %v11216, %v11218
  %11287 = vmax.xlane.f32.xlu0 %v11286
  %v11288 = vpop.xlane.xlu0 %11287
  %v11289 = vmax.f32 %v11222, %v11224
  %11290 = vmax.xlane.f32.xlu0 %v11289
  %v11291 = vpop.xlane.xlu0 %11290
  %v11292 = vmax.f32 %v11228, %v11230
  %11293 = vmax.xlane.f32.xlu0 %v11292
  %v11294 = vpop.xlane.xlu0 %11293
  %v11295 = vmax.f32 %v11234, %v11236
  %11296 = vmax.xlane.f32.xlu0 %v11295
  %v11297 = vpop.xlane.xlu0 %11296
  %v11298 = vmax.f32 %v11240, %v11242
  %11299 = vmax.xlane.f32.xlu0 %v11298
  %v11300 = vpop.xlane.xlu0 %11299
  %v11301 = vmax.f32 %v11246, %v11248
  %11302 = vmax.xlane.f32.xlu0 %v11301
  %v11303 = vpop.xlane.xlu0 %11302
  %v11304 = vmax.f32 %v11252, %v11254
  %11305 = vmax.xlane.f32.xlu0 %v11304
  %v11306 = vpop.xlane.xlu0 %11305
  %v11307 = vmax.f32 %v11258, %v11260
  %11308 = vmax.xlane.f32.xlu0 %v11307
  %v11309 = vpop.xlane.xlu0 %11308
  %v11310 = vsub.f32 %v11168, %v11264
  %v11311 = vsub.f32 %v11170, %v11264
  %v11312 = vsub.f32 %v11174, %v11267
  %v11313 = vsub.f32 %v11176, %v11267
  %v11314 = vsub.f32 %v11180, %v11270
  %v11315 = vsub.f32 %v11182, %v11270
  %v11316 = vsub.f32 %v11186, %v11273
  %v11317 = vsub.f32 %v11188, %v11273
  %v11318 = vsub.f32 %v11192, %v11276
  %v11319 = vsub.f32 %v11194, %v11276
  %v11320 = vsub.f32 %v11198, %v11279
  %v11321 = vsub.f32 %v11200, %v11279
  %v11322 = vsub.f32 %v11204, %v11282
  %v11323 = vsub.f32 %v11206, %v11282
  %v11324 = vsub.f32 %v11210, %v11285
  %v11325 = vsub.f32 %v11212, %v11285
  %v11326 = vsub.f32 %v11216, %v11288
  %v11327 = vsub.f32 %v11218, %v11288
  %v11328 = vsub.f32 %v11222, %v11291
  %v11329 = vsub.f32 %v11224, %v11291
  %v11330 = vsub.f32 %v11228, %v11294
  %v11331 = vsub.f32 %v11230, %v11294
  %v11332 = vsub.f32 %v11234, %v11297
  %v11333 = vsub.f32 %v11236, %v11297
  %v11334 = vsub.f32 %v11240, %v11300
  %v11335 = vsub.f32 %v11242, %v11300
  %v11336 = vsub.f32 %v11246, %v11303
  %v11337 = vsub.f32 %v11248, %v11303
  %v11338 = vsub.f32 %v11252, %v11306
  %v11339 = vsub.f32 %v11254, %v11306
  %v11340 = vsub.f32 %v11258, %v11309
  %v11341 = vsub.f32 %v11260, %v11309
  %v11342 = vmul.f32 %v11310, 1.442695
  %v11343 = vpow.pop %v11342
  %v11344 = vmul.f32 %v11311, 1.442695
  %v11345 = vpow.pop %v11344
  %v11346 = vmul.f32 %v11312, 1.442695
  %v11347 = vpow.pop %v11346
  %v11348 = vmul.f32 %v11313, 1.442695
  %v11349 = vpow.pop %v11348
  %v11350 = vmul.f32 %v11314, 1.442695
  %v11351 = vpow.pop %v11350
  %v11352 = vmul.f32 %v11315, 1.442695
  %v11353 = vpow.pop %v11352
  %v11354 = vmul.f32 %v11316, 1.442695
  %v11355 = vpow.pop %v11354
  %v11356 = vmul.f32 %v11317, 1.442695
  %v11357 = vpow.pop %v11356
  %v11358 = vmul.f32 %v11318, 1.442695
  %v11359 = vpow.pop %v11358
  %v11360 = vmul.f32 %v11319, 1.442695
  %v11361 = vpow.pop %v11360
  %v11362 = vmul.f32 %v11320, 1.442695
  %v11363 = vpow.pop %v11362
  %v11364 = vmul.f32 %v11321, 1.442695
  %v11365 = vpow.pop %v11364
  %v11366 = vmul.f32 %v11322, 1.442695
  %v11367 = vpow.pop %v11366
  %v11368 = vmul.f32 %v11323, 1.442695
  %v11369 = vpow.pop %v11368
  %v11370 = vmul.f32 %v11324, 1.442695
  %v11371 = vpow.pop %v11370
  %v11372 = vmul.f32 %v11325, 1.442695
  %v11373 = vpow.pop %v11372
  %v11374 = vmul.f32 %v11326, 1.442695
  %v11375 = vpow.pop %v11374
  %v11376 = vmul.f32 %v11327, 1.442695
  %v11377 = vpow.pop %v11376
  %v11378 = vmul.f32 %v11328, 1.442695
  %v11379 = vpow.pop %v11378
  %v11380 = vmul.f32 %v11329, 1.442695
  %v11381 = vpow.pop %v11380
  %v11382 = vmul.f32 %v11330, 1.442695
  %v11383 = vpow.pop %v11382
  %v11384 = vmul.f32 %v11331, 1.442695
  %v11385 = vpow.pop %v11384
  %v11386 = vmul.f32 %v11332, 1.442695
  %v11387 = vpow.pop %v11386
  %v11388 = vmul.f32 %v11333, 1.442695
  %v11389 = vpow.pop %v11388
  %v11390 = vmul.f32 %v11334, 1.442695
  %v11391 = vpow.pop %v11390
  %v11392 = vmul.f32 %v11335, 1.442695
  %v11393 = vpow.pop %v11392
  %v11394 = vmul.f32 %v11336, 1.442695
  %v11395 = vpow.pop %v11394
  %v11396 = vmul.f32 %v11337, 1.442695
  %v11397 = vpow.pop %v11396
  %v11398 = vmul.f32 %v11338, 1.442695
  %v11399 = vpow.pop %v11398
  %v11400 = vmul.f32 %v11339, 1.442695
  %v11401 = vpow.pop %v11400
  %v11402 = vmul.f32 %v11340, 1.442695
  %v11403 = vpow.pop %v11402
  %v11404 = vmul.f32 %v11341, 1.442695
  %v11405 = vpow.pop %v11404
  %v11406 = vadd.f32 %v11343, %v11345
  %11407 = vadd.xlane.f32.xlu0 %v11406
  %v11408 = vpop.xlane.xlu0 %11407
  %v11409 = vadd.f32 %v11347, %v11349
  %11410 = vadd.xlane.f32.xlu0 %v11409
  %v11411 = vpop.xlane.xlu0 %11410
  %v11412 = vadd.f32 %v11351, %v11353
  %11413 = vadd.xlane.f32.xlu0 %v11412
  %v11414 = vpop.xlane.xlu0 %11413
  %v11415 = vadd.f32 %v11355, %v11357
  %11416 = vadd.xlane.f32.xlu0 %v11415
  %v11417 = vpop.xlane.xlu0 %11416
  %v11418 = vadd.f32 %v11359, %v11361
  %11419 = vadd.xlane.f32.xlu0 %v11418
  %v11420 = vpop.xlane.xlu0 %11419
  %v11421 = vadd.f32 %v11363, %v11365
  %11422 = vadd.xlane.f32.xlu0 %v11421
  %v11423 = vpop.xlane.xlu0 %11422
  %v11424 = vadd.f32 %v11367, %v11369
  %11425 = vadd.xlane.f32.xlu0 %v11424
  %v11426 = vpop.xlane.xlu0 %11425
  %v11427 = vadd.f32 %v11371, %v11373
  %11428 = vadd.xlane.f32.xlu0 %v11427
  %v11429 = vpop.xlane.xlu0 %11428
  %v11430 = vadd.f32 %v11375, %v11377
  %11431 = vadd.xlane.f32.xlu0 %v11430
  %v11432 = vpop.xlane.xlu0 %11431
  %v11433 = vadd.f32 %v11379, %v11381
  %11434 = vadd.xlane.f32.xlu0 %v11433
  %v11435 = vpop.xlane.xlu0 %11434
  %v11436 = vadd.f32 %v11383, %v11385
  %11437 = vadd.xlane.f32.xlu0 %v11436
  %v11438 = vpop.xlane.xlu0 %11437
  %v11439 = vadd.f32 %v11387, %v11389
  %11440 = vadd.xlane.f32.xlu0 %v11439
  %v11441 = vpop.xlane.xlu0 %11440
  %v11442 = vadd.f32 %v11391, %v11393
  %11443 = vadd.xlane.f32.xlu0 %v11442
  %v11444 = vpop.xlane.xlu0 %11443
  %v11445 = vadd.f32 %v11395, %v11397
  %11446 = vadd.xlane.f32.xlu0 %v11445
  %v11447 = vpop.xlane.xlu0 %11446
  %v11448 = vadd.f32 %v11399, %v11401
  %11449 = vadd.xlane.f32.xlu0 %v11448
  %v11450 = vpop.xlane.xlu0 %11449
  %v11451 = vadd.f32 %v11403, %v11405
  %11452 = vadd.xlane.f32.xlu0 %v11451
  %v11453 = vpop.xlane.xlu0 %11452
  %v11454 = vrcp.pop %v11408
  %v11455 = vmul.f32 %v11343, %v11454
  %v11456 = vmul.f32 %v11345, %v11454
  %v11457 = vrcp.pop %v11411
  %v11458 = vmul.f32 %v11347, %v11457
  %v11459 = vmul.f32 %v11349, %v11457
  %v11460 = vrcp.pop %v11414
  %v11461 = vmul.f32 %v11351, %v11460
  %v11462 = vmul.f32 %v11353, %v11460
  %v11463 = vrcp.pop %v11417
  %v11464 = vmul.f32 %v11355, %v11463
  %v11465 = vmul.f32 %v11357, %v11463
  %v11466 = vrcp.pop %v11420
  %v11467 = vmul.f32 %v11359, %v11466
  %v11468 = vmul.f32 %v11361, %v11466
  %v11469 = vrcp.pop %v11423
  %v11470 = vmul.f32 %v11363, %v11469
  %v11471 = vmul.f32 %v11365, %v11469
  %v11472 = vrcp.pop %v11426
  %v11473 = vmul.f32 %v11367, %v11472
  %v11474 = vmul.f32 %v11369, %v11472
  %v11475 = vrcp.pop %v11429
  %v11476 = vmul.f32 %v11371, %v11475
  %v11477 = vmul.f32 %v11373, %v11475
  %v11478 = vrcp.pop %v11432
  %v11479 = vmul.f32 %v11375, %v11478
  %v11480 = vmul.f32 %v11377, %v11478
  %v11481 = vrcp.pop %v11435
  %v11482 = vmul.f32 %v11379, %v11481
  %v11483 = vmul.f32 %v11381, %v11481
  %v11484 = vrcp.pop %v11438
  %v11485 = vmul.f32 %v11383, %v11484
  %v11486 = vmul.f32 %v11385, %v11484
  %v11487 = vrcp.pop %v11441
  %v11488 = vmul.f32 %v11387, %v11487
  %v11489 = vmul.f32 %v11389, %v11487
  %v11490 = vrcp.pop %v11444
  %v11491 = vmul.f32 %v11391, %v11490
  %v11492 = vmul.f32 %v11393, %v11490
  %v11493 = vrcp.pop %v11447
  %v11494 = vmul.f32 %v11395, %v11493
  %v11495 = vmul.f32 %v11397, %v11493
  %v11496 = vrcp.pop %v11450
  %v11497 = vmul.f32 %v11399, %v11496
  %v11498 = vmul.f32 %v11401, %v11496
  %v11499 = vrcp.pop %v11453
  %v11500 = vmul.f32 %v11403, %v11499
  %v11501 = vmul.f32 %v11405, %v11499
  %11502 = vmatprep.subr.mxu0 0.0
  %11503 = vmatpush1.xpose.msra.mxu0 0.0
  %11504 = vmatprep.subr.mxu0 0.0
  %11505 = vmatpush1.xpose.msra.mxu0 0.0
  %11506 = vmatprep.subr.mxu0 0.0
  %11507 = vmatpush1.xpose.msra.mxu0 0.0
  %11508 = vmatprep.subr.mxu0 0.0
  %11509 = vmatpush1.xpose.msra.mxu0 0.0
  %11510 = vmatprep.subr.mxu0 0.0
  %11511 = vmatpush1.xpose.msra.mxu0 0.0
  %11512 = vmatprep.subr.mxu0 0.0
  %11513 = vmatpush1.xpose.msra.mxu0 0.0
  %11514 = vmatprep.subr.mxu0 0.0
  %11515 = vmatpush1.xpose.msra.mxu0 0.0
  %11516 = vmatprep.subr.mxu0 0.0
  %11517 = vmatpush1.xpose.msra.mxu0 0.0
  %11518 = vmatprep.subr.mxu0 0.0
  %11519 = vmatpush1.xpose.msra.mxu0 0.0
  %11520 = vmatprep.subr.mxu0 0.0
  %11521 = vmatpush1.xpose.msra.mxu0 0.0
  %11522 = vmatprep.subr.mxu0 0.0
  %11523 = vmatpush1.xpose.msra.mxu0 0.0
  %11524 = vmatprep.subr.mxu0 0.0
  %11525 = vmatpush1.xpose.msra.mxu0 0.0
  %11526 = vmatprep.subr.mxu0 0.0
  %11527 = vmatpush1.xpose.msra.mxu0 0.0
  %11528 = vmatprep.subr.mxu0 0.0
  %11529 = vmatpush1.xpose.msra.mxu0 0.0
  %11530 = vmatprep.subr.mxu0 0.0
  %11531 = vmatpush1.xpose.msra.mxu0 0.0
  %11532 = vmatprep.subr.mxu0 %v6140
  %11533 = vmatpush1.xpose.msra.mxu0 %v6138
  %11534 = vmatprep.subr.mxu0 0.0
  %11535 = vmatpush2.xpose.msra.mxu0 0.0
  %11536 = vmatprep.subr.mxu0 0.0
  %11537 = vmatpush2.xpose.msra.mxu0 0.0
  %11538 = vmatprep.subr.mxu0 0.0
  %11539 = vmatpush2.xpose.msra.mxu0 0.0
  %11540 = vmatprep.subr.mxu0 0.0
  %11541 = vmatpush2.xpose.msra.mxu0 0.0
  %11542 = vmatprep.subr.mxu0 0.0
  %11543 = vmatpush2.xpose.msra.mxu0 0.0
  %11544 = vmatprep.subr.mxu0 0.0
  %11545 = vmatpush2.xpose.msra.mxu0 0.0
  %11546 = vmatprep.subr.mxu0 0.0
  %11547 = vmatpush2.xpose.msra.mxu0 0.0
  %11548 = vmatprep.subr.mxu0 0.0
  %11549 = vmatpush2.xpose.msra.mxu0 0.0
  %11550 = vmatprep.subr.mxu0 0.0
  %11551 = vmatpush2.xpose.msra.mxu0 0.0
  %11552 = vmatprep.subr.mxu0 0.0
  %11553 = vmatpush2.xpose.msra.mxu0 0.0
  %11554 = vmatprep.subr.mxu0 0.0
  %11555 = vmatpush2.xpose.msra.mxu0 0.0
  %11556 = vmatprep.subr.mxu0 0.0
  %11557 = vmatpush2.xpose.msra.mxu0 0.0
  %11558 = vmatprep.subr.mxu0 0.0
  %11559 = vmatpush2.xpose.msra.mxu0 0.0
  %11560 = vmatprep.subr.mxu0 0.0
  %11561 = vmatpush2.xpose.msra.mxu0 0.0
  %11562 = vmatprep.subr.mxu0 0.0
  %11563 = vmatpush2.xpose.msra.mxu0 0.0
  %11564 = vmatprep.subr.mxu0 0.0
  %11565 = vmatpush2.xpose.msra.mxu0 0.0
  %11566 = vmatprep.mubr.f32.mxu0 %v11456
  %11567 = vmatmul.mubr.f32.gmra.mxu0 %v11455
  %v11568 = vpop.f32.mrf.mxu0
  %v11569 = vadd.f32 0.0, %v11568
  %v11570 = vpop.f32.mrf.mxu0
  %11571 = vmatprep.mubr.f32.mxu0 %v11459
  %11572 = vmatmul.mubr.f32.gmra.mxu0 %v11458
  %v11573 = vpop.f32.mrf.mxu0
  %v11574 = vadd.f32 0.0, %v11573
  %v11575 = vpop.f32.mrf.mxu0
  %11576 = vmatprep.mubr.f32.mxu0 %v11462
  %11577 = vmatmul.mubr.f32.gmra.mxu0 %v11461
  %v11578 = vpop.f32.mrf.mxu0
  %v11579 = vadd.f32 0.0, %v11578
  %v11580 = vpop.f32.mrf.mxu0
  %11581 = vmatprep.mubr.f32.mxu0 %v11465
  %11582 = vmatmul.mubr.f32.gmra.mxu0 %v11464
  %v11583 = vpop.f32.mrf.mxu0
  %v11584 = vadd.f32 0.0, %v11583
  %v11585 = vpop.f32.mrf.mxu0
  %11586 = vmatprep.mubr.f32.mxu0 %v11468
  %11587 = vmatmul.mubr.f32.gmra.mxu0 %v11467
  %v11588 = vpop.f32.mrf.mxu0
  %v11589 = vadd.f32 0.0, %v11588
  %v11590 = vpop.f32.mrf.mxu0
  %11591 = vmatprep.mubr.f32.mxu0 %v11471
  %11592 = vmatmul.mubr.f32.gmra.mxu0 %v11470
  %v11593 = vpop.f32.mrf.mxu0
  %v11594 = vadd.f32 0.0, %v11593
  %v11595 = vpop.f32.mrf.mxu0
  %11596 = vmatprep.mubr.f32.mxu0 %v11474
  %11597 = vmatmul.mubr.f32.gmra.mxu0 %v11473
  %v11598 = vpop.f32.mrf.mxu0
  %v11599 = vadd.f32 0.0, %v11598
  %v11600 = vpop.f32.mrf.mxu0
  %11601 = vmatprep.mubr.f32.mxu0 %v11477
  %11602 = vmatmul.mubr.f32.gmra.mxu0 %v11476
  %v11603 = vpop.f32.mrf.mxu0
  %v11604 = vadd.f32 0.0, %v11603
  %v11605 = vpop.f32.mrf.mxu0
  %11606 = vmatprep.mubr.f32.mxu0 %v11480
  %11607 = vmatmul.mubr.f32.gmra.mxu0 %v11479
  %v11608 = vpop.f32.mrf.mxu0
  %v11609 = vadd.f32 0.0, %v11608
  %v11610 = vpop.f32.mrf.mxu0
  %11611 = vmatprep.mubr.f32.mxu0 %v11483
  %11612 = vmatmul.mubr.f32.gmra.mxu0 %v11482
  %v11613 = vpop.f32.mrf.mxu0
  %v11614 = vadd.f32 0.0, %v11613
  %v11615 = vpop.f32.mrf.mxu0
  %11616 = vmatprep.mubr.f32.mxu0 %v11486
  %11617 = vmatmul.mubr.f32.gmra.mxu0 %v11485
  %v11618 = vpop.f32.mrf.mxu0
  %v11619 = vadd.f32 0.0, %v11618
  %v11620 = vpop.f32.mrf.mxu0
  %11621 = vmatprep.mubr.f32.mxu0 %v11489
  %11622 = vmatmul.mubr.f32.gmra.mxu0 %v11488
  %v11623 = vpop.f32.mrf.mxu0
  %v11624 = vadd.f32 0.0, %v11623
  %v11625 = vpop.f32.mrf.mxu0
  %11626 = vmatprep.mubr.f32.mxu0 %v11492
  %11627 = vmatmul.mubr.f32.gmra.mxu0 %v11491
  %v11628 = vpop.f32.mrf.mxu0
  %v11629 = vadd.f32 0.0, %v11628
  %v11630 = vpop.f32.mrf.mxu0
  %11631 = vmatprep.mubr.f32.mxu0 %v11495
  %11632 = vmatmul.mubr.f32.gmra.mxu0 %v11494
  %v11633 = vpop.f32.mrf.mxu0
  %v11634 = vadd.f32 0.0, %v11633
  %v11635 = vpop.f32.mrf.mxu0
  %11636 = vmatprep.mubr.f32.mxu0 %v11498
  %11637 = vmatmul.mubr.f32.gmra.mxu0 %v11497
  %v11638 = vpop.f32.mrf.mxu0
  %v11639 = vadd.f32 0.0, %v11638
  %v11640 = vpop.f32.mrf.mxu0
  %11641 = vmatprep.mubr.f32.mxu0 %v11501
  %11642 = vmatmul.mubr.f32.gmra.mxu0 %v11500
  %v11643 = vpop.f32.mrf.mxu0
  %v11644 = vadd.f32 0.0, %v11643
  %v11645 = vpop.f32.mrf.mxu0
  %11646 = vdwg.mxu0
  %11663 = vrot.lane.b32.xlu0 %v11569, 24
  %v11664 = vpop.permute.xlu0 %11663
  %11665 = vrot.lane.b32.xlu0 %v11574, 24
  %v11666 = vpop.permute.xlu0 %11665
  %11667 = vrot.lane.b32.xlu0 %v11579, 24
  %v11668 = vpop.permute.xlu0 %11667
  %11669 = vrot.lane.b32.xlu0 %v11584, 24
  %v11670 = vpop.permute.xlu0 %11669
  %11671 = vrot.lane.b32.xlu0 %v11589, 24
  %v11672 = vpop.permute.xlu0 %11671
  %11673 = vrot.lane.b32.xlu0 %v11594, 24
  %v11674 = vpop.permute.xlu0 %11673
  %11675 = vrot.lane.b32.xlu0 %v11599, 24
  %v11676 = vpop.permute.xlu0 %11675
  %11677 = vrot.lane.b32.xlu0 %v11604, 24
  %v11678 = vpop.permute.xlu0 %11677
  %11679 = vrot.lane.b32.xlu0 %v11609, 24
  %v11680 = vpop.permute.xlu0 %11679
  %11681 = vrot.lane.b32.xlu0 %v11614, 24
  %v11682 = vpop.permute.xlu0 %11681
  %11683 = vrot.lane.b32.xlu0 %v11619, 24
  %v11684 = vpop.permute.xlu0 %11683
  %11685 = vrot.lane.b32.xlu0 %v11624, 24
  %v11686 = vpop.permute.xlu0 %11685
  %11687 = vrot.lane.b32.xlu0 %v11629, 24
  %v11688 = vpop.permute.xlu0 %11687
  %11689 = vrot.lane.b32.xlu0 %v11634, 24
  %v11690 = vpop.permute.xlu0 %11689
  %11691 = vrot.lane.b32.xlu0 %v11639, 24
  %v11692 = vpop.permute.xlu0 %11691
  %11693 = vrot.lane.b32.xlu0 %v11644, 24
  %v11694 = vpop.permute.xlu0 %11693
  %11711 = vst.msk [vmem:[#allocation2] sm:$0xff] %vm2764, %v11664
  %11712 = vst.msk [vmem:[#allocation2 + $0x8] sm:$0xff] %vm2764, %v11666
  %11713 = vst.msk [vmem:[#allocation2 + $0x10] sm:$0xff] %vm2764, %v11668
  %11714 = vst.msk [vmem:[#allocation2 + $0x18] sm:$0xff] %vm2764, %v11670
  %11715 = vst.msk [vmem:[#allocation2 + $0x20] sm:$0xff] %vm2764, %v11672
  %11716 = vst.msk [vmem:[#allocation2 + $0x28] sm:$0xff] %vm2764, %v11674
  %11717 = vst.msk [vmem:[#allocation2 + $0x30] sm:$0xff] %vm2764, %v11676
  %11718 = vst.msk [vmem:[#allocation2 + $0x38] sm:$0xff] %vm2764, %v11678
  %11719 = vst.msk [vmem:[#allocation2 + $0x40] sm:$0xff] %vm2764, %v11680
  %11720 = vst.msk [vmem:[#allocation2 + $0x48] sm:$0xff] %vm2764, %v11682
  %11721 = vst.msk [vmem:[#allocation2 + $0x50] sm:$0xff] %vm2764, %v11684
  %11722 = vst.msk [vmem:[#allocation2 + $0x58] sm:$0xff] %vm2764, %v11686
  %11723 = vst.msk [vmem:[#allocation2 + $0x60] sm:$0xff] %vm2764, %v11688
  %11724 = vst.msk [vmem:[#allocation2 + $0x68] sm:$0xff] %vm2764, %v11690
  %11725 = vst.msk [vmem:[#allocation2 + $0x70] sm:$0xff] %vm2764, %v11692
  %11726 = vst.msk [vmem:[#allocation2 + $0x78] sm:$0xff] %vm2764, %v11694
  %v11727 = vld [vmem:[#allocation2] sm:$0xff]
  %v11728 = vld [vmem:[#allocation2 + $0x8] sm:$0xff]
  %v11729 = vld [vmem:[#allocation2 + $0x10] sm:$0xff]
  %v11730 = vld [vmem:[#allocation2 + $0x18] sm:$0xff]
  %v11731 = vld [vmem:[#allocation2 + $0x20] sm:$0xff]
  %v11732 = vld [vmem:[#allocation2 + $0x28] sm:$0xff]
  %v11733 = vld [vmem:[#allocation2 + $0x30] sm:$0xff]
  %v11734 = vld [vmem:[#allocation2 + $0x38] sm:$0xff]
  %v11735 = vld [vmem:[#allocation2 + $0x40] sm:$0xff]
  %v11736 = vld [vmem:[#allocation2 + $0x48] sm:$0xff]
  %v11737 = vld [vmem:[#allocation2 + $0x50] sm:$0xff]
  %v11738 = vld [vmem:[#allocation2 + $0x58] sm:$0xff]
  %v11739 = vld [vmem:[#allocation2 + $0x60] sm:$0xff]
  %v11740 = vld [vmem:[#allocation2 + $0x68] sm:$0xff]
  %v11741 = vld [vmem:[#allocation2 + $0x70] sm:$0xff]
  %v11742 = vld [vmem:[#allocation2 + $0x78] sm:$0xff]
  %v11744 = vsel %vm339, %v11727, 0
  %v11747 = vsel %vm339, %v11728, 0
  %v11750 = vsel %vm339, %v11729, 0
  %v11753 = vsel %vm339, %v11730, 0
  %v11756 = vsel %vm339, %v11731, 0
  %v11759 = vsel %vm339, %v11732, 0
  %v11762 = vsel %vm339, %v11733, 0
  %v11765 = vsel %vm339, %v11734, 0
  %v11768 = vsel %vm339, %v11735, 0
  %v11771 = vsel %vm339, %v11736, 0
  %v11774 = vsel %vm339, %v11737, 0
  %v11777 = vsel %vm339, %v11738, 0
  %v11780 = vsel %vm339, %v11739, 0
  %v11783 = vsel %vm339, %v11740, 0
  %v11786 = vsel %vm339, %v11741, 0
  %v11789 = vsel %vm339, %v11742, 0
  %11791 = vmatprep.subr.mxu0 0.0
  %11792 = vmatpush1.xpose.msra.mxu0 %v11789
  %11793 = vmatprep.subr.mxu0 0.0
  %11794 = vmatpush1.xpose.msra.mxu0 %v11786
  %11795 = vmatprep.subr.mxu0 0.0
  %11796 = vmatpush1.xpose.msra.mxu0 %v11783
  %11797 = vmatprep.subr.mxu0 0.0
  %11798 = vmatpush1.xpose.msra.mxu0 %v11780
  %11799 = vmatprep.subr.mxu0 0.0
  %11800 = vmatpush1.xpose.msra.mxu0 %v11777
  %11801 = vmatprep.subr.mxu0 0.0
  %11802 = vmatpush1.xpose.msra.mxu0 %v11774
  %11803 = vmatprep.subr.mxu0 0.0
  %11804 = vmatpush1.xpose.msra.mxu0 %v11771
  %11805 = vmatprep.subr.mxu0 0.0
  %11806 = vmatpush1.xpose.msra.mxu0 %v11768
  %11807 = vmatprep.subr.mxu0 0.0
  %11808 = vmatpush1.xpose.msra.mxu0 %v11765
  %11809 = vmatprep.subr.mxu0 0.0
  %11810 = vmatpush1.xpose.msra.mxu0 %v11762
  %11811 = vmatprep.subr.mxu0 0.0
  %11812 = vmatpush1.xpose.msra.mxu0 %v11759
  %11813 = vmatprep.subr.mxu0 0.0
  %11814 = vmatpush1.xpose.msra.mxu0 %v11756
  %11815 = vmatprep.subr.mxu0 0.0
  %11816 = vmatpush1.xpose.msra.mxu0 %v11753
  %11817 = vmatprep.subr.mxu0 0.0
  %11818 = vmatpush1.xpose.msra.mxu0 %v11750
  %11819 = vmatprep.subr.mxu0 0.0
  %11820 = vmatpush1.xpose.msra.mxu0 %v11747
  %11821 = vmatprep.subr.mxu0 0.0
  %11822 = vmatpush1.xpose.msra.mxu0 %v11744
  %11823 = vmatprep.subr.mxu0 0.0
  %11824 = vmatpush2.xpose.msra.mxu0 0.0
  %11825 = vmatprep.subr.mxu0 0.0
  %11826 = vmatpush2.xpose.msra.mxu0 0.0
  %11827 = vmatprep.subr.mxu0 0.0
  %11828 = vmatpush2.xpose.msra.mxu0 0.0
  %11829 = vmatprep.subr.mxu0 0.0
  %11830 = vmatpush2.xpose.msra.mxu0 0.0
  %11831 = vmatprep.subr.mxu0 0.0
  %11832 = vmatpush2.xpose.msra.mxu0 0.0
  %11833 = vmatprep.subr.mxu0 0.0
  %11834 = vmatpush2.xpose.msra.mxu0 0.0
  %11835 = vmatprep.subr.mxu0 0.0
  %11836 = vmatpush2.xpose.msra.mxu0 0.0
  %11837 = vmatprep.subr.mxu0 0.0
  %11838 = vmatpush2.xpose.msra.mxu0 0.0
  %11839 = vmatprep.subr.mxu0 0.0
  %11840 = vmatpush2.xpose.msra.mxu0 0.0
  %11841 = vmatprep.subr.mxu0 0.0
  %11842 = vmatpush2.xpose.msra.mxu0 0.0
  %11843 = vmatprep.subr.mxu0 0.0
  %11844 = vmatpush2.xpose.msra.mxu0 0.0
  %11845 = vmatprep.subr.mxu0 0.0
  %11846 = vmatpush2.xpose.msra.mxu0 0.0
  %11847 = vmatprep.subr.mxu0 0.0
  %11848 = vmatpush2.xpose.msra.mxu0 0.0
  %11849 = vmatprep.subr.mxu0 0.0
  %11850 = vmatpush2.xpose.msra.mxu0 0.0
  %11851 = vmatprep.subr.mxu0 0.0
  %11852 = vmatpush2.xpose.msra.mxu0 0.0
  %11853 = vmatprep.subr.mxu0 0.0
  %11854 = vmatpush2.xpose.msra.mxu0 0.0
  %11855 = vmatprep.mubr.f32.mxu0 0.0
  %11856 = vmatmul.mubr.f32.gmra.mxu0 %v8871
  %v11857 = vpop.f32.mrf.mxu0
  %v11858 = vadd.f32 0.0, %v11857
  %v11859 = vpop.f32.mrf.mxu0
  %11860 = vmatprep.mubr.f32.mxu0 0.0
  %11861 = vmatmul.mubr.f32.gmra.mxu0 %v8874
  %v11862 = vpop.f32.mrf.mxu0
  %v11863 = vadd.f32 0.0, %v11862
  %v11864 = vpop.f32.mrf.mxu0
  %11865 = vmatprep.mubr.f32.mxu0 0.0
  %11866 = vmatmul.mubr.f32.gmra.mxu0 %v8877
  %v11867 = vpop.f32.mrf.mxu0
  %v11868 = vadd.f32 0.0, %v11867
  %v11869 = vpop.f32.mrf.mxu0
  %11870 = vmatprep.mubr.f32.mxu0 0.0
  %11871 = vmatmul.mubr.f32.gmra.mxu0 %v8880
  %v11872 = vpop.f32.mrf.mxu0
  %v11873 = vadd.f32 0.0, %v11872
  %v11874 = vpop.f32.mrf.mxu0
  %11875 = vdwg.mxu0
  %11877 = vset.pattern.permute.xlu0 0
  %11878 = vperm.xlu0 %11877, %v131
  %v11879 = vpop.permute.xlu0 %11878
  %11882 = vset.pattern.permute.xlu0 0
  %11883 = vperm.xlu0 %11882, %v132
  %v11884 = vpop.permute.xlu0 %11883
  %11887 = vset.pattern.permute.xlu0 0
  %11888 = vperm.xlu0 %11887, %v133
  %v11889 = vpop.permute.xlu0 %11888
  %11892 = vset.pattern.permute.xlu0 0
  %11893 = vperm.xlu0 %11892, %v134
  %v11894 = vpop.permute.xlu0 %11893
  %v11896 = vadd.f32 %v8997, %v11879
  %v11897 = vadd.f32 %v11858, %v11879
  %v11898 = vadd.f32 %v9002, %v11884
  %v11899 = vadd.f32 %v11863, %v11884
  %v11900 = vadd.f32 %v9007, %v11889
  %v11901 = vadd.f32 %v11868, %v11889
  %v11902 = vadd.f32 %v9012, %v11894
  %v11903 = vadd.f32 %v11873, %v11894
  %v11904 = vadd.f32 %v5507, %v11896
  %v11905 = vadd.f32 %v5508, %v11897
  %v11906 = vadd.f32 %v5509, %v11898
  %v11907 = vadd.f32 %v5510, %v11899
  %v11908 = vadd.f32 %v5511, %v11900
  %v11909 = vadd.f32 %v5512, %v11901
  %v11910 = vadd.f32 %v5513, %v11902
  %v11911 = vadd.f32 %v5514, %v11903
  %v11912 = vadd.f32 %v11904, %v11906
  %v11913 = vadd.f32 %v11912, %v11908
  %v11914 = vadd.f32 %v11913, %v11910
  %v11915 = vrot.slane %v11914, 4
  %v11916 = vadd.f32 %v11914, %v11915
  %v11917 = vrot.slane %v11916, 2
  %v11918 = vadd.f32 %v11916, %v11917
  %v11919 = vrot.slane %v11918, 1
  %v11920 = vadd.f32 %v11918, %v11919
  %v11921 = vadd.f32 %v11905, %v11907
  %v11922 = vadd.f32 %v11921, %v11909
  %v11923 = vadd.f32 %v11922, %v11911
  %v11924 = vrot.slane %v11923, 4
  %v11925 = vadd.f32 %v11923, %v11924
  %v11926 = vrot.slane %v11925, 2
  %v11927 = vadd.f32 %v11925, %v11926
  %v11928 = vrot.slane %v11927, 1
  %v11929 = vadd.f32 %v11927, %v11928
  %v11930 = vmul.f32 %v11920, 0.03125
  %v11931 = vmul.f32 %v11929, 0.03125
  %v11932 = vsub.f32 %v11904, %v11930
  %v11933 = vsub.f32 %v11905, %v11931
  %v11934 = vsub.f32 %v11906, %v11930
  %v11935 = vsub.f32 %v11907, %v11931
  %v11936 = vsub.f32 %v11908, %v11930
  %v11937 = vsub.f32 %v11909, %v11931
  %v11938 = vsub.f32 %v11910, %v11930
  %v11939 = vsub.f32 %v11911, %v11931
  %v11940 = vmul.f32 %v11932, %v11932
  %v11941 = vmul.f32 %v11933, %v11933
  %v11942 = vmul.f32 %v11934, %v11934
  %v11943 = vmul.f32 %v11935, %v11935
  %v11944 = vmul.f32 %v11936, %v11936
  %v11945 = vmul.f32 %v11937, %v11937
  %v11946 = vmul.f32 %v11938, %v11938
  %v11947 = vmul.f32 %v11939, %v11939
  %v11948 = vadd.f32 %v11940, %v11942
  %v11949 = vadd.f32 %v11948, %v11944
  %v11950 = vadd.f32 %v11949, %v11946
  %v11951 = vrot.slane %v11950, 4
  %v11952 = vadd.f32 %v11950, %v11951
  %v11953 = vrot.slane %v11952, 2
  %v11954 = vadd.f32 %v11952, %v11953
  %v11955 = vrot.slane %v11954, 1
  %v11956 = vadd.f32 %v11954, %v11955
  %v11957 = vadd.f32 %v11941, %v11943
  %v11958 = vadd.f32 %v11957, %v11945
  %v11959 = vadd.f32 %v11958, %v11947
  %v11960 = vrot.slane %v11959, 4
  %v11961 = vadd.f32 %v11959, %v11960
  %v11962 = vrot.slane %v11961, 2
  %v11963 = vadd.f32 %v11961, %v11962
  %v11964 = vrot.slane %v11963, 1
  %v11965 = vadd.f32 %v11963, %v11964
  %v11966 = vmul.f32 %v11956, 0.03125
  %v11967 = vmul.f32 %v11965, 0.03125
  %v11968 = vadd.f32 %v11966, 1e-05
  %v11969 = vadd.f32 %v11967, 1e-05
  %v11970 = vrsqrt.pop %v11968
  %v11971 = vrsqrt.pop %v11969
  %v11972 = vmul.f32 %v11932, %v11970
  %v11973 = vmul.f32 %v11933, %v11971
  %v11974 = vmul.f32 %v11934, %v11970
  %v11975 = vmul.f32 %v11935, %v11971
  %v11976 = vmul.f32 %v11936, %v11970
  %v11977 = vmul.f32 %v11937, %v11971
  %v11978 = vmul.f32 %v11938, %v11970
  %v11979 = vmul.f32 %v11939, %v11971
  %11981 = vset.pattern.permute.xlu0 0
  %11982 = vperm.xlu0 %11981, %v135
  %v11983 = vpop.permute.xlu0 %11982
  %11986 = vset.pattern.permute.xlu0 0
  %11987 = vperm.xlu0 %11986, %v136
  %v11988 = vpop.permute.xlu0 %11987
  %11991 = vset.pattern.permute.xlu0 0
  %11992 = vperm.xlu0 %11991, %v137
  %v11993 = vpop.permute.xlu0 %11992
  %11996 = vset.pattern.permute.xlu0 0
  %11997 = vperm.xlu0 %11996, %v138
  %v11998 = vpop.permute.xlu0 %11997
  %v12000 = vmul.f32 %v11972, %v11983
  %v12001 = vmul.f32 %v11973, %v11983
  %v12002 = vmul.f32 %v11974, %v11988
  %v12003 = vmul.f32 %v11975, %v11988
  %v12004 = vmul.f32 %v11976, %v11993
  %v12005 = vmul.f32 %v11977, %v11993
  %v12006 = vmul.f32 %v11978, %v11998
  %v12007 = vmul.f32 %v11979, %v11998
  %12009 = vset.pattern.permute.xlu0 0
  %12010 = vperm.xlu0 %12009, %v139
  %v12011 = vpop.permute.xlu0 %12010
  %12014 = vset.pattern.permute.xlu0 0
  %12015 = vperm.xlu0 %12014, %v140
  %v12016 = vpop.permute.xlu0 %12015
  %12019 = vset.pattern.permute.xlu0 0
  %12020 = vperm.xlu0 %12019, %v141
  %v12021 = vpop.permute.xlu0 %12020
  %12024 = vset.pattern.permute.xlu0 0
  %12025 = vperm.xlu0 %12024, %v142
  %v12026 = vpop.permute.xlu0 %12025
  %v12028 = vadd.f32 %v12000, %v12011
  %v12029 = vadd.f32 %v12001, %v12011
  %v12030 = vadd.f32 %v12002, %v12016
  %v12031 = vadd.f32 %v12003, %v12016
  %v12032 = vadd.f32 %v12004, %v12021
  %v12033 = vadd.f32 %v12005, %v12021
  %v12034 = vadd.f32 %v12006, %v12026
  %v12035 = vadd.f32 %v12007, %v12026
  %12037 = vset.pattern.permute.xlu0 0
  %12038 = vperm.xlu0 %12037, %v143
  %v12039 = vpop.permute.xlu0 %12038
  %12042 = vset.pattern.permute.xlu0 0
  %12043 = vperm.xlu0 %12042, %v144
  %v12044 = vpop.permute.xlu0 %12043
  %12047 = vset.pattern.permute.xlu0 0
  %12048 = vperm.xlu0 %12047, %v145
  %v12049 = vpop.permute.xlu0 %12048
  %12052 = vset.pattern.permute.xlu0 0
  %12053 = vperm.xlu0 %12052, %v146
  %v12054 = vpop.permute.xlu0 %12053
  %12057 = vset.pattern.permute.xlu0 0
  %12058 = vperm.xlu0 %12057, %v147
  %v12059 = vpop.permute.xlu0 %12058
  %12062 = vset.pattern.permute.xlu0 0
  %12063 = vperm.xlu0 %12062, %v148
  %v12064 = vpop.permute.xlu0 %12063
  %12067 = vset.pattern.permute.xlu0 0
  %12068 = vperm.xlu0 %12067, %v149
  %v12069 = vpop.permute.xlu0 %12068
  %12072 = vset.pattern.permute.xlu0 0
  %12073 = vperm.xlu0 %12072, %v150
  %v12074 = vpop.permute.xlu0 %12073
  %v12077 = vsel %vm339, %v71, 0
  %v12080 = vsel %vm339, %v72, 0
  %v12083 = vsel %vm339, %v73, 0
  %v12086 = vsel %vm339, %v74, 0
  %v12089 = vsel %vm339, %v75, 0
  %v12092 = vsel %vm339, %v76, 0
  %v12095 = vsel %vm339, %v77, 0
  %v12098 = vsel %vm339, %v78, 0
  %12100 = vmatprep.subr.mxu0 0.0
  %12101 = vmatpush1.msra.mxu0 0.0
  %12102 = vmatprep.subr.mxu0 0.0
  %12103 = vmatpush1.msra.mxu0 0.0
  %12104 = vmatprep.subr.mxu0 0.0
  %12105 = vmatpush1.msra.mxu0 0.0
  %12106 = vmatprep.subr.mxu0 0.0
  %12107 = vmatpush1.msra.mxu0 0.0
  %12108 = vmatprep.subr.mxu0 0.0
  %12109 = vmatpush1.msra.mxu0 0.0
  %12110 = vmatprep.subr.mxu0 0.0
  %12111 = vmatpush1.msra.mxu0 0.0
  %12112 = vmatprep.subr.mxu0 0.0
  %12113 = vmatpush1.msra.mxu0 0.0
  %12114 = vmatprep.subr.mxu0 0.0
  %12115 = vmatpush1.msra.mxu0 0.0
  %12116 = vmatprep.subr.mxu0 0.0
  %12117 = vmatpush1.msra.mxu0 0.0
  %12118 = vmatprep.subr.mxu0 0.0
  %12119 = vmatpush1.msra.mxu0 0.0
  %12120 = vmatprep.subr.mxu0 0.0
  %12121 = vmatpush1.msra.mxu0 0.0
  %12122 = vmatprep.subr.mxu0 0.0
  %12123 = vmatpush1.msra.mxu0 0.0
  %12124 = vmatprep.subr.mxu0 %v12035
  %12125 = vmatpush1.msra.mxu0 %v12034
  %12126 = vmatprep.subr.mxu0 %v12033
  %12127 = vmatpush1.msra.mxu0 %v12032
  %12128 = vmatprep.subr.mxu0 %v12031
  %12129 = vmatpush1.msra.mxu0 %v12030
  %12130 = vmatprep.subr.mxu0 %v12029
  %12131 = vmatpush1.msra.mxu0 %v12028
  %12132 = vmatprep.subr.mxu0 0.0
  %12133 = vmatpush2.msra.mxu0 0.0
  %12134 = vmatprep.subr.mxu0 0.0
  %12135 = vmatpush2.msra.mxu0 0.0
  %12136 = vmatprep.subr.mxu0 0.0
  %12137 = vmatpush2.msra.mxu0 0.0
  %12138 = vmatprep.subr.mxu0 0.0
  %12139 = vmatpush2.msra.mxu0 0.0
  %12140 = vmatprep.subr.mxu0 0.0
  %12141 = vmatpush2.msra.mxu0 0.0
  %12142 = vmatprep.subr.mxu0 0.0
  %12143 = vmatpush2.msra.mxu0 0.0
  %12144 = vmatprep.subr.mxu0 0.0
  %12145 = vmatpush2.msra.mxu0 0.0
  %12146 = vmatprep.subr.mxu0 0.0
  %12147 = vmatpush2.msra.mxu0 0.0
  %12148 = vmatprep.subr.mxu0 0.0
  %12149 = vmatpush2.msra.mxu0 0.0
  %12150 = vmatprep.subr.mxu0 0.0
  %12151 = vmatpush2.msra.mxu0 0.0
  %12152 = vmatprep.subr.mxu0 0.0
  %12153 = vmatpush2.msra.mxu0 0.0
  %12154 = vmatprep.subr.mxu0 0.0
  %12155 = vmatpush2.msra.mxu0 0.0
  %12156 = vmatprep.subr.mxu0 0.0
  %12157 = vmatpush2.msra.mxu0 0.0
  %12158 = vmatprep.subr.mxu0 0.0
  %12159 = vmatpush2.msra.mxu0 0.0
  %12160 = vmatprep.subr.mxu0 0.0
  %12161 = vmatpush2.msra.mxu0 0.0
  %12162 = vmatprep.subr.mxu0 0.0
  %12163 = vmatpush2.msra.mxu0 0.0
  %12164 = vmatprep.mubr.f32.mxu0 0.0
  %12165 = vmatmul.mubr.f32.gmra.mxu0 %v12077
  %v12166 = vpop.f32.mrf.mxu0
  %v12167 = vadd.f32 %v12039, %v12166
  %v12168 = vpop.f32.mrf.mxu0
  %v12169 = vadd.f32 %v12039, %v12168
  %12170 = vmatprep.mubr.f32.mxu0 0.0
  %12171 = vmatmul.mubr.f32.gmra.mxu0 %v12080
  %v12172 = vpop.f32.mrf.mxu0
  %v12173 = vadd.f32 %v12044, %v12172
  %v12174 = vpop.f32.mrf.mxu0
  %v12175 = vadd.f32 %v12044, %v12174
  %12176 = vmatprep.mubr.f32.mxu0 0.0
  %12177 = vmatmul.mubr.f32.gmra.mxu0 %v12083
  %v12178 = vpop.f32.mrf.mxu0
  %v12179 = vadd.f32 %v12049, %v12178
  %v12180 = vpop.f32.mrf.mxu0
  %v12181 = vadd.f32 %v12049, %v12180
  %12182 = vmatprep.mubr.f32.mxu0 0.0
  %12183 = vmatmul.mubr.f32.gmra.mxu0 %v12086
  %v12184 = vpop.f32.mrf.mxu0
  %v12185 = vadd.f32 %v12054, %v12184
  %v12186 = vpop.f32.mrf.mxu0
  %v12187 = vadd.f32 %v12054, %v12186
  %12188 = vmatprep.mubr.f32.mxu0 0.0
  %12189 = vmatmul.mubr.f32.gmra.mxu0 %v12089
  %v12190 = vpop.f32.mrf.mxu0
  %v12191 = vadd.f32 %v12059, %v12190
  %v12192 = vpop.f32.mrf.mxu0
  %v12193 = vadd.f32 %v12059, %v12192
  %12194 = vmatprep.mubr.f32.mxu0 0.0
  %12195 = vmatmul.mubr.f32.gmra.mxu0 %v12092
  %v12196 = vpop.f32.mrf.mxu0
  %v12197 = vadd.f32 %v12064, %v12196
  %v12198 = vpop.f32.mrf.mxu0
  %v12199 = vadd.f32 %v12064, %v12198
  %12200 = vmatprep.mubr.f32.mxu0 0.0
  %12201 = vmatmul.mubr.f32.gmra.mxu0 %v12095
  %v12202 = vpop.f32.mrf.mxu0
  %v12203 = vadd.f32 %v12069, %v12202
  %v12204 = vpop.f32.mrf.mxu0
  %v12205 = vadd.f32 %v12069, %v12204
  %12206 = vmatprep.mubr.f32.mxu0 0.0
  %12207 = vmatmul.mubr.f32.gmra.mxu0 %v12098
  %v12208 = vpop.f32.mrf.mxu0
  %v12209 = vadd.f32 %v12074, %v12208
  %v12210 = vpop.f32.mrf.mxu0
  %v12211 = vadd.f32 %v12074, %v12210
  %12212 = vdwg.mxu0
  %v12213 = vmax.f32 %v12167, 0.0
  %v12214 = vmax.f32 %v12169, 0.0
  %v12215 = vmax.f32 %v12173, 0.0
  %v12216 = vmax.f32 %v12175, 0.0
  %v12217 = vmax.f32 %v12179, 0.0
  %v12218 = vmax.f32 %v12181, 0.0
  %v12219 = vmax.f32 %v12185, 0.0
  %v12220 = vmax.f32 %v12187, 0.0
  %v12221 = vmax.f32 %v12191, 0.0
  %v12222 = vmax.f32 %v12193, 0.0
  %v12223 = vmax.f32 %v12197, 0.0
  %v12224 = vmax.f32 %v12199, 0.0
  %v12225 = vmax.f32 %v12203, 0.0
  %v12226 = vmax.f32 %v12205, 0.0
  %v12227 = vmax.f32 %v12209, 0.0
  %v12228 = vmax.f32 %v12211, 0.0
  %v12229 = vld [vmem:[%s4] sm:$0xff]
  %v12230 = vld [vmem:[%s4 + $0x8] sm:$0xff]
  %v12231 = vld [vmem:[%s4 + $0x10] sm:$0xff]
  %v12232 = vld [vmem:[%s4 + $0x18] sm:$0xff]
  %vm12233 = vcmask 523264
  %v12235 = vsel %vm12233, %v12229, 0
  %v12238 = vsel %vm12233, %v12230, 0
  %v12241 = vsel %vm12233, %v12231, 0
  %v12244 = vsel %vm12233, %v12232, 0
  %12246 = vmatprep.subr.mxu0 0.0
  %12247 = vmatpush1.msra.mxu0 0.0
  %12248 = vmatprep.subr.mxu0 0.0
  %12249 = vmatpush1.msra.mxu0 0.0
  %12250 = vmatprep.subr.mxu0 0.0
  %12251 = vmatpush1.msra.mxu0 0.0
  %12252 = vmatprep.subr.mxu0 0.0
  %12253 = vmatpush1.msra.mxu0 0.0
  %12254 = vmatprep.subr.mxu0 0.0
  %12255 = vmatpush1.msra.mxu0 0.0
  %12256 = vmatprep.subr.mxu0 0.0
  %12257 = vmatpush1.msra.mxu0 0.0
  %12258 = vmatprep.subr.mxu0 0.0
  %12259 = vmatpush1.msra.mxu0 0.0
  %12260 = vmatprep.subr.mxu0 0.0
  %12261 = vmatpush1.msra.mxu0 0.0
  %12262 = vmatprep.subr.mxu0 %v12228
  %12263 = vmatpush1.msra.mxu0 %v12227
  %12264 = vmatprep.subr.mxu0 %v12226
  %12265 = vmatpush1.msra.mxu0 %v12225
  %12266 = vmatprep.subr.mxu0 %v12224
  %12267 = vmatpush1.msra.mxu0 %v12223
  %12268 = vmatprep.subr.mxu0 %v12222
  %12269 = vmatpush1.msra.mxu0 %v12221
  %12270 = vmatprep.subr.mxu0 %v12220
  %12271 = vmatpush1.msra.mxu0 %v12219
  %12272 = vmatprep.subr.mxu0 %v12218
  %12273 = vmatpush1.msra.mxu0 %v12217
  %12274 = vmatprep.subr.mxu0 %v12216
  %12275 = vmatpush1.msra.mxu0 %v12215
  %12276 = vmatprep.subr.mxu0 %v12214
  %12277 = vmatpush1.msra.mxu0 %v12213
  %12278 = vmatprep.subr.mxu0 0.0
  %12279 = vmatpush2.msra.mxu0 0.0
  %12280 = vmatprep.subr.mxu0 0.0
  %12281 = vmatpush2.msra.mxu0 0.0
  %12282 = vmatprep.subr.mxu0 0.0
  %12283 = vmatpush2.msra.mxu0 0.0
  %12284 = vmatprep.subr.mxu0 0.0
  %12285 = vmatpush2.msra.mxu0 0.0
  %12286 = vmatprep.subr.mxu0 0.0
  %12287 = vmatpush2.msra.mxu0 0.0
  %12288 = vmatprep.subr.mxu0 0.0
  %12289 = vmatpush2.msra.mxu0 0.0
  %12290 = vmatprep.subr.mxu0 0.0
  %12291 = vmatpush2.msra.mxu0 0.0
  %12292 = vmatprep.subr.mxu0 0.0
  %12293 = vmatpush2.msra.mxu0 0.0
  %12294 = vmatprep.subr.mxu0 0.0
  %12295 = vmatpush2.msra.mxu0 0.0
  %12296 = vmatprep.subr.mxu0 0.0
  %12297 = vmatpush2.msra.mxu0 0.0
  %12298 = vmatprep.subr.mxu0 0.0
  %12299 = vmatpush2.msra.mxu0 0.0
  %12300 = vmatprep.subr.mxu0 0.0
  %12301 = vmatpush2.msra.mxu0 0.0
  %12302 = vmatprep.subr.mxu0 0.0
  %12303 = vmatpush2.msra.mxu0 0.0
  %12304 = vmatprep.subr.mxu0 0.0
  %12305 = vmatpush2.msra.mxu0 0.0
  %12306 = vmatprep.subr.mxu0 0.0
  %12307 = vmatpush2.msra.mxu0 0.0
  %12308 = vmatprep.subr.mxu0 0.0
  %12309 = vmatpush2.msra.mxu0 0.0
  %12310 = vmatprep.mubr.f32.mxu0 0.0
  %12311 = vmatmul.mubr.f32.gmra.mxu0 %v12235
  %v12312 = vpop.f32.mrf.mxu0
  %v12313 = vadd.f32 0.0, %v12312
  %v12314 = vpop.f32.mrf.mxu0
  %v12315 = vadd.f32 0.0, %v12314
  %12316 = vmatprep.mubr.f32.mxu0 0.0
  %12317 = vmatmul.mubr.f32.gmra.mxu0 %v12238
  %v12318 = vpop.f32.mrf.mxu0
  %v12319 = vadd.f32 0.0, %v12318
  %v12320 = vpop.f32.mrf.mxu0
  %v12321 = vadd.f32 0.0, %v12320
  %12322 = vmatprep.mubr.f32.mxu0 0.0
  %12323 = vmatmul.mubr.f32.gmra.mxu0 %v12241
  %v12324 = vpop.f32.mrf.mxu0
  %v12325 = vadd.f32 0.0, %v12324
  %v12326 = vpop.f32.mrf.mxu0
  %v12327 = vadd.f32 0.0, %v12326
  %12328 = vmatprep.mubr.f32.mxu0 0.0
  %12329 = vmatmul.mubr.f32.gmra.mxu0 %v12244
  %v12330 = vpop.f32.mrf.mxu0
  %v12331 = vadd.f32 0.0, %v12330
  %v12332 = vpop.f32.mrf.mxu0
  %v12333 = vadd.f32 0.0, %v12332
  %12334 = vdwg.mxu0
  %v12335 = vadd.f32 %v12028, %v12313
  %v12336 = vadd.f32 %v12029, %v12315
  %v12337 = vadd.f32 %v12030, %v12319
  %v12338 = vadd.f32 %v12031, %v12321
  %v12339 = vadd.f32 %v12032, %v12325
  %v12340 = vadd.f32 %v12033, %v12327
  %v12341 = vadd.f32 %v12034, %v12331
  %v12342 = vadd.f32 %v12035, %v12333
  %12344 = vset.pattern.permute.xlu0 0
  %12345 = vperm.xlu0 %12344, %v151
  %v12346 = vpop.permute.xlu0 %12345
  %12349 = vset.pattern.permute.xlu0 0
  %12350 = vperm.xlu0 %12349, %v152
  %v12351 = vpop.permute.xlu0 %12350
  %12354 = vset.pattern.permute.xlu0 0
  %12355 = vperm.xlu0 %12354, %v153
  %v12356 = vpop.permute.xlu0 %12355
  %12359 = vset.pattern.permute.xlu0 0
  %12360 = vperm.xlu0 %12359, %v154
  %v12361 = vpop.permute.xlu0 %12360
  %v12363 = vadd.f32 %v12335, %v12346
  %v12364 = vadd.f32 %v12336, %v12346
  %v12365 = vadd.f32 %v12337, %v12351
  %v12366 = vadd.f32 %v12338, %v12351
  %v12367 = vadd.f32 %v12339, %v12356
  %v12368 = vadd.f32 %v12340, %v12356
  %v12369 = vadd.f32 %v12341, %v12361
  %v12370 = vadd.f32 %v12342, %v12361
  %12371 = vst [vmem:[%s6] sm:$0xff] %v12363
  %12372 = vst [vmem:[%s6 + $0x8] sm:$0xff] %v12364
  %12373 = vst [vmem:[%s6 + $0x10] sm:$0xff] %v12365
  %12374 = vst [vmem:[%s6 + $0x18] sm:$0xff] %v12366
  %12375 = vst [vmem:[%s6 + $0x20] sm:$0xff] %v12367
  %12376 = vst [vmem:[%s6 + $0x28] sm:$0xff] %v12368
  %12377 = vst [vmem:[%s6 + $0x30] sm:$0xff] %v12369
  %12378 = vst [vmem:[%s6 + $0x38] sm:$0xff] %v12370
  // Predicated region
  $region26: #{decoder_layer_forward.1} parent=0 // pred_check
    _
  $region27: #{decoder_layer_forward.1} parent=0 // pred_check_branch
    %12380 = sbr.rel (0) target = $region29
  $region28: #{decoder_layer_forward.1} parent=0 // pred_region
    _
  $region29: #{decoder_layer_forward.1} parent=0 // pred_fallthru
    _
  // Predicated region
  $region30: #{decoder_layer_forward.1} parent=0 // pred_check
    _
  $region31: #{decoder_layer_forward.1} parent=0 // pred_check_branch
    %12382 = sbr.rel (0) target = $region33
  $region32: #{decoder_layer_forward.1} parent=0 // pred_region
    _
  $region33: #{decoder_layer_forward.1} parent=0 // pred_fallthru
    _

</llo_original>
